<compile_context>
chip_gen: v5e
topology: v5e:2x2
jax: 0.10.0
libtpu: 0.0.40
codegen_flags: <defaults>
</compile_context>

<pallas_src>
import jax
import jax.numpy as jnp
import numpy as np
from jax.experimental import pallas as pl
from jax.experimental.pallas import tpu as pltpu

EPS = 1e-5   # PyTorch InstanceNorm2d default (affine=False, no running stats)
LANE = 128


def _round_up(x, m):
    return ((x + m - 1) // m) * m


def _pad_lane(c):
    return max(LANE, _round_up(c, LANE))


def _make_block_kernel(H, W, Cp):
    """Fused (pad->conv3x3->IN->ReLU->pad->conv3x3->IN) + residual.

    One grid step == one sample.  NHWC with Cp (lane-dense) channels.
    """
    HW = H * W

    def kernel(x_ref, w1_ref, b1_ref, w2_ref, b2_ref, o_ref, pad_ref, acc_ref):

        def fill_pad(get_rows):
            # ReflectionPad2d(1).  Every padded element is written exactly once
            # from source-row values (no pad_ref read-back RAW chain).
            body = get_rows(0, H)                                # (H, W, Cp) bf16
            pad_ref[1:H + 1, 1:W + 1, :] = body
            pad_ref[1:H + 1, 0:1, :] = body[:, 1:2, :]
            pad_ref[1:H + 1, W + 1:W + 2, :] = body[:, W - 2:W - 1, :]
            top = get_rows(1, 2)                                 # (1, W, Cp)
            pad_ref[0:1, 1:W + 1, :] = top
            pad_ref[0:1, 0:1, :] = top[:, 1:2, :]
            pad_ref[0:1, W + 1:W + 2, :] = top[:, W - 2:W - 1, :]
            bot = get_rows(H - 2, H - 1)                         # (1, W, Cp)
            pad_ref[H + 1:H + 2, 1:W + 1, :] = bot
            pad_ref[H + 1:H + 2, 0:1, :] = bot[:, 1:2, :]
            pad_ref[H + 1:H + 2, W + 1:W + 2, :] = bot[:, W - 2:W - 1, :]

        def conv_in(w_ref, b_ref):
            # 3x3 conv as 9 accumulated K=Cp MXU matmuls taken directly from
            # tap slices of the padded buffer (no 9*Cp im2col slab).
            # bf16 operands, f32 accumulation into the VMEM accumulator.
            for t in range(9):
                dy, dx = t // 3, t % 3
                tap = pad_ref[dy:dy + H, dx:dx + W, :].reshape(HW, Cp)
                part = jnp.dot(tap, w_ref[t],
                               preferred_element_type=jnp.float32)
                if t == 0:
                    acc_ref[...] = part
                else:
                    acc_ref[...] += part
            y = acc_ref[...] + b_ref[...]                        # (HW, Cp) f32
            # InstanceNorm2d (affine=False): single pass, var = E[y^2]-mean^2
            # clamped at 0 -> fewer simultaneously-live full-image temporaries.
            mean = jnp.mean(y, axis=0, keepdims=True)
            mean_sq = jnp.mean(y * y, axis=0, keepdims=True)
            var = jnp.maximum(mean_sq - mean * mean, 0.0)
            return (y - mean) * jax.lax.rsqrt(var + EPS)         # (HW, Cp) f32

        # Stage 1: reflect-pad(x) -> conv1 -> IN -> ReLU
        # (x is read as row slices; no full-image x value held across stages.)
        fill_pad(lambda r0, r1: x_ref[0, r0:r1, :, :].astype(jnp.bfloat16))
        h = jnp.maximum(conv_in(w1_ref, b1_ref), 0.0)
        h = h.astype(jnp.bfloat16).reshape(H, W, Cp)
        # Stage 2: reflect-pad(h) -> conv2 -> IN   (pad/acc scratch reused)
        fill_pad(lambda r0, r1: h[r0:r1, :, :])
        y = conv_in(w2_ref, b2_ref)
        # Residual add: re-read x from its VMEM block; lane-dense store.
        o_ref[0] = (x_ref[0] + y.reshape(H, W, Cp)).astype(o_ref.dtype)

    return kernel


def _pack_weight(w_hwio, Cp):
    """HWIO (3,3,Cin,Cout) -> (9, Cp, Cp) bf16 per-tap weights, zero-padded."""
    kh, kw, ci, co = w_hwio.shape
    w = jnp.pad(w_hwio.astype(jnp.float32),
                ((0, 0), (0, 0), (0, Cp - ci), (0, Cp - co)))
    return w.reshape(kh * kw, Cp, Cp).astype(jnp.bfloat16)


def residual_block_pallas(x_nchw, params):
    """Full ResidualBlock forward.  x_nchw: (N, C, H, W) float32."""
    N, C, H, W = x_nchw.shape
    Cp = _pad_lane(C)
    PW = _round_up(W + 2, 8)          # pad-buffer width, sublane aligned

    # NCHW <-> NHWC transposes are interface glue only.
    x = jnp.transpose(x_nchw, (0, 2, 3, 1))                      # -> NHWC f32
    if Cp != C:
        x = jnp.pad(x, ((0, 0), (0, 0), (0, 0), (0, Cp - C)))

    w1 = _pack_weight(params["w1"], Cp)                          # (9, Cp, Cp) bf16
    w2 = _pack_weight(params["w2"], Cp)
    b1 = jnp.pad(params["b1"].astype(jnp.float32), (0, Cp - C)).reshape(1, Cp)
    b2 = jnp.pad(params["b2"].astype(jnp.float32), (0, Cp - C)).reshape(1, Cp)

    kernel = _make_block_kernel(H, W, Cp)

    # Scoped-VMEM budget: scratch + double-buffered in/out blocks + weights,
    # with headroom, clamped so the request stays valid on v7x (64 MiB).
    bytes_pad = (H + 2) * PW * Cp * 2
    bytes_acc = H * W * Cp * 4
    bytes_blk = H * W * Cp * 4                     # x block == out block
    bytes_w = 9 * Cp * Cp * 2
    bytes_b = Cp * 4
    needed = (bytes_pad + bytes_acc
              + 2 * (2 * bytes_blk + 2 * bytes_w + 2 * bytes_b))
    vmem_limit = int(min(max(needed * 5 // 4 + (2 << 20), 32 << 20), 64 << 20))

    out = pl.pallas_call(
        kernel,
        out_shape=jax.ShapeDtypeStruct((N, H, W, Cp), x.dtype),
        grid_spec=pltpu.PrefetchScalarGridSpec(
            num_scalar_prefetch=0,
            grid=(N,),
            in_specs=[
                pl.BlockSpec((1, H, W, Cp), lambda n: (n, 0, 0, 0)),  # x
                pl.BlockSpec((9, Cp, Cp), lambda n: (0, 0, 0)),       # w1
                pl.BlockSpec((1, Cp), lambda n: (0, 0)),              # b1
                pl.BlockSpec((9, Cp, Cp), lambda n: (0, 0, 0)),       # w2
                pl.BlockSpec((1, Cp), lambda n: (0, 0)),              # b2
            ],
            out_specs=pl.BlockSpec((1, H, W, Cp), lambda n: (n, 0, 0, 0)),
            scratch_shapes=[
                pltpu.VMEM((H + 2, PW, Cp), jnp.bfloat16),   # padded activations
                pltpu.VMEM((H * W, Cp), jnp.float32),        # conv accumulator
            ],
        ),
        compiler_params=pltpu.CompilerParams(
            dimension_semantics=("parallel",),
            vmem_limit_bytes=vmem_limit),
    )(x, w1, b1, w2, b2)

    out = out[..., :C]
    return jnp.transpose(out, (0, 3, 1, 2))                      # -> NCHW


# ----------------------------- reference -----------------------------------
def _ref_block(x, w1_oihw, b1, w2_oihw, b2):
    def conv_in(x, w, b):
        xp = jnp.pad(x, ((0, 0), (0, 0), (1, 1), (1, 1)), mode="reflect")
        y = jax.lax.conv_general_dilated(
            xp, w, (1, 1), "VALID",
            dimension_numbers=("NCHW", "OIHW", "NCHW"))
        y = y + b.reshape(1, -1, 1, 1)
        m = y.mean(axis=(2, 3), keepdims=True)
        v = ((y - m) ** 2).mean(axis=(2, 3), keepdims=True)
        return (y - m) * jax.lax.rsqrt(v + EPS)

    h = jnp.maximum(conv_in(x, w1_oihw, b1), 0.0)
    return x + conv_in(h, w2_oihw, b2)


# ------------------------------- main ---------------------------------------
if __name__ == "__main__":
    N, C, H, W = 2, 4, 16, 16

    key = jax.random.PRNGKey(0)
    kx, kw1, kb1, kw2, kb2 = jax.random.split(key, 5)

    x = jax.random.normal(kx, (N, C, H, W), dtype=jnp.float32)

    # Deterministic synthetic parameters (PyTorch conv weight layout OIHW).
    w1_oihw = jax.random.normal(kw1, (C, C, 3, 3), dtype=jnp.float32) * 0.1
    b1 = jax.random.normal(kb1, (C,), dtype=jnp.float32) * 0.1
    w2_oihw = jax.random.normal(kw2, (C, C, 3, 3), dtype=jnp.float32) * 0.1
    b2 = jax.random.normal(kb2, (C,), dtype=jnp.float32) * 0.1

    params = {
        # kernel expects HWIO: (kh, kw, C_in, C_out)
        "w1": jnp.transpose(w1_oihw, (2, 3, 1, 0)),
        "b1": b1,
        "w2": jnp.transpose(w2_oihw, (2, 3, 1, 0)),
        "b2": b2,
    }

    fwd = jax.jit(residual_block_pallas)
    out = jax.block_until_ready(fwd(x, params))

    ref = jax.block_until_ready(_ref_block(x, w1_oihw, b1, w2_oihw, b2))
    # bf16 MXU operands (f32 accumulation / IN stats) -> relaxed tolerance.
    np.testing.assert_allclose(np.asarray(out), np.asarray(ref),
                               atol=2e-2, rtol=2e-2)

    print("KERNEL_OK")
</pallas_src>

<mosaic_0001>
module attributes {stable_mosaic.version = 11 : i64} {
  func.func @kernel(%arg0: i32, %arg1: memref<1x16x16x128xf32, #tpu.memory_space<vmem>>, %arg2: memref<9x128x128xbf16, #tpu.memory_space<vmem>>, %arg3: memref<1x128xf32, #tpu.memory_space<vmem>>, %arg4: memref<9x128x128xbf16, #tpu.memory_space<vmem>>, %arg5: memref<1x128xf32, #tpu.memory_space<vmem>>, %arg6: memref<1x16x16x128xf32, #tpu.memory_space<vmem>>, %arg7: memref<18x24x128xbf16, #tpu.memory_space<vmem>>, %arg8: memref<256x128xf32, #tpu.memory_space<vmem>>) attributes {dimension_semantics = [#tpu.dimension_semantics<parallel>], iteration_bounds = array<i64: 2>, scalar_prefetch = 0 : i64, scratch_operands = 2 : i64, tpu.core_type = #tpu.core_type<tc>, window_params = [{transform_indices = @transform_0, window_bounds = array<i64: 1, 16, 16, 128>}, {pipeline_mode = #tpu.pipeline_mode<synchronous>, transform_indices = @transform_1, window_bounds = array<i64: 9, 128, 128>}, {pipeline_mode = #tpu.pipeline_mode<synchronous>, transform_indices = @transform_2, window_bounds = array<i64: 1, 128>}, {pipeline_mode = #tpu.pipeline_mode<synchronous>, transform_indices = @transform_3, window_bounds = array<i64: 9, 128, 128>}, {pipeline_mode = #tpu.pipeline_mode<synchronous>, transform_indices = @transform_4, window_bounds = array<i64: 1, 128>}, {transform_indices = @transform_5, window_bounds = array<i64: 1, 16, 16, 128>}]} {
    %c0 = arith.constant 0 : index
    %c0_0 = arith.constant 0 : index
    %c0_1 = arith.constant 0 : index
    %c0_2 = arith.constant 0 : index
    %0 = vector.load %arg1[%c0, %c0_0, %c0_1, %c0_2] : memref<1x16x16x128xf32, #tpu.memory_space<vmem>>, vector<1x16x16x128xf32>
    %1 = vector.shape_cast %0 : vector<1x16x16x128xf32> to vector<16x16x128xf32>
    %2 = arith.truncf %1 : vector<16x16x128xf32> to vector<16x16x128xbf16>
    %c1 = arith.constant 1 : index
    %c1_3 = arith.constant 1 : index
    %c0_4 = arith.constant 0 : index
    %3 = vector.load %arg7[%c1, %c1_3, %c0_4] : memref<18x24x128xbf16, #tpu.memory_space<vmem>>, vector<16x16x128xbf16>
    tpu.vector_store %arg7[%c1, %c1_3, %c0_4], %2 {strides = array<i32>} : memref<18x24x128xbf16, #tpu.memory_space<vmem>>, vector<16x16x128xbf16>,
    %4 = vector.extract_strided_slice %2 {offsets = [0, 1, 0], sizes = [16, 1, 128], strides = [1, 1, 1]} : vector<16x16x128xbf16> to vector<16x1x128xbf16>
    %c1_5 = arith.constant 1 : index
    %c0_6 = arith.constant 0 : index
    %c0_7 = arith.constant 0 : index
    %5 = vector.load %arg7[%c1_5, %c0_6, %c0_7] : memref<18x24x128xbf16, #tpu.memory_space<vmem>>, vector<16x1x128xbf16>
    tpu.vector_store %arg7[%c1_5, %c0_6, %c0_7], %4 {strides = array<i32>} : memref<18x24x128xbf16, #tpu.memory_space<vmem>>, vector<16x1x128xbf16>,
    %6 = vector.extract_strided_slice %2 {offsets = [0, 14, 0], sizes = [16, 1, 128], strides = [1, 1, 1]} : vector<16x16x128xbf16> to vector<16x1x128xbf16>
    %c1_8 = arith.constant 1 : index
    %c17 = arith.constant 17 : index
    %c0_9 = arith.constant 0 : index
    %7 = vector.load %arg7[%c1_8, %c17, %c0_9] : memref<18x24x128xbf16, #tpu.memory_space<vmem>>, vector<16x1x128xbf16>
    tpu.vector_store %arg7[%c1_8, %c17, %c0_9], %6 {strides = array<i32>} : memref<18x24x128xbf16, #tpu.memory_space<vmem>>, vector<16x1x128xbf16>,
    %c0_10 = arith.constant 0 : index
    %c1_11 = arith.constant 1 : index
    %c0_12 = arith.constant 0 : index
    %c0_13 = arith.constant 0 : index
    %8 = vector.load %arg1[%c0_10, %c1_11, %c0_12, %c0_13] : memref<1x16x16x128xf32, #tpu.memory_space<vmem>>, vector<1x1x16x128xf32>
    %9 = vector.shape_cast %8 : vector<1x1x16x128xf32> to vector<1x16x128xf32>
    %10 = arith.truncf %9 : vector<1x16x128xf32> to vector<1x16x128xbf16>
    %c0_14 = arith.constant 0 : index
    %c1_15 = arith.constant 1 : index
    %c0_16 = arith.constant 0 : index
    %11 = vector.load %arg7[%c0_14, %c1_15, %c0_16] : memref<18x24x128xbf16, #tpu.memory_space<vmem>>, vector<1x16x128xbf16>
    tpu.vector_store %arg7[%c0_14, %c1_15, %c0_16], %10 {strides = array<i32>} : memref<18x24x128xbf16, #tpu.memory_space<vmem>>, vector<1x16x128xbf16>,
    %12 = vector.extract_strided_slice %10 {offsets = [0, 1, 0], sizes = [1, 1, 128], strides = [1, 1, 1]} : vector<1x16x128xbf16> to vector<1x1x128xbf16>
    %c0_17 = arith.constant 0 : index
    %c0_18 = arith.constant 0 : index
    %c0_19 = arith.constant 0 : index
    %13 = vector.load %arg7[%c0_17, %c0_18, %c0_19] : memref<18x24x128xbf16, #tpu.memory_space<vmem>>, vector<1x1x128xbf16>
    tpu.vector_store %arg7[%c0_17, %c0_18, %c0_19], %12 {strides = array<i32>} : memref<18x24x128xbf16, #tpu.memory_space<vmem>>, vector<1x1x128xbf16>,
    %14 = vector.extract_strided_slice %10 {offsets = [0, 14, 0], sizes = [1, 1, 128], strides = [1, 1, 1]} : vector<1x16x128xbf16> to vector<1x1x128xbf16>
    %c0_20 = arith.constant 0 : index
    %c17_21 = arith.constant 17 : index
    %c0_22 = arith.constant 0 : index
    %15 = vector.load %arg7[%c0_20, %c17_21, %c0_22] : memref<18x24x128xbf16, #tpu.memory_space<vmem>>, vector<1x1x128xbf16>
    tpu.vector_store %arg7[%c0_20, %c17_21, %c0_22], %14 {strides = array<i32>} : memref<18x24x128xbf16, #tpu.memory_space<vmem>>, vector<1x1x128xbf16>,
    %c0_23 = arith.constant 0 : index
    %c14 = arith.constant 14 : index
    %c0_24 = arith.constant 0 : index
    %c0_25 = arith.constant 0 : index
    %16 = vector.load %arg1[%c0_23, %c14, %c0_24, %c0_25] : memref<1x16x16x128xf32, #tpu.memory_space<vmem>>, vector<1x1x16x128xf32>
    %17 = vector.shape_cast %16 : vector<1x1x16x128xf32> to vector<1x16x128xf32>
    %18 = arith.truncf %17 : vector<1x16x128xf32> to vector<1x16x128xbf16>
    %c17_26 = arith.constant 17 : index
    %c1_27 = arith.constant 1 : index
    %c0_28 = arith.constant 0 : index
    %19 = vector.load %arg7[%c17_26, %c1_27, %c0_28] : memref<18x24x128xbf16, #tpu.memory_space<vmem>>, vector<1x16x128xbf16>
    tpu.vector_store %arg7[%c17_26, %c1_27, %c0_28], %18 {strides = array<i32>} : memref<18x24x128xbf16, #tpu.memory_space<vmem>>, vector<1x16x128xbf16>,
    %20 = vector.extract_strided_slice %18 {offsets = [0, 1, 0], sizes = [1, 1, 128], strides = [1, 1, 1]} : vector<1x16x128xbf16> to vector<1x1x128xbf16>
    %c17_29 = arith.constant 17 : index
    %c0_30 = arith.constant 0 : index
    %c0_31 = arith.constant 0 : index
    %21 = vector.load %arg7[%c17_29, %c0_30, %c0_31] : memref<18x24x128xbf16, #tpu.memory_space<vmem>>, vector<1x1x128xbf16>
    tpu.vector_store %arg7[%c17_29, %c0_30, %c0_31], %20 {strides = array<i32>} : memref<18x24x128xbf16, #tpu.memory_space<vmem>>, vector<1x1x128xbf16>,
    %22 = vector.extract_strided_slice %18 {offsets = [0, 14, 0], sizes = [1, 1, 128], strides = [1, 1, 1]} : vector<1x16x128xbf16> to vector<1x1x128xbf16>
    %c17_32 = arith.constant 17 : index
    %c17_33 = arith.constant 17 : index
    %c0_34 = arith.constant 0 : index
    %23 = vector.load %arg7[%c17_32, %c17_33, %c0_34] : memref<18x24x128xbf16, #tpu.memory_space<vmem>>, vector<1x1x128xbf16>
    tpu.vector_store %arg7[%c17_32, %c17_33, %c0_34], %22 {strides = array<i32>} : memref<18x24x128xbf16, #tpu.memory_space<vmem>>, vector<1x1x128xbf16>,
    %c0_35 = arith.constant 0 : index
    %c0_36 = arith.constant 0 : index
    %c0_37 = arith.constant 0 : index
    %24 = vector.load %arg7[%c0_35, %c0_36, %c0_37] : memref<18x24x128xbf16, #tpu.memory_space<vmem>>, vector<16x16x128xbf16>
    %25 = vector.shape_cast %24 : vector<16x16x128xbf16> to vector<256x128xbf16>
    %c0_38 = arith.constant 0 : index
    %c0_39 = arith.constant 0 : index
    %c0_40 = arith.constant 0 : index
    %26 = vector.load %arg2[%c0_38, %c0_39, %c0_40] : memref<9x128x128xbf16, #tpu.memory_space<vmem>>, vector<1x128x128xbf16>
    %27 = vector.shape_cast %26 : vector<1x128x128xbf16> to vector<128x128xbf16>
    %cst = arith.constant dense<0.000000e+00> : vector<256x128xf32>
    %28 = tpu.matmul %25, %27, %cst {dimension_numbers = #tpu.dot_dimension_numbers<[1], [0], [0], [1], [0, 0, 1, 1], [], []>} : vector<256x128xbf16>, vector<128x128xbf16>, vector<256x128xf32> -> vector<256x128xf32>
    %c0_41 = arith.constant 0 : index
    %c0_42 = arith.constant 0 : index
    %29 = vector.load %arg8[%c0_41, %c0_42] : memref<256x128xf32, #tpu.memory_space<vmem>>, vector<256x128xf32>
    tpu.vector_store %arg8[%c0_41, %c0_42], %28 {strides = array<i32>} : memref<256x128xf32, #tpu.memory_space<vmem>>, vector<256x128xf32>,
    %c0_43 = arith.constant 0 : index
    %c1_44 = arith.constant 1 : index
    %c0_45 = arith.constant 0 : index
    %30 = vector.load %arg7[%c0_43, %c1_44, %c0_45] : memref<18x24x128xbf16, #tpu.memory_space<vmem>>, vector<16x16x128xbf16>
    %31 = vector.shape_cast %30 : vector<16x16x128xbf16> to vector<256x128xbf16>
    %c1_46 = arith.constant 1 : index
    %c0_47 = arith.constant 0 : index
    %c0_48 = arith.constant 0 : index
    %32 = vector.load %arg2[%c1_46, %c0_47, %c0_48] : memref<9x128x128xbf16, #tpu.memory_space<vmem>>, vector<1x128x128xbf16>
    %33 = vector.shape_cast %32 : vector<1x128x128xbf16> to vector<128x128xbf16>
    %cst_49 = arith.constant dense<0.000000e+00> : vector<256x128xf32>
    %34 = tpu.matmul %31, %33, %cst_49 {dimension_numbers = #tpu.dot_dimension_numbers<[1], [0], [0], [1], [0, 0, 1, 1], [], []>} : vector<256x128xbf16>, vector<128x128xbf16>, vector<256x128xf32> -> vector<256x128xf32>
    %c0_50 = arith.constant 0 : index
    %c0_51 = arith.constant 0 : index
    %35 = vector.load %arg8[%c0_50, %c0_51] : memref<256x128xf32, #tpu.memory_space<vmem>>, vector<256x128xf32>
    %36 = arith.addf %35, %34 : vector<256x128xf32>
    %c0_52 = arith.constant 0 : index
    %c0_53 = arith.constant 0 : index
    %37 = vector.load %arg8[%c0_52, %c0_53] : memref<256x128xf32, #tpu.memory_space<vmem>>, vector<256x128xf32>
    tpu.vector_store %arg8[%c0_52, %c0_53], %36 {strides = array<i32>} : memref<256x128xf32, #tpu.memory_space<vmem>>, vector<256x128xf32>,
    %c0_54 = arith.constant 0 : index
    %c2 = arith.constant 2 : index
    %c0_55 = arith.constant 0 : index
    %38 = vector.load %arg7[%c0_54, %c2, %c0_55] : memref<18x24x128xbf16, #tpu.memory_space<vmem>>, vector<16x16x128xbf16>
    %39 = vector.shape_cast %38 : vector<16x16x128xbf16> to vector<256x128xbf16>
    %c2_56 = arith.constant 2 : index
    %c0_57 = arith.constant 0 : index
    %c0_58 = arith.constant 0 : index
    %40 = vector.load %arg2[%c2_56, %c0_57, %c0_58] : memref<9x128x128xbf16, #tpu.memory_space<vmem>>, vector<1x128x128xbf16>
    %41 = vector.shape_cast %40 : vector<1x128x128xbf16> to vector<128x128xbf16>
    %cst_59 = arith.constant dense<0.000000e+00> : vector<256x128xf32>
    %42 = tpu.matmul %39, %41, %cst_59 {dimension_numbers = #tpu.dot_dimension_numbers<[1], [0], [0], [1], [0, 0, 1, 1], [], []>} : vector<256x128xbf16>, vector<128x128xbf16>, vector<256x128xf32> -> vector<256x128xf32>
    %c0_60 = arith.constant 0 : index
    %c0_61 = arith.constant 0 : index
    %43 = vector.load %arg8[%c0_60, %c0_61] : memref<256x128xf32, #tpu.memory_space<vmem>>, vector<256x128xf32>
    %44 = arith.addf %43, %42 : vector<256x128xf32>
    %c0_62 = arith.constant 0 : index
    %c0_63 = arith.constant 0 : index
    %45 = vector.load %arg8[%c0_62, %c0_63] : memref<256x128xf32, #tpu.memory_space<vmem>>, vector<256x128xf32>
    tpu.vector_store %arg8[%c0_62, %c0_63], %44 {strides = array<i32>} : memref<256x128xf32, #tpu.memory_space<vmem>>, vector<256x128xf32>,
    %c1_64 = arith.constant 1 : index
    %c0_65 = arith.constant 0 : index
    %c0_66 = arith.constant 0 : index
    %46 = vector.load %arg7[%c1_64, %c0_65, %c0_66] : memref<18x24x128xbf16, #tpu.memory_space<vmem>>, vector<16x16x128xbf16>
    %47 = vector.shape_cast %46 : vector<16x16x128xbf16> to vector<256x128xbf16>
    %c3 = arith.constant 3 : index
    %c0_67 = arith.constant 0 : index
    %c0_68 = arith.constant 0 : index
    %48 = vector.load %arg2[%c3, %c0_67, %c0_68] : memref<9x128x128xbf16, #tpu.memory_space<vmem>>, vector<1x128x128xbf16>
    %49 = vector.shape_cast %48 : vector<1x128x128xbf16> to vector<128x128xbf16>
    %cst_69 = arith.constant dense<0.000000e+00> : vector<256x128xf32>
    %50 = tpu.matmul %47, %49, %cst_69 {dimension_numbers = #tpu.dot_dimension_numbers<[1], [0], [0], [1], [0, 0, 1, 1], [], []>} : vector<256x128xbf16>, vector<128x128xbf16>, vector<256x128xf32> -> vector<256x128xf32>
    %c0_70 = arith.constant 0 : index
    %c0_71 = arith.constant 0 : index
    %51 = vector.load %arg8[%c0_70, %c0_71] : memref<256x128xf32, #tpu.memory_space<vmem>>, vector<256x128xf32>
    %52 = arith.addf %51, %50 : vector<256x128xf32>
    %c0_72 = arith.constant 0 : index
    %c0_73 = arith.constant 0 : index
    %53 = vector.load %arg8[%c0_72, %c0_73] : memref<256x128xf32, #tpu.memory_space<vmem>>, vector<256x128xf32>
    tpu.vector_store %arg8[%c0_72, %c0_73], %52 {strides = array<i32>} : memref<256x128xf32, #tpu.memory_space<vmem>>, vector<256x128xf32>,
    %c1_74 = arith.constant 1 : index
    %c1_75 = arith.constant 1 : index
    %c0_76 = arith.constant 0 : index
    %54 = vector.load %arg7[%c1_74, %c1_75, %c0_76] : memref<18x24x128xbf16, #tpu.memory_space<vmem>>, vector<16x16x128xbf16>
    %55 = vector.shape_cast %54 : vector<16x16x128xbf16> to vector<256x128xbf16>
    %c4 = arith.constant 4 : index
    %c0_77 = arith.constant 0 : index
    %c0_78 = arith.constant 0 : index
    %56 = vector.load %arg2[%c4, %c0_77, %c0_78] : memref<9x128x128xbf16, #tpu.memory_space<vmem>>, vector<1x128x128xbf16>
    %57 = vector.shape_cast %56 : vector<1x128x128xbf16> to vector<128x128xbf16>
    %cst_79 = arith.constant dense<0.000000e+00> : vector<256x128xf32>
    %58 = tpu.matmul %55, %57, %cst_79 {dimension_numbers = #tpu.dot_dimension_numbers<[1], [0], [0], [1], [0, 0, 1, 1], [], []>} : vector<256x128xbf16>, vector<128x128xbf16>, vector<256x128xf32> -> vector<256x128xf32>
    %c0_80 = arith.constant 0 : index
    %c0_81 = arith.constant 0 : index
    %59 = vector.load %arg8[%c0_80, %c0_81] : memref<256x128xf32, #tpu.memory_space<vmem>>, vector<256x128xf32>
    %60 = arith.addf %59, %58 : vector<256x128xf32>
    %c0_82 = arith.constant 0 : index
    %c0_83 = arith.constant 0 : index
    %61 = vector.load %arg8[%c0_82, %c0_83] : memref<256x128xf32, #tpu.memory_space<vmem>>, vector<256x128xf32>
    tpu.vector_store %arg8[%c0_82, %c0_83], %60 {strides = array<i32>} : memref<256x128xf32, #tpu.memory_space<vmem>>, vector<256x128xf32>,
    %c1_84 = arith.constant 1 : index
    %c2_85 = arith.constant 2 : index
    %c0_86 = arith.constant 0 : index
    %62 = vector.load %arg7[%c1_84, %c2_85, %c0_86] : memref<18x24x128xbf16, #tpu.memory_space<vmem>>, vector<16x16x128xbf16>
    %63 = vector.shape_cast %62 : vector<16x16x128xbf16> to vector<256x128xbf16>
    %c5 = arith.constant 5 : index
    %c0_87 = arith.constant 0 : index
    %c0_88 = arith.constant 0 : index
    %64 = vector.load %arg2[%c5, %c0_87, %c0_88] : memref<9x128x128xbf16, #tpu.memory_space<vmem>>, vector<1x128x128xbf16>
    %65 = vector.shape_cast %64 : vector<1x128x128xbf16> to vector<128x128xbf16>
    %cst_89 = arith.constant dense<0.000000e+00> : vector<256x128xf32>
    %66 = tpu.matmul %63, %65, %cst_89 {dimension_numbers = #tpu.dot_dimension_numbers<[1], [0], [0], [1], [0, 0, 1, 1], [], []>} : vector<256x128xbf16>, vector<128x128xbf16>, vector<256x128xf32> -> vector<256x128xf32>
    %c0_90 = arith.constant 0 : index
    %c0_91 = arith.constant 0 : index
    %67 = vector.load %arg8[%c0_90, %c0_91] : memref<256x128xf32, #tpu.memory_space<vmem>>, vector<256x128xf32>
    %68 = arith.addf %67, %66 : vector<256x128xf32>
    %c0_92 = arith.constant 0 : index
    %c0_93 = arith.constant 0 : index
    %69 = vector.load %arg8[%c0_92, %c0_93] : memref<256x128xf32, #tpu.memory_space<vmem>>, vector<256x128xf32>
    tpu.vector_store %arg8[%c0_92, %c0_93], %68 {strides = array<i32>} : memref<256x128xf32, #tpu.memory_space<vmem>>, vector<256x128xf32>,
    %c2_94 = arith.constant 2 : index
    %c0_95 = arith.constant 0 : index
    %c0_96 = arith.constant 0 : index
    %70 = vector.load %arg7[%c2_94, %c0_95, %c0_96] : memref<18x24x128xbf16, #tpu.memory_space<vmem>>, vector<16x16x128xbf16>
    %71 = vector.shape_cast %70 : vector<16x16x128xbf16> to vector<256x128xbf16>
    %c6 = arith.constant 6 : index
    %c0_97 = arith.constant 0 : index
    %c0_98 = arith.constant 0 : index
    %72 = vector.load %arg2[%c6, %c0_97, %c0_98] : memref<9x128x128xbf16, #tpu.memory_space<vmem>>, vector<1x128x128xbf16>
    %73 = vector.shape_cast %72 : vector<1x128x128xbf16> to vector<128x128xbf16>
    %cst_99 = arith.constant dense<0.000000e+00> : vector<256x128xf32>
    %74 = tpu.matmul %71, %73, %cst_99 {dimension_numbers = #tpu.dot_dimension_numbers<[1], [0], [0], [1], [0, 0, 1, 1], [], []>} : vector<256x128xbf16>, vector<128x128xbf16>, vector<256x128xf32> -> vector<256x128xf32>
    %c0_100 = arith.constant 0 : index
    %c0_101 = arith.constant 0 : index
    %75 = vector.load %arg8[%c0_100, %c0_101] : memref<256x128xf32, #tpu.memory_space<vmem>>, vector<256x128xf32>
    %76 = arith.addf %75, %74 : vector<256x128xf32>
    %c0_102 = arith.constant 0 : index
    %c0_103 = arith.constant 0 : index
    %77 = vector.load %arg8[%c0_102, %c0_103] : memref<256x128xf32, #tpu.memory_space<vmem>>, vector<256x128xf32>
    tpu.vector_store %arg8[%c0_102, %c0_103], %76 {strides = array<i32>} : memref<256x128xf32, #tpu.memory_space<vmem>>, vector<256x128xf32>,
    %c2_104 = arith.constant 2 : index
    %c1_105 = arith.constant 1 : index
    %c0_106 = arith.constant 0 : index
    %78 = vector.load %arg7[%c2_104, %c1_105, %c0_106] : memref<18x24x128xbf16, #tpu.memory_space<vmem>>, vector<16x16x128xbf16>
    %79 = vector.shape_cast %78 : vector<16x16x128xbf16> to vector<256x128xbf16>
    %c7 = arith.constant 7 : index
    %c0_107 = arith.constant 0 : index
    %c0_108 = arith.constant 0 : index
    %80 = vector.load %arg2[%c7, %c0_107, %c0_108] : memref<9x128x128xbf16, #tpu.memory_space<vmem>>, vector<1x128x128xbf16>
    %81 = vector.shape_cast %80 : vector<1x128x128xbf16> to vector<128x128xbf16>
    %cst_109 = arith.constant dense<0.000000e+00> : vector<256x128xf32>
    %82 = tpu.matmul %79, %81, %cst_109 {dimension_numbers = #tpu.dot_dimension_numbers<[1], [0], [0], [1], [0, 0, 1, 1], [], []>} : vector<256x128xbf16>, vector<128x128xbf16>, vector<256x128xf32> -> vector<256x128xf32>
    %c0_110 = arith.constant 0 : index
    %c0_111 = arith.constant 0 : index
    %83 = vector.load %arg8[%c0_110, %c0_111] : memref<256x128xf32, #tpu.memory_space<vmem>>, vector<256x128xf32>
    %84 = arith.addf %83, %82 : vector<256x128xf32>
    %c0_112 = arith.constant 0 : index
    %c0_113 = arith.constant 0 : index
    %85 = vector.load %arg8[%c0_112, %c0_113] : memref<256x128xf32, #tpu.memory_space<vmem>>, vector<256x128xf32>
    tpu.vector_store %arg8[%c0_112, %c0_113], %84 {strides = array<i32>} : memref<256x128xf32, #tpu.memory_space<vmem>>, vector<256x128xf32>,
    %c2_114 = arith.constant 2 : index
    %c2_115 = arith.constant 2 : index
    %c0_116 = arith.constant 0 : index
    %86 = vector.load %arg7[%c2_114, %c2_115, %c0_116] : memref<18x24x128xbf16, #tpu.memory_space<vmem>>, vector<16x16x128xbf16>
    %87 = vector.shape_cast %86 : vector<16x16x128xbf16> to vector<256x128xbf16>
    %c8 = arith.constant 8 : index
    %c0_117 = arith.constant 0 : index
    %c0_118 = arith.constant 0 : index
    %88 = vector.load %arg2[%c8, %c0_117, %c0_118] : memref<9x128x128xbf16, #tpu.memory_space<vmem>>, vector<1x128x128xbf16>
    %89 = vector.shape_cast %88 : vector<1x128x128xbf16> to vector<128x128xbf16>
    %cst_119 = arith.constant dense<0.000000e+00> : vector<256x128xf32>
    %90 = tpu.matmul %87, %89, %cst_119 {dimension_numbers = #tpu.dot_dimension_numbers<[1], [0], [0], [1], [0, 0, 1, 1], [], []>} : vector<256x128xbf16>, vector<128x128xbf16>, vector<256x128xf32> -> vector<256x128xf32>
    %c0_120 = arith.constant 0 : index
    %c0_121 = arith.constant 0 : index
    %91 = vector.load %arg8[%c0_120, %c0_121] : memref<256x128xf32, #tpu.memory_space<vmem>>, vector<256x128xf32>
    %92 = arith.addf %91, %90 : vector<256x128xf32>
    %c0_122 = arith.constant 0 : index
    %c0_123 = arith.constant 0 : index
    %93 = vector.load %arg8[%c0_122, %c0_123] : memref<256x128xf32, #tpu.memory_space<vmem>>, vector<256x128xf32>
    tpu.vector_store %arg8[%c0_122, %c0_123], %92 {strides = array<i32>} : memref<256x128xf32, #tpu.memory_space<vmem>>, vector<256x128xf32>,
    %c0_124 = arith.constant 0 : index
    %c0_125 = arith.constant 0 : index
    %94 = vector.load %arg8[%c0_124, %c0_125] : memref<256x128xf32, #tpu.memory_space<vmem>>, vector<256x128xf32>
    %c0_126 = arith.constant 0 : index
    %c0_127 = arith.constant 0 : index
    %95 = vector.load %arg3[%c0_126, %c0_127] : memref<1x128xf32, #tpu.memory_space<vmem>>, vector<1x128xf32>
    %96 = vector.broadcast %95 : vector<1x128xf32> to vector<256x128xf32>
    %97 = arith.addf %94, %96 : vector<256x128xf32>
    %cst_128 = arith.constant dense<0.000000e+00> : vector<128xf32>
    %98 = vector.multi_reduction <add>, %97, %cst_128 [0] : vector<256x128xf32> to vector<128xf32>
    %99 = vector.shape_cast %98 : vector<128xf32> to vector<1x128xf32>
    %cst_129 = arith.constant 2.560000e+02 : f32
    %100 = vector.broadcast %cst_129 : f32 to vector<1x128xf32>
    %101 = arith.divf %99, %100 : vector<1x128xf32>
    %102 = arith.mulf %97, %97 : vector<256x128xf32>
    %cst_130 = arith.constant dense<0.000000e+00> : vector<128xf32>
    %103 = vector.multi_reduction <add>, %102, %cst_130 [0] : vector<256x128xf32> to vector<128xf32>
    %104 = vector.shape_cast %103 : vector<128xf32> to vector<1x128xf32>
    %cst_131 = arith.constant 2.560000e+02 : f32
    %105 = vector.broadcast %cst_131 : f32 to vector<1x128xf32>
    %106 = arith.divf %104, %105 : vector<1x128xf32>
    %107 = arith.mulf %101, %101 : vector<1x128xf32>
    %108 = arith.subf %106, %107 : vector<1x128xf32>
    %cst_132 = arith.constant 0.000000e+00 : f32
    %109 = vector.broadcast %cst_132 : f32 to vector<1x128xf32>
    %110 = arith.maximumf %108, %109 : vector<1x128xf32>
    %111 = vector.broadcast %101 : vector<1x128xf32> to vector<256x128xf32>
    %112 = arith.subf %97, %111 : vector<256x128xf32>
    %cst_133 = arith.constant 9.99999974E-6 : f32
    %113 = vector.broadcast %cst_133 : f32 to vector<1x128xf32>
    %114 = arith.addf %110, %113 : vector<1x128xf32>
    %115 = math.rsqrt %114 : vector<1x128xf32>
    %116 = vector.broadcast %115 : vector<1x128xf32> to vector<256x128xf32>
    %117 = arith.mulf %112, %116 : vector<256x128xf32>
    %cst_134 = arith.constant 0.000000e+00 : f32
    %118 = vector.broadcast %cst_134 : f32 to vector<256x128xf32>
    %119 = arith.maximumf %117, %118 : vector<256x128xf32>
    %120 = arith.truncf %119 : vector<256x128xf32> to vector<256x128xbf16>
    %121 = vector.shape_cast %120 : vector<256x128xbf16> to vector<16x16x128xbf16>
    %c1_135 = arith.constant 1 : index
    %c1_136 = arith.constant 1 : index
    %c0_137 = arith.constant 0 : index
    %122 = vector.load %arg7[%c1_135, %c1_136, %c0_137] : memref<18x24x128xbf16, #tpu.memory_space<vmem>>, vector<16x16x128xbf16>
    tpu.vector_store %arg7[%c1_135, %c1_136, %c0_137], %121 {strides = array<i32>} : memref<18x24x128xbf16, #tpu.memory_space<vmem>>, vector<16x16x128xbf16>,
    %123 = vector.extract_strided_slice %121 {offsets = [0, 1, 0], sizes = [16, 1, 128], strides = [1, 1, 1]} : vector<16x16x128xbf16> to vector<16x1x128xbf16>
    %c1_138 = arith.constant 1 : index
    %c0_139 = arith.constant 0 : index
    %c0_140 = arith.constant 0 : index
    %124 = vector.load %arg7[%c1_138, %c0_139, %c0_140] : memref<18x24x128xbf16, #tpu.memory_space<vmem>>, vector<16x1x128xbf16>
    tpu.vector_store %arg7[%c1_138, %c0_139, %c0_140], %123 {strides = array<i32>} : memref<18x24x128xbf16, #tpu.memory_space<vmem>>, vector<16x1x128xbf16>,
    %125 = vector.extract_strided_slice %121 {offsets = [0, 14, 0], sizes = [16, 1, 128], strides = [1, 1, 1]} : vector<16x16x128xbf16> to vector<16x1x128xbf16>
    %c1_141 = arith.constant 1 : index
    %c17_142 = arith.constant 17 : index
    %c0_143 = arith.constant 0 : index
    %126 = vector.load %arg7[%c1_141, %c17_142, %c0_143] : memref<18x24x128xbf16, #tpu.memory_space<vmem>>, vector<16x1x128xbf16>
    tpu.vector_store %arg7[%c1_141, %c17_142, %c0_143], %125 {strides = array<i32>} : memref<18x24x128xbf16, #tpu.memory_space<vmem>>, vector<16x1x128xbf16>,
    %127 = vector.extract_strided_slice %121 {offsets = [1, 0, 0], sizes = [1, 16, 128], strides = [1, 1, 1]} : vector<16x16x128xbf16> to vector<1x16x128xbf16>
    %c0_144 = arith.constant 0 : index
    %c1_145 = arith.constant 1 : index
    %c0_146 = arith.constant 0 : index
    %128 = vector.load %arg7[%c0_144, %c1_145, %c0_146] : memref<18x24x128xbf16, #tpu.memory_space<vmem>>, vector<1x16x128xbf16>
    tpu.vector_store %arg7[%c0_144, %c1_145, %c0_146], %127 {strides = array<i32>} : memref<18x24x128xbf16, #tpu.memory_space<vmem>>, vector<1x16x128xbf16>,
    %129 = vector.extract_strided_slice %127 {offsets = [0, 1, 0], sizes = [1, 1, 128], strides = [1, 1, 1]} : vector<1x16x128xbf16> to vector<1x1x128xbf16>
    %c0_147 = arith.constant 0 : index
    %c0_148 = arith.constant 0 : index
    %c0_149 = arith.constant 0 : index
    %130 = vector.load %arg7[%c0_147, %c0_148, %c0_149] : memref<18x24x128xbf16, #tpu.memory_space<vmem>>, vector<1x1x128xbf16>
    tpu.vector_store %arg7[%c0_147, %c0_148, %c0_149], %129 {strides = array<i32>} : memref<18x24x128xbf16, #tpu.memory_space<vmem>>, vector<1x1x128xbf16>,
    %131 = vector.extract_strided_slice %127 {offsets = [0, 14, 0], sizes = [1, 1, 128], strides = [1, 1, 1]} : vector<1x16x128xbf16> to vector<1x1x128xbf16>
    %c0_150 = arith.constant 0 : index
    %c17_151 = arith.constant 17 : index
    %c0_152 = arith.constant 0 : index
    %132 = vector.load %arg7[%c0_150, %c17_151, %c0_152] : memref<18x24x128xbf16, #tpu.memory_space<vmem>>, vector<1x1x128xbf16>
    tpu.vector_store %arg7[%c0_150, %c17_151, %c0_152], %131 {strides = array<i32>} : memref<18x24x128xbf16, #tpu.memory_space<vmem>>, vector<1x1x128xbf16>,
    %133 = vector.extract_strided_slice %121 {offsets = [14, 0, 0], sizes = [1, 16, 128], strides = [1, 1, 1]} : vector<16x16x128xbf16> to vector<1x16x128xbf16>
    %c17_153 = arith.constant 17 : index
    %c1_154 = arith.constant 1 : index
    %c0_155 = arith.constant 0 : index
    %134 = vector.load %arg7[%c17_153, %c1_154, %c0_155] : memref<18x24x128xbf16, #tpu.memory_space<vmem>>, vector<1x16x128xbf16>
    tpu.vector_store %arg7[%c17_153, %c1_154, %c0_155], %133 {strides = array<i32>} : memref<18x24x128xbf16, #tpu.memory_space<vmem>>, vector<1x16x128xbf16>,
    %135 = vector.extract_strided_slice %133 {offsets = [0, 1, 0], sizes = [1, 1, 128], strides = [1, 1, 1]} : vector<1x16x128xbf16> to vector<1x1x128xbf16>
    %c17_156 = arith.constant 17 : index
    %c0_157 = arith.constant 0 : index
    %c0_158 = arith.constant 0 : index
    %136 = vector.load %arg7[%c17_156, %c0_157, %c0_158] : memref<18x24x128xbf16, #tpu.memory_space<vmem>>, vector<1x1x128xbf16>
    tpu.vector_store %arg7[%c17_156, %c0_157, %c0_158], %135 {strides = array<i32>} : memref<18x24x128xbf16, #tpu.memory_space<vmem>>, vector<1x1x128xbf16>,
    %137 = vector.extract_strided_slice %133 {offsets = [0, 14, 0], sizes = [1, 1, 128], strides = [1, 1, 1]} : vector<1x16x128xbf16> to vector<1x1x128xbf16>
    %c17_159 = arith.constant 17 : index
    %c17_160 = arith.constant 17 : index
    %c0_161 = arith.constant 0 : index
    %138 = vector.load %arg7[%c17_159, %c17_160, %c0_161] : memref<18x24x128xbf16, #tpu.memory_space<vmem>>, vector<1x1x128xbf16>
    tpu.vector_store %arg7[%c17_159, %c17_160, %c0_161], %137 {strides = array<i32>} : memref<18x24x128xbf16, #tpu.memory_space<vmem>>, vector<1x1x128xbf16>,
    %c0_162 = arith.constant 0 : index
    %c0_163 = arith.constant 0 : index
    %c0_164 = arith.constant 0 : index
    %139 = vector.load %arg7[%c0_162, %c0_163, %c0_164] : memref<18x24x128xbf16, #tpu.memory_space<vmem>>, vector<16x16x128xbf16>
    %140 = vector.shape_cast %139 : vector<16x16x128xbf16> to vector<256x128xbf16>
    %c0_165 = arith.constant 0 : index
    %c0_166 = arith.constant 0 : index
    %c0_167 = arith.constant 0 : index
    %141 = vector.load %arg4[%c0_165, %c0_166, %c0_167] : memref<9x128x128xbf16, #tpu.memory_space<vmem>>, vector<1x128x128xbf16>
    %142 = vector.shape_cast %141 : vector<1x128x128xbf16> to vector<128x128xbf16>
    %cst_168 = arith.constant dense<0.000000e+00> : vector<256x128xf32>
    %143 = tpu.matmul %140, %142, %cst_168 {dimension_numbers = #tpu.dot_dimension_numbers<[1], [0], [0], [1], [0, 0, 1, 1], [], []>} : vector<256x128xbf16>, vector<128x128xbf16>, vector<256x128xf32> -> vector<256x128xf32>
    %c0_169 = arith.constant 0 : index
    %c0_170 = arith.constant 0 : index
    %144 = vector.load %arg8[%c0_169, %c0_170] : memref<256x128xf32, #tpu.memory_space<vmem>>, vector<256x128xf32>
    tpu.vector_store %arg8[%c0_169, %c0_170], %143 {strides = array<i32>} : memref<256x128xf32, #tpu.memory_space<vmem>>, vector<256x128xf32>,
    %c0_171 = arith.constant 0 : index
    %c1_172 = arith.constant 1 : index
    %c0_173 = arith.constant 0 : index
    %145 = vector.load %arg7[%c0_171, %c1_172, %c0_173] : memref<18x24x128xbf16, #tpu.memory_space<vmem>>, vector<16x16x128xbf16>
    %146 = vector.shape_cast %145 : vector<16x16x128xbf16> to vector<256x128xbf16>
    %c1_174 = arith.constant 1 : index
    %c0_175 = arith.constant 0 : index
    %c0_176 = arith.constant 0 : index
    %147 = vector.load %arg4[%c1_174, %c0_175, %c0_176] : memref<9x128x128xbf16, #tpu.memory_space<vmem>>, vector<1x128x128xbf16>
    %148 = vector.shape_cast %147 : vector<1x128x128xbf16> to vector<128x128xbf16>
    %cst_177 = arith.constant dense<0.000000e+00> : vector<256x128xf32>
    %149 = tpu.matmul %146, %148, %cst_177 {dimension_numbers = #tpu.dot_dimension_numbers<[1], [0], [0], [1], [0, 0, 1, 1], [], []>} : vector<256x128xbf16>, vector<128x128xbf16>, vector<256x128xf32> -> vector<256x128xf32>
    %c0_178 = arith.constant 0 : index
    %c0_179 = arith.constant 0 : index
    %150 = vector.load %arg8[%c0_178, %c0_179] : memref<256x128xf32, #tpu.memory_space<vmem>>, vector<256x128xf32>
    %151 = arith.addf %150, %149 : vector<256x128xf32>
    %c0_180 = arith.constant 0 : index
    %c0_181 = arith.constant 0 : index
    %152 = vector.load %arg8[%c0_180, %c0_181] : memref<256x128xf32, #tpu.memory_space<vmem>>, vector<256x128xf32>
    tpu.vector_store %arg8[%c0_180, %c0_181], %151 {strides = array<i32>} : memref<256x128xf32, #tpu.memory_space<vmem>>, vector<256x128xf32>,
    %c0_182 = arith.constant 0 : index
    %c2_183 = arith.constant 2 : index
    %c0_184 = arith.constant 0 : index
    %153 = vector.load %arg7[%c0_182, %c2_183, %c0_184] : memref<18x24x128xbf16, #tpu.memory_space<vmem>>, vector<16x16x128xbf16>
    %154 = vector.shape_cast %153 : vector<16x16x128xbf16> to vector<256x128xbf16>
    %c2_185 = arith.constant 2 : index
    %c0_186 = arith.constant 0 : index
    %c0_187 = arith.constant 0 : index
    %155 = vector.load %arg4[%c2_185, %c0_186, %c0_187] : memref<9x128x128xbf16, #tpu.memory_space<vmem>>, vector<1x128x128xbf16>
    %156 = vector.shape_cast %155 : vector<1x128x128xbf16> to vector<128x128xbf16>
    %cst_188 = arith.constant dense<0.000000e+00> : vector<256x128xf32>
    %157 = tpu.matmul %154, %156, %cst_188 {dimension_numbers = #tpu.dot_dimension_numbers<[1], [0], [0], [1], [0, 0, 1, 1], [], []>} : vector<256x128xbf16>, vector<128x128xbf16>, vector<256x128xf32> -> vector<256x128xf32>
    %c0_189 = arith.constant 0 : index
    %c0_190 = arith.constant 0 : index
    %158 = vector.load %arg8[%c0_189, %c0_190] : memref<256x128xf32, #tpu.memory_space<vmem>>, vector<256x128xf32>
    %159 = arith.addf %158, %157 : vector<256x128xf32>
    %c0_191 = arith.constant 0 : index
    %c0_192 = arith.constant 0 : index
    %160 = vector.load %arg8[%c0_191, %c0_192] : memref<256x128xf32, #tpu.memory_space<vmem>>, vector<256x128xf32>
    tpu.vector_store %arg8[%c0_191, %c0_192], %159 {strides = array<i32>} : memref<256x128xf32, #tpu.memory_space<vmem>>, vector<256x128xf32>,
    %c1_193 = arith.constant 1 : index
    %c0_194 = arith.constant 0 : index
    %c0_195 = arith.constant 0 : index
    %161 = vector.load %arg7[%c1_193, %c0_194, %c0_195] : memref<18x24x128xbf16, #tpu.memory_space<vmem>>, vector<16x16x128xbf16>
    %162 = vector.shape_cast %161 : vector<16x16x128xbf16> to vector<256x128xbf16>
    %c3_196 = arith.constant 3 : index
    %c0_197 = arith.constant 0 : index
    %c0_198 = arith.constant 0 : index
    %163 = vector.load %arg4[%c3_196, %c0_197, %c0_198] : memref<9x128x128xbf16, #tpu.memory_space<vmem>>, vector<1x128x128xbf16>
    %164 = vector.shape_cast %163 : vector<1x128x128xbf16> to vector<128x128xbf16>
    %cst_199 = arith.constant dense<0.000000e+00> : vector<256x128xf32>
    %165 = tpu.matmul %162, %164, %cst_199 {dimension_numbers = #tpu.dot_dimension_numbers<[1], [0], [0], [1], [0, 0, 1, 1], [], []>} : vector<256x128xbf16>, vector<128x128xbf16>, vector<256x128xf32> -> vector<256x128xf32>
    %c0_200 = arith.constant 0 : index
    %c0_201 = arith.constant 0 : index
    %166 = vector.load %arg8[%c0_200, %c0_201] : memref<256x128xf32, #tpu.memory_space<vmem>>, vector<256x128xf32>
    %167 = arith.addf %166, %165 : vector<256x128xf32>
    %c0_202 = arith.constant 0 : index
    %c0_203 = arith.constant 0 : index
    %168 = vector.load %arg8[%c0_202, %c0_203] : memref<256x128xf32, #tpu.memory_space<vmem>>, vector<256x128xf32>
    tpu.vector_store %arg8[%c0_202, %c0_203], %167 {strides = array<i32>} : memref<256x128xf32, #tpu.memory_space<vmem>>, vector<256x128xf32>,
    %c1_204 = arith.constant 1 : index
    %c1_205 = arith.constant 1 : index
    %c0_206 = arith.constant 0 : index
    %169 = vector.load %arg7[%c1_204, %c1_205, %c0_206] : memref<18x24x128xbf16, #tpu.memory_space<vmem>>, vector<16x16x128xbf16>
    %170 = vector.shape_cast %169 : vector<16x16x128xbf16> to vector<256x128xbf16>
    %c4_207 = arith.constant 4 : index
    %c0_208 = arith.constant 0 : index
    %c0_209 = arith.constant 0 : index
    %171 = vector.load %arg4[%c4_207, %c0_208, %c0_209] : memref<9x128x128xbf16, #tpu.memory_space<vmem>>, vector<1x128x128xbf16>
    %172 = vector.shape_cast %171 : vector<1x128x128xbf16> to vector<128x128xbf16>
    %cst_210 = arith.constant dense<0.000000e+00> : vector<256x128xf32>
    %173 = tpu.matmul %170, %172, %cst_210 {dimension_numbers = #tpu.dot_dimension_numbers<[1], [0], [0], [1], [0, 0, 1, 1], [], []>} : vector<256x128xbf16>, vector<128x128xbf16>, vector<256x128xf32> -> vector<256x128xf32>
    %c0_211 = arith.constant 0 : index
    %c0_212 = arith.constant 0 : index
    %174 = vector.load %arg8[%c0_211, %c0_212] : memref<256x128xf32, #tpu.memory_space<vmem>>, vector<256x128xf32>
    %175 = arith.addf %174, %173 : vector<256x128xf32>
    %c0_213 = arith.constant 0 : index
    %c0_214 = arith.constant 0 : index
    %176 = vector.load %arg8[%c0_213, %c0_214] : memref<256x128xf32, #tpu.memory_space<vmem>>, vector<256x128xf32>
    tpu.vector_store %arg8[%c0_213, %c0_214], %175 {strides = array<i32>} : memref<256x128xf32, #tpu.memory_space<vmem>>, vector<256x128xf32>,
    %c1_215 = arith.constant 1 : index
    %c2_216 = arith.constant 2 : index
    %c0_217 = arith.constant 0 : index
    %177 = vector.load %arg7[%c1_215, %c2_216, %c0_217] : memref<18x24x128xbf16, #tpu.memory_space<vmem>>, vector<16x16x128xbf16>
    %178 = vector.shape_cast %177 : vector<16x16x128xbf16> to vector<256x128xbf16>
    %c5_218 = arith.constant 5 : index
    %c0_219 = arith.constant 0 : index
    %c0_220 = arith.constant 0 : index
    %179 = vector.load %arg4[%c5_218, %c0_219, %c0_220] : memref<9x128x128xbf16, #tpu.memory_space<vmem>>, vector<1x128x128xbf16>
    %180 = vector.shape_cast %179 : vector<1x128x128xbf16> to vector<128x128xbf16>
    %cst_221 = arith.constant dense<0.000000e+00> : vector<256x128xf32>
    %181 = tpu.matmul %178, %180, %cst_221 {dimension_numbers = #tpu.dot_dimension_numbers<[1], [0], [0], [1], [0, 0, 1, 1], [], []>} : vector<256x128xbf16>, vector<128x128xbf16>, vector<256x128xf32> -> vector<256x128xf32>
    %c0_222 = arith.constant 0 : index
    %c0_223 = arith.constant 0 : index
    %182 = vector.load %arg8[%c0_222, %c0_223] : memref<256x128xf32, #tpu.memory_space<vmem>>, vector<256x128xf32>
    %183 = arith.addf %182, %181 : vector<256x128xf32>
    %c0_224 = arith.constant 0 : index
    %c0_225 = arith.constant 0 : index
    %184 = vector.load %arg8[%c0_224, %c0_225] : memref<256x128xf32, #tpu.memory_space<vmem>>, vector<256x128xf32>
    tpu.vector_store %arg8[%c0_224, %c0_225], %183 {strides = array<i32>} : memref<256x128xf32, #tpu.memory_space<vmem>>, vector<256x128xf32>,
    %c2_226 = arith.constant 2 : index
    %c0_227 = arith.constant 0 : index
    %c0_228 = arith.constant 0 : index
    %185 = vector.load %arg7[%c2_226, %c0_227, %c0_228] : memref<18x24x128xbf16, #tpu.memory_space<vmem>>, vector<16x16x128xbf16>
    %186 = vector.shape_cast %185 : vector<16x16x128xbf16> to vector<256x128xbf16>
    %c6_229 = arith.constant 6 : index
    %c0_230 = arith.constant 0 : index
    %c0_231 = arith.constant 0 : index
    %187 = vector.load %arg4[%c6_229, %c0_230, %c0_231] : memref<9x128x128xbf16, #tpu.memory_space<vmem>>, vector<1x128x128xbf16>
    %188 = vector.shape_cast %187 : vector<1x128x128xbf16> to vector<128x128xbf16>
    %cst_232 = arith.constant dense<0.000000e+00> : vector<256x128xf32>
    %189 = tpu.matmul %186, %188, %cst_232 {dimension_numbers = #tpu.dot_dimension_numbers<[1], [0], [0], [1], [0, 0, 1, 1], [], []>} : vector<256x128xbf16>, vector<128x128xbf16>, vector<256x128xf32> -> vector<256x128xf32>
    %c0_233 = arith.constant 0 : index
    %c0_234 = arith.constant 0 : index
    %190 = vector.load %arg8[%c0_233, %c0_234] : memref<256x128xf32, #tpu.memory_space<vmem>>, vector<256x128xf32>
    %191 = arith.addf %190, %189 : vector<256x128xf32>
    %c0_235 = arith.constant 0 : index
    %c0_236 = arith.constant 0 : index
    %192 = vector.load %arg8[%c0_235, %c0_236] : memref<256x128xf32, #tpu.memory_space<vmem>>, vector<256x128xf32>
    tpu.vector_store %arg8[%c0_235, %c0_236], %191 {strides = array<i32>} : memref<256x128xf32, #tpu.memory_space<vmem>>, vector<256x128xf32>,
    %c2_237 = arith.constant 2 : index
    %c1_238 = arith.constant 1 : index
    %c0_239 = arith.constant 0 : index
    %193 = vector.load %arg7[%c2_237, %c1_238, %c0_239] : memref<18x24x128xbf16, #tpu.memory_space<vmem>>, vector<16x16x128xbf16>
    %194 = vector.shape_cast %193 : vector<16x16x128xbf16> to vector<256x128xbf16>
    %c7_240 = arith.constant 7 : index
    %c0_241 = arith.constant 0 : index
    %c0_242 = arith.constant 0 : index
    %195 = vector.load %arg4[%c7_240, %c0_241, %c0_242] : memref<9x128x128xbf16, #tpu.memory_space<vmem>>, vector<1x128x128xbf16>
    %196 = vector.shape_cast %195 : vector<1x128x128xbf16> to vector<128x128xbf16>
    %cst_243 = arith.constant dense<0.000000e+00> : vector<256x128xf32>
    %197 = tpu.matmul %194, %196, %cst_243 {dimension_numbers = #tpu.dot_dimension_numbers<[1], [0], [0], [1], [0, 0, 1, 1], [], []>} : vector<256x128xbf16>, vector<128x128xbf16>, vector<256x128xf32> -> vector<256x128xf32>
    %c0_244 = arith.constant 0 : index
    %c0_245 = arith.constant 0 : index
    %198 = vector.load %arg8[%c0_244, %c0_245] : memref<256x128xf32, #tpu.memory_space<vmem>>, vector<256x128xf32>
    %199 = arith.addf %198, %197 : vector<256x128xf32>
    %c0_246 = arith.constant 0 : index
    %c0_247 = arith.constant 0 : index
    %200 = vector.load %arg8[%c0_246, %c0_247] : memref<256x128xf32, #tpu.memory_space<vmem>>, vector<256x128xf32>
    tpu.vector_store %arg8[%c0_246, %c0_247], %199 {strides = array<i32>} : memref<256x128xf32, #tpu.memory_space<vmem>>, vector<256x128xf32>,
    %c2_248 = arith.constant 2 : index
    %c2_249 = arith.constant 2 : index
    %c0_250 = arith.constant 0 : index
    %201 = vector.load %arg7[%c2_248, %c2_249, %c0_250] : memref<18x24x128xbf16, #tpu.memory_space<vmem>>, vector<16x16x128xbf16>
    %202 = vector.shape_cast %201 : vector<16x16x128xbf16> to vector<256x128xbf16>
    %c8_251 = arith.constant 8 : index
    %c0_252 = arith.constant 0 : index
    %c0_253 = arith.constant 0 : index
    %203 = vector.load %arg4[%c8_251, %c0_252, %c0_253] : memref<9x128x128xbf16, #tpu.memory_space<vmem>>, vector<1x128x128xbf16>
    %204 = vector.shape_cast %203 : vector<1x128x128xbf16> to vector<128x128xbf16>
    %cst_254 = arith.constant dense<0.000000e+00> : vector<256x128xf32>
    %205 = tpu.matmul %202, %204, %cst_254 {dimension_numbers = #tpu.dot_dimension_numbers<[1], [0], [0], [1], [0, 0, 1, 1], [], []>} : vector<256x128xbf16>, vector<128x128xbf16>, vector<256x128xf32> -> vector<256x128xf32>
    %c0_255 = arith.constant 0 : index
    %c0_256 = arith.constant 0 : index
    %206 = vector.load %arg8[%c0_255, %c0_256] : memref<256x128xf32, #tpu.memory_space<vmem>>, vector<256x128xf32>
    %207 = arith.addf %206, %205 : vector<256x128xf32>
    %c0_257 = arith.constant 0 : index
    %c0_258 = arith.constant 0 : index
    %208 = vector.load %arg8[%c0_257, %c0_258] : memref<256x128xf32, #tpu.memory_space<vmem>>, vector<256x128xf32>
    tpu.vector_store %arg8[%c0_257, %c0_258], %207 {strides = array<i32>} : memref<256x128xf32, #tpu.memory_space<vmem>>, vector<256x128xf32>,
    %c0_259 = arith.constant 0 : index
    %c0_260 = arith.constant 0 : index
    %209 = vector.load %arg8[%c0_259, %c0_260] : memref<256x128xf32, #tpu.memory_space<vmem>>, vector<256x128xf32>
    %c0_261 = arith.constant 0 : index
    %c0_262 = arith.constant 0 : index
    %210 = vector.load %arg5[%c0_261, %c0_262] : memref<1x128xf32, #tpu.memory_space<vmem>>, vector<1x128xf32>
    %211 = vector.broadcast %210 : vector<1x128xf32> to vector<256x128xf32>
    %212 = arith.addf %209, %211 : vector<256x128xf32>
    %cst_263 = arith.constant dense<0.000000e+00> : vector<128xf32>
    %213 = vector.multi_reduction <add>, %212, %cst_263 [0] : vector<256x128xf32> to vector<128xf32>
    %214 = vector.shape_cast %213 : vector<128xf32> to vector<1x128xf32>
    %cst_264 = arith.constant 2.560000e+02 : f32
    %215 = vector.broadcast %cst_264 : f32 to vector<1x128xf32>
    %216 = arith.divf %214, %215 : vector<1x128xf32>
    %217 = arith.mulf %212, %212 : vector<256x128xf32>
    %cst_265 = arith.constant dense<0.000000e+00> : vector<128xf32>
    %218 = vector.multi_reduction <add>, %217, %cst_265 [0] : vector<256x128xf32> to vector<128xf32>
    %219 = vector.shape_cast %218 : vector<128xf32> to vector<1x128xf32>
    %cst_266 = arith.constant 2.560000e+02 : f32
    %220 = vector.broadcast %cst_266 : f32 to vector<1x128xf32>
    %221 = arith.divf %219, %220 : vector<1x128xf32>
    %222 = arith.mulf %216, %216 : vector<1x128xf32>
    %223 = arith.subf %221, %222 : vector<1x128xf32>
    %cst_267 = arith.constant 0.000000e+00 : f32
    %224 = vector.broadcast %cst_267 : f32 to vector<1x128xf32>
    %225 = arith.maximumf %223, %224 : vector<1x128xf32>
    %226 = vector.broadcast %216 : vector<1x128xf32> to vector<256x128xf32>
    %227 = arith.subf %212, %226 : vector<256x128xf32>
    %cst_268 = arith.constant 9.99999974E-6 : f32
    %228 = vector.broadcast %cst_268 : f32 to vector<1x128xf32>
    %229 = arith.addf %225, %228 : vector<1x128xf32>
    %230 = math.rsqrt %229 : vector<1x128xf32>
    %231 = vector.broadcast %230 : vector<1x128xf32> to vector<256x128xf32>
    %232 = arith.mulf %227, %231 : vector<256x128xf32>
    %c0_269 = arith.constant 0 : index
    %c0_270 = arith.constant 0 : index
    %c0_271 = arith.constant 0 : index
    %c0_272 = arith.constant 0 : index
    %233 = vector.load %arg1[%c0_269, %c0_270, %c0_271, %c0_272] : memref<1x16x16x128xf32, #tpu.memory_space<vmem>>, vector<1x16x16x128xf32>
    %234 = vector.shape_cast %233 : vector<1x16x16x128xf32> to vector<16x16x128xf32>
    %235 = vector.shape_cast %232 : vector<256x128xf32> to vector<16x16x128xf32>
    %236 = arith.addf %234, %235 : vector<16x16x128xf32>
    %c0_273 = arith.constant 0 : index
    %c0_274 = arith.constant 0 : index
    %c0_275 = arith.constant 0 : index
    %c0_276 = arith.constant 0 : index
    %237 = vector.load %arg6[%c0_273, %c0_274, %c0_275, %c0_276] : memref<1x16x16x128xf32, #tpu.memory_space<vmem>>, vector<1x16x16x128xf32>
    %238 = vector.shape_cast %237 : vector<1x16x16x128xf32> to vector<16x16x128xf32>
    %239 = vector.shape_cast %236 : vector<16x16x128xf32> to vector<1x16x16x128xf32>
    tpu.vector_store %arg6[%c0_273, %c0_274, %c0_275, %c0_276], %239 {strides = array<i32>} : memref<1x16x16x128xf32, #tpu.memory_space<vmem>>, vector<1x16x16x128xf32>,
    return
  }
  func.func @transform_0(%arg0: i32) -> (i32, i32, i32, i32) {
    %c0_i32 = arith.constant 0 : i32
    %c0_i32_0 = arith.constant 0 : i32
    %c0_i32_1 = arith.constant 0 : i32
    %c0_i32_2 = arith.constant 0 : i32
    return %arg0, %c0_i32, %c0_i32_0, %c0_i32_1 : i32, i32, i32, i32
  }
  func.func @transform_1(%arg0: i32) -> (i32, i32, i32) {
    %c0_i32 = arith.constant 0 : i32
    %c0_i32_0 = arith.constant 0 : i32
    %c0_i32_1 = arith.constant 0 : i32
    %c0_i32_2 = arith.constant 0 : i32
    return %c0_i32, %c0_i32_0, %c0_i32_1 : i32, i32, i32
  }
  func.func @transform_2(%arg0: i32) -> (i32, i32) {
    %c0_i32 = arith.constant 0 : i32
    %c0_i32_0 = arith.constant 0 : i32
    %c0_i32_1 = arith.constant 0 : i32
    return %c0_i32, %c0_i32_0 : i32, i32
  }
  func.func @transform_3(%arg0: i32) -> (i32, i32, i32) {
    %c0_i32 = arith.constant 0 : i32
    %c0_i32_0 = arith.constant 0 : i32
    %c0_i32_1 = arith.constant 0 : i32
    %c0_i32_2 = arith.constant 0 : i32
    return %c0_i32, %c0_i32_0, %c0_i32_1 : i32, i32, i32
  }
  func.func @transform_4(%arg0: i32) -> (i32, i32) {
    %c0_i32 = arith.constant 0 : i32
    %c0_i32_0 = arith.constant 0 : i32
    %c0_i32_1 = arith.constant 0 : i32
    return %c0_i32, %c0_i32_0 : i32, i32
  }
  func.func @transform_5(%arg0: i32) -> (i32, i32, i32, i32) {
    %c0_i32 = arith.constant 0 : i32
    %c0_i32_0 = arith.constant 0 : i32
    %c0_i32_1 = arith.constant 0 : i32
    %c0_i32_2 = arith.constant 0 : i32
    return %arg0, %c0_i32, %c0_i32_0, %c0_i32_1 : i32, i32, i32, i32
  }
}

</mosaic_0001>

<llo_original>
// kernel: residual_block_pallas.1
$region0: #{residual_block_pallas.1}
  #allocation0 [shape = 'u32[]', space=smem, size = 0x4, offset = 0x4, fixed_abs, tag = 'smem constant byte address 0x4 - core index']
  #allocation1 [shape = 'u32[72,128]{1,0:T(1,128)}', space=vmem, size = 0x9000, scoped, tag = 'internal scratch']
  #allocation2 [shape = 'bf16[18,24,128]{2,1,0:T(8,128)(2,1)}', space=vmem, size = 0x1b000, scoped, tag = 'scratch operand']
  #allocation3 [shape = 'f32[256,128]{1,0:T(8,128)}', space=vmem, size = 0x20000, scoped, tag = 'scratch operand']
  %s0 = inlined_call_operand.vmem [shape: f32[2,16,16,128], index: 0, kind: input, shape index: {}]
  %s1 = inlined_call_operand.vmem [shape: bf16[9,128,128], index: 1, kind: input, shape index: {}]
  %s2 = inlined_call_operand.vmem [shape: f32[1,128], index: 2, kind: input, shape index: {}]
  %s3 = inlined_call_operand.vmem [shape: bf16[9,128,128], index: 3, kind: input, shape index: {}]
  %s4 = inlined_call_operand.vmem [shape: f32[1,128], index: 4, kind: input, shape index: {}]
  %s5 = inlined_call_operand.vmem [shape: f32[2,16,16,128], index: 5, kind: output, shape index: {}]
  %s6 = sld [smem:[#allocation0]]
  $region53: #{residual_block_pallas.1} parent=0
    _
  %s8 = ssub.s32 1, %s6
  %s9 = scalar_select 0, %s8, %s6
  loop: start=0, step=1, limit=4
  $region2: #{residual_block_pallas.1} parent=0 // loop_pre_header
    _
  $region3: #{residual_block_pallas.1} parent=0 // loop_header
    %s11 = sphi 0, %s15
    %p12 = scmp.ge.s32.totalorder %s11, 4
    %s21 = sphi 0, %s23
    %s24 = sphi 0, %s21
    %s25 = sphi 0, %s24
    %s41 = sphi 0, %s25
    %s45 = sphi 0, %s45
    %s47 = sphi 0, %s45
    %s48 = sphi 0, %s47
    %s62 = sphi 0, %s48
    %s66 = sphi 0, %s66
    %s68 = sphi 0, %s66
    %s69 = sphi 0, %s68
    %s83 = sphi 0, %s69
    %s87 = sphi 0, %s87
    %s89 = sphi 0, %s87
    %s90 = sphi 0, %s89
    %s104 = sphi 0, %s90
    %s108 = sphi 0, %s108
    %s110 = sphi 0, %s108
    %s111 = sphi 0, %s110
    %s125 = sphi 0, %s111
    %s131 = sphi 0, %s133
    %s134 = sphi 0, %s131
    %s135 = sphi 0, %s134
    %s151 = sphi 0, %s135
  $region4: #{residual_block_pallas.1} parent=0 // loop_header_branch
    %14 = sbr.rel (%p12) target = $region8
  $region5: #{residual_block_pallas.1} parent=0 // loop_body
    %s16 = ssub.s32 %s11, 1
    %s17 = ssub.s32 %s11, 2
    %s18 = sadd.s32 %s11, 1
    %s19 = ssub.s32 %s11, %s18
    %p20 = scmp.eq.s32.totalorder %s19, 0
    %s22 = sadd.s32 %s21, 1
    %s23 = scalar_select %p20, %s21, %s22
    %p26 = pneg %p20
    %p27 = scmp.eq.s32.totalorder %s11, 1
    %p28 = por %p26, %p27
    %p29 = scmp.ne.s32.totalorder %s21, %s24
    %p30 = scmp.eq.s32.totalorder %s11, 0
    %p31 = por %p29, %p30
    %p32 = scmp.ne.s32.totalorder %s21, %s24
    %p33 = scmp.eq.s32.totalorder %s16, 1
    %p34 = por %p32, %p33
    %p35 = scmp.ne.s32.totalorder %s24, %s25
    %p36 = scmp.eq.s32.totalorder %s16, 0
    %p37 = por %p35, %p36
    %p38 = scmp.ne.s32.totalorder %s24, %s25
    %p39 = scmp.eq.s32.totalorder %s17, 1
    %p40 = por %p38, %p39
    %p42 = scmp.ne.s32.totalorder %s25, %s41
    %p43 = scmp.eq.s32.totalorder %s17, 0
    %p44 = por %p42, %p43
    %s46 = sadd.s32 %s45, 1
    %p49 = scmp.eq.s32.totalorder %s11, 1
    %p50 = scmp.ne.s32.totalorder %s45, %s47
    %p51 = scmp.eq.s32.totalorder %s11, 0
    %p52 = por %p50, %p51
    %p53 = scmp.ne.s32.totalorder %s45, %s47
    %p54 = scmp.eq.s32.totalorder %s16, 1
    %p55 = por %p53, %p54
    %p56 = scmp.ne.s32.totalorder %s47, %s48
    %p57 = scmp.eq.s32.totalorder %s16, 0
    %p58 = por %p56, %p57
    %p59 = scmp.ne.s32.totalorder %s47, %s48
    %p60 = scmp.eq.s32.totalorder %s17, 1
    %p61 = por %p59, %p60
    %p63 = scmp.ne.s32.totalorder %s48, %s62
    %p64 = scmp.eq.s32.totalorder %s17, 0
    %p65 = por %p63, %p64
    %s67 = sadd.s32 %s66, 1
    %p70 = scmp.eq.s32.totalorder %s11, 1
    %p71 = scmp.ne.s32.totalorder %s66, %s68
    %p72 = scmp.eq.s32.totalorder %s11, 0
    %p73 = por %p71, %p72
    %p74 = scmp.ne.s32.totalorder %s66, %s68
    %p75 = scmp.eq.s32.totalorder %s16, 1
    %p76 = por %p74, %p75
    %p77 = scmp.ne.s32.totalorder %s68, %s69
    %p78 = scmp.eq.s32.totalorder %s16, 0
    %p79 = por %p77, %p78
    %p80 = scmp.ne.s32.totalorder %s68, %s69
    %p81 = scmp.eq.s32.totalorder %s17, 1
    %p82 = por %p80, %p81
    %p84 = scmp.ne.s32.totalorder %s69, %s83
    %p85 = scmp.eq.s32.totalorder %s17, 0
    %p86 = por %p84, %p85
    %s88 = sadd.s32 %s87, 1
    %p91 = scmp.eq.s32.totalorder %s11, 1
    %p92 = scmp.ne.s32.totalorder %s87, %s89
    %p93 = scmp.eq.s32.totalorder %s11, 0
    %p94 = por %p92, %p93
    %p95 = scmp.ne.s32.totalorder %s87, %s89
    %p96 = scmp.eq.s32.totalorder %s16, 1
    %p97 = por %p95, %p96
    %p98 = scmp.ne.s32.totalorder %s89, %s90
    %p99 = scmp.eq.s32.totalorder %s16, 0
    %p100 = por %p98, %p99
    %p101 = scmp.ne.s32.totalorder %s89, %s90
    %p102 = scmp.eq.s32.totalorder %s17, 1
    %p103 = por %p101, %p102
    %p105 = scmp.ne.s32.totalorder %s90, %s104
    %p106 = scmp.eq.s32.totalorder %s17, 0
    %p107 = por %p105, %p106
    %s109 = sadd.s32 %s108, 1
    %p112 = scmp.eq.s32.totalorder %s11, 1
    %p113 = scmp.ne.s32.totalorder %s108, %s110
    %p114 = scmp.eq.s32.totalorder %s11, 0
    %p115 = por %p113, %p114
    %p116 = scmp.ne.s32.totalorder %s108, %s110
    %p117 = scmp.eq.s32.totalorder %s16, 1
    %p118 = por %p116, %p117
    %p119 = scmp.ne.s32.totalorder %s110, %s111
    %p120 = scmp.eq.s32.totalorder %s16, 0
    %p121 = por %p119, %p120
    %p122 = scmp.ne.s32.totalorder %s110, %s111
    %p123 = scmp.eq.s32.totalorder %s17, 1
    %p124 = por %p122, %p123
    %p126 = scmp.ne.s32.totalorder %s111, %s125
    %p127 = scmp.eq.s32.totalorder %s17, 0
    %p128 = por %p126, %p127
    %s129 = ssub.s32 %s11, %s18
    %p130 = scmp.eq.s32.totalorder %s129, 0
    %s132 = sadd.s32 %s131, 1
    %s133 = scalar_select %p130, %s131, %s132
    %p136 = pneg %p130
    %p137 = scmp.eq.s32.totalorder %s11, 1
    %p138 = por %p136, %p137
    %p139 = scmp.ne.s32.totalorder %s131, %s134
    %p140 = scmp.eq.s32.totalorder %s11, 0
    %p141 = por %p139, %p140
    %p142 = scmp.ne.s32.totalorder %s131, %s134
    %p143 = scmp.eq.s32.totalorder %s16, 1
    %p144 = por %p142, %p143
    %p145 = scmp.ne.s32.totalorder %s134, %s135
    %p146 = scmp.eq.s32.totalorder %s16, 0
    %p147 = por %p145, %p146
    %p148 = scmp.ne.s32.totalorder %s134, %s135
    %p149 = scmp.eq.s32.totalorder %s17, 1
    %p150 = por %p148, %p149
    %p152 = scmp.ne.s32.totalorder %s135, %s151
    %p153 = scmp.eq.s32.totalorder %s17, 0
    %p154 = por %p152, %p153
    %p155 = scmp.le.s32.totalorder 1, %s11
    %p156 = scmp.lt.s32.totalorder %s11, 3
    %p157 = pnand %p155, %p156
    %p158 = pneg %p157
    // Predicated region
    $region9: #{residual_block_pallas.1} parent=5 // pred_check
      _
    $region10: #{residual_block_pallas.1} parent=5 // pred_check_branch
      %160 = sbr.rel (%p157) target = $region12
    $region11: #{residual_block_pallas.1} parent=5 // pred_region
      %s161 = ssub.s32 %s11, 1
      // Predicated region
      $region13: #{residual_block_pallas.1} parent=11 // pred_check
        %p162 = pneg %p58
      $region14: #{residual_block_pallas.1} parent=11 // pred_check_branch
        %164 = sbr.rel (%p162) target = $region16
      $region15: #{residual_block_pallas.1} parent=11 // pred_region
        _
      $region16: #{residual_block_pallas.1} parent=11 // pred_fallthru
        _
      // Predicated region
      $region17: #{residual_block_pallas.1} parent=11 // pred_check
        %p165 = pneg %p79
      $region18: #{residual_block_pallas.1} parent=11 // pred_check_branch
        %167 = sbr.rel (%p165) target = $region20
      $region19: #{residual_block_pallas.1} parent=11 // pred_region
        _
      $region20: #{residual_block_pallas.1} parent=11 // pred_fallthru
        _
      // Predicated region
      $region21: #{residual_block_pallas.1} parent=11 // pred_check
        %p168 = pneg %p100
      $region22: #{residual_block_pallas.1} parent=11 // pred_check_branch
        %170 = sbr.rel (%p168) target = $region24
      $region23: #{residual_block_pallas.1} parent=11 // pred_region
        _
      $region24: #{residual_block_pallas.1} parent=11 // pred_fallthru
        _
      // Predicated region
      $region25: #{residual_block_pallas.1} parent=11 // pred_check
        %p171 = pneg %p121
      $region26: #{residual_block_pallas.1} parent=11 // pred_check_branch
        %173 = sbr.rel (%p171) target = $region28
      $region27: #{residual_block_pallas.1} parent=11 // pred_region
        _
      $region28: #{residual_block_pallas.1} parent=11 // pred_fallthru
        _
    $region12: #{residual_block_pallas.1} parent=5 // pred_fallthru
      _
    %p174 = scmp.lt.s32.totalorder %s11, 2
    // Predicated region
    $region29: #{residual_block_pallas.1} parent=5 // pred_check
      %p175 = pneg %p174
    $region30: #{residual_block_pallas.1} parent=5 // pred_check_branch
      %177 = sbr.rel (%p175) target = $region32
    $region31: #{residual_block_pallas.1} parent=5 // pred_region
      // Predicated region
      $region33: #{residual_block_pallas.1} parent=31 // pred_check
        %p178 = pneg %p31
      $region34: #{residual_block_pallas.1} parent=31 // pred_check_branch
        %180 = sbr.rel (%p178) target = $region36
      $region35: #{residual_block_pallas.1} parent=31 // pred_region
        %p181 = scmp.lt.s32.totalorder %s11, 1
        %s182 = scalar_select %p181, %s11, 1
        %s183 = smul.addr %s182, 32
        %s184 = smul.addr %s183, 8
        %s185 = scalar_lea.vmem %s0, %s184
      $region36: #{residual_block_pallas.1} parent=31 // pred_fallthru
        _
    $region32: #{residual_block_pallas.1} parent=5 // pred_fallthru
      _
    %p186 = scmp.le.s32.totalorder 1, %s11
    %p187 = scmp.lt.s32.totalorder %s11, 3
    %p188 = pnand %p186, %p187
    %p189 = pneg %p188
    // Predicated region
    $region37: #{residual_block_pallas.1} parent=5 // pred_check
      _
    $region38: #{residual_block_pallas.1} parent=5 // pred_check_branch
      %191 = sbr.rel (%p188) target = $region40
    $region39: #{residual_block_pallas.1} parent=5 // pred_region
      %s192 = ssub.s32 %s11, 1
      %p193 = scmp.lt.s32.totalorder %s16, 1
      %s194 = scalar_select %p193, %s16, 1
      %s195 = smul.addr %s194, 32
      %s196 = smul.addr %s195, 8
      %s197 = scalar_lea.vmem %s0, %s196
      %p198 = pneg %p37
      %p199 = pneg %p34
      %p200 = pneg %p58
      %p201 = pneg %p55
      %p202 = pneg %p79
      %p203 = pneg %p76
      %p204 = pneg %p100
      %p205 = pneg %p97
      %p206 = pneg %p121
      %p207 = pneg %p118
      %p208 = pneg %p147
      %p209 = pneg %p144
      %p210 = scmp.lt.s32.totalorder %s16, 1
      %s211 = scalar_select %p210, %s16, 1
      %s212 = smul.addr %s211, 32
      %s213 = smul.addr %s212, 8
      %s214 = scalar_lea.vmem %s5, %s213
      %p215 = scmp.lt.s32.totalorder %s16, 1
      %s216 = scalar_select %p215, %s16, 1
      %s217 = smul.addr %s216, 32
      %s218 = smul.addr %s217, 8
      %s219 = scalar_lea.vmem %s0, %s218
      %p220 = scmp.lt.s32.totalorder %s16, 1
      %s221 = scalar_select %p220, %s16, 1
      %s222 = smul.addr %s221, 32
      %s223 = smul.addr %s222, 8
      %s224 = scalar_lea.vmem %s5, %s223
      %v225 = vld [vmem:[%s219] sm:$0xff]
      %v226 = vld [vmem:[%s219 + $0x8] sm:$0xff]
      %v227 = vld [vmem:[%s219 + $0x10] sm:$0xff]
      %v228 = vld [vmem:[%s219 + $0x18] sm:$0xff]
      %v229 = vld [vmem:[%s219 + $0x20] sm:$0xff]
      %v230 = vld [vmem:[%s219 + $0x28] sm:$0xff]
      %v231 = vld [vmem:[%s219 + $0x30] sm:$0xff]
      %v232 = vld [vmem:[%s219 + $0x38] sm:$0xff]
      %v233 = vld [vmem:[%s219 + $0x40] sm:$0xff]
      %v234 = vld [vmem:[%s219 + $0x48] sm:$0xff]
      %v235 = vld [vmem:[%s219 + $0x50] sm:$0xff]
      %v236 = vld [vmem:[%s219 + $0x58] sm:$0xff]
      %v237 = vld [vmem:[%s219 + $0x60] sm:$0xff]
      %v238 = vld [vmem:[%s219 + $0x68] sm:$0xff]
      %v239 = vld [vmem:[%s219 + $0x70] sm:$0xff]
      %v240 = vld [vmem:[%s219 + $0x78] sm:$0xff]
      %v241 = vld [vmem:[%s219 + $0x80] sm:$0xff]
      %v242 = vld [vmem:[%s219 + $0x88] sm:$0xff]
      %v243 = vld [vmem:[%s219 + $0x90] sm:$0xff]
      %v244 = vld [vmem:[%s219 + $0x98] sm:$0xff]
      %v245 = vld [vmem:[%s219 + $0xa0] sm:$0xff]
      %v246 = vld [vmem:[%s219 + $0xa8] sm:$0xff]
      %v247 = vld [vmem:[%s219 + $0xb0] sm:$0xff]
      %v248 = vld [vmem:[%s219 + $0xb8] sm:$0xff]
      %v249 = vld [vmem:[%s219 + $0xc0] sm:$0xff]
      %v250 = vld [vmem:[%s219 + $0xc8] sm:$0xff]
      %v251 = vld [vmem:[%s219 + $0xd0] sm:$0xff]
      %v252 = vld [vmem:[%s219 + $0xd8] sm:$0xff]
      %v253 = vld [vmem:[%s219 + $0xe0] sm:$0xff]
      %v254 = vld [vmem:[%s219 + $0xe8] sm:$0xff]
      %v255 = vld [vmem:[%s219 + $0xf0] sm:$0xff]
      %v256 = vld [vmem:[%s219 + $0xf8] sm:$0xff]
      %v257 = vpack.c.bf16 %v225, %v225
      %v258 = vpack.c.bf16 %v226, %v226
      %v259 = vpack.c.bf16 %v227, %v227
      %v260 = vpack.c.bf16 %v228, %v228
      %v261 = vpack.c.bf16 %v229, %v229
      %v262 = vpack.c.bf16 %v230, %v230
      %v263 = vpack.c.bf16 %v231, %v231
      %v264 = vpack.c.bf16 %v232, %v232
      %v265 = vpack.c.bf16 %v233, %v233
      %v266 = vpack.c.bf16 %v234, %v234
      %v267 = vpack.c.bf16 %v235, %v235
      %v268 = vpack.c.bf16 %v236, %v236
      %v269 = vpack.c.bf16 %v237, %v237
      %v270 = vpack.c.bf16 %v238, %v238
      %v271 = vpack.c.bf16 %v239, %v239
      %v272 = vpack.c.bf16 %v240, %v240
      %v273 = vpack.c.bf16 %v241, %v241
      %v274 = vpack.c.bf16 %v242, %v242
      %v275 = vpack.c.bf16 %v243, %v243
      %v276 = vpack.c.bf16 %v244, %v244
      %v277 = vpack.c.bf16 %v245, %v245
      %v278 = vpack.c.bf16 %v246, %v246
      %v279 = vpack.c.bf16 %v247, %v247
      %v280 = vpack.c.bf16 %v248, %v248
      %v281 = vpack.c.bf16 %v249, %v249
      %v282 = vpack.c.bf16 %v250, %v250
      %v283 = vpack.c.bf16 %v251, %v251
      %v284 = vpack.c.bf16 %v252, %v252
      %v285 = vpack.c.bf16 %v253, %v253
      %v286 = vpack.c.bf16 %v254, %v254
      %v287 = vpack.c.bf16 %v255, %v255
      %v288 = vpack.c.bf16 %v256, %v256
      %vm289 = vsmask.f32 256
      %vm290 = vsmask.f32 4368
      %vm291 = vmor %vm289, %vm290
      %v293 = vshrl.u32 %v257, 16
      %v295 = vrot.slane %v293, 7
      %v296 = vshll.u32 %v257, 16
      %v298 = vor.u32 %v295, %v296
      %v299 = vrot.slane %v295, 4
      %v301 = vshrl.u32 %v258, 16
      %v303 = vrot.slane %v301, 7
      %v304 = vshll.u32 %v258, 16
      %v306 = vor.u32 %v303, %v304
      %v307 = vsel %vm291, %v299, %v306
      %v308 = vrot.slane %v303, 4
      %v310 = vshrl.u32 %v259, 16
      %v312 = vrot.slane %v310, 7
      %v313 = vshll.u32 %v259, 16
      %v315 = vor.u32 %v312, %v313
      %v316 = vrot.slane %v312, 4
      %v318 = vshrl.u32 %v260, 16
      %v320 = vrot.slane %v318, 7
      %v321 = vshll.u32 %v260, 16
      %v323 = vor.u32 %v320, %v321
      %v324 = vsel %vm291, %v316, %v323
      %v325 = vrot.slane %v320, 4
      %v327 = vshrl.u32 %v261, 16
      %v329 = vrot.slane %v327, 7
      %v330 = vshll.u32 %v261, 16
      %v332 = vor.u32 %v329, %v330
      %v333 = vrot.slane %v329, 4
      %v335 = vshrl.u32 %v262, 16
      %v337 = vrot.slane %v335, 7
      %v338 = vshll.u32 %v262, 16
      %v340 = vor.u32 %v337, %v338
      %v341 = vsel %vm291, %v333, %v340
      %v342 = vrot.slane %v337, 4
      %v344 = vshrl.u32 %v263, 16
      %v346 = vrot.slane %v344, 7
      %v347 = vshll.u32 %v263, 16
      %v349 = vor.u32 %v346, %v347
      %v350 = vrot.slane %v346, 4
      %v352 = vshrl.u32 %v264, 16
      %v354 = vrot.slane %v352, 7
      %v355 = vshll.u32 %v264, 16
      %v357 = vor.u32 %v354, %v355
      %v358 = vsel %vm291, %v350, %v357
      %v359 = vrot.slane %v354, 4
      %v361 = vshrl.u32 %v265, 16
      %v363 = vrot.slane %v361, 7
      %v364 = vshll.u32 %v265, 16
      %v366 = vor.u32 %v363, %v364
      %v367 = vrot.slane %v363, 4
      %v369 = vshrl.u32 %v266, 16
      %v371 = vrot.slane %v369, 7
      %v372 = vshll.u32 %v266, 16
      %v374 = vor.u32 %v371, %v372
      %v375 = vsel %vm291, %v367, %v374
      %v376 = vrot.slane %v371, 4
      %v378 = vshrl.u32 %v267, 16
      %v380 = vrot.slane %v378, 7
      %v381 = vshll.u32 %v267, 16
      %v383 = vor.u32 %v380, %v381
      %v384 = vrot.slane %v380, 4
      %v386 = vshrl.u32 %v268, 16
      %v388 = vrot.slane %v386, 7
      %v389 = vshll.u32 %v268, 16
      %v391 = vor.u32 %v388, %v389
      %v392 = vsel %vm291, %v384, %v391
      %v393 = vrot.slane %v388, 4
      %v395 = vshrl.u32 %v269, 16
      %v397 = vrot.slane %v395, 7
      %v398 = vshll.u32 %v269, 16
      %v400 = vor.u32 %v397, %v398
      %v401 = vrot.slane %v397, 4
      %v403 = vshrl.u32 %v270, 16
      %v405 = vrot.slane %v403, 7
      %v406 = vshll.u32 %v270, 16
      %v408 = vor.u32 %v405, %v406
      %v409 = vsel %vm291, %v401, %v408
      %v410 = vrot.slane %v405, 4
      %v412 = vshrl.u32 %v271, 16
      %v414 = vrot.slane %v412, 7
      %v415 = vshll.u32 %v271, 16
      %v417 = vor.u32 %v414, %v415
      %v418 = vrot.slane %v414, 4
      %v420 = vshrl.u32 %v272, 16
      %v422 = vrot.slane %v420, 7
      %v423 = vshll.u32 %v272, 16
      %v425 = vor.u32 %v422, %v423
      %v426 = vsel %vm291, %v418, %v425
      %v427 = vrot.slane %v422, 4
      %v429 = vshrl.u32 %v273, 16
      %v431 = vrot.slane %v429, 7
      %v432 = vshll.u32 %v273, 16
      %v434 = vor.u32 %v431, %v432
      %v435 = vrot.slane %v431, 4
      %v437 = vshrl.u32 %v274, 16
      %v439 = vrot.slane %v437, 7
      %v440 = vshll.u32 %v274, 16
      %v442 = vor.u32 %v439, %v440
      %v443 = vsel %vm291, %v435, %v442
      %v444 = vrot.slane %v439, 4
      %v446 = vshrl.u32 %v275, 16
      %v448 = vrot.slane %v446, 7
      %v449 = vshll.u32 %v275, 16
      %v451 = vor.u32 %v448, %v449
      %v452 = vrot.slane %v448, 4
      %v454 = vshrl.u32 %v276, 16
      %v456 = vrot.slane %v454, 7
      %v457 = vshll.u32 %v276, 16
      %v459 = vor.u32 %v456, %v457
      %v460 = vsel %vm291, %v452, %v459
      %v461 = vrot.slane %v456, 4
      %v463 = vshrl.u32 %v277, 16
      %v465 = vrot.slane %v463, 7
      %v466 = vshll.u32 %v277, 16
      %v468 = vor.u32 %v465, %v466
      %v469 = vrot.slane %v465, 4
      %v471 = vshrl.u32 %v278, 16
      %v473 = vrot.slane %v471, 7
      %v474 = vshll.u32 %v278, 16
      %v476 = vor.u32 %v473, %v474
      %v477 = vsel %vm291, %v469, %v476
      %v478 = vrot.slane %v473, 4
      %v480 = vshrl.u32 %v279, 16
      %v482 = vrot.slane %v480, 7
      %v483 = vshll.u32 %v279, 16
      %v485 = vor.u32 %v482, %v483
      %v486 = vrot.slane %v482, 4
      %v488 = vshrl.u32 %v280, 16
      %v490 = vrot.slane %v488, 7
      %v491 = vshll.u32 %v280, 16
      %v493 = vor.u32 %v490, %v491
      %v494 = vsel %vm291, %v486, %v493
      %v495 = vrot.slane %v490, 4
      %v497 = vshrl.u32 %v281, 16
      %v499 = vrot.slane %v497, 7
      %v500 = vshll.u32 %v281, 16
      %v502 = vor.u32 %v499, %v500
      %v503 = vrot.slane %v499, 4
      %v505 = vshrl.u32 %v282, 16
      %v507 = vrot.slane %v505, 7
      %v508 = vshll.u32 %v282, 16
      %v510 = vor.u32 %v507, %v508
      %v511 = vsel %vm291, %v503, %v510
      %v512 = vrot.slane %v507, 4
      %v514 = vshrl.u32 %v283, 16
      %v516 = vrot.slane %v514, 7
      %v517 = vshll.u32 %v283, 16
      %v519 = vor.u32 %v516, %v517
      %v520 = vrot.slane %v516, 4
      %v522 = vshrl.u32 %v284, 16
      %v524 = vrot.slane %v522, 7
      %v525 = vshll.u32 %v284, 16
      %v527 = vor.u32 %v524, %v525
      %v528 = vsel %vm291, %v520, %v527
      %v529 = vrot.slane %v524, 4
      %v531 = vshrl.u32 %v285, 16
      %v533 = vrot.slane %v531, 7
      %v534 = vshll.u32 %v285, 16
      %v536 = vor.u32 %v533, %v534
      %v537 = vrot.slane %v533, 4
      %v539 = vshrl.u32 %v286, 16
      %v541 = vrot.slane %v539, 7
      %v542 = vshll.u32 %v286, 16
      %v544 = vor.u32 %v541, %v542
      %v545 = vsel %vm291, %v537, %v544
      %v546 = vrot.slane %v541, 4
      %v548 = vshrl.u32 %v287, 16
      %v550 = vrot.slane %v548, 7
      %v551 = vshll.u32 %v287, 16
      %v553 = vor.u32 %v550, %v551
      %v554 = vrot.slane %v550, 4
      %v556 = vshrl.u32 %v288, 16
      %v558 = vrot.slane %v556, 7
      %v559 = vshll.u32 %v288, 16
      %v561 = vor.u32 %v558, %v559
      %v562 = vsel %vm291, %v554, %v561
      %v563 = vrot.slane %v558, 4
      %s612 = scalar_lea.vmem [#allocation2], 12
      %vm613 = vcmask 1043456
      %vm614 = vsmask.f32 7938
      %vm615 = vmand %vm613, %vm614
      %v616 = vld [vmem:[%s612] sm:$0xf]
      %v617 = vsel %vm615, %v298, %v616
      %618 = vst [vmem:[%s612] sm:$0xf] %v617
      %619 = vst [vmem:[%s612 + $0x4] sm:$0xf] %v307
      %vm620 = vcmask 1040384
      %vm621 = vmand %vm620, %vm289
      %v622 = vld [vmem:[%s612 + $0x8] sm:$0x1]
      %v623 = vsel %vm621, %v308, %v622
      %624 = vst [vmem:[%s612 + $0x8] sm:$0x1] %v623
      %v625 = vld [vmem:[%s612 + $0xc] sm:$0xf]
      %v626 = vsel %vm615, %v315, %v625
      %627 = vst [vmem:[%s612 + $0xc] sm:$0xf] %v626
      %628 = vst [vmem:[%s612 + $0x10] sm:$0xf] %v324
      %v629 = vld [vmem:[%s612 + $0x14] sm:$0x1]
      %v630 = vsel %vm621, %v325, %v629
      %631 = vst [vmem:[%s612 + $0x14] sm:$0x1] %v630
      %v632 = vld [vmem:[%s612 + $0x18] sm:$0xf]
      %v633 = vsel %vm615, %v332, %v632
      %634 = vst [vmem:[%s612 + $0x18] sm:$0xf] %v633
      %635 = vst [vmem:[%s612 + $0x1c] sm:$0xf] %v341
      %v636 = vld [vmem:[%s612 + $0x20] sm:$0x1]
      %v637 = vsel %vm621, %v342, %v636
      %638 = vst [vmem:[%s612 + $0x20] sm:$0x1] %v637
      %v639 = vld [vmem:[%s612 + $0x24] sm:$0xf]
      %v640 = vsel %vm615, %v349, %v639
      %641 = vst [vmem:[%s612 + $0x24] sm:$0xf] %v640
      %642 = vst [vmem:[%s612 + $0x28] sm:$0xf] %v358
      %v643 = vld [vmem:[%s612 + $0x2c] sm:$0x1]
      %v644 = vsel %vm621, %v359, %v643
      %645 = vst [vmem:[%s612 + $0x2c] sm:$0x1] %v644
      %v646 = vld [vmem:[%s612 + $0x30] sm:$0xf]
      %v647 = vsel %vm615, %v366, %v646
      %648 = vst [vmem:[%s612 + $0x30] sm:$0xf] %v647
      %649 = vst [vmem:[%s612 + $0x34] sm:$0xf] %v375
      %v650 = vld [vmem:[%s612 + $0x38] sm:$0x1]
      %v651 = vsel %vm621, %v376, %v650
      %652 = vst [vmem:[%s612 + $0x38] sm:$0x1] %v651
      %v653 = vld [vmem:[%s612 + $0x3c] sm:$0xf]
      %v654 = vsel %vm615, %v383, %v653
      %655 = vst [vmem:[%s612 + $0x3c] sm:$0xf] %v654
      %656 = vst [vmem:[%s612 + $0x40] sm:$0xf] %v392
      %v657 = vld [vmem:[%s612 + $0x44] sm:$0x1]
      %v658 = vsel %vm621, %v393, %v657
      %659 = vst [vmem:[%s612 + $0x44] sm:$0x1] %v658
      %v660 = vld [vmem:[%s612 + $0x48] sm:$0xf]
      %v661 = vsel %vm615, %v400, %v660
      %662 = vst [vmem:[%s612 + $0x48] sm:$0xf] %v661
      %663 = vst [vmem:[%s612 + $0x4c] sm:$0xf] %v409
      %v664 = vld [vmem:[%s612 + $0x50] sm:$0x1]
      %v665 = vsel %vm621, %v410, %v664
      %666 = vst [vmem:[%s612 + $0x50] sm:$0x1] %v665
      %v667 = vld [vmem:[%s612 + $0x54] sm:$0xf]
      %v668 = vsel %vm615, %v417, %v667
      %669 = vst [vmem:[%s612 + $0x54] sm:$0xf] %v668
      %670 = vst [vmem:[%s612 + $0x58] sm:$0xf] %v426
      %v671 = vld [vmem:[%s612 + $0x5c] sm:$0x1]
      %v672 = vsel %vm621, %v427, %v671
      %673 = vst [vmem:[%s612 + $0x5c] sm:$0x1] %v672
      %v674 = vld [vmem:[%s612 + $0x60] sm:$0xf]
      %v675 = vsel %vm615, %v434, %v674
      %676 = vst [vmem:[%s612 + $0x60] sm:$0xf] %v675
      %677 = vst [vmem:[%s612 + $0x64] sm:$0xf] %v443
      %v678 = vld [vmem:[%s612 + $0x68] sm:$0x1]
      %v679 = vsel %vm621, %v444, %v678
      %680 = vst [vmem:[%s612 + $0x68] sm:$0x1] %v679
      %v681 = vld [vmem:[%s612 + $0x6c] sm:$0xf]
      %v682 = vsel %vm615, %v451, %v681
      %683 = vst [vmem:[%s612 + $0x6c] sm:$0xf] %v682
      %684 = vst [vmem:[%s612 + $0x70] sm:$0xf] %v460
      %v685 = vld [vmem:[%s612 + $0x74] sm:$0x1]
      %v686 = vsel %vm621, %v461, %v685
      %687 = vst [vmem:[%s612 + $0x74] sm:$0x1] %v686
      %v688 = vld [vmem:[%s612 + $0x78] sm:$0xf]
      %v689 = vsel %vm615, %v468, %v688
      %690 = vst [vmem:[%s612 + $0x78] sm:$0xf] %v689
      %691 = vst [vmem:[%s612 + $0x7c] sm:$0xf] %v477
      %v692 = vld [vmem:[%s612 + $0x80] sm:$0x1]
      %v693 = vsel %vm621, %v478, %v692
      %694 = vst [vmem:[%s612 + $0x80] sm:$0x1] %v693
      %v695 = vld [vmem:[%s612 + $0x84] sm:$0xf]
      %v696 = vsel %vm615, %v485, %v695
      %697 = vst [vmem:[%s612 + $0x84] sm:$0xf] %v696
      %698 = vst [vmem:[%s612 + $0x88] sm:$0xf] %v494
      %v699 = vld [vmem:[%s612 + $0x8c] sm:$0x1]
      %v700 = vsel %vm621, %v495, %v699
      %701 = vst [vmem:[%s612 + $0x8c] sm:$0x1] %v700
      %v702 = vld [vmem:[%s612 + $0x90] sm:$0xf]
      %v703 = vsel %vm615, %v502, %v702
      %704 = vst [vmem:[%s612 + $0x90] sm:$0xf] %v703
      %705 = vst [vmem:[%s612 + $0x94] sm:$0xf] %v511
      %v706 = vld [vmem:[%s612 + $0x98] sm:$0x1]
      %v707 = vsel %vm621, %v512, %v706
      %708 = vst [vmem:[%s612 + $0x98] sm:$0x1] %v707
      %v709 = vld [vmem:[%s612 + $0x9c] sm:$0xf]
      %v710 = vsel %vm615, %v519, %v709
      %711 = vst [vmem:[%s612 + $0x9c] sm:$0xf] %v710
      %712 = vst [vmem:[%s612 + $0xa0] sm:$0xf] %v528
      %v713 = vld [vmem:[%s612 + $0xa4] sm:$0x1]
      %v714 = vsel %vm621, %v529, %v713
      %715 = vst [vmem:[%s612 + $0xa4] sm:$0x1] %v714
      %v716 = vld [vmem:[%s612 + $0xa8] sm:$0xf]
      %v717 = vsel %vm615, %v536, %v716
      %718 = vst [vmem:[%s612 + $0xa8] sm:$0xf] %v717
      %719 = vst [vmem:[%s612 + $0xac] sm:$0xf] %v545
      %v720 = vld [vmem:[%s612 + $0xb0] sm:$0x1]
      %v721 = vsel %vm621, %v546, %v720
      %722 = vst [vmem:[%s612 + $0xb0] sm:$0x1] %v721
      %v723 = vld [vmem:[%s612 + $0xb4] sm:$0xf]
      %v724 = vsel %vm615, %v553, %v723
      %725 = vst [vmem:[%s612 + $0xb4] sm:$0xf] %v724
      %726 = vst [vmem:[%s612 + $0xb8] sm:$0xf] %v562
      %v727 = vld [vmem:[%s612 + $0xbc] sm:$0x1]
      %v728 = vsel %vm621, %v563, %v727
      %729 = vst [vmem:[%s612 + $0xbc] sm:$0x1] %v728
      %v730 = vrot.slane %v293, 4
      %v731 = vrot.slane %v730, 4
      %v732 = vrot.slane %v310, 4
      %v733 = vrot.slane %v732, 4
      %v734 = vrot.slane %v327, 4
      %v735 = vrot.slane %v734, 4
      %v736 = vrot.slane %v344, 4
      %v737 = vrot.slane %v736, 4
      %v738 = vrot.slane %v361, 4
      %v739 = vrot.slane %v738, 4
      %v740 = vrot.slane %v378, 4
      %v741 = vrot.slane %v740, 4
      %v742 = vrot.slane %v395, 4
      %v743 = vrot.slane %v742, 4
      %v744 = vrot.slane %v412, 4
      %v745 = vrot.slane %v744, 4
      %v746 = vrot.slane %v429, 4
      %v747 = vrot.slane %v746, 4
      %v748 = vrot.slane %v446, 4
      %v749 = vrot.slane %v748, 4
      %v750 = vrot.slane %v463, 4
      %v751 = vrot.slane %v750, 4
      %v752 = vrot.slane %v480, 4
      %v753 = vrot.slane %v752, 4
      %v754 = vrot.slane %v497, 4
      %v755 = vrot.slane %v754, 4
      %v756 = vrot.slane %v514, 4
      %v757 = vrot.slane %v756, 4
      %v758 = vrot.slane %v531, 4
      %v759 = vrot.slane %v758, 4
      %v760 = vrot.slane %v548, 4
      %v761 = vrot.slane %v760, 4
      %v778 = vld [vmem:[%s612] sm:$0x1]
      %v779 = vsel %vm621, %v731, %v778
      %780 = vst [vmem:[%s612] sm:$0x1] %v779
      %v781 = vld [vmem:[%s612 + $0xc] sm:$0x1]
      %v782 = vsel %vm621, %v733, %v781
      %783 = vst [vmem:[%s612 + $0xc] sm:$0x1] %v782
      %v784 = vld [vmem:[%s612 + $0x18] sm:$0x1]
      %v785 = vsel %vm621, %v735, %v784
      %786 = vst [vmem:[%s612 + $0x18] sm:$0x1] %v785
      %v787 = vld [vmem:[%s612 + $0x24] sm:$0x1]
      %v788 = vsel %vm621, %v737, %v787
      %789 = vst [vmem:[%s612 + $0x24] sm:$0x1] %v788
      %v790 = vld [vmem:[%s612 + $0x30] sm:$0x1]
      %v791 = vsel %vm621, %v739, %v790
      %792 = vst [vmem:[%s612 + $0x30] sm:$0x1] %v791
      %v793 = vld [vmem:[%s612 + $0x3c] sm:$0x1]
      %v794 = vsel %vm621, %v741, %v793
      %795 = vst [vmem:[%s612 + $0x3c] sm:$0x1] %v794
      %v796 = vld [vmem:[%s612 + $0x48] sm:$0x1]
      %v797 = vsel %vm621, %v743, %v796
      %798 = vst [vmem:[%s612 + $0x48] sm:$0x1] %v797
      %v799 = vld [vmem:[%s612 + $0x54] sm:$0x1]
      %v800 = vsel %vm621, %v745, %v799
      %801 = vst [vmem:[%s612 + $0x54] sm:$0x1] %v800
      %v802 = vld [vmem:[%s612 + $0x60] sm:$0x1]
      %v803 = vsel %vm621, %v747, %v802
      %804 = vst [vmem:[%s612 + $0x60] sm:$0x1] %v803
      %v805 = vld [vmem:[%s612 + $0x6c] sm:$0x1]
      %v806 = vsel %vm621, %v749, %v805
      %807 = vst [vmem:[%s612 + $0x6c] sm:$0x1] %v806
      %v808 = vld [vmem:[%s612 + $0x78] sm:$0x1]
      %v809 = vsel %vm621, %v751, %v808
      %810 = vst [vmem:[%s612 + $0x78] sm:$0x1] %v809
      %v811 = vld [vmem:[%s612 + $0x84] sm:$0x1]
      %v812 = vsel %vm621, %v753, %v811
      %813 = vst [vmem:[%s612 + $0x84] sm:$0x1] %v812
      %v814 = vld [vmem:[%s612 + $0x90] sm:$0x1]
      %v815 = vsel %vm621, %v755, %v814
      %816 = vst [vmem:[%s612 + $0x90] sm:$0x1] %v815
      %v817 = vld [vmem:[%s612 + $0x9c] sm:$0x1]
      %v818 = vsel %vm621, %v757, %v817
      %819 = vst [vmem:[%s612 + $0x9c] sm:$0x1] %v818
      %v820 = vld [vmem:[%s612 + $0xa8] sm:$0x1]
      %v821 = vsel %vm621, %v759, %v820
      %822 = vst [vmem:[%s612 + $0xa8] sm:$0x1] %v821
      %v823 = vld [vmem:[%s612 + $0xb4] sm:$0x1]
      %v824 = vsel %vm621, %v761, %v823
      %825 = vst [vmem:[%s612 + $0xb4] sm:$0x1] %v824
      %v826 = vrot.slane %v304, 7
      %v827 = vrot.slane %v826, 4
      %v828 = vrot.slane %v321, 7
      %v829 = vrot.slane %v828, 4
      %v830 = vrot.slane %v338, 7
      %v831 = vrot.slane %v830, 4
      %v832 = vrot.slane %v355, 7
      %v833 = vrot.slane %v832, 4
      %v834 = vrot.slane %v372, 7
      %v835 = vrot.slane %v834, 4
      %v836 = vrot.slane %v389, 7
      %v837 = vrot.slane %v836, 4
      %v838 = vrot.slane %v406, 7
      %v839 = vrot.slane %v838, 4
      %v840 = vrot.slane %v423, 7
      %v841 = vrot.slane %v840, 4
      %v842 = vrot.slane %v440, 7
      %v843 = vrot.slane %v842, 4
      %v844 = vrot.slane %v457, 7
      %v845 = vrot.slane %v844, 4
      %v846 = vrot.slane %v474, 7
      %v847 = vrot.slane %v846, 4
      %v848 = vrot.slane %v491, 7
      %v849 = vrot.slane %v848, 4
      %v850 = vrot.slane %v508, 7
      %v851 = vrot.slane %v850, 4
      %v852 = vrot.slane %v525, 7
      %v853 = vrot.slane %v852, 4
      %v854 = vrot.slane %v542, 7
      %v855 = vrot.slane %v854, 4
      %v856 = vrot.slane %v559, 7
      %v857 = vrot.slane %v856, 4
      %vm874 = vmand %vm620, %vm614
      %v875 = vld [vmem:[%s612 + $0x8] sm:$0x1]
      %v876 = vsel %vm874, %v827, %v875
      %877 = vst [vmem:[%s612 + $0x8] sm:$0x1] %v876
      %v878 = vld [vmem:[%s612 + $0x14] sm:$0x1]
      %v879 = vsel %vm874, %v829, %v878
      %880 = vst [vmem:[%s612 + $0x14] sm:$0x1] %v879
      %v881 = vld [vmem:[%s612 + $0x20] sm:$0x1]
      %v882 = vsel %vm874, %v831, %v881
      %883 = vst [vmem:[%s612 + $0x20] sm:$0x1] %v882
      %v884 = vld [vmem:[%s612 + $0x2c] sm:$0x1]
      %v885 = vsel %vm874, %v833, %v884
      %886 = vst [vmem:[%s612 + $0x2c] sm:$0x1] %v885
      %v887 = vld [vmem:[%s612 + $0x38] sm:$0x1]
      %v888 = vsel %vm874, %v835, %v887
      %889 = vst [vmem:[%s612 + $0x38] sm:$0x1] %v888
      %v890 = vld [vmem:[%s612 + $0x44] sm:$0x1]
      %v891 = vsel %vm874, %v837, %v890
      %892 = vst [vmem:[%s612 + $0x44] sm:$0x1] %v891
      %v893 = vld [vmem:[%s612 + $0x50] sm:$0x1]
      %v894 = vsel %vm874, %v839, %v893
      %895 = vst [vmem:[%s612 + $0x50] sm:$0x1] %v894
      %v896 = vld [vmem:[%s612 + $0x5c] sm:$0x1]
      %v897 = vsel %vm874, %v841, %v896
      %898 = vst [vmem:[%s612 + $0x5c] sm:$0x1] %v897
      %v899 = vld [vmem:[%s612 + $0x68] sm:$0x1]
      %v900 = vsel %vm874, %v843, %v899
      %901 = vst [vmem:[%s612 + $0x68] sm:$0x1] %v900
      %v902 = vld [vmem:[%s612 + $0x74] sm:$0x1]
      %v903 = vsel %vm874, %v845, %v902
      %904 = vst [vmem:[%s612 + $0x74] sm:$0x1] %v903
      %v905 = vld [vmem:[%s612 + $0x80] sm:$0x1]
      %v906 = vsel %vm874, %v847, %v905
      %907 = vst [vmem:[%s612 + $0x80] sm:$0x1] %v906
      %v908 = vld [vmem:[%s612 + $0x8c] sm:$0x1]
      %v909 = vsel %vm874, %v849, %v908
      %910 = vst [vmem:[%s612 + $0x8c] sm:$0x1] %v909
      %v911 = vld [vmem:[%s612 + $0x98] sm:$0x1]
      %v912 = vsel %vm874, %v851, %v911
      %913 = vst [vmem:[%s612 + $0x98] sm:$0x1] %v912
      %v914 = vld [vmem:[%s612 + $0xa4] sm:$0x1]
      %v915 = vsel %vm874, %v853, %v914
      %916 = vst [vmem:[%s612 + $0xa4] sm:$0x1] %v915
      %v917 = vld [vmem:[%s612 + $0xb0] sm:$0x1]
      %v918 = vsel %vm874, %v855, %v917
      %919 = vst [vmem:[%s612 + $0xb0] sm:$0x1] %v918
      %v920 = vld [vmem:[%s612 + $0xbc] sm:$0x1]
      %v921 = vsel %vm874, %v857, %v920
      %922 = vst [vmem:[%s612 + $0xbc] sm:$0x1] %v921
      %s923 = scalar_lea.vmem %s219, 16
      %v924 = vld [vmem:[%s923] sm:$0xff]
      %v925 = vld [vmem:[%s923 + $0x8] sm:$0xff]
      %v926 = vpack.c.bf16 %v924, %v924
      %v927 = vpack.c.bf16 %v925, %v925
      %v929 = vshrl.u32 %v926, 16
      %v931 = vrot.slane %v929, 7
      %v932 = vshll.u32 %v926, 16
      %v934 = vor.u32 %v931, %v932
      %v935 = vrot.slane %v931, 4
      %v937 = vshrl.u32 %v927, 16
      %v939 = vrot.slane %v937, 7
      %v940 = vshll.u32 %v927, 16
      %v942 = vor.u32 %v939, %v940
      %v943 = vsel %vm291, %v935, %v942
      %v944 = vrot.slane %v939, 4
      %v948 = vld [vmem:[#allocation2] sm:$0xf]
      %v949 = vsel %vm615, %v934, %v948
      %950 = vst [vmem:[#allocation2] sm:$0xf] %v949
      %951 = vst [vmem:[#allocation2 + $0x4] sm:$0xf] %v943
      %v952 = vld [vmem:[#allocation2 + $0x8] sm:$0x1]
      %v953 = vsel %vm621, %v944, %v952
      %954 = vst [vmem:[#allocation2 + $0x8] sm:$0x1] %v953
      %v955 = vrot.slane %v929, 4
      %v956 = vrot.slane %v955, 4
      %v958 = vld [vmem:[#allocation2] sm:$0x1]
      %v959 = vsel %vm621, %v956, %v958
      %960 = vst [vmem:[#allocation2] sm:$0x1] %v959
      %v961 = vrot.slane %v940, 7
      %v962 = vrot.slane %v961, 4
      %v964 = vld [vmem:[#allocation2 + $0x8] sm:$0x1]
      %v965 = vsel %vm874, %v962, %v964
      %966 = vst [vmem:[#allocation2 + $0x8] sm:$0x1] %v965
      %s967 = scalar_lea.vmem %s219, 224
      %v968 = vld [vmem:[%s967] sm:$0xff]
      %v969 = vld [vmem:[%s967 + $0x8] sm:$0xff]
      %v970 = vpack.c.bf16 %v968, %v968
      %v971 = vpack.c.bf16 %v969, %v969
      %v973 = vshrl.u32 %v970, 16
      %v975 = vrot.slane %v973, 7
      %v976 = vshll.u32 %v970, 16
      %v978 = vor.u32 %v975, %v976
      %v979 = vrot.slane %v975, 4
      %v981 = vshrl.u32 %v971, 16
      %v983 = vrot.slane %v981, 7
      %v984 = vshll.u32 %v971, 16
      %v986 = vor.u32 %v983, %v984
      %v987 = vsel %vm291, %v979, %v986
      %v988 = vrot.slane %v983, 4
      %s992 = scalar_lea.vmem [#allocation2], 204
      %v993 = vld [vmem:[%s992] sm:$0xf]
      %v994 = vsel %vm615, %v978, %v993
      %995 = vst [vmem:[%s992] sm:$0xf] %v994
      %996 = vst [vmem:[%s992 + $0x4] sm:$0xf] %v987
      %v997 = vld [vmem:[%s992 + $0x8] sm:$0x1]
      %v998 = vsel %vm621, %v988, %v997
      %999 = vst [vmem:[%s992 + $0x8] sm:$0x1] %v998
      %v1000 = vrot.slane %v973, 4
      %v1001 = vrot.slane %v1000, 4
      %v1003 = vld [vmem:[%s992] sm:$0x1]
      %v1004 = vsel %vm621, %v1001, %v1003
      %1005 = vst [vmem:[%s992] sm:$0x1] %v1004
      %v1006 = vrot.slane %v984, 7
      %v1007 = vrot.slane %v1006, 4
      %v1009 = vld [vmem:[%s992 + $0x8] sm:$0x1]
      %v1010 = vsel %vm874, %v1007, %v1009
      %1011 = vst [vmem:[%s992 + $0x8] sm:$0x1] %v1010
      %v1012 = vld [vmem:[#allocation2] sm:$0xf]
      %v1013 = vld [vmem:[#allocation2 + $0x4] sm:$0xf]
      %v1014 = vld [vmem:[#allocation2 + $0xc] sm:$0xf]
      %v1015 = vld [vmem:[#allocation2 + $0x10] sm:$0xf]
      %v1016 = vld [vmem:[#allocation2 + $0x18] sm:$0xf]
      %v1017 = vld [vmem:[#allocation2 + $0x1c] sm:$0xf]
      %v1018 = vld [vmem:[#allocation2 + $0x24] sm:$0xf]
      %v1019 = vld [vmem:[#allocation2 + $0x28] sm:$0xf]
      %v1020 = vld [vmem:[#allocation2 + $0x30] sm:$0xf]
      %v1021 = vld [vmem:[#allocation2 + $0x34] sm:$0xf]
      %v1022 = vld [vmem:[#allocation2 + $0x3c] sm:$0xf]
      %v1023 = vld [vmem:[#allocation2 + $0x40] sm:$0xf]
      %v1024 = vld [vmem:[#allocation2 + $0x48] sm:$0xf]
      %v1025 = vld [vmem:[#allocation2 + $0x4c] sm:$0xf]
      %v1026 = vld [vmem:[#allocation2 + $0x54] sm:$0xf]
      %v1027 = vld [vmem:[#allocation2 + $0x58] sm:$0xf]
      %v1028 = vld [vmem:[#allocation2 + $0x60] sm:$0xf]
      %v1029 = vld [vmem:[#allocation2 + $0x64] sm:$0xf]
      %v1030 = vld [vmem:[#allocation2 + $0x6c] sm:$0xf]
      %v1031 = vld [vmem:[#allocation2 + $0x70] sm:$0xf]
      %v1032 = vld [vmem:[#allocation2 + $0x78] sm:$0xf]
      %v1033 = vld [vmem:[#allocation2 + $0x7c] sm:$0xf]
      %v1034 = vld [vmem:[#allocation2 + $0x84] sm:$0xf]
      %v1035 = vld [vmem:[#allocation2 + $0x88] sm:$0xf]
      %v1036 = vld [vmem:[#allocation2 + $0x90] sm:$0xf]
      %v1037 = vld [vmem:[#allocation2 + $0x94] sm:$0xf]
      %v1038 = vld [vmem:[#allocation2 + $0x9c] sm:$0xf]
      %v1039 = vld [vmem:[#allocation2 + $0xa0] sm:$0xf]
      %v1040 = vld [vmem:[#allocation2 + $0xa8] sm:$0xf]
      %v1041 = vld [vmem:[#allocation2 + $0xac] sm:$0xf]
      %v1042 = vld [vmem:[#allocation2 + $0xb4] sm:$0xf]
      %v1043 = vld [vmem:[#allocation2 + $0xb8] sm:$0xf]
      %v1044 = vld [vmem:[%s1] sm:$0xf]
      %v1045 = vld [vmem:[%s1 + $0x4] sm:$0xf]
      %v1046 = vld [vmem:[%s1 + $0x8] sm:$0xf]
      %v1047 = vld [vmem:[%s1 + $0xc] sm:$0xf]
      %v1048 = vld [vmem:[%s1 + $0x10] sm:$0xf]
      %v1049 = vld [vmem:[%s1 + $0x14] sm:$0xf]
      %v1050 = vld [vmem:[%s1 + $0x18] sm:$0xf]
      %v1051 = vld [vmem:[%s1 + $0x1c] sm:$0xf]
      %v1052 = vld [vmem:[%s1 + $0x20] sm:$0xf]
      %v1053 = vld [vmem:[%s1 + $0x24] sm:$0xf]
      %v1054 = vld [vmem:[%s1 + $0x28] sm:$0xf]
      %v1055 = vld [vmem:[%s1 + $0x2c] sm:$0xf]
      %v1056 = vld [vmem:[%s1 + $0x30] sm:$0xf]
      %v1057 = vld [vmem:[%s1 + $0x34] sm:$0xf]
      %v1058 = vld [vmem:[%s1 + $0x38] sm:$0xf]
      %v1059 = vld [vmem:[%s1 + $0x3c] sm:$0xf]
      %v1092 = vunpack.c.l.b16 %v1012
      %v1093 = vunpack.c.l.b16 %v1013
      %v1094 = vunpack.c.l.b16 %v1014
      %v1095 = vunpack.c.l.b16 %v1015
      %v1096 = vunpack.c.l.b16 %v1016
      %v1097 = vunpack.c.l.b16 %v1017
      %v1098 = vunpack.c.l.b16 %v1018
      %v1099 = vunpack.c.l.b16 %v1019
      %v1100 = vunpack.c.l.b16 %v1020
      %v1101 = vunpack.c.l.b16 %v1021
      %v1102 = vunpack.c.l.b16 %v1022
      %v1103 = vunpack.c.l.b16 %v1023
      %v1104 = vunpack.c.l.b16 %v1024
      %v1105 = vunpack.c.l.b16 %v1025
      %v1106 = vunpack.c.l.b16 %v1026
      %v1107 = vunpack.c.l.b16 %v1027
      %v1108 = vunpack.c.l.b16 %v1028
      %v1109 = vunpack.c.l.b16 %v1029
      %v1110 = vunpack.c.l.b16 %v1030
      %v1111 = vunpack.c.l.b16 %v1031
      %v1112 = vunpack.c.l.b16 %v1032
      %v1113 = vunpack.c.l.b16 %v1033
      %v1114 = vunpack.c.l.b16 %v1034
      %v1115 = vunpack.c.l.b16 %v1035
      %v1116 = vunpack.c.l.b16 %v1036
      %v1117 = vunpack.c.l.b16 %v1037
      %v1118 = vunpack.c.l.b16 %v1038
      %v1119 = vunpack.c.l.b16 %v1039
      %v1120 = vunpack.c.l.b16 %v1040
      %v1121 = vunpack.c.l.b16 %v1041
      %v1122 = vunpack.c.l.b16 %v1042
      %v1123 = vunpack.c.l.b16 %v1043
      %v1124 = vpack.c.b16 %v1093, %v1092
      %v1125 = vpack.c.b16 %v1095, %v1094
      %v1126 = vpack.c.b16 %v1097, %v1096
      %v1127 = vpack.c.b16 %v1099, %v1098
      %v1128 = vpack.c.b16 %v1101, %v1100
      %v1129 = vpack.c.b16 %v1103, %v1102
      %v1130 = vpack.c.b16 %v1105, %v1104
      %v1131 = vpack.c.b16 %v1107, %v1106
      %v1132 = vpack.c.b16 %v1109, %v1108
      %v1133 = vpack.c.b16 %v1111, %v1110
      %v1134 = vpack.c.b16 %v1113, %v1112
      %v1135 = vpack.c.b16 %v1115, %v1114
      %v1136 = vpack.c.b16 %v1117, %v1116
      %v1137 = vpack.c.b16 %v1119, %v1118
      %v1138 = vpack.c.b16 %v1121, %v1120
      %v1139 = vpack.c.b16 %v1123, %v1122
      %v1172 = vunpack.c.l.b16 %v1044
      %v1173 = vunpack.c.l.b16 %v1045
      %v1174 = vunpack.c.l.b16 %v1046
      %v1175 = vunpack.c.l.b16 %v1047
      %v1176 = vunpack.c.l.b16 %v1048
      %v1177 = vunpack.c.l.b16 %v1049
      %v1178 = vunpack.c.l.b16 %v1050
      %v1179 = vunpack.c.l.b16 %v1051
      %v1180 = vunpack.c.l.b16 %v1052
      %v1181 = vunpack.c.l.b16 %v1053
      %v1182 = vunpack.c.l.b16 %v1054
      %v1183 = vunpack.c.l.b16 %v1055
      %v1184 = vunpack.c.l.b16 %v1056
      %v1185 = vunpack.c.l.b16 %v1057
      %v1186 = vunpack.c.l.b16 %v1058
      %v1187 = vunpack.c.l.b16 %v1059
      %v1188 = vpack.c.b16 %v1173, %v1172
      %v1189 = vpack.c.b16 %v1175, %v1174
      %v1190 = vpack.c.b16 %v1177, %v1176
      %v1191 = vpack.c.b16 %v1179, %v1178
      %v1192 = vpack.c.b16 %v1181, %v1180
      %v1193 = vpack.c.b16 %v1183, %v1182
      %v1194 = vpack.c.b16 %v1185, %v1184
      %v1195 = vpack.c.b16 %v1187, %v1186
      %1204 = vmatpush.bf16.msra.mxu0 %v1195
      %1205 = vmatpush.bf16.msra.mxu0 %v1194
      %1206 = vmatpush.bf16.msra.mxu0 %v1193
      %1207 = vmatpush.bf16.msra.mxu0 %v1192
      %1208 = vmatpush.bf16.msra.mxu0 %v1191
      %1209 = vmatpush.bf16.msra.mxu0 %v1190
      %1210 = vmatpush.bf16.msra.mxu0 %v1189
      %1211 = vmatpush.bf16.msra.mxu0 %v1188
      %1212 = vmatmul.bf16.gmra.mxu0 %v1124
      %v1213 = vpop.f32.mrf.mxu0
      %v1214 = vadd.f32 0.0, %v1213
      %v1215 = vpop.f32.mrf.mxu0
      %v1216 = vadd.f32 0.0, %v1215
      %1217 = vmatmul.bf16.gmra.mxu0 %v1125
      %v1218 = vpop.f32.mrf.mxu0
      %v1219 = vadd.f32 0.0, %v1218
      %v1220 = vpop.f32.mrf.mxu0
      %v1221 = vadd.f32 0.0, %v1220
      %1222 = vmatmul.bf16.gmra.mxu0 %v1126
      %v1223 = vpop.f32.mrf.mxu0
      %v1224 = vadd.f32 0.0, %v1223
      %v1225 = vpop.f32.mrf.mxu0
      %v1226 = vadd.f32 0.0, %v1225
      %1227 = vmatmul.bf16.gmra.mxu0 %v1127
      %v1228 = vpop.f32.mrf.mxu0
      %v1229 = vadd.f32 0.0, %v1228
      %v1230 = vpop.f32.mrf.mxu0
      %v1231 = vadd.f32 0.0, %v1230
      %1232 = vmatmul.bf16.gmra.mxu0 %v1128
      %v1233 = vpop.f32.mrf.mxu0
      %v1234 = vadd.f32 0.0, %v1233
      %v1235 = vpop.f32.mrf.mxu0
      %v1236 = vadd.f32 0.0, %v1235
      %1237 = vmatmul.bf16.gmra.mxu0 %v1129
      %v1238 = vpop.f32.mrf.mxu0
      %v1239 = vadd.f32 0.0, %v1238
      %v1240 = vpop.f32.mrf.mxu0
      %v1241 = vadd.f32 0.0, %v1240
      %1242 = vmatmul.bf16.gmra.mxu0 %v1130
      %v1243 = vpop.f32.mrf.mxu0
      %v1244 = vadd.f32 0.0, %v1243
      %v1245 = vpop.f32.mrf.mxu0
      %v1246 = vadd.f32 0.0, %v1245
      %1247 = vmatmul.bf16.gmra.mxu0 %v1131
      %v1248 = vpop.f32.mrf.mxu0
      %v1249 = vadd.f32 0.0, %v1248
      %v1250 = vpop.f32.mrf.mxu0
      %v1251 = vadd.f32 0.0, %v1250
      %1252 = vmatmul.bf16.gmra.mxu0 %v1132
      %v1253 = vpop.f32.mrf.mxu0
      %v1254 = vadd.f32 0.0, %v1253
      %v1255 = vpop.f32.mrf.mxu0
      %v1256 = vadd.f32 0.0, %v1255
      %1257 = vmatmul.bf16.gmra.mxu0 %v1133
      %v1258 = vpop.f32.mrf.mxu0
      %v1259 = vadd.f32 0.0, %v1258
      %v1260 = vpop.f32.mrf.mxu0
      %v1261 = vadd.f32 0.0, %v1260
      %1262 = vmatmul.bf16.gmra.mxu0 %v1134
      %v1263 = vpop.f32.mrf.mxu0
      %v1264 = vadd.f32 0.0, %v1263
      %v1265 = vpop.f32.mrf.mxu0
      %v1266 = vadd.f32 0.0, %v1265
      %1267 = vmatmul.bf16.gmra.mxu0 %v1135
      %v1268 = vpop.f32.mrf.mxu0
      %v1269 = vadd.f32 0.0, %v1268
      %v1270 = vpop.f32.mrf.mxu0
      %v1271 = vadd.f32 0.0, %v1270
      %1272 = vmatmul.bf16.gmra.mxu0 %v1136
      %v1273 = vpop.f32.mrf.mxu0
      %v1274 = vadd.f32 0.0, %v1273
      %v1275 = vpop.f32.mrf.mxu0
      %v1276 = vadd.f32 0.0, %v1275
      %1277 = vmatmul.bf16.gmra.mxu0 %v1137
      %v1278 = vpop.f32.mrf.mxu0
      %v1279 = vadd.f32 0.0, %v1278
      %v1280 = vpop.f32.mrf.mxu0
      %v1281 = vadd.f32 0.0, %v1280
      %1282 = vmatmul.bf16.gmra.mxu0 %v1138
      %v1283 = vpop.f32.mrf.mxu0
      %v1284 = vadd.f32 0.0, %v1283
      %v1285 = vpop.f32.mrf.mxu0
      %v1286 = vadd.f32 0.0, %v1285
      %1287 = vmatmul.bf16.gmra.mxu0 %v1139
      %v1288 = vpop.f32.mrf.mxu0
      %v1289 = vadd.f32 0.0, %v1288
      %v1290 = vpop.f32.mrf.mxu0
      %v1291 = vadd.f32 0.0, %v1290
      %1292 = vdwg.mxu0
      %1293 = vst [vmem:[#allocation3] sm:$0xff] %v1214
      %1294 = vst [vmem:[#allocation3 + $0x8] sm:$0xff] %v1216
      %1295 = vst [vmem:[#allocation3 + $0x10] sm:$0xff] %v1219
      %1296 = vst [vmem:[#allocation3 + $0x18] sm:$0xff] %v1221
      %1297 = vst [vmem:[#allocation3 + $0x20] sm:$0xff] %v1224
      %1298 = vst [vmem:[#allocation3 + $0x28] sm:$0xff] %v1226
      %1299 = vst [vmem:[#allocation3 + $0x30] sm:$0xff] %v1229
      %1300 = vst [vmem:[#allocation3 + $0x38] sm:$0xff] %v1231
      %1301 = vst [vmem:[#allocation3 + $0x40] sm:$0xff] %v1234
      %1302 = vst [vmem:[#allocation3 + $0x48] sm:$0xff] %v1236
      %1303 = vst [vmem:[#allocation3 + $0x50] sm:$0xff] %v1239
      %1304 = vst [vmem:[#allocation3 + $0x58] sm:$0xff] %v1241
      %1305 = vst [vmem:[#allocation3 + $0x60] sm:$0xff] %v1244
      %1306 = vst [vmem:[#allocation3 + $0x68] sm:$0xff] %v1246
      %1307 = vst [vmem:[#allocation3 + $0x70] sm:$0xff] %v1249
      %1308 = vst [vmem:[#allocation3 + $0x78] sm:$0xff] %v1251
      %1309 = vst [vmem:[#allocation3 + $0x80] sm:$0xff] %v1254
      %1310 = vst [vmem:[#allocation3 + $0x88] sm:$0xff] %v1256
      %1311 = vst [vmem:[#allocation3 + $0x90] sm:$0xff] %v1259
      %1312 = vst [vmem:[#allocation3 + $0x98] sm:$0xff] %v1261
      %1313 = vst [vmem:[#allocation3 + $0xa0] sm:$0xff] %v1264
      %1314 = vst [vmem:[#allocation3 + $0xa8] sm:$0xff] %v1266
      %1315 = vst [vmem:[#allocation3 + $0xb0] sm:$0xff] %v1269
      %1316 = vst [vmem:[#allocation3 + $0xb8] sm:$0xff] %v1271
      %1317 = vst [vmem:[#allocation3 + $0xc0] sm:$0xff] %v1274
      %1318 = vst [vmem:[#allocation3 + $0xc8] sm:$0xff] %v1276
      %1319 = vst [vmem:[#allocation3 + $0xd0] sm:$0xff] %v1279
      %1320 = vst [vmem:[#allocation3 + $0xd8] sm:$0xff] %v1281
      %1321 = vst [vmem:[#allocation3 + $0xe0] sm:$0xff] %v1284
      %1322 = vst [vmem:[#allocation3 + $0xe8] sm:$0xff] %v1286
      %1323 = vst [vmem:[#allocation3 + $0xf0] sm:$0xff] %v1289
      %1324 = vst [vmem:[#allocation3 + $0xf8] sm:$0xff] %v1291
      %v1325 = vld [vmem:[#allocation2] sm:$0xf]
      %v1326 = vld [vmem:[#allocation2 + $0x4] sm:$0xf]
      %v1327 = vld [vmem:[#allocation2 + $0x8] sm:$0x1]
      %v1328 = vld [vmem:[#allocation2 + $0xc] sm:$0xf]
      %v1329 = vld [vmem:[#allocation2 + $0x10] sm:$0xf]
      %v1330 = vld [vmem:[#allocation2 + $0x14] sm:$0x1]
      %v1331 = vld [vmem:[#allocation2 + $0x18] sm:$0xf]
      %v1332 = vld [vmem:[#allocation2 + $0x1c] sm:$0xf]
      %v1333 = vld [vmem:[#allocation2 + $0x20] sm:$0x1]
      %v1334 = vld [vmem:[#allocation2 + $0x24] sm:$0xf]
      %v1335 = vld [vmem:[#allocation2 + $0x28] sm:$0xf]
      %v1336 = vld [vmem:[#allocation2 + $0x2c] sm:$0x1]
      %v1337 = vld [vmem:[#allocation2 + $0x30] sm:$0xf]
      %v1338 = vld [vmem:[#allocation2 + $0x34] sm:$0xf]
      %v1339 = vld [vmem:[#allocation2 + $0x38] sm:$0x1]
      %v1340 = vld [vmem:[#allocation2 + $0x3c] sm:$0xf]
      %v1341 = vld [vmem:[#allocation2 + $0x40] sm:$0xf]
      %v1342 = vld [vmem:[#allocation2 + $0x44] sm:$0x1]
      %v1343 = vld [vmem:[#allocation2 + $0x48] sm:$0xf]
      %v1344 = vld [vmem:[#allocation2 + $0x4c] sm:$0xf]
      %v1345 = vld [vmem:[#allocation2 + $0x50] sm:$0x1]
      %v1346 = vld [vmem:[#allocation2 + $0x54] sm:$0xf]
      %v1347 = vld [vmem:[#allocation2 + $0x58] sm:$0xf]
      %v1348 = vld [vmem:[#allocation2 + $0x5c] sm:$0x1]
      %v1349 = vld [vmem:[#allocation2 + $0x60] sm:$0xf]
      %v1350 = vld [vmem:[#allocation2 + $0x64] sm:$0xf]
      %v1351 = vld [vmem:[#allocation2 + $0x68] sm:$0x1]
      %v1352 = vld [vmem:[#allocation2 + $0x6c] sm:$0xf]
      %v1353 = vld [vmem:[#allocation2 + $0x70] sm:$0xf]
      %v1354 = vld [vmem:[#allocation2 + $0x74] sm:$0x1]
      %v1355 = vld [vmem:[#allocation2 + $0x78] sm:$0xf]
      %v1356 = vld [vmem:[#allocation2 + $0x7c] sm:$0xf]
      %v1357 = vld [vmem:[#allocation2 + $0x80] sm:$0x1]
      %v1358 = vld [vmem:[#allocation2 + $0x84] sm:$0xf]
      %v1359 = vld [vmem:[#allocation2 + $0x88] sm:$0xf]
      %v1360 = vld [vmem:[#allocation2 + $0x8c] sm:$0x1]
      %v1361 = vld [vmem:[#allocation2 + $0x90] sm:$0xf]
      %v1362 = vld [vmem:[#allocation2 + $0x94] sm:$0xf]
      %v1363 = vld [vmem:[#allocation2 + $0x98] sm:$0x1]
      %v1364 = vld [vmem:[#allocation2 + $0x9c] sm:$0xf]
      %v1365 = vld [vmem:[#allocation2 + $0xa0] sm:$0xf]
      %v1366 = vld [vmem:[#allocation2 + $0xa4] sm:$0x1]
      %v1367 = vld [vmem:[#allocation2 + $0xa8] sm:$0xf]
      %v1368 = vld [vmem:[#allocation2 + $0xac] sm:$0xf]
      %v1369 = vld [vmem:[#allocation2 + $0xb0] sm:$0x1]
      %v1370 = vld [vmem:[#allocation2 + $0xb4] sm:$0xf]
      %v1371 = vld [vmem:[#allocation2 + $0xb8] sm:$0xf]
      %v1372 = vld [vmem:[#allocation2 + $0xbc] sm:$0x1]
      %vm1373 = vsmask.f32 3328
      %vm1374 = vsmask.f32 7440
      %vm1375 = vmor %vm1373, %vm1374
      %v1377 = vshrl.u32 %v1325, 16
      %v1379 = vrot.slane %v1377, 4
      %v1380 = vshll.u32 %v1325, 16
      %v1382 = vrot.slane %v1380, 5
      %v1383 = vor.u32 %v1379, %v1382
      %v1384 = vrot.slane %v1383, 4
      %v1386 = vshll.u32 %v1326, 16
      %v1388 = vrot.slane %v1386, 5
      %v1389 = vsel %vm1375, %v1384, %v1388
      %v1390 = vshrl.u32 %v1326, 16
      %v1392 = vrot.slane %v1390, 4
      %v1393 = vor.u32 %v1392, %v1388
      %v1394 = vrot.slane %v1393, 4
      %v1396 = vshll.u32 %v1327, 16
      %v1398 = vrot.slane %v1396, 5
      %v1399 = vsel %vm1375, %v1394, %v1398
      %v1401 = vshrl.u32 %v1328, 16
      %v1403 = vrot.slane %v1401, 4
      %v1404 = vshll.u32 %v1328, 16
      %v1406 = vrot.slane %v1404, 5
      %v1407 = vor.u32 %v1403, %v1406
      %v1408 = vrot.slane %v1407, 4
      %v1410 = vshll.u32 %v1329, 16
      %v1412 = vrot.slane %v1410, 5
      %v1413 = vsel %vm1375, %v1408, %v1412
      %v1414 = vshrl.u32 %v1329, 16
      %v1416 = vrot.slane %v1414, 4
      %v1417 = vor.u32 %v1416, %v1412
      %v1418 = vrot.slane %v1417, 4
      %v1420 = vshll.u32 %v1330, 16
      %v1422 = vrot.slane %v1420, 5
      %v1423 = vsel %vm1375, %v1418, %v1422
      %v1425 = vshrl.u32 %v1331, 16
      %v1427 = vrot.slane %v1425, 4
      %v1428 = vshll.u32 %v1331, 16
      %v1430 = vrot.slane %v1428, 5
      %v1431 = vor.u32 %v1427, %v1430
      %v1432 = vrot.slane %v1431, 4
      %v1434 = vshll.u32 %v1332, 16
      %v1436 = vrot.slane %v1434, 5
      %v1437 = vsel %vm1375, %v1432, %v1436
      %v1438 = vshrl.u32 %v1332, 16
      %v1440 = vrot.slane %v1438, 4
      %v1441 = vor.u32 %v1440, %v1436
      %v1442 = vrot.slane %v1441, 4
      %v1444 = vshll.u32 %v1333, 16
      %v1446 = vrot.slane %v1444, 5
      %v1447 = vsel %vm1375, %v1442, %v1446
      %v1449 = vshrl.u32 %v1334, 16
      %v1451 = vrot.slane %v1449, 4
      %v1452 = vshll.u32 %v1334, 16
      %v1454 = vrot.slane %v1452, 5
      %v1455 = vor.u32 %v1451, %v1454
      %v1456 = vrot.slane %v1455, 4
      %v1458 = vshll.u32 %v1335, 16
      %v1460 = vrot.slane %v1458, 5
      %v1461 = vsel %vm1375, %v1456, %v1460
      %v1462 = vshrl.u32 %v1335, 16
      %v1464 = vrot.slane %v1462, 4
      %v1465 = vor.u32 %v1464, %v1460
      %v1466 = vrot.slane %v1465, 4
      %v1468 = vshll.u32 %v1336, 16
      %v1470 = vrot.slane %v1468, 5
      %v1471 = vsel %vm1375, %v1466, %v1470
      %v1473 = vshrl.u32 %v1337, 16
      %v1475 = vrot.slane %v1473, 4
      %v1476 = vshll.u32 %v1337, 16
      %v1478 = vrot.slane %v1476, 5
      %v1479 = vor.u32 %v1475, %v1478
      %v1480 = vrot.slane %v1479, 4
      %v1482 = vshll.u32 %v1338, 16
      %v1484 = vrot.slane %v1482, 5
      %v1485 = vsel %vm1375, %v1480, %v1484
      %v1486 = vshrl.u32 %v1338, 16
      %v1488 = vrot.slane %v1486, 4
      %v1489 = vor.u32 %v1488, %v1484
      %v1490 = vrot.slane %v1489, 4
      %v1492 = vshll.u32 %v1339, 16
      %v1494 = vrot.slane %v1492, 5
      %v1495 = vsel %vm1375, %v1490, %v1494
      %v1497 = vshrl.u32 %v1340, 16
      %v1499 = vrot.slane %v1497, 4
      %v1500 = vshll.u32 %v1340, 16
      %v1502 = vrot.slane %v1500, 5
      %v1503 = vor.u32 %v1499, %v1502
      %v1504 = vrot.slane %v1503, 4
      %v1506 = vshll.u32 %v1341, 16
      %v1508 = vrot.slane %v1506, 5
      %v1509 = vsel %vm1375, %v1504, %v1508
      %v1510 = vshrl.u32 %v1341, 16
      %v1512 = vrot.slane %v1510, 4
      %v1513 = vor.u32 %v1512, %v1508
      %v1514 = vrot.slane %v1513, 4
      %v1516 = vshll.u32 %v1342, 16
      %v1518 = vrot.slane %v1516, 5
      %v1519 = vsel %vm1375, %v1514, %v1518
      %v1521 = vshrl.u32 %v1343, 16
      %v1523 = vrot.slane %v1521, 4
      %v1524 = vshll.u32 %v1343, 16
      %v1526 = vrot.slane %v1524, 5
      %v1527 = vor.u32 %v1523, %v1526
      %v1528 = vrot.slane %v1527, 4
      %v1530 = vshll.u32 %v1344, 16
      %v1532 = vrot.slane %v1530, 5
      %v1533 = vsel %vm1375, %v1528, %v1532
      %v1534 = vshrl.u32 %v1344, 16
      %v1536 = vrot.slane %v1534, 4
      %v1537 = vor.u32 %v1536, %v1532
      %v1538 = vrot.slane %v1537, 4
      %v1540 = vshll.u32 %v1345, 16
      %v1542 = vrot.slane %v1540, 5
      %v1543 = vsel %vm1375, %v1538, %v1542
      %v1545 = vshrl.u32 %v1346, 16
      %v1547 = vrot.slane %v1545, 4
      %v1548 = vshll.u32 %v1346, 16
      %v1550 = vrot.slane %v1548, 5
      %v1551 = vor.u32 %v1547, %v1550
      %v1552 = vrot.slane %v1551, 4
      %v1554 = vshll.u32 %v1347, 16
      %v1556 = vrot.slane %v1554, 5
      %v1557 = vsel %vm1375, %v1552, %v1556
      %v1558 = vshrl.u32 %v1347, 16
      %v1560 = vrot.slane %v1558, 4
      %v1561 = vor.u32 %v1560, %v1556
      %v1562 = vrot.slane %v1561, 4
      %v1564 = vshll.u32 %v1348, 16
      %v1566 = vrot.slane %v1564, 5
      %v1567 = vsel %vm1375, %v1562, %v1566
      %v1569 = vshrl.u32 %v1349, 16
      %v1571 = vrot.slane %v1569, 4
      %v1572 = vshll.u32 %v1349, 16
      %v1574 = vrot.slane %v1572, 5
      %v1575 = vor.u32 %v1571, %v1574
      %v1576 = vrot.slane %v1575, 4
      %v1578 = vshll.u32 %v1350, 16
      %v1580 = vrot.slane %v1578, 5
      %v1581 = vsel %vm1375, %v1576, %v1580
      %v1582 = vshrl.u32 %v1350, 16
      %v1584 = vrot.slane %v1582, 4
      %v1585 = vor.u32 %v1584, %v1580
      %v1586 = vrot.slane %v1585, 4
      %v1588 = vshll.u32 %v1351, 16
      %v1590 = vrot.slane %v1588, 5
      %v1591 = vsel %vm1375, %v1586, %v1590
      %v1593 = vshrl.u32 %v1352, 16
      %v1595 = vrot.slane %v1593, 4
      %v1596 = vshll.u32 %v1352, 16
      %v1598 = vrot.slane %v1596, 5
      %v1599 = vor.u32 %v1595, %v1598
      %v1600 = vrot.slane %v1599, 4
      %v1602 = vshll.u32 %v1353, 16
      %v1604 = vrot.slane %v1602, 5
      %v1605 = vsel %vm1375, %v1600, %v1604
      %v1606 = vshrl.u32 %v1353, 16
      %v1608 = vrot.slane %v1606, 4
      %v1609 = vor.u32 %v1608, %v1604
      %v1610 = vrot.slane %v1609, 4
      %v1612 = vshll.u32 %v1354, 16
      %v1614 = vrot.slane %v1612, 5
      %v1615 = vsel %vm1375, %v1610, %v1614
      %v1617 = vshrl.u32 %v1355, 16
      %v1619 = vrot.slane %v1617, 4
      %v1620 = vshll.u32 %v1355, 16
      %v1622 = vrot.slane %v1620, 5
      %v1623 = vor.u32 %v1619, %v1622
      %v1624 = vrot.slane %v1623, 4
      %v1626 = vshll.u32 %v1356, 16
      %v1628 = vrot.slane %v1626, 5
      %v1629 = vsel %vm1375, %v1624, %v1628
      %v1630 = vshrl.u32 %v1356, 16
      %v1632 = vrot.slane %v1630, 4
      %v1633 = vor.u32 %v1632, %v1628
      %v1634 = vrot.slane %v1633, 4
      %v1636 = vshll.u32 %v1357, 16
      %v1638 = vrot.slane %v1636, 5
      %v1639 = vsel %vm1375, %v1634, %v1638
      %v1641 = vshrl.u32 %v1358, 16
      %v1643 = vrot.slane %v1641, 4
      %v1644 = vshll.u32 %v1358, 16
      %v1646 = vrot.slane %v1644, 5
      %v1647 = vor.u32 %v1643, %v1646
      %v1648 = vrot.slane %v1647, 4
      %v1650 = vshll.u32 %v1359, 16
      %v1652 = vrot.slane %v1650, 5
      %v1653 = vsel %vm1375, %v1648, %v1652
      %v1654 = vshrl.u32 %v1359, 16
      %v1656 = vrot.slane %v1654, 4
      %v1657 = vor.u32 %v1656, %v1652
      %v1658 = vrot.slane %v1657, 4
      %v1660 = vshll.u32 %v1360, 16
      %v1662 = vrot.slane %v1660, 5
      %v1663 = vsel %vm1375, %v1658, %v1662
      %v1665 = vshrl.u32 %v1361, 16
      %v1667 = vrot.slane %v1665, 4
      %v1668 = vshll.u32 %v1361, 16
      %v1670 = vrot.slane %v1668, 5
      %v1671 = vor.u32 %v1667, %v1670
      %v1672 = vrot.slane %v1671, 4
      %v1674 = vshll.u32 %v1362, 16
      %v1676 = vrot.slane %v1674, 5
      %v1677 = vsel %vm1375, %v1672, %v1676
      %v1678 = vshrl.u32 %v1362, 16
      %v1680 = vrot.slane %v1678, 4
      %v1681 = vor.u32 %v1680, %v1676
      %v1682 = vrot.slane %v1681, 4
      %v1684 = vshll.u32 %v1363, 16
      %v1686 = vrot.slane %v1684, 5
      %v1687 = vsel %vm1375, %v1682, %v1686
      %v1689 = vshrl.u32 %v1364, 16
      %v1691 = vrot.slane %v1689, 4
      %v1692 = vshll.u32 %v1364, 16
      %v1694 = vrot.slane %v1692, 5
      %v1695 = vor.u32 %v1691, %v1694
      %v1696 = vrot.slane %v1695, 4
      %v1698 = vshll.u32 %v1365, 16
      %v1700 = vrot.slane %v1698, 5
      %v1701 = vsel %vm1375, %v1696, %v1700
      %v1702 = vshrl.u32 %v1365, 16
      %v1704 = vrot.slane %v1702, 4
      %v1705 = vor.u32 %v1704, %v1700
      %v1706 = vrot.slane %v1705, 4
      %v1708 = vshll.u32 %v1366, 16
      %v1710 = vrot.slane %v1708, 5
      %v1711 = vsel %vm1375, %v1706, %v1710
      %v1713 = vshrl.u32 %v1367, 16
      %v1715 = vrot.slane %v1713, 4
      %v1716 = vshll.u32 %v1367, 16
      %v1718 = vrot.slane %v1716, 5
      %v1719 = vor.u32 %v1715, %v1718
      %v1720 = vrot.slane %v1719, 4
      %v1722 = vshll.u32 %v1368, 16
      %v1724 = vrot.slane %v1722, 5
      %v1725 = vsel %vm1375, %v1720, %v1724
      %v1726 = vshrl.u32 %v1368, 16
      %v1728 = vrot.slane %v1726, 4
      %v1729 = vor.u32 %v1728, %v1724
      %v1730 = vrot.slane %v1729, 4
      %v1732 = vshll.u32 %v1369, 16
      %v1734 = vrot.slane %v1732, 5
      %v1735 = vsel %vm1375, %v1730, %v1734
      %v1737 = vshrl.u32 %v1370, 16
      %v1739 = vrot.slane %v1737, 4
      %v1740 = vshll.u32 %v1370, 16
      %v1742 = vrot.slane %v1740, 5
      %v1743 = vor.u32 %v1739, %v1742
      %v1744 = vrot.slane %v1743, 4
      %v1746 = vshll.u32 %v1371, 16
      %v1748 = vrot.slane %v1746, 5
      %v1749 = vsel %vm1375, %v1744, %v1748
      %v1750 = vshrl.u32 %v1371, 16
      %v1752 = vrot.slane %v1750, 4
      %v1753 = vor.u32 %v1752, %v1748
      %v1754 = vrot.slane %v1753, 4
      %v1756 = vshll.u32 %v1372, 16
      %v1758 = vrot.slane %v1756, 5
      %v1759 = vsel %vm1375, %v1754, %v1758
      %s1760 = scalar_lea.vmem %s1, 64
      %v1761 = vld [vmem:[%s1760] sm:$0xf]
      %v1762 = vld [vmem:[%s1760 + $0x4] sm:$0xf]
      %v1763 = vld [vmem:[%s1760 + $0x8] sm:$0xf]
      %v1764 = vld [vmem:[%s1760 + $0xc] sm:$0xf]
      %v1765 = vld [vmem:[%s1760 + $0x10] sm:$0xf]
      %v1766 = vld [vmem:[%s1760 + $0x14] sm:$0xf]
      %v1767 = vld [vmem:[%s1760 + $0x18] sm:$0xf]
      %v1768 = vld [vmem:[%s1760 + $0x1c] sm:$0xf]
      %v1769 = vld [vmem:[%s1760 + $0x20] sm:$0xf]
      %v1770 = vld [vmem:[%s1760 + $0x24] sm:$0xf]
      %v1771 = vld [vmem:[%s1760 + $0x28] sm:$0xf]
      %v1772 = vld [vmem:[%s1760 + $0x2c] sm:$0xf]
      %v1773 = vld [vmem:[%s1760 + $0x30] sm:$0xf]
      %v1774 = vld [vmem:[%s1760 + $0x34] sm:$0xf]
      %v1775 = vld [vmem:[%s1760 + $0x38] sm:$0xf]
      %v1776 = vld [vmem:[%s1760 + $0x3c] sm:$0xf]
      %v1777 = vunpack.c.l.b16 %v1389
      %v1778 = vunpack.c.l.b16 %v1399
      %v1779 = vunpack.c.l.b16 %v1413
      %v1780 = vunpack.c.l.b16 %v1423
      %v1781 = vunpack.c.l.b16 %v1437
      %v1782 = vunpack.c.l.b16 %v1447
      %v1783 = vunpack.c.l.b16 %v1461
      %v1784 = vunpack.c.l.b16 %v1471
      %v1785 = vunpack.c.l.b16 %v1485
      %v1786 = vunpack.c.l.b16 %v1495
      %v1787 = vunpack.c.l.b16 %v1509
      %v1788 = vunpack.c.l.b16 %v1519
      %v1789 = vunpack.c.l.b16 %v1533
      %v1790 = vunpack.c.l.b16 %v1543
      %v1791 = vunpack.c.l.b16 %v1557
      %v1792 = vunpack.c.l.b16 %v1567
      %v1793 = vunpack.c.l.b16 %v1581
      %v1794 = vunpack.c.l.b16 %v1591
      %v1795 = vunpack.c.l.b16 %v1605
      %v1796 = vunpack.c.l.b16 %v1615
      %v1797 = vunpack.c.l.b16 %v1629
      %v1798 = vunpack.c.l.b16 %v1639
      %v1799 = vunpack.c.l.b16 %v1653
      %v1800 = vunpack.c.l.b16 %v1663
      %v1801 = vunpack.c.l.b16 %v1677
      %v1802 = vunpack.c.l.b16 %v1687
      %v1803 = vunpack.c.l.b16 %v1701
      %v1804 = vunpack.c.l.b16 %v1711
      %v1805 = vunpack.c.l.b16 %v1725
      %v1806 = vunpack.c.l.b16 %v1735
      %v1807 = vunpack.c.l.b16 %v1749
      %v1808 = vunpack.c.l.b16 %v1759
      %v1809 = vpack.c.b16 %v1778, %v1777
      %v1810 = vpack.c.b16 %v1780, %v1779
      %v1811 = vpack.c.b16 %v1782, %v1781
      %v1812 = vpack.c.b16 %v1784, %v1783
      %v1813 = vpack.c.b16 %v1786, %v1785
      %v1814 = vpack.c.b16 %v1788, %v1787
      %v1815 = vpack.c.b16 %v1790, %v1789
      %v1816 = vpack.c.b16 %v1792, %v1791
      %v1817 = vpack.c.b16 %v1794, %v1793
      %v1818 = vpack.c.b16 %v1796, %v1795
      %v1819 = vpack.c.b16 %v1798, %v1797
      %v1820 = vpack.c.b16 %v1800, %v1799
      %v1821 = vpack.c.b16 %v1802, %v1801
      %v1822 = vpack.c.b16 %v1804, %v1803
      %v1823 = vpack.c.b16 %v1806, %v1805
      %v1824 = vpack.c.b16 %v1808, %v1807
      %v1857 = vunpack.c.l.b16 %v1761
      %v1858 = vunpack.c.l.b16 %v1762
      %v1859 = vunpack.c.l.b16 %v1763
      %v1860 = vunpack.c.l.b16 %v1764
      %v1861 = vunpack.c.l.b16 %v1765
      %v1862 = vunpack.c.l.b16 %v1766
      %v1863 = vunpack.c.l.b16 %v1767
      %v1864 = vunpack.c.l.b16 %v1768
      %v1865 = vunpack.c.l.b16 %v1769
      %v1866 = vunpack.c.l.b16 %v1770
      %v1867 = vunpack.c.l.b16 %v1771
      %v1868 = vunpack.c.l.b16 %v1772
      %v1869 = vunpack.c.l.b16 %v1773
      %v1870 = vunpack.c.l.b16 %v1774
      %v1871 = vunpack.c.l.b16 %v1775
      %v1872 = vunpack.c.l.b16 %v1776
      %v1873 = vpack.c.b16 %v1858, %v1857
      %v1874 = vpack.c.b16 %v1860, %v1859
      %v1875 = vpack.c.b16 %v1862, %v1861
      %v1876 = vpack.c.b16 %v1864, %v1863
      %v1877 = vpack.c.b16 %v1866, %v1865
      %v1878 = vpack.c.b16 %v1868, %v1867
      %v1879 = vpack.c.b16 %v1870, %v1869
      %v1880 = vpack.c.b16 %v1872, %v1871
      %1889 = vmatpush.bf16.msra.mxu0 %v1880
      %1890 = vmatpush.bf16.msra.mxu0 %v1879
      %1891 = vmatpush.bf16.msra.mxu0 %v1878
      %1892 = vmatpush.bf16.msra.mxu0 %v1877
      %1893 = vmatpush.bf16.msra.mxu0 %v1876
      %1894 = vmatpush.bf16.msra.mxu0 %v1875
      %1895 = vmatpush.bf16.msra.mxu0 %v1874
      %1896 = vmatpush.bf16.msra.mxu0 %v1873
      %1897 = vmatmul.bf16.gmra.mxu0 %v1809
      %v1898 = vpop.f32.mrf.mxu0
      %v1899 = vadd.f32 0.0, %v1898
      %v1900 = vpop.f32.mrf.mxu0
      %v1901 = vadd.f32 0.0, %v1900
      %1902 = vmatmul.bf16.gmra.mxu0 %v1810
      %v1903 = vpop.f32.mrf.mxu0
      %v1904 = vadd.f32 0.0, %v1903
      %v1905 = vpop.f32.mrf.mxu0
      %v1906 = vadd.f32 0.0, %v1905
      %1907 = vmatmul.bf16.gmra.mxu0 %v1811
      %v1908 = vpop.f32.mrf.mxu0
      %v1909 = vadd.f32 0.0, %v1908
      %v1910 = vpop.f32.mrf.mxu0
      %v1911 = vadd.f32 0.0, %v1910
      %1912 = vmatmul.bf16.gmra.mxu0 %v1812
      %v1913 = vpop.f32.mrf.mxu0
      %v1914 = vadd.f32 0.0, %v1913
      %v1915 = vpop.f32.mrf.mxu0
      %v1916 = vadd.f32 0.0, %v1915
      %1917 = vmatmul.bf16.gmra.mxu0 %v1813
      %v1918 = vpop.f32.mrf.mxu0
      %v1919 = vadd.f32 0.0, %v1918
      %v1920 = vpop.f32.mrf.mxu0
      %v1921 = vadd.f32 0.0, %v1920
      %1922 = vmatmul.bf16.gmra.mxu0 %v1814
      %v1923 = vpop.f32.mrf.mxu0
      %v1924 = vadd.f32 0.0, %v1923
      %v1925 = vpop.f32.mrf.mxu0
      %v1926 = vadd.f32 0.0, %v1925
      %1927 = vmatmul.bf16.gmra.mxu0 %v1815
      %v1928 = vpop.f32.mrf.mxu0
      %v1929 = vadd.f32 0.0, %v1928
      %v1930 = vpop.f32.mrf.mxu0
      %v1931 = vadd.f32 0.0, %v1930
      %1932 = vmatmul.bf16.gmra.mxu0 %v1816
      %v1933 = vpop.f32.mrf.mxu0
      %v1934 = vadd.f32 0.0, %v1933
      %v1935 = vpop.f32.mrf.mxu0
      %v1936 = vadd.f32 0.0, %v1935
      %1937 = vmatmul.bf16.gmra.mxu0 %v1817
      %v1938 = vpop.f32.mrf.mxu0
      %v1939 = vadd.f32 0.0, %v1938
      %v1940 = vpop.f32.mrf.mxu0
      %v1941 = vadd.f32 0.0, %v1940
      %1942 = vmatmul.bf16.gmra.mxu0 %v1818
      %v1943 = vpop.f32.mrf.mxu0
      %v1944 = vadd.f32 0.0, %v1943
      %v1945 = vpop.f32.mrf.mxu0
      %v1946 = vadd.f32 0.0, %v1945
      %1947 = vmatmul.bf16.gmra.mxu0 %v1819
      %v1948 = vpop.f32.mrf.mxu0
      %v1949 = vadd.f32 0.0, %v1948
      %v1950 = vpop.f32.mrf.mxu0
      %v1951 = vadd.f32 0.0, %v1950
      %1952 = vmatmul.bf16.gmra.mxu0 %v1820
      %v1953 = vpop.f32.mrf.mxu0
      %v1954 = vadd.f32 0.0, %v1953
      %v1955 = vpop.f32.mrf.mxu0
      %v1956 = vadd.f32 0.0, %v1955
      %1957 = vmatmul.bf16.gmra.mxu0 %v1821
      %v1958 = vpop.f32.mrf.mxu0
      %v1959 = vadd.f32 0.0, %v1958
      %v1960 = vpop.f32.mrf.mxu0
      %v1961 = vadd.f32 0.0, %v1960
      %1962 = vmatmul.bf16.gmra.mxu0 %v1822
      %v1963 = vpop.f32.mrf.mxu0
      %v1964 = vadd.f32 0.0, %v1963
      %v1965 = vpop.f32.mrf.mxu0
      %v1966 = vadd.f32 0.0, %v1965
      %1967 = vmatmul.bf16.gmra.mxu0 %v1823
      %v1968 = vpop.f32.mrf.mxu0
      %v1969 = vadd.f32 0.0, %v1968
      %v1970 = vpop.f32.mrf.mxu0
      %v1971 = vadd.f32 0.0, %v1970
      %1972 = vmatmul.bf16.gmra.mxu0 %v1824
      %v1973 = vpop.f32.mrf.mxu0
      %v1974 = vadd.f32 0.0, %v1973
      %v1975 = vpop.f32.mrf.mxu0
      %v1976 = vadd.f32 0.0, %v1975
      %1977 = vdwg.mxu0
      %v1978 = vld [vmem:[#allocation3] sm:$0xff]
      %v1979 = vld [vmem:[#allocation3 + $0x8] sm:$0xff]
      %v1980 = vld [vmem:[#allocation3 + $0x10] sm:$0xff]
      %v1981 = vld [vmem:[#allocation3 + $0x18] sm:$0xff]
      %v1982 = vld [vmem:[#allocation3 + $0x20] sm:$0xff]
      %v1983 = vld [vmem:[#allocation3 + $0x28] sm:$0xff]
      %v1984 = vld [vmem:[#allocation3 + $0x30] sm:$0xff]
      %v1985 = vld [vmem:[#allocation3 + $0x38] sm:$0xff]
      %v1986 = vld [vmem:[#allocation3 + $0x40] sm:$0xff]
      %v1987 = vld [vmem:[#allocation3 + $0x48] sm:$0xff]
      %v1988 = vld [vmem:[#allocation3 + $0x50] sm:$0xff]
      %v1989 = vld [vmem:[#allocation3 + $0x58] sm:$0xff]
      %v1990 = vld [vmem:[#allocation3 + $0x60] sm:$0xff]
      %v1991 = vld [vmem:[#allocation3 + $0x68] sm:$0xff]
      %v1992 = vld [vmem:[#allocation3 + $0x70] sm:$0xff]
      %v1993 = vld [vmem:[#allocation3 + $0x78] sm:$0xff]
      %v1994 = vld [vmem:[#allocation3 + $0x80] sm:$0xff]
      %v1995 = vld [vmem:[#allocation3 + $0x88] sm:$0xff]
      %v1996 = vld [vmem:[#allocation3 + $0x90] sm:$0xff]
      %v1997 = vld [vmem:[#allocation3 + $0x98] sm:$0xff]
      %v1998 = vld [vmem:[#allocation3 + $0xa0] sm:$0xff]
      %v1999 = vld [vmem:[#allocation3 + $0xa8] sm:$0xff]
      %v2000 = vld [vmem:[#allocation3 + $0xb0] sm:$0xff]
      %v2001 = vld [vmem:[#allocation3 + $0xb8] sm:$0xff]
      %v2002 = vld [vmem:[#allocation3 + $0xc0] sm:$0xff]
      %v2003 = vld [vmem:[#allocation3 + $0xc8] sm:$0xff]
      %v2004 = vld [vmem:[#allocation3 + $0xd0] sm:$0xff]
      %v2005 = vld [vmem:[#allocation3 + $0xd8] sm:$0xff]
      %v2006 = vld [vmem:[#allocation3 + $0xe0] sm:$0xff]
      %v2007 = vld [vmem:[#allocation3 + $0xe8] sm:$0xff]
      %v2008 = vld [vmem:[#allocation3 + $0xf0] sm:$0xff]
      %v2009 = vld [vmem:[#allocation3 + $0xf8] sm:$0xff]
      %v2010 = vadd.f32 %v1978, %v1899
      %v2011 = vadd.f32 %v1979, %v1901
      %v2012 = vadd.f32 %v1980, %v1904
      %v2013 = vadd.f32 %v1981, %v1906
      %v2014 = vadd.f32 %v1982, %v1909
      %v2015 = vadd.f32 %v1983, %v1911
      %v2016 = vadd.f32 %v1984, %v1914
      %v2017 = vadd.f32 %v1985, %v1916
      %v2018 = vadd.f32 %v1986, %v1919
      %v2019 = vadd.f32 %v1987, %v1921
      %v2020 = vadd.f32 %v1988, %v1924
      %v2021 = vadd.f32 %v1989, %v1926
      %v2022 = vadd.f32 %v1990, %v1929
      %v2023 = vadd.f32 %v1991, %v1931
      %v2024 = vadd.f32 %v1992, %v1934
      %v2025 = vadd.f32 %v1993, %v1936
      %v2026 = vadd.f32 %v1994, %v1939
      %v2027 = vadd.f32 %v1995, %v1941
      %v2028 = vadd.f32 %v1996, %v1944
      %v2029 = vadd.f32 %v1997, %v1946
      %v2030 = vadd.f32 %v1998, %v1949
      %v2031 = vadd.f32 %v1999, %v1951
      %v2032 = vadd.f32 %v2000, %v1954
      %v2033 = vadd.f32 %v2001, %v1956
      %v2034 = vadd.f32 %v2002, %v1959
      %v2035 = vadd.f32 %v2003, %v1961
      %v2036 = vadd.f32 %v2004, %v1964
      %v2037 = vadd.f32 %v2005, %v1966
      %v2038 = vadd.f32 %v2006, %v1969
      %v2039 = vadd.f32 %v2007, %v1971
      %v2040 = vadd.f32 %v2008, %v1974
      %v2041 = vadd.f32 %v2009, %v1976
      %2042 = vst [vmem:[#allocation3] sm:$0xff] %v2010
      %2043 = vst [vmem:[#allocation3 + $0x8] sm:$0xff] %v2011
      %2044 = vst [vmem:[#allocation3 + $0x10] sm:$0xff] %v2012
      %2045 = vst [vmem:[#allocation3 + $0x18] sm:$0xff] %v2013
      %2046 = vst [vmem:[#allocation3 + $0x20] sm:$0xff] %v2014
      %2047 = vst [vmem:[#allocation3 + $0x28] sm:$0xff] %v2015
      %2048 = vst [vmem:[#allocation3 + $0x30] sm:$0xff] %v2016
      %2049 = vst [vmem:[#allocation3 + $0x38] sm:$0xff] %v2017
      %2050 = vst [vmem:[#allocation3 + $0x40] sm:$0xff] %v2018
      %2051 = vst [vmem:[#allocation3 + $0x48] sm:$0xff] %v2019
      %2052 = vst [vmem:[#allocation3 + $0x50] sm:$0xff] %v2020
      %2053 = vst [vmem:[#allocation3 + $0x58] sm:$0xff] %v2021
      %2054 = vst [vmem:[#allocation3 + $0x60] sm:$0xff] %v2022
      %2055 = vst [vmem:[#allocation3 + $0x68] sm:$0xff] %v2023
      %2056 = vst [vmem:[#allocation3 + $0x70] sm:$0xff] %v2024
      %2057 = vst [vmem:[#allocation3 + $0x78] sm:$0xff] %v2025
      %2058 = vst [vmem:[#allocation3 + $0x80] sm:$0xff] %v2026
      %2059 = vst [vmem:[#allocation3 + $0x88] sm:$0xff] %v2027
      %2060 = vst [vmem:[#allocation3 + $0x90] sm:$0xff] %v2028
      %2061 = vst [vmem:[#allocation3 + $0x98] sm:$0xff] %v2029
      %2062 = vst [vmem:[#allocation3 + $0xa0] sm:$0xff] %v2030
      %2063 = vst [vmem:[#allocation3 + $0xa8] sm:$0xff] %v2031
      %2064 = vst [vmem:[#allocation3 + $0xb0] sm:$0xff] %v2032
      %2065 = vst [vmem:[#allocation3 + $0xb8] sm:$0xff] %v2033
      %2066 = vst [vmem:[#allocation3 + $0xc0] sm:$0xff] %v2034
      %2067 = vst [vmem:[#allocation3 + $0xc8] sm:$0xff] %v2035
      %2068 = vst [vmem:[#allocation3 + $0xd0] sm:$0xff] %v2036
      %2069 = vst [vmem:[#allocation3 + $0xd8] sm:$0xff] %v2037
      %2070 = vst [vmem:[#allocation3 + $0xe0] sm:$0xff] %v2038
      %2071 = vst [vmem:[#allocation3 + $0xe8] sm:$0xff] %v2039
      %2072 = vst [vmem:[#allocation3 + $0xf0] sm:$0xff] %v2040
      %2073 = vst [vmem:[#allocation3 + $0xf8] sm:$0xff] %v2041
      %v2074 = vld [vmem:[#allocation2] sm:$0xe]
      %v2075 = vld [vmem:[#allocation2 + $0x4] sm:$0xf]
      %v2076 = vld [vmem:[#allocation2 + $0x8] sm:$0x1]
      %v2077 = vld [vmem:[#allocation2 + $0xc] sm:$0xe]
      %v2078 = vld [vmem:[#allocation2 + $0x10] sm:$0xf]
      %v2079 = vld [vmem:[#allocation2 + $0x14] sm:$0x1]
      %v2080 = vld [vmem:[#allocation2 + $0x18] sm:$0xe]
      %v2081 = vld [vmem:[#allocation2 + $0x1c] sm:$0xf]
      %v2082 = vld [vmem:[#allocation2 + $0x20] sm:$0x1]
      %v2083 = vld [vmem:[#allocation2 + $0x24] sm:$0xe]
      %v2084 = vld [vmem:[#allocation2 + $0x28] sm:$0xf]
      %v2085 = vld [vmem:[#allocation2 + $0x2c] sm:$0x1]
      %v2086 = vld [vmem:[#allocation2 + $0x30] sm:$0xe]
      %v2087 = vld [vmem:[#allocation2 + $0x34] sm:$0xf]
      %v2088 = vld [vmem:[#allocation2 + $0x38] sm:$0x1]
      %v2089 = vld [vmem:[#allocation2 + $0x3c] sm:$0xe]
      %v2090 = vld [vmem:[#allocation2 + $0x40] sm:$0xf]
      %v2091 = vld [vmem:[#allocation2 + $0x44] sm:$0x1]
      %v2092 = vld [vmem:[#allocation2 + $0x48] sm:$0xe]
      %v2093 = vld [vmem:[#allocation2 + $0x4c] sm:$0xf]
      %v2094 = vld [vmem:[#allocation2 + $0x50] sm:$0x1]
      %v2095 = vld [vmem:[#allocation2 + $0x54] sm:$0xe]
      %v2096 = vld [vmem:[#allocation2 + $0x58] sm:$0xf]
      %v2097 = vld [vmem:[#allocation2 + $0x5c] sm:$0x1]
      %v2098 = vld [vmem:[#allocation2 + $0x60] sm:$0xe]
      %v2099 = vld [vmem:[#allocation2 + $0x64] sm:$0xf]
      %v2100 = vld [vmem:[#allocation2 + $0x68] sm:$0x1]
      %v2101 = vld [vmem:[#allocation2 + $0x6c] sm:$0xe]
      %v2102 = vld [vmem:[#allocation2 + $0x70] sm:$0xf]
      %v2103 = vld [vmem:[#allocation2 + $0x74] sm:$0x1]
      %v2104 = vld [vmem:[#allocation2 + $0x78] sm:$0xe]
      %v2105 = vld [vmem:[#allocation2 + $0x7c] sm:$0xf]
      %v2106 = vld [vmem:[#allocation2 + $0x80] sm:$0x1]
      %v2107 = vld [vmem:[#allocation2 + $0x84] sm:$0xe]
      %v2108 = vld [vmem:[#allocation2 + $0x88] sm:$0xf]
      %v2109 = vld [vmem:[#allocation2 + $0x8c] sm:$0x1]
      %v2110 = vld [vmem:[#allocation2 + $0x90] sm:$0xe]
      %v2111 = vld [vmem:[#allocation2 + $0x94] sm:$0xf]
      %v2112 = vld [vmem:[#allocation2 + $0x98] sm:$0x1]
      %v2113 = vld [vmem:[#allocation2 + $0x9c] sm:$0xe]
      %v2114 = vld [vmem:[#allocation2 + $0xa0] sm:$0xf]
      %v2115 = vld [vmem:[#allocation2 + $0xa4] sm:$0x1]
      %v2116 = vld [vmem:[#allocation2 + $0xa8] sm:$0xe]
      %v2117 = vld [vmem:[#allocation2 + $0xac] sm:$0xf]
      %v2118 = vld [vmem:[#allocation2 + $0xb0] sm:$0x1]
      %v2119 = vld [vmem:[#allocation2 + $0xb4] sm:$0xe]
      %v2120 = vld [vmem:[#allocation2 + $0xb8] sm:$0xf]
      %v2121 = vld [vmem:[#allocation2 + $0xbc] sm:$0x1]
      %vm2170 = vcmask 1042432
      %vm2171 = vcmask 1046532
      %vm2172 = vmor %vm2170, %vm2171
      %v2173 = vrot.slane %v2074, 5
      %v2174 = vrot.slane %v2173, 4
      %v2175 = vrot.slane %v2075, 5
      %v2176 = vsel %vm2172, %v2174, %v2175
      %v2177 = vrot.slane %v2175, 4
      %v2178 = vrot.slane %v2076, 5
      %v2179 = vsel %vm2172, %v2177, %v2178
      %v2180 = vrot.slane %v2077, 5
      %v2181 = vrot.slane %v2180, 4
      %v2182 = vrot.slane %v2078, 5
      %v2183 = vsel %vm2172, %v2181, %v2182
      %v2184 = vrot.slane %v2182, 4
      %v2185 = vrot.slane %v2079, 5
      %v2186 = vsel %vm2172, %v2184, %v2185
      %v2187 = vrot.slane %v2080, 5
      %v2188 = vrot.slane %v2187, 4
      %v2189 = vrot.slane %v2081, 5
      %v2190 = vsel %vm2172, %v2188, %v2189
      %v2191 = vrot.slane %v2189, 4
      %v2192 = vrot.slane %v2082, 5
      %v2193 = vsel %vm2172, %v2191, %v2192
      %v2194 = vrot.slane %v2083, 5
      %v2195 = vrot.slane %v2194, 4
      %v2196 = vrot.slane %v2084, 5
      %v2197 = vsel %vm2172, %v2195, %v2196
      %v2198 = vrot.slane %v2196, 4
      %v2199 = vrot.slane %v2085, 5
      %v2200 = vsel %vm2172, %v2198, %v2199
      %v2201 = vrot.slane %v2086, 5
      %v2202 = vrot.slane %v2201, 4
      %v2203 = vrot.slane %v2087, 5
      %v2204 = vsel %vm2172, %v2202, %v2203
      %v2205 = vrot.slane %v2203, 4
      %v2206 = vrot.slane %v2088, 5
      %v2207 = vsel %vm2172, %v2205, %v2206
      %v2208 = vrot.slane %v2089, 5
      %v2209 = vrot.slane %v2208, 4
      %v2210 = vrot.slane %v2090, 5
      %v2211 = vsel %vm2172, %v2209, %v2210
      %v2212 = vrot.slane %v2210, 4
      %v2213 = vrot.slane %v2091, 5
      %v2214 = vsel %vm2172, %v2212, %v2213
      %v2215 = vrot.slane %v2092, 5
      %v2216 = vrot.slane %v2215, 4
      %v2217 = vrot.slane %v2093, 5
      %v2218 = vsel %vm2172, %v2216, %v2217
      %v2219 = vrot.slane %v2217, 4
      %v2220 = vrot.slane %v2094, 5
      %v2221 = vsel %vm2172, %v2219, %v2220
      %v2222 = vrot.slane %v2095, 5
      %v2223 = vrot.slane %v2222, 4
      %v2224 = vrot.slane %v2096, 5
      %v2225 = vsel %vm2172, %v2223, %v2224
      %v2226 = vrot.slane %v2224, 4
      %v2227 = vrot.slane %v2097, 5
      %v2228 = vsel %vm2172, %v2226, %v2227
      %v2229 = vrot.slane %v2098, 5
      %v2230 = vrot.slane %v2229, 4
      %v2231 = vrot.slane %v2099, 5
      %v2232 = vsel %vm2172, %v2230, %v2231
      %v2233 = vrot.slane %v2231, 4
      %v2234 = vrot.slane %v2100, 5
      %v2235 = vsel %vm2172, %v2233, %v2234
      %v2236 = vrot.slane %v2101, 5
      %v2237 = vrot.slane %v2236, 4
      %v2238 = vrot.slane %v2102, 5
      %v2239 = vsel %vm2172, %v2237, %v2238
      %v2240 = vrot.slane %v2238, 4
      %v2241 = vrot.slane %v2103, 5
      %v2242 = vsel %vm2172, %v2240, %v2241
      %v2243 = vrot.slane %v2104, 5
      %v2244 = vrot.slane %v2243, 4
      %v2245 = vrot.slane %v2105, 5
      %v2246 = vsel %vm2172, %v2244, %v2245
      %v2247 = vrot.slane %v2245, 4
      %v2248 = vrot.slane %v2106, 5
      %v2249 = vsel %vm2172, %v2247, %v2248
      %v2250 = vrot.slane %v2107, 5
      %v2251 = vrot.slane %v2250, 4
      %v2252 = vrot.slane %v2108, 5
      %v2253 = vsel %vm2172, %v2251, %v2252
      %v2254 = vrot.slane %v2252, 4
      %v2255 = vrot.slane %v2109, 5
      %v2256 = vsel %vm2172, %v2254, %v2255
      %v2257 = vrot.slane %v2110, 5
      %v2258 = vrot.slane %v2257, 4
      %v2259 = vrot.slane %v2111, 5
      %v2260 = vsel %vm2172, %v2258, %v2259
      %v2261 = vrot.slane %v2259, 4
      %v2262 = vrot.slane %v2112, 5
      %v2263 = vsel %vm2172, %v2261, %v2262
      %v2264 = vrot.slane %v2113, 5
      %v2265 = vrot.slane %v2264, 4
      %v2266 = vrot.slane %v2114, 5
      %v2267 = vsel %vm2172, %v2265, %v2266
      %v2268 = vrot.slane %v2266, 4
      %v2269 = vrot.slane %v2115, 5
      %v2270 = vsel %vm2172, %v2268, %v2269
      %v2271 = vrot.slane %v2116, 5
      %v2272 = vrot.slane %v2271, 4
      %v2273 = vrot.slane %v2117, 5
      %v2274 = vsel %vm2172, %v2272, %v2273
      %v2275 = vrot.slane %v2273, 4
      %v2276 = vrot.slane %v2118, 5
      %v2277 = vsel %vm2172, %v2275, %v2276
      %v2278 = vrot.slane %v2119, 5
      %v2279 = vrot.slane %v2278, 4
      %v2280 = vrot.slane %v2120, 5
      %v2281 = vsel %vm2172, %v2279, %v2280
      %v2282 = vrot.slane %v2280, 4
      %v2283 = vrot.slane %v2121, 5
      %v2284 = vsel %vm2172, %v2282, %v2283
      %s2285 = scalar_lea.vmem %s1, 128
      %v2286 = vld [vmem:[%s2285] sm:$0xf]
      %v2287 = vld [vmem:[%s2285 + $0x4] sm:$0xf]
      %v2288 = vld [vmem:[%s2285 + $0x8] sm:$0xf]
      %v2289 = vld [vmem:[%s2285 + $0xc] sm:$0xf]
      %v2290 = vld [vmem:[%s2285 + $0x10] sm:$0xf]
      %v2291 = vld [vmem:[%s2285 + $0x14] sm:$0xf]
      %v2292 = vld [vmem:[%s2285 + $0x18] sm:$0xf]
      %v2293 = vld [vmem:[%s2285 + $0x1c] sm:$0xf]
      %v2294 = vld [vmem:[%s2285 + $0x20] sm:$0xf]
      %v2295 = vld [vmem:[%s2285 + $0x24] sm:$0xf]
      %v2296 = vld [vmem:[%s2285 + $0x28] sm:$0xf]
      %v2297 = vld [vmem:[%s2285 + $0x2c] sm:$0xf]
      %v2298 = vld [vmem:[%s2285 + $0x30] sm:$0xf]
      %v2299 = vld [vmem:[%s2285 + $0x34] sm:$0xf]
      %v2300 = vld [vmem:[%s2285 + $0x38] sm:$0xf]
      %v2301 = vld [vmem:[%s2285 + $0x3c] sm:$0xf]
      %v2302 = vunpack.c.l.b16 %v2176
      %v2303 = vunpack.c.l.b16 %v2179
      %v2304 = vunpack.c.l.b16 %v2183
      %v2305 = vunpack.c.l.b16 %v2186
      %v2306 = vunpack.c.l.b16 %v2190
      %v2307 = vunpack.c.l.b16 %v2193
      %v2308 = vunpack.c.l.b16 %v2197
      %v2309 = vunpack.c.l.b16 %v2200
      %v2310 = vunpack.c.l.b16 %v2204
      %v2311 = vunpack.c.l.b16 %v2207
      %v2312 = vunpack.c.l.b16 %v2211
      %v2313 = vunpack.c.l.b16 %v2214
      %v2314 = vunpack.c.l.b16 %v2218
      %v2315 = vunpack.c.l.b16 %v2221
      %v2316 = vunpack.c.l.b16 %v2225
      %v2317 = vunpack.c.l.b16 %v2228
      %v2318 = vunpack.c.l.b16 %v2232
      %v2319 = vunpack.c.l.b16 %v2235
      %v2320 = vunpack.c.l.b16 %v2239
      %v2321 = vunpack.c.l.b16 %v2242
      %v2322 = vunpack.c.l.b16 %v2246
      %v2323 = vunpack.c.l.b16 %v2249
      %v2324 = vunpack.c.l.b16 %v2253
      %v2325 = vunpack.c.l.b16 %v2256
      %v2326 = vunpack.c.l.b16 %v2260
      %v2327 = vunpack.c.l.b16 %v2263
      %v2328 = vunpack.c.l.b16 %v2267
      %v2329 = vunpack.c.l.b16 %v2270
      %v2330 = vunpack.c.l.b16 %v2274
      %v2331 = vunpack.c.l.b16 %v2277
      %v2332 = vunpack.c.l.b16 %v2281
      %v2333 = vunpack.c.l.b16 %v2284
      %v2334 = vpack.c.b16 %v2303, %v2302
      %v2335 = vpack.c.b16 %v2305, %v2304
      %v2336 = vpack.c.b16 %v2307, %v2306
      %v2337 = vpack.c.b16 %v2309, %v2308
      %v2338 = vpack.c.b16 %v2311, %v2310
      %v2339 = vpack.c.b16 %v2313, %v2312
      %v2340 = vpack.c.b16 %v2315, %v2314
      %v2341 = vpack.c.b16 %v2317, %v2316
      %v2342 = vpack.c.b16 %v2319, %v2318
      %v2343 = vpack.c.b16 %v2321, %v2320
      %v2344 = vpack.c.b16 %v2323, %v2322
      %v2345 = vpack.c.b16 %v2325, %v2324
      %v2346 = vpack.c.b16 %v2327, %v2326
      %v2347 = vpack.c.b16 %v2329, %v2328
      %v2348 = vpack.c.b16 %v2331, %v2330
      %v2349 = vpack.c.b16 %v2333, %v2332
      %v2382 = vunpack.c.l.b16 %v2286
      %v2383 = vunpack.c.l.b16 %v2287
      %v2384 = vunpack.c.l.b16 %v2288
      %v2385 = vunpack.c.l.b16 %v2289
      %v2386 = vunpack.c.l.b16 %v2290
      %v2387 = vunpack.c.l.b16 %v2291
      %v2388 = vunpack.c.l.b16 %v2292
      %v2389 = vunpack.c.l.b16 %v2293
      %v2390 = vunpack.c.l.b16 %v2294
      %v2391 = vunpack.c.l.b16 %v2295
      %v2392 = vunpack.c.l.b16 %v2296
      %v2393 = vunpack.c.l.b16 %v2297
      %v2394 = vunpack.c.l.b16 %v2298
      %v2395 = vunpack.c.l.b16 %v2299
      %v2396 = vunpack.c.l.b16 %v2300
      %v2397 = vunpack.c.l.b16 %v2301
      %v2398 = vpack.c.b16 %v2383, %v2382
      %v2399 = vpack.c.b16 %v2385, %v2384
      %v2400 = vpack.c.b16 %v2387, %v2386
      %v2401 = vpack.c.b16 %v2389, %v2388
      %v2402 = vpack.c.b16 %v2391, %v2390
      %v2403 = vpack.c.b16 %v2393, %v2392
      %v2404 = vpack.c.b16 %v2395, %v2394
      %v2405 = vpack.c.b16 %v2397, %v2396
      %2414 = vmatpush.bf16.msra.mxu0 %v2405
      %2415 = vmatpush.bf16.msra.mxu0 %v2404
      %2416 = vmatpush.bf16.msra.mxu0 %v2403
      %2417 = vmatpush.bf16.msra.mxu0 %v2402
      %2418 = vmatpush.bf16.msra.mxu0 %v2401
      %2419 = vmatpush.bf16.msra.mxu0 %v2400
      %2420 = vmatpush.bf16.msra.mxu0 %v2399
      %2421 = vmatpush.bf16.msra.mxu0 %v2398
      %2422 = vmatmul.bf16.gmra.mxu0 %v2334
      %v2423 = vpop.f32.mrf.mxu0
      %v2424 = vadd.f32 0.0, %v2423
      %v2425 = vpop.f32.mrf.mxu0
      %v2426 = vadd.f32 0.0, %v2425
      %2427 = vmatmul.bf16.gmra.mxu0 %v2335
      %v2428 = vpop.f32.mrf.mxu0
      %v2429 = vadd.f32 0.0, %v2428
      %v2430 = vpop.f32.mrf.mxu0
      %v2431 = vadd.f32 0.0, %v2430
      %2432 = vmatmul.bf16.gmra.mxu0 %v2336
      %v2433 = vpop.f32.mrf.mxu0
      %v2434 = vadd.f32 0.0, %v2433
      %v2435 = vpop.f32.mrf.mxu0
      %v2436 = vadd.f32 0.0, %v2435
      %2437 = vmatmul.bf16.gmra.mxu0 %v2337
      %v2438 = vpop.f32.mrf.mxu0
      %v2439 = vadd.f32 0.0, %v2438
      %v2440 = vpop.f32.mrf.mxu0
      %v2441 = vadd.f32 0.0, %v2440
      %2442 = vmatmul.bf16.gmra.mxu0 %v2338
      %v2443 = vpop.f32.mrf.mxu0
      %v2444 = vadd.f32 0.0, %v2443
      %v2445 = vpop.f32.mrf.mxu0
      %v2446 = vadd.f32 0.0, %v2445
      %2447 = vmatmul.bf16.gmra.mxu0 %v2339
      %v2448 = vpop.f32.mrf.mxu0
      %v2449 = vadd.f32 0.0, %v2448
      %v2450 = vpop.f32.mrf.mxu0
      %v2451 = vadd.f32 0.0, %v2450
      %2452 = vmatmul.bf16.gmra.mxu0 %v2340
      %v2453 = vpop.f32.mrf.mxu0
      %v2454 = vadd.f32 0.0, %v2453
      %v2455 = vpop.f32.mrf.mxu0
      %v2456 = vadd.f32 0.0, %v2455
      %2457 = vmatmul.bf16.gmra.mxu0 %v2341
      %v2458 = vpop.f32.mrf.mxu0
      %v2459 = vadd.f32 0.0, %v2458
      %v2460 = vpop.f32.mrf.mxu0
      %v2461 = vadd.f32 0.0, %v2460
      %2462 = vmatmul.bf16.gmra.mxu0 %v2342
      %v2463 = vpop.f32.mrf.mxu0
      %v2464 = vadd.f32 0.0, %v2463
      %v2465 = vpop.f32.mrf.mxu0
      %v2466 = vadd.f32 0.0, %v2465
      %2467 = vmatmul.bf16.gmra.mxu0 %v2343
      %v2468 = vpop.f32.mrf.mxu0
      %v2469 = vadd.f32 0.0, %v2468
      %v2470 = vpop.f32.mrf.mxu0
      %v2471 = vadd.f32 0.0, %v2470
      %2472 = vmatmul.bf16.gmra.mxu0 %v2344
      %v2473 = vpop.f32.mrf.mxu0
      %v2474 = vadd.f32 0.0, %v2473
      %v2475 = vpop.f32.mrf.mxu0
      %v2476 = vadd.f32 0.0, %v2475
      %2477 = vmatmul.bf16.gmra.mxu0 %v2345
      %v2478 = vpop.f32.mrf.mxu0
      %v2479 = vadd.f32 0.0, %v2478
      %v2480 = vpop.f32.mrf.mxu0
      %v2481 = vadd.f32 0.0, %v2480
      %2482 = vmatmul.bf16.gmra.mxu0 %v2346
      %v2483 = vpop.f32.mrf.mxu0
      %v2484 = vadd.f32 0.0, %v2483
      %v2485 = vpop.f32.mrf.mxu0
      %v2486 = vadd.f32 0.0, %v2485
      %2487 = vmatmul.bf16.gmra.mxu0 %v2347
      %v2488 = vpop.f32.mrf.mxu0
      %v2489 = vadd.f32 0.0, %v2488
      %v2490 = vpop.f32.mrf.mxu0
      %v2491 = vadd.f32 0.0, %v2490
      %2492 = vmatmul.bf16.gmra.mxu0 %v2348
      %v2493 = vpop.f32.mrf.mxu0
      %v2494 = vadd.f32 0.0, %v2493
      %v2495 = vpop.f32.mrf.mxu0
      %v2496 = vadd.f32 0.0, %v2495
      %2497 = vmatmul.bf16.gmra.mxu0 %v2349
      %v2498 = vpop.f32.mrf.mxu0
      %v2499 = vadd.f32 0.0, %v2498
      %v2500 = vpop.f32.mrf.mxu0
      %v2501 = vadd.f32 0.0, %v2500
      %2502 = vdwg.mxu0
      %v2503 = vld [vmem:[#allocation3] sm:$0xff]
      %v2504 = vld [vmem:[#allocation3 + $0x8] sm:$0xff]
      %v2505 = vld [vmem:[#allocation3 + $0x10] sm:$0xff]
      %v2506 = vld [vmem:[#allocation3 + $0x18] sm:$0xff]
      %v2507 = vld [vmem:[#allocation3 + $0x20] sm:$0xff]
      %v2508 = vld [vmem:[#allocation3 + $0x28] sm:$0xff]
      %v2509 = vld [vmem:[#allocation3 + $0x30] sm:$0xff]
      %v2510 = vld [vmem:[#allocation3 + $0x38] sm:$0xff]
      %v2511 = vld [vmem:[#allocation3 + $0x40] sm:$0xff]
      %v2512 = vld [vmem:[#allocation3 + $0x48] sm:$0xff]
      %v2513 = vld [vmem:[#allocation3 + $0x50] sm:$0xff]
      %v2514 = vld [vmem:[#allocation3 + $0x58] sm:$0xff]
      %v2515 = vld [vmem:[#allocation3 + $0x60] sm:$0xff]
      %v2516 = vld [vmem:[#allocation3 + $0x68] sm:$0xff]
      %v2517 = vld [vmem:[#allocation3 + $0x70] sm:$0xff]
      %v2518 = vld [vmem:[#allocation3 + $0x78] sm:$0xff]
      %v2519 = vld [vmem:[#allocation3 + $0x80] sm:$0xff]
      %v2520 = vld [vmem:[#allocation3 + $0x88] sm:$0xff]
      %v2521 = vld [vmem:[#allocation3 + $0x90] sm:$0xff]
      %v2522 = vld [vmem:[#allocation3 + $0x98] sm:$0xff]
      %v2523 = vld [vmem:[#allocation3 + $0xa0] sm:$0xff]
      %v2524 = vld [vmem:[#allocation3 + $0xa8] sm:$0xff]
      %v2525 = vld [vmem:[#allocation3 + $0xb0] sm:$0xff]
      %v2526 = vld [vmem:[#allocation3 + $0xb8] sm:$0xff]
      %v2527 = vld [vmem:[#allocation3 + $0xc0] sm:$0xff]
      %v2528 = vld [vmem:[#allocation3 + $0xc8] sm:$0xff]
      %v2529 = vld [vmem:[#allocation3 + $0xd0] sm:$0xff]
      %v2530 = vld [vmem:[#allocation3 + $0xd8] sm:$0xff]
      %v2531 = vld [vmem:[#allocation3 + $0xe0] sm:$0xff]
      %v2532 = vld [vmem:[#allocation3 + $0xe8] sm:$0xff]
      %v2533 = vld [vmem:[#allocation3 + $0xf0] sm:$0xff]
      %v2534 = vld [vmem:[#allocation3 + $0xf8] sm:$0xff]
      %v2535 = vadd.f32 %v2503, %v2424
      %v2536 = vadd.f32 %v2504, %v2426
      %v2537 = vadd.f32 %v2505, %v2429
      %v2538 = vadd.f32 %v2506, %v2431
      %v2539 = vadd.f32 %v2507, %v2434
      %v2540 = vadd.f32 %v2508, %v2436
      %v2541 = vadd.f32 %v2509, %v2439
      %v2542 = vadd.f32 %v2510, %v2441
      %v2543 = vadd.f32 %v2511, %v2444
      %v2544 = vadd.f32 %v2512, %v2446
      %v2545 = vadd.f32 %v2513, %v2449
      %v2546 = vadd.f32 %v2514, %v2451
      %v2547 = vadd.f32 %v2515, %v2454
      %v2548 = vadd.f32 %v2516, %v2456
      %v2549 = vadd.f32 %v2517, %v2459
      %v2550 = vadd.f32 %v2518, %v2461
      %v2551 = vadd.f32 %v2519, %v2464
      %v2552 = vadd.f32 %v2520, %v2466
      %v2553 = vadd.f32 %v2521, %v2469
      %v2554 = vadd.f32 %v2522, %v2471
      %v2555 = vadd.f32 %v2523, %v2474
      %v2556 = vadd.f32 %v2524, %v2476
      %v2557 = vadd.f32 %v2525, %v2479
      %v2558 = vadd.f32 %v2526, %v2481
      %v2559 = vadd.f32 %v2527, %v2484
      %v2560 = vadd.f32 %v2528, %v2486
      %v2561 = vadd.f32 %v2529, %v2489
      %v2562 = vadd.f32 %v2530, %v2491
      %v2563 = vadd.f32 %v2531, %v2494
      %v2564 = vadd.f32 %v2532, %v2496
      %v2565 = vadd.f32 %v2533, %v2499
      %v2566 = vadd.f32 %v2534, %v2501
      %2567 = vst [vmem:[#allocation3] sm:$0xff] %v2535
      %2568 = vst [vmem:[#allocation3 + $0x8] sm:$0xff] %v2536
      %2569 = vst [vmem:[#allocation3 + $0x10] sm:$0xff] %v2537
      %2570 = vst [vmem:[#allocation3 + $0x18] sm:$0xff] %v2538
      %2571 = vst [vmem:[#allocation3 + $0x20] sm:$0xff] %v2539
      %2572 = vst [vmem:[#allocation3 + $0x28] sm:$0xff] %v2540
      %2573 = vst [vmem:[#allocation3 + $0x30] sm:$0xff] %v2541
      %2574 = vst [vmem:[#allocation3 + $0x38] sm:$0xff] %v2542
      %2575 = vst [vmem:[#allocation3 + $0x40] sm:$0xff] %v2543
      %2576 = vst [vmem:[#allocation3 + $0x48] sm:$0xff] %v2544
      %2577 = vst [vmem:[#allocation3 + $0x50] sm:$0xff] %v2545
      %2578 = vst [vmem:[#allocation3 + $0x58] sm:$0xff] %v2546
      %2579 = vst [vmem:[#allocation3 + $0x60] sm:$0xff] %v2547
      %2580 = vst [vmem:[#allocation3 + $0x68] sm:$0xff] %v2548
      %2581 = vst [vmem:[#allocation3 + $0x70] sm:$0xff] %v2549
      %2582 = vst [vmem:[#allocation3 + $0x78] sm:$0xff] %v2550
      %2583 = vst [vmem:[#allocation3 + $0x80] sm:$0xff] %v2551
      %2584 = vst [vmem:[#allocation3 + $0x88] sm:$0xff] %v2552
      %2585 = vst [vmem:[#allocation3 + $0x90] sm:$0xff] %v2553
      %2586 = vst [vmem:[#allocation3 + $0x98] sm:$0xff] %v2554
      %2587 = vst [vmem:[#allocation3 + $0xa0] sm:$0xff] %v2555
      %2588 = vst [vmem:[#allocation3 + $0xa8] sm:$0xff] %v2556
      %2589 = vst [vmem:[#allocation3 + $0xb0] sm:$0xff] %v2557
      %2590 = vst [vmem:[#allocation3 + $0xb8] sm:$0xff] %v2558
      %2591 = vst [vmem:[#allocation3 + $0xc0] sm:$0xff] %v2559
      %2592 = vst [vmem:[#allocation3 + $0xc8] sm:$0xff] %v2560
      %2593 = vst [vmem:[#allocation3 + $0xd0] sm:$0xff] %v2561
      %2594 = vst [vmem:[#allocation3 + $0xd8] sm:$0xff] %v2562
      %2595 = vst [vmem:[#allocation3 + $0xe0] sm:$0xff] %v2563
      %2596 = vst [vmem:[#allocation3 + $0xe8] sm:$0xff] %v2564
      %2597 = vst [vmem:[#allocation3 + $0xf0] sm:$0xff] %v2565
      %2598 = vst [vmem:[#allocation3 + $0xf8] sm:$0xff] %v2566
      %v2599 = vld [vmem:[%s612] sm:$0xf]
      %v2600 = vld [vmem:[%s612 + $0x4] sm:$0xf]
      %v2601 = vld [vmem:[%s612 + $0xc] sm:$0xf]
      %v2602 = vld [vmem:[%s612 + $0x10] sm:$0xf]
      %v2603 = vld [vmem:[%s612 + $0x18] sm:$0xf]
      %v2604 = vld [vmem:[%s612 + $0x1c] sm:$0xf]
      %v2605 = vld [vmem:[%s612 + $0x24] sm:$0xf]
      %v2606 = vld [vmem:[%s612 + $0x28] sm:$0xf]
      %v2607 = vld [vmem:[%s612 + $0x30] sm:$0xf]
      %v2608 = vld [vmem:[%s612 + $0x34] sm:$0xf]
      %v2609 = vld [vmem:[%s612 + $0x3c] sm:$0xf]
      %v2610 = vld [vmem:[%s612 + $0x40] sm:$0xf]
      %v2611 = vld [vmem:[%s612 + $0x48] sm:$0xf]
      %v2612 = vld [vmem:[%s612 + $0x4c] sm:$0xf]
      %v2613 = vld [vmem:[%s612 + $0x54] sm:$0xf]
      %v2614 = vld [vmem:[%s612 + $0x58] sm:$0xf]
      %v2615 = vld [vmem:[%s612 + $0x60] sm:$0xf]
      %v2616 = vld [vmem:[%s612 + $0x64] sm:$0xf]
      %v2617 = vld [vmem:[%s612 + $0x6c] sm:$0xf]
      %v2618 = vld [vmem:[%s612 + $0x70] sm:$0xf]
      %v2619 = vld [vmem:[%s612 + $0x78] sm:$0xf]
      %v2620 = vld [vmem:[%s612 + $0x7c] sm:$0xf]
      %v2621 = vld [vmem:[%s612 + $0x84] sm:$0xf]
      %v2622 = vld [vmem:[%s612 + $0x88] sm:$0xf]
      %v2623 = vld [vmem:[%s612 + $0x90] sm:$0xf]
      %v2624 = vld [vmem:[%s612 + $0x94] sm:$0xf]
      %v2625 = vld [vmem:[%s612 + $0x9c] sm:$0xf]
      %v2626 = vld [vmem:[%s612 + $0xa0] sm:$0xf]
      %v2627 = vld [vmem:[%s612 + $0xa8] sm:$0xf]
      %v2628 = vld [vmem:[%s612 + $0xac] sm:$0xf]
      %v2629 = vld [vmem:[%s612 + $0xb4] sm:$0xf]
      %v2630 = vld [vmem:[%s612 + $0xb8] sm:$0xf]
      %s2631 = scalar_lea.vmem %s1, 192
      %v2632 = vld [vmem:[%s2631] sm:$0xf]
      %v2633 = vld [vmem:[%s2631 + $0x4] sm:$0xf]
      %v2634 = vld [vmem:[%s2631 + $0x8] sm:$0xf]
      %v2635 = vld [vmem:[%s2631 + $0xc] sm:$0xf]
      %v2636 = vld [vmem:[%s2631 + $0x10] sm:$0xf]
      %v2637 = vld [vmem:[%s2631 + $0x14] sm:$0xf]
      %v2638 = vld [vmem:[%s2631 + $0x18] sm:$0xf]
      %v2639 = vld [vmem:[%s2631 + $0x1c] sm:$0xf]
      %v2640 = vld [vmem:[%s2631 + $0x20] sm:$0xf]
      %v2641 = vld [vmem:[%s2631 + $0x24] sm:$0xf]
      %v2642 = vld [vmem:[%s2631 + $0x28] sm:$0xf]
      %v2643 = vld [vmem:[%s2631 + $0x2c] sm:$0xf]
      %v2644 = vld [vmem:[%s2631 + $0x30] sm:$0xf]
      %v2645 = vld [vmem:[%s2631 + $0x34] sm:$0xf]
      %v2646 = vld [vmem:[%s2631 + $0x38] sm:$0xf]
      %v2647 = vld [vmem:[%s2631 + $0x3c] sm:$0xf]
      %v2680 = vunpack.c.l.b16 %v2599
      %v2681 = vunpack.c.l.b16 %v2600
      %v2682 = vunpack.c.l.b16 %v2601
      %v2683 = vunpack.c.l.b16 %v2602
      %v2684 = vunpack.c.l.b16 %v2603
      %v2685 = vunpack.c.l.b16 %v2604
      %v2686 = vunpack.c.l.b16 %v2605
      %v2687 = vunpack.c.l.b16 %v2606
      %v2688 = vunpack.c.l.b16 %v2607
      %v2689 = vunpack.c.l.b16 %v2608
      %v2690 = vunpack.c.l.b16 %v2609
      %v2691 = vunpack.c.l.b16 %v2610
      %v2692 = vunpack.c.l.b16 %v2611
      %v2693 = vunpack.c.l.b16 %v2612
      %v2694 = vunpack.c.l.b16 %v2613
      %v2695 = vunpack.c.l.b16 %v2614
      %v2696 = vunpack.c.l.b16 %v2615
      %v2697 = vunpack.c.l.b16 %v2616
      %v2698 = vunpack.c.l.b16 %v2617
      %v2699 = vunpack.c.l.b16 %v2618
      %v2700 = vunpack.c.l.b16 %v2619
      %v2701 = vunpack.c.l.b16 %v2620
      %v2702 = vunpack.c.l.b16 %v2621
      %v2703 = vunpack.c.l.b16 %v2622
      %v2704 = vunpack.c.l.b16 %v2623
      %v2705 = vunpack.c.l.b16 %v2624
      %v2706 = vunpack.c.l.b16 %v2625
      %v2707 = vunpack.c.l.b16 %v2626
      %v2708 = vunpack.c.l.b16 %v2627
      %v2709 = vunpack.c.l.b16 %v2628
      %v2710 = vunpack.c.l.b16 %v2629
      %v2711 = vunpack.c.l.b16 %v2630
      %v2712 = vpack.c.b16 %v2681, %v2680
      %v2713 = vpack.c.b16 %v2683, %v2682
      %v2714 = vpack.c.b16 %v2685, %v2684
      %v2715 = vpack.c.b16 %v2687, %v2686
      %v2716 = vpack.c.b16 %v2689, %v2688
      %v2717 = vpack.c.b16 %v2691, %v2690
      %v2718 = vpack.c.b16 %v2693, %v2692
      %v2719 = vpack.c.b16 %v2695, %v2694
      %v2720 = vpack.c.b16 %v2697, %v2696
      %v2721 = vpack.c.b16 %v2699, %v2698
      %v2722 = vpack.c.b16 %v2701, %v2700
      %v2723 = vpack.c.b16 %v2703, %v2702
      %v2724 = vpack.c.b16 %v2705, %v2704
      %v2725 = vpack.c.b16 %v2707, %v2706
      %v2726 = vpack.c.b16 %v2709, %v2708
      %v2727 = vpack.c.b16 %v2711, %v2710
      %v2760 = vunpack.c.l.b16 %v2632
      %v2761 = vunpack.c.l.b16 %v2633
      %v2762 = vunpack.c.l.b16 %v2634
      %v2763 = vunpack.c.l.b16 %v2635
      %v2764 = vunpack.c.l.b16 %v2636
      %v2765 = vunpack.c.l.b16 %v2637
      %v2766 = vunpack.c.l.b16 %v2638
      %v2767 = vunpack.c.l.b16 %v2639
      %v2768 = vunpack.c.l.b16 %v2640
      %v2769 = vunpack.c.l.b16 %v2641
      %v2770 = vunpack.c.l.b16 %v2642
      %v2771 = vunpack.c.l.b16 %v2643
      %v2772 = vunpack.c.l.b16 %v2644
      %v2773 = vunpack.c.l.b16 %v2645
      %v2774 = vunpack.c.l.b16 %v2646
      %v2775 = vunpack.c.l.b16 %v2647
      %v2776 = vpack.c.b16 %v2761, %v2760
      %v2777 = vpack.c.b16 %v2763, %v2762
      %v2778 = vpack.c.b16 %v2765, %v2764
      %v2779 = vpack.c.b16 %v2767, %v2766
      %v2780 = vpack.c.b16 %v2769, %v2768
      %v2781 = vpack.c.b16 %v2771, %v2770
      %v2782 = vpack.c.b16 %v2773, %v2772
      %v2783 = vpack.c.b16 %v2775, %v2774
      %2792 = vmatpush.bf16.msra.mxu0 %v2783
      %2793 = vmatpush.bf16.msra.mxu0 %v2782
      %2794 = vmatpush.bf16.msra.mxu0 %v2781
      %2795 = vmatpush.bf16.msra.mxu0 %v2780
      %2796 = vmatpush.bf16.msra.mxu0 %v2779
      %2797 = vmatpush.bf16.msra.mxu0 %v2778
      %2798 = vmatpush.bf16.msra.mxu0 %v2777
      %2799 = vmatpush.bf16.msra.mxu0 %v2776
      %2800 = vmatmul.bf16.gmra.mxu0 %v2712
      %v2801 = vpop.f32.mrf.mxu0
      %v2802 = vadd.f32 0.0, %v2801
      %v2803 = vpop.f32.mrf.mxu0
      %v2804 = vadd.f32 0.0, %v2803
      %2805 = vmatmul.bf16.gmra.mxu0 %v2713
      %v2806 = vpop.f32.mrf.mxu0
      %v2807 = vadd.f32 0.0, %v2806
      %v2808 = vpop.f32.mrf.mxu0
      %v2809 = vadd.f32 0.0, %v2808
      %2810 = vmatmul.bf16.gmra.mxu0 %v2714
      %v2811 = vpop.f32.mrf.mxu0
      %v2812 = vadd.f32 0.0, %v2811
      %v2813 = vpop.f32.mrf.mxu0
      %v2814 = vadd.f32 0.0, %v2813
      %2815 = vmatmul.bf16.gmra.mxu0 %v2715
      %v2816 = vpop.f32.mrf.mxu0
      %v2817 = vadd.f32 0.0, %v2816
      %v2818 = vpop.f32.mrf.mxu0
      %v2819 = vadd.f32 0.0, %v2818
      %2820 = vmatmul.bf16.gmra.mxu0 %v2716
      %v2821 = vpop.f32.mrf.mxu0
      %v2822 = vadd.f32 0.0, %v2821
      %v2823 = vpop.f32.mrf.mxu0
      %v2824 = vadd.f32 0.0, %v2823
      %2825 = vmatmul.bf16.gmra.mxu0 %v2717
      %v2826 = vpop.f32.mrf.mxu0
      %v2827 = vadd.f32 0.0, %v2826
      %v2828 = vpop.f32.mrf.mxu0
      %v2829 = vadd.f32 0.0, %v2828
      %2830 = vmatmul.bf16.gmra.mxu0 %v2718
      %v2831 = vpop.f32.mrf.mxu0
      %v2832 = vadd.f32 0.0, %v2831
      %v2833 = vpop.f32.mrf.mxu0
      %v2834 = vadd.f32 0.0, %v2833
      %2835 = vmatmul.bf16.gmra.mxu0 %v2719
      %v2836 = vpop.f32.mrf.mxu0
      %v2837 = vadd.f32 0.0, %v2836
      %v2838 = vpop.f32.mrf.mxu0
      %v2839 = vadd.f32 0.0, %v2838
      %2840 = vmatmul.bf16.gmra.mxu0 %v2720
      %v2841 = vpop.f32.mrf.mxu0
      %v2842 = vadd.f32 0.0, %v2841
      %v2843 = vpop.f32.mrf.mxu0
      %v2844 = vadd.f32 0.0, %v2843
      %2845 = vmatmul.bf16.gmra.mxu0 %v2721
      %v2846 = vpop.f32.mrf.mxu0
      %v2847 = vadd.f32 0.0, %v2846
      %v2848 = vpop.f32.mrf.mxu0
      %v2849 = vadd.f32 0.0, %v2848
      %2850 = vmatmul.bf16.gmra.mxu0 %v2722
      %v2851 = vpop.f32.mrf.mxu0
      %v2852 = vadd.f32 0.0, %v2851
      %v2853 = vpop.f32.mrf.mxu0
      %v2854 = vadd.f32 0.0, %v2853
      %2855 = vmatmul.bf16.gmra.mxu0 %v2723
      %v2856 = vpop.f32.mrf.mxu0
      %v2857 = vadd.f32 0.0, %v2856
      %v2858 = vpop.f32.mrf.mxu0
      %v2859 = vadd.f32 0.0, %v2858
      %2860 = vmatmul.bf16.gmra.mxu0 %v2724
      %v2861 = vpop.f32.mrf.mxu0
      %v2862 = vadd.f32 0.0, %v2861
      %v2863 = vpop.f32.mrf.mxu0
      %v2864 = vadd.f32 0.0, %v2863
      %2865 = vmatmul.bf16.gmra.mxu0 %v2725
      %v2866 = vpop.f32.mrf.mxu0
      %v2867 = vadd.f32 0.0, %v2866
      %v2868 = vpop.f32.mrf.mxu0
      %v2869 = vadd.f32 0.0, %v2868
      %2870 = vmatmul.bf16.gmra.mxu0 %v2726
      %v2871 = vpop.f32.mrf.mxu0
      %v2872 = vadd.f32 0.0, %v2871
      %v2873 = vpop.f32.mrf.mxu0
      %v2874 = vadd.f32 0.0, %v2873
      %2875 = vmatmul.bf16.gmra.mxu0 %v2727
      %v2876 = vpop.f32.mrf.mxu0
      %v2877 = vadd.f32 0.0, %v2876
      %v2878 = vpop.f32.mrf.mxu0
      %v2879 = vadd.f32 0.0, %v2878
      %2880 = vdwg.mxu0
      %v2881 = vld [vmem:[#allocation3] sm:$0xff]
      %v2882 = vld [vmem:[#allocation3 + $0x8] sm:$0xff]
      %v2883 = vld [vmem:[#allocation3 + $0x10] sm:$0xff]
      %v2884 = vld [vmem:[#allocation3 + $0x18] sm:$0xff]
      %v2885 = vld [vmem:[#allocation3 + $0x20] sm:$0xff]
      %v2886 = vld [vmem:[#allocation3 + $0x28] sm:$0xff]
      %v2887 = vld [vmem:[#allocation3 + $0x30] sm:$0xff]
      %v2888 = vld [vmem:[#allocation3 + $0x38] sm:$0xff]
      %v2889 = vld [vmem:[#allocation3 + $0x40] sm:$0xff]
      %v2890 = vld [vmem:[#allocation3 + $0x48] sm:$0xff]
      %v2891 = vld [vmem:[#allocation3 + $0x50] sm:$0xff]
      %v2892 = vld [vmem:[#allocation3 + $0x58] sm:$0xff]
      %v2893 = vld [vmem:[#allocation3 + $0x60] sm:$0xff]
      %v2894 = vld [vmem:[#allocation3 + $0x68] sm:$0xff]
      %v2895 = vld [vmem:[#allocation3 + $0x70] sm:$0xff]
      %v2896 = vld [vmem:[#allocation3 + $0x78] sm:$0xff]
      %v2897 = vld [vmem:[#allocation3 + $0x80] sm:$0xff]
      %v2898 = vld [vmem:[#allocation3 + $0x88] sm:$0xff]
      %v2899 = vld [vmem:[#allocation3 + $0x90] sm:$0xff]
      %v2900 = vld [vmem:[#allocation3 + $0x98] sm:$0xff]
      %v2901 = vld [vmem:[#allocation3 + $0xa0] sm:$0xff]
      %v2902 = vld [vmem:[#allocation3 + $0xa8] sm:$0xff]
      %v2903 = vld [vmem:[#allocation3 + $0xb0] sm:$0xff]
      %v2904 = vld [vmem:[#allocation3 + $0xb8] sm:$0xff]
      %v2905 = vld [vmem:[#allocation3 + $0xc0] sm:$0xff]
      %v2906 = vld [vmem:[#allocation3 + $0xc8] sm:$0xff]
      %v2907 = vld [vmem:[#allocation3 + $0xd0] sm:$0xff]
      %v2908 = vld [vmem:[#allocation3 + $0xd8] sm:$0xff]
      %v2909 = vld [vmem:[#allocation3 + $0xe0] sm:$0xff]
      %v2910 = vld [vmem:[#allocation3 + $0xe8] sm:$0xff]
      %v2911 = vld [vmem:[#allocation3 + $0xf0] sm:$0xff]
      %v2912 = vld [vmem:[#allocation3 + $0xf8] sm:$0xff]
      %v2913 = vadd.f32 %v2881, %v2802
      %v2914 = vadd.f32 %v2882, %v2804
      %v2915 = vadd.f32 %v2883, %v2807
      %v2916 = vadd.f32 %v2884, %v2809
      %v2917 = vadd.f32 %v2885, %v2812
      %v2918 = vadd.f32 %v2886, %v2814
      %v2919 = vadd.f32 %v2887, %v2817
      %v2920 = vadd.f32 %v2888, %v2819
      %v2921 = vadd.f32 %v2889, %v2822
      %v2922 = vadd.f32 %v2890, %v2824
      %v2923 = vadd.f32 %v2891, %v2827
      %v2924 = vadd.f32 %v2892, %v2829
      %v2925 = vadd.f32 %v2893, %v2832
      %v2926 = vadd.f32 %v2894, %v2834
      %v2927 = vadd.f32 %v2895, %v2837
      %v2928 = vadd.f32 %v2896, %v2839
      %v2929 = vadd.f32 %v2897, %v2842
      %v2930 = vadd.f32 %v2898, %v2844
      %v2931 = vadd.f32 %v2899, %v2847
      %v2932 = vadd.f32 %v2900, %v2849
      %v2933 = vadd.f32 %v2901, %v2852
      %v2934 = vadd.f32 %v2902, %v2854
      %v2935 = vadd.f32 %v2903, %v2857
      %v2936 = vadd.f32 %v2904, %v2859
      %v2937 = vadd.f32 %v2905, %v2862
      %v2938 = vadd.f32 %v2906, %v2864
      %v2939 = vadd.f32 %v2907, %v2867
      %v2940 = vadd.f32 %v2908, %v2869
      %v2941 = vadd.f32 %v2909, %v2872
      %v2942 = vadd.f32 %v2910, %v2874
      %v2943 = vadd.f32 %v2911, %v2877
      %v2944 = vadd.f32 %v2912, %v2879
      %2945 = vst [vmem:[#allocation3] sm:$0xff] %v2913
      %2946 = vst [vmem:[#allocation3 + $0x8] sm:$0xff] %v2914
      %2947 = vst [vmem:[#allocation3 + $0x10] sm:$0xff] %v2915
      %2948 = vst [vmem:[#allocation3 + $0x18] sm:$0xff] %v2916
      %2949 = vst [vmem:[#allocation3 + $0x20] sm:$0xff] %v2917
      %2950 = vst [vmem:[#allocation3 + $0x28] sm:$0xff] %v2918
      %2951 = vst [vmem:[#allocation3 + $0x30] sm:$0xff] %v2919
      %2952 = vst [vmem:[#allocation3 + $0x38] sm:$0xff] %v2920
      %2953 = vst [vmem:[#allocation3 + $0x40] sm:$0xff] %v2921
      %2954 = vst [vmem:[#allocation3 + $0x48] sm:$0xff] %v2922
      %2955 = vst [vmem:[#allocation3 + $0x50] sm:$0xff] %v2923
      %2956 = vst [vmem:[#allocation3 + $0x58] sm:$0xff] %v2924
      %2957 = vst [vmem:[#allocation3 + $0x60] sm:$0xff] %v2925
      %2958 = vst [vmem:[#allocation3 + $0x68] sm:$0xff] %v2926
      %2959 = vst [vmem:[#allocation3 + $0x70] sm:$0xff] %v2927
      %2960 = vst [vmem:[#allocation3 + $0x78] sm:$0xff] %v2928
      %2961 = vst [vmem:[#allocation3 + $0x80] sm:$0xff] %v2929
      %2962 = vst [vmem:[#allocation3 + $0x88] sm:$0xff] %v2930
      %2963 = vst [vmem:[#allocation3 + $0x90] sm:$0xff] %v2931
      %2964 = vst [vmem:[#allocation3 + $0x98] sm:$0xff] %v2932
      %2965 = vst [vmem:[#allocation3 + $0xa0] sm:$0xff] %v2933
      %2966 = vst [vmem:[#allocation3 + $0xa8] sm:$0xff] %v2934
      %2967 = vst [vmem:[#allocation3 + $0xb0] sm:$0xff] %v2935
      %2968 = vst [vmem:[#allocation3 + $0xb8] sm:$0xff] %v2936
      %2969 = vst [vmem:[#allocation3 + $0xc0] sm:$0xff] %v2937
      %2970 = vst [vmem:[#allocation3 + $0xc8] sm:$0xff] %v2938
      %2971 = vst [vmem:[#allocation3 + $0xd0] sm:$0xff] %v2939
      %2972 = vst [vmem:[#allocation3 + $0xd8] sm:$0xff] %v2940
      %2973 = vst [vmem:[#allocation3 + $0xe0] sm:$0xff] %v2941
      %2974 = vst [vmem:[#allocation3 + $0xe8] sm:$0xff] %v2942
      %2975 = vst [vmem:[#allocation3 + $0xf0] sm:$0xff] %v2943
      %2976 = vst [vmem:[#allocation3 + $0xf8] sm:$0xff] %v2944
      %v2977 = vld [vmem:[%s612] sm:$0xf]
      %v2978 = vld [vmem:[%s612 + $0x4] sm:$0xf]
      %v2979 = vld [vmem:[%s612 + $0x8] sm:$0x1]
      %v2980 = vld [vmem:[%s612 + $0xc] sm:$0xf]
      %v2981 = vld [vmem:[%s612 + $0x10] sm:$0xf]
      %v2982 = vld [vmem:[%s612 + $0x14] sm:$0x1]
      %v2983 = vld [vmem:[%s612 + $0x18] sm:$0xf]
      %v2984 = vld [vmem:[%s612 + $0x1c] sm:$0xf]
      %v2985 = vld [vmem:[%s612 + $0x20] sm:$0x1]
      %v2986 = vld [vmem:[%s612 + $0x24] sm:$0xf]
      %v2987 = vld [vmem:[%s612 + $0x28] sm:$0xf]
      %v2988 = vld [vmem:[%s612 + $0x2c] sm:$0x1]
      %v2989 = vld [vmem:[%s612 + $0x30] sm:$0xf]
      %v2990 = vld [vmem:[%s612 + $0x34] sm:$0xf]
      %v2991 = vld [vmem:[%s612 + $0x38] sm:$0x1]
      %v2992 = vld [vmem:[%s612 + $0x3c] sm:$0xf]
      %v2993 = vld [vmem:[%s612 + $0x40] sm:$0xf]
      %v2994 = vld [vmem:[%s612 + $0x44] sm:$0x1]
      %v2995 = vld [vmem:[%s612 + $0x48] sm:$0xf]
      %v2996 = vld [vmem:[%s612 + $0x4c] sm:$0xf]
      %v2997 = vld [vmem:[%s612 + $0x50] sm:$0x1]
      %v2998 = vld [vmem:[%s612 + $0x54] sm:$0xf]
      %v2999 = vld [vmem:[%s612 + $0x58] sm:$0xf]
      %v3000 = vld [vmem:[%s612 + $0x5c] sm:$0x1]
      %v3001 = vld [vmem:[%s612 + $0x60] sm:$0xf]
      %v3002 = vld [vmem:[%s612 + $0x64] sm:$0xf]
      %v3003 = vld [vmem:[%s612 + $0x68] sm:$0x1]
      %v3004 = vld [vmem:[%s612 + $0x6c] sm:$0xf]
      %v3005 = vld [vmem:[%s612 + $0x70] sm:$0xf]
      %v3006 = vld [vmem:[%s612 + $0x74] sm:$0x1]
      %v3007 = vld [vmem:[%s612 + $0x78] sm:$0xf]
      %v3008 = vld [vmem:[%s612 + $0x7c] sm:$0xf]
      %v3009 = vld [vmem:[%s612 + $0x80] sm:$0x1]
      %v3010 = vld [vmem:[%s612 + $0x84] sm:$0xf]
      %v3011 = vld [vmem:[%s612 + $0x88] sm:$0xf]
      %v3012 = vld [vmem:[%s612 + $0x8c] sm:$0x1]
      %v3013 = vld [vmem:[%s612 + $0x90] sm:$0xf]
      %v3014 = vld [vmem:[%s612 + $0x94] sm:$0xf]
      %v3015 = vld [vmem:[%s612 + $0x98] sm:$0x1]
      %v3016 = vld [vmem:[%s612 + $0x9c] sm:$0xf]
      %v3017 = vld [vmem:[%s612 + $0xa0] sm:$0xf]
      %v3018 = vld [vmem:[%s612 + $0xa4] sm:$0x1]
      %v3019 = vld [vmem:[%s612 + $0xa8] sm:$0xf]
      %v3020 = vld [vmem:[%s612 + $0xac] sm:$0xf]
      %v3021 = vld [vmem:[%s612 + $0xb0] sm:$0x1]
      %v3022 = vld [vmem:[%s612 + $0xb4] sm:$0xf]
      %v3023 = vld [vmem:[%s612 + $0xb8] sm:$0xf]
      %v3024 = vld [vmem:[%s612 + $0xbc] sm:$0x1]
      %v3026 = vshrl.u32 %v2977, 16
      %v3028 = vrot.slane %v3026, 4
      %v3029 = vshll.u32 %v2977, 16
      %v3031 = vrot.slane %v3029, 5
      %v3032 = vor.u32 %v3028, %v3031
      %v3033 = vrot.slane %v3032, 4
      %v3035 = vshll.u32 %v2978, 16
      %v3037 = vrot.slane %v3035, 5
      %v3038 = vsel %vm1375, %v3033, %v3037
      %v3039 = vshrl.u32 %v2978, 16
      %v3041 = vrot.slane %v3039, 4
      %v3042 = vor.u32 %v3041, %v3037
      %v3043 = vrot.slane %v3042, 4
      %v3045 = vshll.u32 %v2979, 16
      %v3047 = vrot.slane %v3045, 5
      %v3048 = vsel %vm1375, %v3043, %v3047
      %v3050 = vshrl.u32 %v2980, 16
      %v3052 = vrot.slane %v3050, 4
      %v3053 = vshll.u32 %v2980, 16
      %v3055 = vrot.slane %v3053, 5
      %v3056 = vor.u32 %v3052, %v3055
      %v3057 = vrot.slane %v3056, 4
      %v3059 = vshll.u32 %v2981, 16
      %v3061 = vrot.slane %v3059, 5
      %v3062 = vsel %vm1375, %v3057, %v3061
      %v3063 = vshrl.u32 %v2981, 16
      %v3065 = vrot.slane %v3063, 4
      %v3066 = vor.u32 %v3065, %v3061
      %v3067 = vrot.slane %v3066, 4
      %v3069 = vshll.u32 %v2982, 16
      %v3071 = vrot.slane %v3069, 5
      %v3072 = vsel %vm1375, %v3067, %v3071
      %v3074 = vshrl.u32 %v2983, 16
      %v3076 = vrot.slane %v3074, 4
      %v3077 = vshll.u32 %v2983, 16
      %v3079 = vrot.slane %v3077, 5
      %v3080 = vor.u32 %v3076, %v3079
      %v3081 = vrot.slane %v3080, 4
      %v3083 = vshll.u32 %v2984, 16
      %v3085 = vrot.slane %v3083, 5
      %v3086 = vsel %vm1375, %v3081, %v3085
      %v3087 = vshrl.u32 %v2984, 16
      %v3089 = vrot.slane %v3087, 4
      %v3090 = vor.u32 %v3089, %v3085
      %v3091 = vrot.slane %v3090, 4
      %v3093 = vshll.u32 %v2985, 16
      %v3095 = vrot.slane %v3093, 5
      %v3096 = vsel %vm1375, %v3091, %v3095
      %v3098 = vshrl.u32 %v2986, 16
      %v3100 = vrot.slane %v3098, 4
      %v3101 = vshll.u32 %v2986, 16
      %v3103 = vrot.slane %v3101, 5
      %v3104 = vor.u32 %v3100, %v3103
      %v3105 = vrot.slane %v3104, 4
      %v3107 = vshll.u32 %v2987, 16
      %v3109 = vrot.slane %v3107, 5
      %v3110 = vsel %vm1375, %v3105, %v3109
      %v3111 = vshrl.u32 %v2987, 16
      %v3113 = vrot.slane %v3111, 4
      %v3114 = vor.u32 %v3113, %v3109
      %v3115 = vrot.slane %v3114, 4
      %v3117 = vshll.u32 %v2988, 16
      %v3119 = vrot.slane %v3117, 5
      %v3120 = vsel %vm1375, %v3115, %v3119
      %v3122 = vshrl.u32 %v2989, 16
      %v3124 = vrot.slane %v3122, 4
      %v3125 = vshll.u32 %v2989, 16
      %v3127 = vrot.slane %v3125, 5
      %v3128 = vor.u32 %v3124, %v3127
      %v3129 = vrot.slane %v3128, 4
      %v3131 = vshll.u32 %v2990, 16
      %v3133 = vrot.slane %v3131, 5
      %v3134 = vsel %vm1375, %v3129, %v3133
      %v3135 = vshrl.u32 %v2990, 16
      %v3137 = vrot.slane %v3135, 4
      %v3138 = vor.u32 %v3137, %v3133
      %v3139 = vrot.slane %v3138, 4
      %v3141 = vshll.u32 %v2991, 16
      %v3143 = vrot.slane %v3141, 5
      %v3144 = vsel %vm1375, %v3139, %v3143
      %v3146 = vshrl.u32 %v2992, 16
      %v3148 = vrot.slane %v3146, 4
      %v3149 = vshll.u32 %v2992, 16
      %v3151 = vrot.slane %v3149, 5
      %v3152 = vor.u32 %v3148, %v3151
      %v3153 = vrot.slane %v3152, 4
      %v3155 = vshll.u32 %v2993, 16
      %v3157 = vrot.slane %v3155, 5
      %v3158 = vsel %vm1375, %v3153, %v3157
      %v3159 = vshrl.u32 %v2993, 16
      %v3161 = vrot.slane %v3159, 4
      %v3162 = vor.u32 %v3161, %v3157
      %v3163 = vrot.slane %v3162, 4
      %v3165 = vshll.u32 %v2994, 16
      %v3167 = vrot.slane %v3165, 5
      %v3168 = vsel %vm1375, %v3163, %v3167
      %v3170 = vshrl.u32 %v2995, 16
      %v3172 = vrot.slane %v3170, 4
      %v3173 = vshll.u32 %v2995, 16
      %v3175 = vrot.slane %v3173, 5
      %v3176 = vor.u32 %v3172, %v3175
      %v3177 = vrot.slane %v3176, 4
      %v3179 = vshll.u32 %v2996, 16
      %v3181 = vrot.slane %v3179, 5
      %v3182 = vsel %vm1375, %v3177, %v3181
      %v3183 = vshrl.u32 %v2996, 16
      %v3185 = vrot.slane %v3183, 4
      %v3186 = vor.u32 %v3185, %v3181
      %v3187 = vrot.slane %v3186, 4
      %v3189 = vshll.u32 %v2997, 16
      %v3191 = vrot.slane %v3189, 5
      %v3192 = vsel %vm1375, %v3187, %v3191
      %v3194 = vshrl.u32 %v2998, 16
      %v3196 = vrot.slane %v3194, 4
      %v3197 = vshll.u32 %v2998, 16
      %v3199 = vrot.slane %v3197, 5
      %v3200 = vor.u32 %v3196, %v3199
      %v3201 = vrot.slane %v3200, 4
      %v3203 = vshll.u32 %v2999, 16
      %v3205 = vrot.slane %v3203, 5
      %v3206 = vsel %vm1375, %v3201, %v3205
      %v3207 = vshrl.u32 %v2999, 16
      %v3209 = vrot.slane %v3207, 4
      %v3210 = vor.u32 %v3209, %v3205
      %v3211 = vrot.slane %v3210, 4
      %v3213 = vshll.u32 %v3000, 16
      %v3215 = vrot.slane %v3213, 5
      %v3216 = vsel %vm1375, %v3211, %v3215
      %v3218 = vshrl.u32 %v3001, 16
      %v3220 = vrot.slane %v3218, 4
      %v3221 = vshll.u32 %v3001, 16
      %v3223 = vrot.slane %v3221, 5
      %v3224 = vor.u32 %v3220, %v3223
      %v3225 = vrot.slane %v3224, 4
      %v3227 = vshll.u32 %v3002, 16
      %v3229 = vrot.slane %v3227, 5
      %v3230 = vsel %vm1375, %v3225, %v3229
      %v3231 = vshrl.u32 %v3002, 16
      %v3233 = vrot.slane %v3231, 4
      %v3234 = vor.u32 %v3233, %v3229
      %v3235 = vrot.slane %v3234, 4
      %v3237 = vshll.u32 %v3003, 16
      %v3239 = vrot.slane %v3237, 5
      %v3240 = vsel %vm1375, %v3235, %v3239
      %v3242 = vshrl.u32 %v3004, 16
      %v3244 = vrot.slane %v3242, 4
      %v3245 = vshll.u32 %v3004, 16
      %v3247 = vrot.slane %v3245, 5
      %v3248 = vor.u32 %v3244, %v3247
      %v3249 = vrot.slane %v3248, 4
      %v3251 = vshll.u32 %v3005, 16
      %v3253 = vrot.slane %v3251, 5
      %v3254 = vsel %vm1375, %v3249, %v3253
      %v3255 = vshrl.u32 %v3005, 16
      %v3257 = vrot.slane %v3255, 4
      %v3258 = vor.u32 %v3257, %v3253
      %v3259 = vrot.slane %v3258, 4
      %v3261 = vshll.u32 %v3006, 16
      %v3263 = vrot.slane %v3261, 5
      %v3264 = vsel %vm1375, %v3259, %v3263
      %v3266 = vshrl.u32 %v3007, 16
      %v3268 = vrot.slane %v3266, 4
      %v3269 = vshll.u32 %v3007, 16
      %v3271 = vrot.slane %v3269, 5
      %v3272 = vor.u32 %v3268, %v3271
      %v3273 = vrot.slane %v3272, 4
      %v3275 = vshll.u32 %v3008, 16
      %v3277 = vrot.slane %v3275, 5
      %v3278 = vsel %vm1375, %v3273, %v3277
      %v3279 = vshrl.u32 %v3008, 16
      %v3281 = vrot.slane %v3279, 4
      %v3282 = vor.u32 %v3281, %v3277
      %v3283 = vrot.slane %v3282, 4
      %v3285 = vshll.u32 %v3009, 16
      %v3287 = vrot.slane %v3285, 5
      %v3288 = vsel %vm1375, %v3283, %v3287
      %v3290 = vshrl.u32 %v3010, 16
      %v3292 = vrot.slane %v3290, 4
      %v3293 = vshll.u32 %v3010, 16
      %v3295 = vrot.slane %v3293, 5
      %v3296 = vor.u32 %v3292, %v3295
      %v3297 = vrot.slane %v3296, 4
      %v3299 = vshll.u32 %v3011, 16
      %v3301 = vrot.slane %v3299, 5
      %v3302 = vsel %vm1375, %v3297, %v3301
      %v3303 = vshrl.u32 %v3011, 16
      %v3305 = vrot.slane %v3303, 4
      %v3306 = vor.u32 %v3305, %v3301
      %v3307 = vrot.slane %v3306, 4
      %v3309 = vshll.u32 %v3012, 16
      %v3311 = vrot.slane %v3309, 5
      %v3312 = vsel %vm1375, %v3307, %v3311
      %v3314 = vshrl.u32 %v3013, 16
      %v3316 = vrot.slane %v3314, 4
      %v3317 = vshll.u32 %v3013, 16
      %v3319 = vrot.slane %v3317, 5
      %v3320 = vor.u32 %v3316, %v3319
      %v3321 = vrot.slane %v3320, 4
      %v3323 = vshll.u32 %v3014, 16
      %v3325 = vrot.slane %v3323, 5
      %v3326 = vsel %vm1375, %v3321, %v3325
      %v3327 = vshrl.u32 %v3014, 16
      %v3329 = vrot.slane %v3327, 4
      %v3330 = vor.u32 %v3329, %v3325
      %v3331 = vrot.slane %v3330, 4
      %v3333 = vshll.u32 %v3015, 16
      %v3335 = vrot.slane %v3333, 5
      %v3336 = vsel %vm1375, %v3331, %v3335
      %v3338 = vshrl.u32 %v3016, 16
      %v3340 = vrot.slane %v3338, 4
      %v3341 = vshll.u32 %v3016, 16
      %v3343 = vrot.slane %v3341, 5
      %v3344 = vor.u32 %v3340, %v3343
      %v3345 = vrot.slane %v3344, 4
      %v3347 = vshll.u32 %v3017, 16
      %v3349 = vrot.slane %v3347, 5
      %v3350 = vsel %vm1375, %v3345, %v3349
      %v3351 = vshrl.u32 %v3017, 16
      %v3353 = vrot.slane %v3351, 4
      %v3354 = vor.u32 %v3353, %v3349
      %v3355 = vrot.slane %v3354, 4
      %v3357 = vshll.u32 %v3018, 16
      %v3359 = vrot.slane %v3357, 5
      %v3360 = vsel %vm1375, %v3355, %v3359
      %v3362 = vshrl.u32 %v3019, 16
      %v3364 = vrot.slane %v3362, 4
      %v3365 = vshll.u32 %v3019, 16
      %v3367 = vrot.slane %v3365, 5
      %v3368 = vor.u32 %v3364, %v3367
      %v3369 = vrot.slane %v3368, 4
      %v3371 = vshll.u32 %v3020, 16
      %v3373 = vrot.slane %v3371, 5
      %v3374 = vsel %vm1375, %v3369, %v3373
      %v3375 = vshrl.u32 %v3020, 16
      %v3377 = vrot.slane %v3375, 4
      %v3378 = vor.u32 %v3377, %v3373
      %v3379 = vrot.slane %v3378, 4
      %v3381 = vshll.u32 %v3021, 16
      %v3383 = vrot.slane %v3381, 5
      %v3384 = vsel %vm1375, %v3379, %v3383
      %v3386 = vshrl.u32 %v3022, 16
      %v3388 = vrot.slane %v3386, 4
      %v3389 = vshll.u32 %v3022, 16
      %v3391 = vrot.slane %v3389, 5
      %v3392 = vor.u32 %v3388, %v3391
      %v3393 = vrot.slane %v3392, 4
      %v3395 = vshll.u32 %v3023, 16
      %v3397 = vrot.slane %v3395, 5
      %v3398 = vsel %vm1375, %v3393, %v3397
      %v3399 = vshrl.u32 %v3023, 16
      %v3401 = vrot.slane %v3399, 4
      %v3402 = vor.u32 %v3401, %v3397
      %v3403 = vrot.slane %v3402, 4
      %v3405 = vshll.u32 %v3024, 16
      %v3407 = vrot.slane %v3405, 5
      %v3408 = vsel %vm1375, %v3403, %v3407
      %s3409 = scalar_lea.vmem %s1, 256
      %v3410 = vld [vmem:[%s3409] sm:$0xf]
      %v3411 = vld [vmem:[%s3409 + $0x4] sm:$0xf]
      %v3412 = vld [vmem:[%s3409 + $0x8] sm:$0xf]
      %v3413 = vld [vmem:[%s3409 + $0xc] sm:$0xf]
      %v3414 = vld [vmem:[%s3409 + $0x10] sm:$0xf]
      %v3415 = vld [vmem:[%s3409 + $0x14] sm:$0xf]
      %v3416 = vld [vmem:[%s3409 + $0x18] sm:$0xf]
      %v3417 = vld [vmem:[%s3409 + $0x1c] sm:$0xf]
      %v3418 = vld [vmem:[%s3409 + $0x20] sm:$0xf]
      %v3419 = vld [vmem:[%s3409 + $0x24] sm:$0xf]
      %v3420 = vld [vmem:[%s3409 + $0x28] sm:$0xf]
      %v3421 = vld [vmem:[%s3409 + $0x2c] sm:$0xf]
      %v3422 = vld [vmem:[%s3409 + $0x30] sm:$0xf]
      %v3423 = vld [vmem:[%s3409 + $0x34] sm:$0xf]
      %v3424 = vld [vmem:[%s3409 + $0x38] sm:$0xf]
      %v3425 = vld [vmem:[%s3409 + $0x3c] sm:$0xf]
      %v3426 = vunpack.c.l.b16 %v3038
      %v3427 = vunpack.c.l.b16 %v3048
      %v3428 = vunpack.c.l.b16 %v3062
      %v3429 = vunpack.c.l.b16 %v3072
      %v3430 = vunpack.c.l.b16 %v3086
      %v3431 = vunpack.c.l.b16 %v3096
      %v3432 = vunpack.c.l.b16 %v3110
      %v3433 = vunpack.c.l.b16 %v3120
      %v3434 = vunpack.c.l.b16 %v3134
      %v3435 = vunpack.c.l.b16 %v3144
      %v3436 = vunpack.c.l.b16 %v3158
      %v3437 = vunpack.c.l.b16 %v3168
      %v3438 = vunpack.c.l.b16 %v3182
      %v3439 = vunpack.c.l.b16 %v3192
      %v3440 = vunpack.c.l.b16 %v3206
      %v3441 = vunpack.c.l.b16 %v3216
      %v3442 = vunpack.c.l.b16 %v3230
      %v3443 = vunpack.c.l.b16 %v3240
      %v3444 = vunpack.c.l.b16 %v3254
      %v3445 = vunpack.c.l.b16 %v3264
      %v3446 = vunpack.c.l.b16 %v3278
      %v3447 = vunpack.c.l.b16 %v3288
      %v3448 = vunpack.c.l.b16 %v3302
      %v3449 = vunpack.c.l.b16 %v3312
      %v3450 = vunpack.c.l.b16 %v3326
      %v3451 = vunpack.c.l.b16 %v3336
      %v3452 = vunpack.c.l.b16 %v3350
      %v3453 = vunpack.c.l.b16 %v3360
      %v3454 = vunpack.c.l.b16 %v3374
      %v3455 = vunpack.c.l.b16 %v3384
      %v3456 = vunpack.c.l.b16 %v3398
      %v3457 = vunpack.c.l.b16 %v3408
      %v3458 = vpack.c.b16 %v3427, %v3426
      %v3459 = vpack.c.b16 %v3429, %v3428
      %v3460 = vpack.c.b16 %v3431, %v3430
      %v3461 = vpack.c.b16 %v3433, %v3432
      %v3462 = vpack.c.b16 %v3435, %v3434
      %v3463 = vpack.c.b16 %v3437, %v3436
      %v3464 = vpack.c.b16 %v3439, %v3438
      %v3465 = vpack.c.b16 %v3441, %v3440
      %v3466 = vpack.c.b16 %v3443, %v3442
      %v3467 = vpack.c.b16 %v3445, %v3444
      %v3468 = vpack.c.b16 %v3447, %v3446
      %v3469 = vpack.c.b16 %v3449, %v3448
      %v3470 = vpack.c.b16 %v3451, %v3450
      %v3471 = vpack.c.b16 %v3453, %v3452
      %v3472 = vpack.c.b16 %v3455, %v3454
      %v3473 = vpack.c.b16 %v3457, %v3456
      %v3506 = vunpack.c.l.b16 %v3410
      %v3507 = vunpack.c.l.b16 %v3411
      %v3508 = vunpack.c.l.b16 %v3412
      %v3509 = vunpack.c.l.b16 %v3413
      %v3510 = vunpack.c.l.b16 %v3414
      %v3511 = vunpack.c.l.b16 %v3415
      %v3512 = vunpack.c.l.b16 %v3416
      %v3513 = vunpack.c.l.b16 %v3417
      %v3514 = vunpack.c.l.b16 %v3418
      %v3515 = vunpack.c.l.b16 %v3419
      %v3516 = vunpack.c.l.b16 %v3420
      %v3517 = vunpack.c.l.b16 %v3421
      %v3518 = vunpack.c.l.b16 %v3422
      %v3519 = vunpack.c.l.b16 %v3423
      %v3520 = vunpack.c.l.b16 %v3424
      %v3521 = vunpack.c.l.b16 %v3425
      %v3522 = vpack.c.b16 %v3507, %v3506
      %v3523 = vpack.c.b16 %v3509, %v3508
      %v3524 = vpack.c.b16 %v3511, %v3510
      %v3525 = vpack.c.b16 %v3513, %v3512
      %v3526 = vpack.c.b16 %v3515, %v3514
      %v3527 = vpack.c.b16 %v3517, %v3516
      %v3528 = vpack.c.b16 %v3519, %v3518
      %v3529 = vpack.c.b16 %v3521, %v3520
      %3538 = vmatpush.bf16.msra.mxu0 %v3529
      %3539 = vmatpush.bf16.msra.mxu0 %v3528
      %3540 = vmatpush.bf16.msra.mxu0 %v3527
      %3541 = vmatpush.bf16.msra.mxu0 %v3526
      %3542 = vmatpush.bf16.msra.mxu0 %v3525
      %3543 = vmatpush.bf16.msra.mxu0 %v3524
      %3544 = vmatpush.bf16.msra.mxu0 %v3523
      %3545 = vmatpush.bf16.msra.mxu0 %v3522
      %3546 = vmatmul.bf16.gmra.mxu0 %v3458
      %v3547 = vpop.f32.mrf.mxu0
      %v3548 = vadd.f32 0.0, %v3547
      %v3549 = vpop.f32.mrf.mxu0
      %v3550 = vadd.f32 0.0, %v3549
      %3551 = vmatmul.bf16.gmra.mxu0 %v3459
      %v3552 = vpop.f32.mrf.mxu0
      %v3553 = vadd.f32 0.0, %v3552
      %v3554 = vpop.f32.mrf.mxu0
      %v3555 = vadd.f32 0.0, %v3554
      %3556 = vmatmul.bf16.gmra.mxu0 %v3460
      %v3557 = vpop.f32.mrf.mxu0
      %v3558 = vadd.f32 0.0, %v3557
      %v3559 = vpop.f32.mrf.mxu0
      %v3560 = vadd.f32 0.0, %v3559
      %3561 = vmatmul.bf16.gmra.mxu0 %v3461
      %v3562 = vpop.f32.mrf.mxu0
      %v3563 = vadd.f32 0.0, %v3562
      %v3564 = vpop.f32.mrf.mxu0
      %v3565 = vadd.f32 0.0, %v3564
      %3566 = vmatmul.bf16.gmra.mxu0 %v3462
      %v3567 = vpop.f32.mrf.mxu0
      %v3568 = vadd.f32 0.0, %v3567
      %v3569 = vpop.f32.mrf.mxu0
      %v3570 = vadd.f32 0.0, %v3569
      %3571 = vmatmul.bf16.gmra.mxu0 %v3463
      %v3572 = vpop.f32.mrf.mxu0
      %v3573 = vadd.f32 0.0, %v3572
      %v3574 = vpop.f32.mrf.mxu0
      %v3575 = vadd.f32 0.0, %v3574
      %3576 = vmatmul.bf16.gmra.mxu0 %v3464
      %v3577 = vpop.f32.mrf.mxu0
      %v3578 = vadd.f32 0.0, %v3577
      %v3579 = vpop.f32.mrf.mxu0
      %v3580 = vadd.f32 0.0, %v3579
      %3581 = vmatmul.bf16.gmra.mxu0 %v3465
      %v3582 = vpop.f32.mrf.mxu0
      %v3583 = vadd.f32 0.0, %v3582
      %v3584 = vpop.f32.mrf.mxu0
      %v3585 = vadd.f32 0.0, %v3584
      %3586 = vmatmul.bf16.gmra.mxu0 %v3466
      %v3587 = vpop.f32.mrf.mxu0
      %v3588 = vadd.f32 0.0, %v3587
      %v3589 = vpop.f32.mrf.mxu0
      %v3590 = vadd.f32 0.0, %v3589
      %3591 = vmatmul.bf16.gmra.mxu0 %v3467
      %v3592 = vpop.f32.mrf.mxu0
      %v3593 = vadd.f32 0.0, %v3592
      %v3594 = vpop.f32.mrf.mxu0
      %v3595 = vadd.f32 0.0, %v3594
      %3596 = vmatmul.bf16.gmra.mxu0 %v3468
      %v3597 = vpop.f32.mrf.mxu0
      %v3598 = vadd.f32 0.0, %v3597
      %v3599 = vpop.f32.mrf.mxu0
      %v3600 = vadd.f32 0.0, %v3599
      %3601 = vmatmul.bf16.gmra.mxu0 %v3469
      %v3602 = vpop.f32.mrf.mxu0
      %v3603 = vadd.f32 0.0, %v3602
      %v3604 = vpop.f32.mrf.mxu0
      %v3605 = vadd.f32 0.0, %v3604
      %3606 = vmatmul.bf16.gmra.mxu0 %v3470
      %v3607 = vpop.f32.mrf.mxu0
      %v3608 = vadd.f32 0.0, %v3607
      %v3609 = vpop.f32.mrf.mxu0
      %v3610 = vadd.f32 0.0, %v3609
      %3611 = vmatmul.bf16.gmra.mxu0 %v3471
      %v3612 = vpop.f32.mrf.mxu0
      %v3613 = vadd.f32 0.0, %v3612
      %v3614 = vpop.f32.mrf.mxu0
      %v3615 = vadd.f32 0.0, %v3614
      %3616 = vmatmul.bf16.gmra.mxu0 %v3472
      %v3617 = vpop.f32.mrf.mxu0
      %v3618 = vadd.f32 0.0, %v3617
      %v3619 = vpop.f32.mrf.mxu0
      %v3620 = vadd.f32 0.0, %v3619
      %3621 = vmatmul.bf16.gmra.mxu0 %v3473
      %v3622 = vpop.f32.mrf.mxu0
      %v3623 = vadd.f32 0.0, %v3622
      %v3624 = vpop.f32.mrf.mxu0
      %v3625 = vadd.f32 0.0, %v3624
      %3626 = vdwg.mxu0
      %v3627 = vld [vmem:[#allocation3] sm:$0xff]
      %v3628 = vld [vmem:[#allocation3 + $0x8] sm:$0xff]
      %v3629 = vld [vmem:[#allocation3 + $0x10] sm:$0xff]
      %v3630 = vld [vmem:[#allocation3 + $0x18] sm:$0xff]
      %v3631 = vld [vmem:[#allocation3 + $0x20] sm:$0xff]
      %v3632 = vld [vmem:[#allocation3 + $0x28] sm:$0xff]
      %v3633 = vld [vmem:[#allocation3 + $0x30] sm:$0xff]
      %v3634 = vld [vmem:[#allocation3 + $0x38] sm:$0xff]
      %v3635 = vld [vmem:[#allocation3 + $0x40] sm:$0xff]
      %v3636 = vld [vmem:[#allocation3 + $0x48] sm:$0xff]
      %v3637 = vld [vmem:[#allocation3 + $0x50] sm:$0xff]
      %v3638 = vld [vmem:[#allocation3 + $0x58] sm:$0xff]
      %v3639 = vld [vmem:[#allocation3 + $0x60] sm:$0xff]
      %v3640 = vld [vmem:[#allocation3 + $0x68] sm:$0xff]
      %v3641 = vld [vmem:[#allocation3 + $0x70] sm:$0xff]
      %v3642 = vld [vmem:[#allocation3 + $0x78] sm:$0xff]
      %v3643 = vld [vmem:[#allocation3 + $0x80] sm:$0xff]
      %v3644 = vld [vmem:[#allocation3 + $0x88] sm:$0xff]
      %v3645 = vld [vmem:[#allocation3 + $0x90] sm:$0xff]
      %v3646 = vld [vmem:[#allocation3 + $0x98] sm:$0xff]
      %v3647 = vld [vmem:[#allocation3 + $0xa0] sm:$0xff]
      %v3648 = vld [vmem:[#allocation3 + $0xa8] sm:$0xff]
      %v3649 = vld [vmem:[#allocation3 + $0xb0] sm:$0xff]
      %v3650 = vld [vmem:[#allocation3 + $0xb8] sm:$0xff]
      %v3651 = vld [vmem:[#allocation3 + $0xc0] sm:$0xff]
      %v3652 = vld [vmem:[#allocation3 + $0xc8] sm:$0xff]
      %v3653 = vld [vmem:[#allocation3 + $0xd0] sm:$0xff]
      %v3654 = vld [vmem:[#allocation3 + $0xd8] sm:$0xff]
      %v3655 = vld [vmem:[#allocation3 + $0xe0] sm:$0xff]
      %v3656 = vld [vmem:[#allocation3 + $0xe8] sm:$0xff]
      %v3657 = vld [vmem:[#allocation3 + $0xf0] sm:$0xff]
      %v3658 = vld [vmem:[#allocation3 + $0xf8] sm:$0xff]
      %v3659 = vadd.f32 %v3627, %v3548
      %v3660 = vadd.f32 %v3628, %v3550
      %v3661 = vadd.f32 %v3629, %v3553
      %v3662 = vadd.f32 %v3630, %v3555
      %v3663 = vadd.f32 %v3631, %v3558
      %v3664 = vadd.f32 %v3632, %v3560
      %v3665 = vadd.f32 %v3633, %v3563
      %v3666 = vadd.f32 %v3634, %v3565
      %v3667 = vadd.f32 %v3635, %v3568
      %v3668 = vadd.f32 %v3636, %v3570
      %v3669 = vadd.f32 %v3637, %v3573
      %v3670 = vadd.f32 %v3638, %v3575
      %v3671 = vadd.f32 %v3639, %v3578
      %v3672 = vadd.f32 %v3640, %v3580
      %v3673 = vadd.f32 %v3641, %v3583
      %v3674 = vadd.f32 %v3642, %v3585
      %v3675 = vadd.f32 %v3643, %v3588
      %v3676 = vadd.f32 %v3644, %v3590
      %v3677 = vadd.f32 %v3645, %v3593
      %v3678 = vadd.f32 %v3646, %v3595
      %v3679 = vadd.f32 %v3647, %v3598
      %v3680 = vadd.f32 %v3648, %v3600
      %v3681 = vadd.f32 %v3649, %v3603
      %v3682 = vadd.f32 %v3650, %v3605
      %v3683 = vadd.f32 %v3651, %v3608
      %v3684 = vadd.f32 %v3652, %v3610
      %v3685 = vadd.f32 %v3653, %v3613
      %v3686 = vadd.f32 %v3654, %v3615
      %v3687 = vadd.f32 %v3655, %v3618
      %v3688 = vadd.f32 %v3656, %v3620
      %v3689 = vadd.f32 %v3657, %v3623
      %v3690 = vadd.f32 %v3658, %v3625
      %3691 = vst [vmem:[#allocation3] sm:$0xff] %v3659
      %3692 = vst [vmem:[#allocation3 + $0x8] sm:$0xff] %v3660
      %3693 = vst [vmem:[#allocation3 + $0x10] sm:$0xff] %v3661
      %3694 = vst [vmem:[#allocation3 + $0x18] sm:$0xff] %v3662
      %3695 = vst [vmem:[#allocation3 + $0x20] sm:$0xff] %v3663
      %3696 = vst [vmem:[#allocation3 + $0x28] sm:$0xff] %v3664
      %3697 = vst [vmem:[#allocation3 + $0x30] sm:$0xff] %v3665
      %3698 = vst [vmem:[#allocation3 + $0x38] sm:$0xff] %v3666
      %3699 = vst [vmem:[#allocation3 + $0x40] sm:$0xff] %v3667
      %3700 = vst [vmem:[#allocation3 + $0x48] sm:$0xff] %v3668
      %3701 = vst [vmem:[#allocation3 + $0x50] sm:$0xff] %v3669
      %3702 = vst [vmem:[#allocation3 + $0x58] sm:$0xff] %v3670
      %3703 = vst [vmem:[#allocation3 + $0x60] sm:$0xff] %v3671
      %3704 = vst [vmem:[#allocation3 + $0x68] sm:$0xff] %v3672
      %3705 = vst [vmem:[#allocation3 + $0x70] sm:$0xff] %v3673
      %3706 = vst [vmem:[#allocation3 + $0x78] sm:$0xff] %v3674
      %3707 = vst [vmem:[#allocation3 + $0x80] sm:$0xff] %v3675
      %3708 = vst [vmem:[#allocation3 + $0x88] sm:$0xff] %v3676
      %3709 = vst [vmem:[#allocation3 + $0x90] sm:$0xff] %v3677
      %3710 = vst [vmem:[#allocation3 + $0x98] sm:$0xff] %v3678
      %3711 = vst [vmem:[#allocation3 + $0xa0] sm:$0xff] %v3679
      %3712 = vst [vmem:[#allocation3 + $0xa8] sm:$0xff] %v3680
      %3713 = vst [vmem:[#allocation3 + $0xb0] sm:$0xff] %v3681
      %3714 = vst [vmem:[#allocation3 + $0xb8] sm:$0xff] %v3682
      %3715 = vst [vmem:[#allocation3 + $0xc0] sm:$0xff] %v3683
      %3716 = vst [vmem:[#allocation3 + $0xc8] sm:$0xff] %v3684
      %3717 = vst [vmem:[#allocation3 + $0xd0] sm:$0xff] %v3685
      %3718 = vst [vmem:[#allocation3 + $0xd8] sm:$0xff] %v3686
      %3719 = vst [vmem:[#allocation3 + $0xe0] sm:$0xff] %v3687
      %3720 = vst [vmem:[#allocation3 + $0xe8] sm:$0xff] %v3688
      %3721 = vst [vmem:[#allocation3 + $0xf0] sm:$0xff] %v3689
      %3722 = vst [vmem:[#allocation3 + $0xf8] sm:$0xff] %v3690
      %v3723 = vld [vmem:[%s612] sm:$0xe]
      %v3724 = vld [vmem:[%s612 + $0x4] sm:$0xf]
      %v3725 = vld [vmem:[%s612 + $0x8] sm:$0x1]
      %v3726 = vld [vmem:[%s612 + $0xc] sm:$0xe]
      %v3727 = vld [vmem:[%s612 + $0x10] sm:$0xf]
      %v3728 = vld [vmem:[%s612 + $0x14] sm:$0x1]
      %v3729 = vld [vmem:[%s612 + $0x18] sm:$0xe]
      %v3730 = vld [vmem:[%s612 + $0x1c] sm:$0xf]
      %v3731 = vld [vmem:[%s612 + $0x20] sm:$0x1]
      %v3732 = vld [vmem:[%s612 + $0x24] sm:$0xe]
      %v3733 = vld [vmem:[%s612 + $0x28] sm:$0xf]
      %v3734 = vld [vmem:[%s612 + $0x2c] sm:$0x1]
      %v3735 = vld [vmem:[%s612 + $0x30] sm:$0xe]
      %v3736 = vld [vmem:[%s612 + $0x34] sm:$0xf]
      %v3737 = vld [vmem:[%s612 + $0x38] sm:$0x1]
      %v3738 = vld [vmem:[%s612 + $0x3c] sm:$0xe]
      %v3739 = vld [vmem:[%s612 + $0x40] sm:$0xf]
      %v3740 = vld [vmem:[%s612 + $0x44] sm:$0x1]
      %v3741 = vld [vmem:[%s612 + $0x48] sm:$0xe]
      %v3742 = vld [vmem:[%s612 + $0x4c] sm:$0xf]
      %v3743 = vld [vmem:[%s612 + $0x50] sm:$0x1]
      %v3744 = vld [vmem:[%s612 + $0x54] sm:$0xe]
      %v3745 = vld [vmem:[%s612 + $0x58] sm:$0xf]
      %v3746 = vld [vmem:[%s612 + $0x5c] sm:$0x1]
      %v3747 = vld [vmem:[%s612 + $0x60] sm:$0xe]
      %v3748 = vld [vmem:[%s612 + $0x64] sm:$0xf]
      %v3749 = vld [vmem:[%s612 + $0x68] sm:$0x1]
      %v3750 = vld [vmem:[%s612 + $0x6c] sm:$0xe]
      %v3751 = vld [vmem:[%s612 + $0x70] sm:$0xf]
      %v3752 = vld [vmem:[%s612 + $0x74] sm:$0x1]
      %v3753 = vld [vmem:[%s612 + $0x78] sm:$0xe]
      %v3754 = vld [vmem:[%s612 + $0x7c] sm:$0xf]
      %v3755 = vld [vmem:[%s612 + $0x80] sm:$0x1]
      %v3756 = vld [vmem:[%s612 + $0x84] sm:$0xe]
      %v3757 = vld [vmem:[%s612 + $0x88] sm:$0xf]
      %v3758 = vld [vmem:[%s612 + $0x8c] sm:$0x1]
      %v3759 = vld [vmem:[%s612 + $0x90] sm:$0xe]
      %v3760 = vld [vmem:[%s612 + $0x94] sm:$0xf]
      %v3761 = vld [vmem:[%s612 + $0x98] sm:$0x1]
      %v3762 = vld [vmem:[%s612 + $0x9c] sm:$0xe]
      %v3763 = vld [vmem:[%s612 + $0xa0] sm:$0xf]
      %v3764 = vld [vmem:[%s612 + $0xa4] sm:$0x1]
      %v3765 = vld [vmem:[%s612 + $0xa8] sm:$0xe]
      %v3766 = vld [vmem:[%s612 + $0xac] sm:$0xf]
      %v3767 = vld [vmem:[%s612 + $0xb0] sm:$0x1]
      %v3768 = vld [vmem:[%s612 + $0xb4] sm:$0xe]
      %v3769 = vld [vmem:[%s612 + $0xb8] sm:$0xf]
      %v3770 = vld [vmem:[%s612 + $0xbc] sm:$0x1]
      %v3819 = vrot.slane %v3723, 5
      %v3820 = vrot.slane %v3819, 4
      %v3821 = vrot.slane %v3724, 5
      %v3822 = vsel %vm2172, %v3820, %v3821
      %v3823 = vrot.slane %v3821, 4
      %v3824 = vrot.slane %v3725, 5
      %v3825 = vsel %vm2172, %v3823, %v3824
      %v3826 = vrot.slane %v3726, 5
      %v3827 = vrot.slane %v3826, 4
      %v3828 = vrot.slane %v3727, 5
      %v3829 = vsel %vm2172, %v3827, %v3828
      %v3830 = vrot.slane %v3828, 4
      %v3831 = vrot.slane %v3728, 5
      %v3832 = vsel %vm2172, %v3830, %v3831
      %v3833 = vrot.slane %v3729, 5
      %v3834 = vrot.slane %v3833, 4
      %v3835 = vrot.slane %v3730, 5
      %v3836 = vsel %vm2172, %v3834, %v3835
      %v3837 = vrot.slane %v3835, 4
      %v3838 = vrot.slane %v3731, 5
      %v3839 = vsel %vm2172, %v3837, %v3838
      %v3840 = vrot.slane %v3732, 5
      %v3841 = vrot.slane %v3840, 4
      %v3842 = vrot.slane %v3733, 5
      %v3843 = vsel %vm2172, %v3841, %v3842
      %v3844 = vrot.slane %v3842, 4
      %v3845 = vrot.slane %v3734, 5
      %v3846 = vsel %vm2172, %v3844, %v3845
      %v3847 = vrot.slane %v3735, 5
      %v3848 = vrot.slane %v3847, 4
      %v3849 = vrot.slane %v3736, 5
      %v3850 = vsel %vm2172, %v3848, %v3849
      %v3851 = vrot.slane %v3849, 4
      %v3852 = vrot.slane %v3737, 5
      %v3853 = vsel %vm2172, %v3851, %v3852
      %v3854 = vrot.slane %v3738, 5
      %v3855 = vrot.slane %v3854, 4
      %v3856 = vrot.slane %v3739, 5
      %v3857 = vsel %vm2172, %v3855, %v3856
      %v3858 = vrot.slane %v3856, 4
      %v3859 = vrot.slane %v3740, 5
      %v3860 = vsel %vm2172, %v3858, %v3859
      %v3861 = vrot.slane %v3741, 5
      %v3862 = vrot.slane %v3861, 4
      %v3863 = vrot.slane %v3742, 5
      %v3864 = vsel %vm2172, %v3862, %v3863
      %v3865 = vrot.slane %v3863, 4
      %v3866 = vrot.slane %v3743, 5
      %v3867 = vsel %vm2172, %v3865, %v3866
      %v3868 = vrot.slane %v3744, 5
      %v3869 = vrot.slane %v3868, 4
      %v3870 = vrot.slane %v3745, 5
      %v3871 = vsel %vm2172, %v3869, %v3870
      %v3872 = vrot.slane %v3870, 4
      %v3873 = vrot.slane %v3746, 5
      %v3874 = vsel %vm2172, %v3872, %v3873
      %v3875 = vrot.slane %v3747, 5
      %v3876 = vrot.slane %v3875, 4
      %v3877 = vrot.slane %v3748, 5
      %v3878 = vsel %vm2172, %v3876, %v3877
      %v3879 = vrot.slane %v3877, 4
      %v3880 = vrot.slane %v3749, 5
      %v3881 = vsel %vm2172, %v3879, %v3880
      %v3882 = vrot.slane %v3750, 5
      %v3883 = vrot.slane %v3882, 4
      %v3884 = vrot.slane %v3751, 5
      %v3885 = vsel %vm2172, %v3883, %v3884
      %v3886 = vrot.slane %v3884, 4
      %v3887 = vrot.slane %v3752, 5
      %v3888 = vsel %vm2172, %v3886, %v3887
      %v3889 = vrot.slane %v3753, 5
      %v3890 = vrot.slane %v3889, 4
      %v3891 = vrot.slane %v3754, 5
      %v3892 = vsel %vm2172, %v3890, %v3891
      %v3893 = vrot.slane %v3891, 4
      %v3894 = vrot.slane %v3755, 5
      %v3895 = vsel %vm2172, %v3893, %v3894
      %v3896 = vrot.slane %v3756, 5
      %v3897 = vrot.slane %v3896, 4
      %v3898 = vrot.slane %v3757, 5
      %v3899 = vsel %vm2172, %v3897, %v3898
      %v3900 = vrot.slane %v3898, 4
      %v3901 = vrot.slane %v3758, 5
      %v3902 = vsel %vm2172, %v3900, %v3901
      %v3903 = vrot.slane %v3759, 5
      %v3904 = vrot.slane %v3903, 4
      %v3905 = vrot.slane %v3760, 5
      %v3906 = vsel %vm2172, %v3904, %v3905
      %v3907 = vrot.slane %v3905, 4
      %v3908 = vrot.slane %v3761, 5
      %v3909 = vsel %vm2172, %v3907, %v3908
      %v3910 = vrot.slane %v3762, 5
      %v3911 = vrot.slane %v3910, 4
      %v3912 = vrot.slane %v3763, 5
      %v3913 = vsel %vm2172, %v3911, %v3912
      %v3914 = vrot.slane %v3912, 4
      %v3915 = vrot.slane %v3764, 5
      %v3916 = vsel %vm2172, %v3914, %v3915
      %v3917 = vrot.slane %v3765, 5
      %v3918 = vrot.slane %v3917, 4
      %v3919 = vrot.slane %v3766, 5
      %v3920 = vsel %vm2172, %v3918, %v3919
      %v3921 = vrot.slane %v3919, 4
      %v3922 = vrot.slane %v3767, 5
      %v3923 = vsel %vm2172, %v3921, %v3922
      %v3924 = vrot.slane %v3768, 5
      %v3925 = vrot.slane %v3924, 4
      %v3926 = vrot.slane %v3769, 5
      %v3927 = vsel %vm2172, %v3925, %v3926
      %v3928 = vrot.slane %v3926, 4
      %v3929 = vrot.slane %v3770, 5
      %v3930 = vsel %vm2172, %v3928, %v3929
      %s3931 = scalar_lea.vmem %s1, 320
      %v3932 = vld [vmem:[%s3931] sm:$0xf]
      %v3933 = vld [vmem:[%s3931 + $0x4] sm:$0xf]
      %v3934 = vld [vmem:[%s3931 + $0x8] sm:$0xf]
      %v3935 = vld [vmem:[%s3931 + $0xc] sm:$0xf]
      %v3936 = vld [vmem:[%s3931 + $0x10] sm:$0xf]
      %v3937 = vld [vmem:[%s3931 + $0x14] sm:$0xf]
      %v3938 = vld [vmem:[%s3931 + $0x18] sm:$0xf]
      %v3939 = vld [vmem:[%s3931 + $0x1c] sm:$0xf]
      %v3940 = vld [vmem:[%s3931 + $0x20] sm:$0xf]
      %v3941 = vld [vmem:[%s3931 + $0x24] sm:$0xf]
      %v3942 = vld [vmem:[%s3931 + $0x28] sm:$0xf]
      %v3943 = vld [vmem:[%s3931 + $0x2c] sm:$0xf]
      %v3944 = vld [vmem:[%s3931 + $0x30] sm:$0xf]
      %v3945 = vld [vmem:[%s3931 + $0x34] sm:$0xf]
      %v3946 = vld [vmem:[%s3931 + $0x38] sm:$0xf]
      %v3947 = vld [vmem:[%s3931 + $0x3c] sm:$0xf]
      %v3948 = vunpack.c.l.b16 %v3822
      %v3949 = vunpack.c.l.b16 %v3825
      %v3950 = vunpack.c.l.b16 %v3829
      %v3951 = vunpack.c.l.b16 %v3832
      %v3952 = vunpack.c.l.b16 %v3836
      %v3953 = vunpack.c.l.b16 %v3839
      %v3954 = vunpack.c.l.b16 %v3843
      %v3955 = vunpack.c.l.b16 %v3846
      %v3956 = vunpack.c.l.b16 %v3850
      %v3957 = vunpack.c.l.b16 %v3853
      %v3958 = vunpack.c.l.b16 %v3857
      %v3959 = vunpack.c.l.b16 %v3860
      %v3960 = vunpack.c.l.b16 %v3864
      %v3961 = vunpack.c.l.b16 %v3867
      %v3962 = vunpack.c.l.b16 %v3871
      %v3963 = vunpack.c.l.b16 %v3874
      %v3964 = vunpack.c.l.b16 %v3878
      %v3965 = vunpack.c.l.b16 %v3881
      %v3966 = vunpack.c.l.b16 %v3885
      %v3967 = vunpack.c.l.b16 %v3888
      %v3968 = vunpack.c.l.b16 %v3892
      %v3969 = vunpack.c.l.b16 %v3895
      %v3970 = vunpack.c.l.b16 %v3899
      %v3971 = vunpack.c.l.b16 %v3902
      %v3972 = vunpack.c.l.b16 %v3906
      %v3973 = vunpack.c.l.b16 %v3909
      %v3974 = vunpack.c.l.b16 %v3913
      %v3975 = vunpack.c.l.b16 %v3916
      %v3976 = vunpack.c.l.b16 %v3920
      %v3977 = vunpack.c.l.b16 %v3923
      %v3978 = vunpack.c.l.b16 %v3927
      %v3979 = vunpack.c.l.b16 %v3930
      %v3980 = vpack.c.b16 %v3949, %v3948
      %v3981 = vpack.c.b16 %v3951, %v3950
      %v3982 = vpack.c.b16 %v3953, %v3952
      %v3983 = vpack.c.b16 %v3955, %v3954
      %v3984 = vpack.c.b16 %v3957, %v3956
      %v3985 = vpack.c.b16 %v3959, %v3958
      %v3986 = vpack.c.b16 %v3961, %v3960
      %v3987 = vpack.c.b16 %v3963, %v3962
      %v3988 = vpack.c.b16 %v3965, %v3964
      %v3989 = vpack.c.b16 %v3967, %v3966
      %v3990 = vpack.c.b16 %v3969, %v3968
      %v3991 = vpack.c.b16 %v3971, %v3970
      %v3992 = vpack.c.b16 %v3973, %v3972
      %v3993 = vpack.c.b16 %v3975, %v3974
      %v3994 = vpack.c.b16 %v3977, %v3976
      %v3995 = vpack.c.b16 %v3979, %v3978
      %v4028 = vunpack.c.l.b16 %v3932
      %v4029 = vunpack.c.l.b16 %v3933
      %v4030 = vunpack.c.l.b16 %v3934
      %v4031 = vunpack.c.l.b16 %v3935
      %v4032 = vunpack.c.l.b16 %v3936
      %v4033 = vunpack.c.l.b16 %v3937
      %v4034 = vunpack.c.l.b16 %v3938
      %v4035 = vunpack.c.l.b16 %v3939
      %v4036 = vunpack.c.l.b16 %v3940
      %v4037 = vunpack.c.l.b16 %v3941
      %v4038 = vunpack.c.l.b16 %v3942
      %v4039 = vunpack.c.l.b16 %v3943
      %v4040 = vunpack.c.l.b16 %v3944
      %v4041 = vunpack.c.l.b16 %v3945
      %v4042 = vunpack.c.l.b16 %v3946
      %v4043 = vunpack.c.l.b16 %v3947
      %v4044 = vpack.c.b16 %v4029, %v4028
      %v4045 = vpack.c.b16 %v4031, %v4030
      %v4046 = vpack.c.b16 %v4033, %v4032
      %v4047 = vpack.c.b16 %v4035, %v4034
      %v4048 = vpack.c.b16 %v4037, %v4036
      %v4049 = vpack.c.b16 %v4039, %v4038
      %v4050 = vpack.c.b16 %v4041, %v4040
      %v4051 = vpack.c.b16 %v4043, %v4042
      %4060 = vmatpush.bf16.msra.mxu0 %v4051
      %4061 = vmatpush.bf16.msra.mxu0 %v4050
      %4062 = vmatpush.bf16.msra.mxu0 %v4049
      %4063 = vmatpush.bf16.msra.mxu0 %v4048
      %4064 = vmatpush.bf16.msra.mxu0 %v4047
      %4065 = vmatpush.bf16.msra.mxu0 %v4046
      %4066 = vmatpush.bf16.msra.mxu0 %v4045
      %4067 = vmatpush.bf16.msra.mxu0 %v4044
      %4068 = vmatmul.bf16.gmra.mxu0 %v3980
      %v4069 = vpop.f32.mrf.mxu0
      %v4070 = vadd.f32 0.0, %v4069
      %v4071 = vpop.f32.mrf.mxu0
      %v4072 = vadd.f32 0.0, %v4071
      %4073 = vmatmul.bf16.gmra.mxu0 %v3981
      %v4074 = vpop.f32.mrf.mxu0
      %v4075 = vadd.f32 0.0, %v4074
      %v4076 = vpop.f32.mrf.mxu0
      %v4077 = vadd.f32 0.0, %v4076
      %4078 = vmatmul.bf16.gmra.mxu0 %v3982
      %v4079 = vpop.f32.mrf.mxu0
      %v4080 = vadd.f32 0.0, %v4079
      %v4081 = vpop.f32.mrf.mxu0
      %v4082 = vadd.f32 0.0, %v4081
      %4083 = vmatmul.bf16.gmra.mxu0 %v3983
      %v4084 = vpop.f32.mrf.mxu0
      %v4085 = vadd.f32 0.0, %v4084
      %v4086 = vpop.f32.mrf.mxu0
      %v4087 = vadd.f32 0.0, %v4086
      %4088 = vmatmul.bf16.gmra.mxu0 %v3984
      %v4089 = vpop.f32.mrf.mxu0
      %v4090 = vadd.f32 0.0, %v4089
      %v4091 = vpop.f32.mrf.mxu0
      %v4092 = vadd.f32 0.0, %v4091
      %4093 = vmatmul.bf16.gmra.mxu0 %v3985
      %v4094 = vpop.f32.mrf.mxu0
      %v4095 = vadd.f32 0.0, %v4094
      %v4096 = vpop.f32.mrf.mxu0
      %v4097 = vadd.f32 0.0, %v4096
      %4098 = vmatmul.bf16.gmra.mxu0 %v3986
      %v4099 = vpop.f32.mrf.mxu0
      %v4100 = vadd.f32 0.0, %v4099
      %v4101 = vpop.f32.mrf.mxu0
      %v4102 = vadd.f32 0.0, %v4101
      %4103 = vmatmul.bf16.gmra.mxu0 %v3987
      %v4104 = vpop.f32.mrf.mxu0
      %v4105 = vadd.f32 0.0, %v4104
      %v4106 = vpop.f32.mrf.mxu0
      %v4107 = vadd.f32 0.0, %v4106
      %4108 = vmatmul.bf16.gmra.mxu0 %v3988
      %v4109 = vpop.f32.mrf.mxu0
      %v4110 = vadd.f32 0.0, %v4109
      %v4111 = vpop.f32.mrf.mxu0
      %v4112 = vadd.f32 0.0, %v4111
      %4113 = vmatmul.bf16.gmra.mxu0 %v3989
      %v4114 = vpop.f32.mrf.mxu0
      %v4115 = vadd.f32 0.0, %v4114
      %v4116 = vpop.f32.mrf.mxu0
      %v4117 = vadd.f32 0.0, %v4116
      %4118 = vmatmul.bf16.gmra.mxu0 %v3990
      %v4119 = vpop.f32.mrf.mxu0
      %v4120 = vadd.f32 0.0, %v4119
      %v4121 = vpop.f32.mrf.mxu0
      %v4122 = vadd.f32 0.0, %v4121
      %4123 = vmatmul.bf16.gmra.mxu0 %v3991
      %v4124 = vpop.f32.mrf.mxu0
      %v4125 = vadd.f32 0.0, %v4124
      %v4126 = vpop.f32.mrf.mxu0
      %v4127 = vadd.f32 0.0, %v4126
      %4128 = vmatmul.bf16.gmra.mxu0 %v3992
      %v4129 = vpop.f32.mrf.mxu0
      %v4130 = vadd.f32 0.0, %v4129
      %v4131 = vpop.f32.mrf.mxu0
      %v4132 = vadd.f32 0.0, %v4131
      %4133 = vmatmul.bf16.gmra.mxu0 %v3993
      %v4134 = vpop.f32.mrf.mxu0
      %v4135 = vadd.f32 0.0, %v4134
      %v4136 = vpop.f32.mrf.mxu0
      %v4137 = vadd.f32 0.0, %v4136
      %4138 = vmatmul.bf16.gmra.mxu0 %v3994
      %v4139 = vpop.f32.mrf.mxu0
      %v4140 = vadd.f32 0.0, %v4139
      %v4141 = vpop.f32.mrf.mxu0
      %v4142 = vadd.f32 0.0, %v4141
      %4143 = vmatmul.bf16.gmra.mxu0 %v3995
      %v4144 = vpop.f32.mrf.mxu0
      %v4145 = vadd.f32 0.0, %v4144
      %v4146 = vpop.f32.mrf.mxu0
      %v4147 = vadd.f32 0.0, %v4146
      %4148 = vdwg.mxu0
      %v4149 = vld [vmem:[#allocation3] sm:$0xff]
      %v4150 = vld [vmem:[#allocation3 + $0x8] sm:$0xff]
      %v4151 = vld [vmem:[#allocation3 + $0x10] sm:$0xff]
      %v4152 = vld [vmem:[#allocation3 + $0x18] sm:$0xff]
      %v4153 = vld [vmem:[#allocation3 + $0x20] sm:$0xff]
      %v4154 = vld [vmem:[#allocation3 + $0x28] sm:$0xff]
      %v4155 = vld [vmem:[#allocation3 + $0x30] sm:$0xff]
      %v4156 = vld [vmem:[#allocation3 + $0x38] sm:$0xff]
      %v4157 = vld [vmem:[#allocation3 + $0x40] sm:$0xff]
      %v4158 = vld [vmem:[#allocation3 + $0x48] sm:$0xff]
      %v4159 = vld [vmem:[#allocation3 + $0x50] sm:$0xff]
      %v4160 = vld [vmem:[#allocation3 + $0x58] sm:$0xff]
      %v4161 = vld [vmem:[#allocation3 + $0x60] sm:$0xff]
      %v4162 = vld [vmem:[#allocation3 + $0x68] sm:$0xff]
      %v4163 = vld [vmem:[#allocation3 + $0x70] sm:$0xff]
      %v4164 = vld [vmem:[#allocation3 + $0x78] sm:$0xff]
      %v4165 = vld [vmem:[#allocation3 + $0x80] sm:$0xff]
      %v4166 = vld [vmem:[#allocation3 + $0x88] sm:$0xff]
      %v4167 = vld [vmem:[#allocation3 + $0x90] sm:$0xff]
      %v4168 = vld [vmem:[#allocation3 + $0x98] sm:$0xff]
      %v4169 = vld [vmem:[#allocation3 + $0xa0] sm:$0xff]
      %v4170 = vld [vmem:[#allocation3 + $0xa8] sm:$0xff]
      %v4171 = vld [vmem:[#allocation3 + $0xb0] sm:$0xff]
      %v4172 = vld [vmem:[#allocation3 + $0xb8] sm:$0xff]
      %v4173 = vld [vmem:[#allocation3 + $0xc0] sm:$0xff]
      %v4174 = vld [vmem:[#allocation3 + $0xc8] sm:$0xff]
      %v4175 = vld [vmem:[#allocation3 + $0xd0] sm:$0xff]
      %v4176 = vld [vmem:[#allocation3 + $0xd8] sm:$0xff]
      %v4177 = vld [vmem:[#allocation3 + $0xe0] sm:$0xff]
      %v4178 = vld [vmem:[#allocation3 + $0xe8] sm:$0xff]
      %v4179 = vld [vmem:[#allocation3 + $0xf0] sm:$0xff]
      %v4180 = vld [vmem:[#allocation3 + $0xf8] sm:$0xff]
      %v4181 = vadd.f32 %v4149, %v4070
      %v4182 = vadd.f32 %v4150, %v4072
      %v4183 = vadd.f32 %v4151, %v4075
      %v4184 = vadd.f32 %v4152, %v4077
      %v4185 = vadd.f32 %v4153, %v4080
      %v4186 = vadd.f32 %v4154, %v4082
      %v4187 = vadd.f32 %v4155, %v4085
      %v4188 = vadd.f32 %v4156, %v4087
      %v4189 = vadd.f32 %v4157, %v4090
      %v4190 = vadd.f32 %v4158, %v4092
      %v4191 = vadd.f32 %v4159, %v4095
      %v4192 = vadd.f32 %v4160, %v4097
      %v4193 = vadd.f32 %v4161, %v4100
      %v4194 = vadd.f32 %v4162, %v4102
      %v4195 = vadd.f32 %v4163, %v4105
      %v4196 = vadd.f32 %v4164, %v4107
      %v4197 = vadd.f32 %v4165, %v4110
      %v4198 = vadd.f32 %v4166, %v4112
      %v4199 = vadd.f32 %v4167, %v4115
      %v4200 = vadd.f32 %v4168, %v4117
      %v4201 = vadd.f32 %v4169, %v4120
      %v4202 = vadd.f32 %v4170, %v4122
      %v4203 = vadd.f32 %v4171, %v4125
      %v4204 = vadd.f32 %v4172, %v4127
      %v4205 = vadd.f32 %v4173, %v4130
      %v4206 = vadd.f32 %v4174, %v4132
      %v4207 = vadd.f32 %v4175, %v4135
      %v4208 = vadd.f32 %v4176, %v4137
      %v4209 = vadd.f32 %v4177, %v4140
      %v4210 = vadd.f32 %v4178, %v4142
      %v4211 = vadd.f32 %v4179, %v4145
      %v4212 = vadd.f32 %v4180, %v4147
      %4213 = vst [vmem:[#allocation3] sm:$0xff] %v4181
      %4214 = vst [vmem:[#allocation3 + $0x8] sm:$0xff] %v4182
      %4215 = vst [vmem:[#allocation3 + $0x10] sm:$0xff] %v4183
      %4216 = vst [vmem:[#allocation3 + $0x18] sm:$0xff] %v4184
      %4217 = vst [vmem:[#allocation3 + $0x20] sm:$0xff] %v4185
      %4218 = vst [vmem:[#allocation3 + $0x28] sm:$0xff] %v4186
      %4219 = vst [vmem:[#allocation3 + $0x30] sm:$0xff] %v4187
      %4220 = vst [vmem:[#allocation3 + $0x38] sm:$0xff] %v4188
      %4221 = vst [vmem:[#allocation3 + $0x40] sm:$0xff] %v4189
      %4222 = vst [vmem:[#allocation3 + $0x48] sm:$0xff] %v4190
      %4223 = vst [vmem:[#allocation3 + $0x50] sm:$0xff] %v4191
      %4224 = vst [vmem:[#allocation3 + $0x58] sm:$0xff] %v4192
      %4225 = vst [vmem:[#allocation3 + $0x60] sm:$0xff] %v4193
      %4226 = vst [vmem:[#allocation3 + $0x68] sm:$0xff] %v4194
      %4227 = vst [vmem:[#allocation3 + $0x70] sm:$0xff] %v4195
      %4228 = vst [vmem:[#allocation3 + $0x78] sm:$0xff] %v4196
      %4229 = vst [vmem:[#allocation3 + $0x80] sm:$0xff] %v4197
      %4230 = vst [vmem:[#allocation3 + $0x88] sm:$0xff] %v4198
      %4231 = vst [vmem:[#allocation3 + $0x90] sm:$0xff] %v4199
      %4232 = vst [vmem:[#allocation3 + $0x98] sm:$0xff] %v4200
      %4233 = vst [vmem:[#allocation3 + $0xa0] sm:$0xff] %v4201
      %4234 = vst [vmem:[#allocation3 + $0xa8] sm:$0xff] %v4202
      %4235 = vst [vmem:[#allocation3 + $0xb0] sm:$0xff] %v4203
      %4236 = vst [vmem:[#allocation3 + $0xb8] sm:$0xff] %v4204
      %4237 = vst [vmem:[#allocation3 + $0xc0] sm:$0xff] %v4205
      %4238 = vst [vmem:[#allocation3 + $0xc8] sm:$0xff] %v4206
      %4239 = vst [vmem:[#allocation3 + $0xd0] sm:$0xff] %v4207
      %4240 = vst [vmem:[#allocation3 + $0xd8] sm:$0xff] %v4208
      %4241 = vst [vmem:[#allocation3 + $0xe0] sm:$0xff] %v4209
      %4242 = vst [vmem:[#allocation3 + $0xe8] sm:$0xff] %v4210
      %4243 = vst [vmem:[#allocation3 + $0xf0] sm:$0xff] %v4211
      %4244 = vst [vmem:[#allocation3 + $0xf8] sm:$0xff] %v4212
      %s4245 = scalar_lea.vmem [#allocation2], 24
      %v4246 = vld [vmem:[%s4245] sm:$0xf]
      %v4247 = vld [vmem:[%s4245 + $0x4] sm:$0xf]
      %v4248 = vld [vmem:[%s4245 + $0xc] sm:$0xf]
      %v4249 = vld [vmem:[%s4245 + $0x10] sm:$0xf]
      %v4250 = vld [vmem:[%s4245 + $0x18] sm:$0xf]
      %v4251 = vld [vmem:[%s4245 + $0x1c] sm:$0xf]
      %v4252 = vld [vmem:[%s4245 + $0x24] sm:$0xf]
      %v4253 = vld [vmem:[%s4245 + $0x28] sm:$0xf]
      %v4254 = vld [vmem:[%s4245 + $0x30] sm:$0xf]
      %v4255 = vld [vmem:[%s4245 + $0x34] sm:$0xf]
      %v4256 = vld [vmem:[%s4245 + $0x3c] sm:$0xf]
      %v4257 = vld [vmem:[%s4245 + $0x40] sm:$0xf]
      %v4258 = vld [vmem:[%s4245 + $0x48] sm:$0xf]
      %v4259 = vld [vmem:[%s4245 + $0x4c] sm:$0xf]
      %v4260 = vld [vmem:[%s4245 + $0x54] sm:$0xf]
      %v4261 = vld [vmem:[%s4245 + $0x58] sm:$0xf]
      %v4262 = vld [vmem:[%s4245 + $0x60] sm:$0xf]
      %v4263 = vld [vmem:[%s4245 + $0x64] sm:$0xf]
      %v4264 = vld [vmem:[%s4245 + $0x6c] sm:$0xf]
      %v4265 = vld [vmem:[%s4245 + $0x70] sm:$0xf]
      %v4266 = vld [vmem:[%s4245 + $0x78] sm:$0xf]
      %v4267 = vld [vmem:[%s4245 + $0x7c] sm:$0xf]
      %v4268 = vld [vmem:[%s4245 + $0x84] sm:$0xf]
      %v4269 = vld [vmem:[%s4245 + $0x88] sm:$0xf]
      %v4270 = vld [vmem:[%s4245 + $0x90] sm:$0xf]
      %v4271 = vld [vmem:[%s4245 + $0x94] sm:$0xf]
      %v4272 = vld [vmem:[%s4245 + $0x9c] sm:$0xf]
      %v4273 = vld [vmem:[%s4245 + $0xa0] sm:$0xf]
      %v4274 = vld [vmem:[%s4245 + $0xa8] sm:$0xf]
      %v4275 = vld [vmem:[%s4245 + $0xac] sm:$0xf]
      %v4276 = vld [vmem:[%s4245 + $0xb4] sm:$0xf]
      %v4277 = vld [vmem:[%s4245 + $0xb8] sm:$0xf]
      %s4278 = scalar_lea.vmem %s1, 384
      %v4279 = vld [vmem:[%s4278] sm:$0xf]
      %v4280 = vld [vmem:[%s4278 + $0x4] sm:$0xf]
      %v4281 = vld [vmem:[%s4278 + $0x8] sm:$0xf]
      %v4282 = vld [vmem:[%s4278 + $0xc] sm:$0xf]
      %v4283 = vld [vmem:[%s4278 + $0x10] sm:$0xf]
      %v4284 = vld [vmem:[%s4278 + $0x14] sm:$0xf]
      %v4285 = vld [vmem:[%s4278 + $0x18] sm:$0xf]
      %v4286 = vld [vmem:[%s4278 + $0x1c] sm:$0xf]
      %v4287 = vld [vmem:[%s4278 + $0x20] sm:$0xf]
      %v4288 = vld [vmem:[%s4278 + $0x24] sm:$0xf]
      %v4289 = vld [vmem:[%s4278 + $0x28] sm:$0xf]
      %v4290 = vld [vmem:[%s4278 + $0x2c] sm:$0xf]
      %v4291 = vld [vmem:[%s4278 + $0x30] sm:$0xf]
      %v4292 = vld [vmem:[%s4278 + $0x34] sm:$0xf]
      %v4293 = vld [vmem:[%s4278 + $0x38] sm:$0xf]
      %v4294 = vld [vmem:[%s4278 + $0x3c] sm:$0xf]
      %v4327 = vunpack.c.l.b16 %v4246
      %v4328 = vunpack.c.l.b16 %v4247
      %v4329 = vunpack.c.l.b16 %v4248
      %v4330 = vunpack.c.l.b16 %v4249
      %v4331 = vunpack.c.l.b16 %v4250
      %v4332 = vunpack.c.l.b16 %v4251
      %v4333 = vunpack.c.l.b16 %v4252
      %v4334 = vunpack.c.l.b16 %v4253
      %v4335 = vunpack.c.l.b16 %v4254
      %v4336 = vunpack.c.l.b16 %v4255
      %v4337 = vunpack.c.l.b16 %v4256
      %v4338 = vunpack.c.l.b16 %v4257
      %v4339 = vunpack.c.l.b16 %v4258
      %v4340 = vunpack.c.l.b16 %v4259
      %v4341 = vunpack.c.l.b16 %v4260
      %v4342 = vunpack.c.l.b16 %v4261
      %v4343 = vunpack.c.l.b16 %v4262
      %v4344 = vunpack.c.l.b16 %v4263
      %v4345 = vunpack.c.l.b16 %v4264
      %v4346 = vunpack.c.l.b16 %v4265
      %v4347 = vunpack.c.l.b16 %v4266
      %v4348 = vunpack.c.l.b16 %v4267
      %v4349 = vunpack.c.l.b16 %v4268
      %v4350 = vunpack.c.l.b16 %v4269
      %v4351 = vunpack.c.l.b16 %v4270
      %v4352 = vunpack.c.l.b16 %v4271
      %v4353 = vunpack.c.l.b16 %v4272
      %v4354 = vunpack.c.l.b16 %v4273
      %v4355 = vunpack.c.l.b16 %v4274
      %v4356 = vunpack.c.l.b16 %v4275
      %v4357 = vunpack.c.l.b16 %v4276
      %v4358 = vunpack.c.l.b16 %v4277
      %v4359 = vpack.c.b16 %v4328, %v4327
      %v4360 = vpack.c.b16 %v4330, %v4329
      %v4361 = vpack.c.b16 %v4332, %v4331
      %v4362 = vpack.c.b16 %v4334, %v4333
      %v4363 = vpack.c.b16 %v4336, %v4335
      %v4364 = vpack.c.b16 %v4338, %v4337
      %v4365 = vpack.c.b16 %v4340, %v4339
      %v4366 = vpack.c.b16 %v4342, %v4341
      %v4367 = vpack.c.b16 %v4344, %v4343
      %v4368 = vpack.c.b16 %v4346, %v4345
      %v4369 = vpack.c.b16 %v4348, %v4347
      %v4370 = vpack.c.b16 %v4350, %v4349
      %v4371 = vpack.c.b16 %v4352, %v4351
      %v4372 = vpack.c.b16 %v4354, %v4353
      %v4373 = vpack.c.b16 %v4356, %v4355
      %v4374 = vpack.c.b16 %v4358, %v4357
      %v4407 = vunpack.c.l.b16 %v4279
      %v4408 = vunpack.c.l.b16 %v4280
      %v4409 = vunpack.c.l.b16 %v4281
      %v4410 = vunpack.c.l.b16 %v4282
      %v4411 = vunpack.c.l.b16 %v4283
      %v4412 = vunpack.c.l.b16 %v4284
      %v4413 = vunpack.c.l.b16 %v4285
      %v4414 = vunpack.c.l.b16 %v4286
      %v4415 = vunpack.c.l.b16 %v4287
      %v4416 = vunpack.c.l.b16 %v4288
      %v4417 = vunpack.c.l.b16 %v4289
      %v4418 = vunpack.c.l.b16 %v4290
      %v4419 = vunpack.c.l.b16 %v4291
      %v4420 = vunpack.c.l.b16 %v4292
      %v4421 = vunpack.c.l.b16 %v4293
      %v4422 = vunpack.c.l.b16 %v4294
      %v4423 = vpack.c.b16 %v4408, %v4407
      %v4424 = vpack.c.b16 %v4410, %v4409
      %v4425 = vpack.c.b16 %v4412, %v4411
      %v4426 = vpack.c.b16 %v4414, %v4413
      %v4427 = vpack.c.b16 %v4416, %v4415
      %v4428 = vpack.c.b16 %v4418, %v4417
      %v4429 = vpack.c.b16 %v4420, %v4419
      %v4430 = vpack.c.b16 %v4422, %v4421
      %4439 = vmatpush.bf16.msra.mxu0 %v4430
      %4440 = vmatpush.bf16.msra.mxu0 %v4429
      %4441 = vmatpush.bf16.msra.mxu0 %v4428
      %4442 = vmatpush.bf16.msra.mxu0 %v4427
      %4443 = vmatpush.bf16.msra.mxu0 %v4426
      %4444 = vmatpush.bf16.msra.mxu0 %v4425
      %4445 = vmatpush.bf16.msra.mxu0 %v4424
      %4446 = vmatpush.bf16.msra.mxu0 %v4423
      %4447 = vmatmul.bf16.gmra.mxu0 %v4359
      %v4448 = vpop.f32.mrf.mxu0
      %v4449 = vadd.f32 0.0, %v4448
      %v4450 = vpop.f32.mrf.mxu0
      %v4451 = vadd.f32 0.0, %v4450
      %4452 = vmatmul.bf16.gmra.mxu0 %v4360
      %v4453 = vpop.f32.mrf.mxu0
      %v4454 = vadd.f32 0.0, %v4453
      %v4455 = vpop.f32.mrf.mxu0
      %v4456 = vadd.f32 0.0, %v4455
      %4457 = vmatmul.bf16.gmra.mxu0 %v4361
      %v4458 = vpop.f32.mrf.mxu0
      %v4459 = vadd.f32 0.0, %v4458
      %v4460 = vpop.f32.mrf.mxu0
      %v4461 = vadd.f32 0.0, %v4460
      %4462 = vmatmul.bf16.gmra.mxu0 %v4362
      %v4463 = vpop.f32.mrf.mxu0
      %v4464 = vadd.f32 0.0, %v4463
      %v4465 = vpop.f32.mrf.mxu0
      %v4466 = vadd.f32 0.0, %v4465
      %4467 = vmatmul.bf16.gmra.mxu0 %v4363
      %v4468 = vpop.f32.mrf.mxu0
      %v4469 = vadd.f32 0.0, %v4468
      %v4470 = vpop.f32.mrf.mxu0
      %v4471 = vadd.f32 0.0, %v4470
      %4472 = vmatmul.bf16.gmra.mxu0 %v4364
      %v4473 = vpop.f32.mrf.mxu0
      %v4474 = vadd.f32 0.0, %v4473
      %v4475 = vpop.f32.mrf.mxu0
      %v4476 = vadd.f32 0.0, %v4475
      %4477 = vmatmul.bf16.gmra.mxu0 %v4365
      %v4478 = vpop.f32.mrf.mxu0
      %v4479 = vadd.f32 0.0, %v4478
      %v4480 = vpop.f32.mrf.mxu0
      %v4481 = vadd.f32 0.0, %v4480
      %4482 = vmatmul.bf16.gmra.mxu0 %v4366
      %v4483 = vpop.f32.mrf.mxu0
      %v4484 = vadd.f32 0.0, %v4483
      %v4485 = vpop.f32.mrf.mxu0
      %v4486 = vadd.f32 0.0, %v4485
      %4487 = vmatmul.bf16.gmra.mxu0 %v4367
      %v4488 = vpop.f32.mrf.mxu0
      %v4489 = vadd.f32 0.0, %v4488
      %v4490 = vpop.f32.mrf.mxu0
      %v4491 = vadd.f32 0.0, %v4490
      %4492 = vmatmul.bf16.gmra.mxu0 %v4368
      %v4493 = vpop.f32.mrf.mxu0
      %v4494 = vadd.f32 0.0, %v4493
      %v4495 = vpop.f32.mrf.mxu0
      %v4496 = vadd.f32 0.0, %v4495
      %4497 = vmatmul.bf16.gmra.mxu0 %v4369
      %v4498 = vpop.f32.mrf.mxu0
      %v4499 = vadd.f32 0.0, %v4498
      %v4500 = vpop.f32.mrf.mxu0
      %v4501 = vadd.f32 0.0, %v4500
      %4502 = vmatmul.bf16.gmra.mxu0 %v4370
      %v4503 = vpop.f32.mrf.mxu0
      %v4504 = vadd.f32 0.0, %v4503
      %v4505 = vpop.f32.mrf.mxu0
      %v4506 = vadd.f32 0.0, %v4505
      %4507 = vmatmul.bf16.gmra.mxu0 %v4371
      %v4508 = vpop.f32.mrf.mxu0
      %v4509 = vadd.f32 0.0, %v4508
      %v4510 = vpop.f32.mrf.mxu0
      %v4511 = vadd.f32 0.0, %v4510
      %4512 = vmatmul.bf16.gmra.mxu0 %v4372
      %v4513 = vpop.f32.mrf.mxu0
      %v4514 = vadd.f32 0.0, %v4513
      %v4515 = vpop.f32.mrf.mxu0
      %v4516 = vadd.f32 0.0, %v4515
      %4517 = vmatmul.bf16.gmra.mxu0 %v4373
      %v4518 = vpop.f32.mrf.mxu0
      %v4519 = vadd.f32 0.0, %v4518
      %v4520 = vpop.f32.mrf.mxu0
      %v4521 = vadd.f32 0.0, %v4520
      %4522 = vmatmul.bf16.gmra.mxu0 %v4374
      %v4523 = vpop.f32.mrf.mxu0
      %v4524 = vadd.f32 0.0, %v4523
      %v4525 = vpop.f32.mrf.mxu0
      %v4526 = vadd.f32 0.0, %v4525
      %4527 = vdwg.mxu0
      %v4528 = vld [vmem:[#allocation3] sm:$0xff]
      %v4529 = vld [vmem:[#allocation3 + $0x8] sm:$0xff]
      %v4530 = vld [vmem:[#allocation3 + $0x10] sm:$0xff]
      %v4531 = vld [vmem:[#allocation3 + $0x18] sm:$0xff]
      %v4532 = vld [vmem:[#allocation3 + $0x20] sm:$0xff]
      %v4533 = vld [vmem:[#allocation3 + $0x28] sm:$0xff]
      %v4534 = vld [vmem:[#allocation3 + $0x30] sm:$0xff]
      %v4535 = vld [vmem:[#allocation3 + $0x38] sm:$0xff]
      %v4536 = vld [vmem:[#allocation3 + $0x40] sm:$0xff]
      %v4537 = vld [vmem:[#allocation3 + $0x48] sm:$0xff]
      %v4538 = vld [vmem:[#allocation3 + $0x50] sm:$0xff]
      %v4539 = vld [vmem:[#allocation3 + $0x58] sm:$0xff]
      %v4540 = vld [vmem:[#allocation3 + $0x60] sm:$0xff]
      %v4541 = vld [vmem:[#allocation3 + $0x68] sm:$0xff]
      %v4542 = vld [vmem:[#allocation3 + $0x70] sm:$0xff]
      %v4543 = vld [vmem:[#allocation3 + $0x78] sm:$0xff]
      %v4544 = vld [vmem:[#allocation3 + $0x80] sm:$0xff]
      %v4545 = vld [vmem:[#allocation3 + $0x88] sm:$0xff]
      %v4546 = vld [vmem:[#allocation3 + $0x90] sm:$0xff]
      %v4547 = vld [vmem:[#allocation3 + $0x98] sm:$0xff]
      %v4548 = vld [vmem:[#allocation3 + $0xa0] sm:$0xff]
      %v4549 = vld [vmem:[#allocation3 + $0xa8] sm:$0xff]
      %v4550 = vld [vmem:[#allocation3 + $0xb0] sm:$0xff]
      %v4551 = vld [vmem:[#allocation3 + $0xb8] sm:$0xff]
      %v4552 = vld [vmem:[#allocation3 + $0xc0] sm:$0xff]
      %v4553 = vld [vmem:[#allocation3 + $0xc8] sm:$0xff]
      %v4554 = vld [vmem:[#allocation3 + $0xd0] sm:$0xff]
      %v4555 = vld [vmem:[#allocation3 + $0xd8] sm:$0xff]
      %v4556 = vld [vmem:[#allocation3 + $0xe0] sm:$0xff]
      %v4557 = vld [vmem:[#allocation3 + $0xe8] sm:$0xff]
      %v4558 = vld [vmem:[#allocation3 + $0xf0] sm:$0xff]
      %v4559 = vld [vmem:[#allocation3 + $0xf8] sm:$0xff]
      %v4560 = vadd.f32 %v4528, %v4449
      %v4561 = vadd.f32 %v4529, %v4451
      %v4562 = vadd.f32 %v4530, %v4454
      %v4563 = vadd.f32 %v4531, %v4456
      %v4564 = vadd.f32 %v4532, %v4459
      %v4565 = vadd.f32 %v4533, %v4461
      %v4566 = vadd.f32 %v4534, %v4464
      %v4567 = vadd.f32 %v4535, %v4466
      %v4568 = vadd.f32 %v4536, %v4469
      %v4569 = vadd.f32 %v4537, %v4471
      %v4570 = vadd.f32 %v4538, %v4474
      %v4571 = vadd.f32 %v4539, %v4476
      %v4572 = vadd.f32 %v4540, %v4479
      %v4573 = vadd.f32 %v4541, %v4481
      %v4574 = vadd.f32 %v4542, %v4484
      %v4575 = vadd.f32 %v4543, %v4486
      %v4576 = vadd.f32 %v4544, %v4489
      %v4577 = vadd.f32 %v4545, %v4491
      %v4578 = vadd.f32 %v4546, %v4494
      %v4579 = vadd.f32 %v4547, %v4496
      %v4580 = vadd.f32 %v4548, %v4499
      %v4581 = vadd.f32 %v4549, %v4501
      %v4582 = vadd.f32 %v4550, %v4504
      %v4583 = vadd.f32 %v4551, %v4506
      %v4584 = vadd.f32 %v4552, %v4509
      %v4585 = vadd.f32 %v4553, %v4511
      %v4586 = vadd.f32 %v4554, %v4514
      %v4587 = vadd.f32 %v4555, %v4516
      %v4588 = vadd.f32 %v4556, %v4519
      %v4589 = vadd.f32 %v4557, %v4521
      %v4590 = vadd.f32 %v4558, %v4524
      %v4591 = vadd.f32 %v4559, %v4526
      %4592 = vst [vmem:[#allocation3] sm:$0xff] %v4560
      %4593 = vst [vmem:[#allocation3 + $0x8] sm:$0xff] %v4561
      %4594 = vst [vmem:[#allocation3 + $0x10] sm:$0xff] %v4562
      %4595 = vst [vmem:[#allocation3 + $0x18] sm:$0xff] %v4563
      %4596 = vst [vmem:[#allocation3 + $0x20] sm:$0xff] %v4564
      %4597 = vst [vmem:[#allocation3 + $0x28] sm:$0xff] %v4565
      %4598 = vst [vmem:[#allocation3 + $0x30] sm:$0xff] %v4566
      %4599 = vst [vmem:[#allocation3 + $0x38] sm:$0xff] %v4567
      %4600 = vst [vmem:[#allocation3 + $0x40] sm:$0xff] %v4568
      %4601 = vst [vmem:[#allocation3 + $0x48] sm:$0xff] %v4569
      %4602 = vst [vmem:[#allocation3 + $0x50] sm:$0xff] %v4570
      %4603 = vst [vmem:[#allocation3 + $0x58] sm:$0xff] %v4571
      %4604 = vst [vmem:[#allocation3 + $0x60] sm:$0xff] %v4572
      %4605 = vst [vmem:[#allocation3 + $0x68] sm:$0xff] %v4573
      %4606 = vst [vmem:[#allocation3 + $0x70] sm:$0xff] %v4574
      %4607 = vst [vmem:[#allocation3 + $0x78] sm:$0xff] %v4575
      %4608 = vst [vmem:[#allocation3 + $0x80] sm:$0xff] %v4576
      %4609 = vst [vmem:[#allocation3 + $0x88] sm:$0xff] %v4577
      %4610 = vst [vmem:[#allocation3 + $0x90] sm:$0xff] %v4578
      %4611 = vst [vmem:[#allocation3 + $0x98] sm:$0xff] %v4579
      %4612 = vst [vmem:[#allocation3 + $0xa0] sm:$0xff] %v4580
      %4613 = vst [vmem:[#allocation3 + $0xa8] sm:$0xff] %v4581
      %4614 = vst [vmem:[#allocation3 + $0xb0] sm:$0xff] %v4582
      %4615 = vst [vmem:[#allocation3 + $0xb8] sm:$0xff] %v4583
      %4616 = vst [vmem:[#allocation3 + $0xc0] sm:$0xff] %v4584
      %4617 = vst [vmem:[#allocation3 + $0xc8] sm:$0xff] %v4585
      %4618 = vst [vmem:[#allocation3 + $0xd0] sm:$0xff] %v4586
      %4619 = vst [vmem:[#allocation3 + $0xd8] sm:$0xff] %v4587
      %4620 = vst [vmem:[#allocation3 + $0xe0] sm:$0xff] %v4588
      %4621 = vst [vmem:[#allocation3 + $0xe8] sm:$0xff] %v4589
      %4622 = vst [vmem:[#allocation3 + $0xf0] sm:$0xff] %v4590
      %4623 = vst [vmem:[#allocation3 + $0xf8] sm:$0xff] %v4591
      %v4624 = vld [vmem:[%s4245] sm:$0xf]
      %v4625 = vld [vmem:[%s4245 + $0x4] sm:$0xf]
      %v4626 = vld [vmem:[%s4245 + $0x8] sm:$0x1]
      %v4627 = vld [vmem:[%s4245 + $0xc] sm:$0xf]
      %v4628 = vld [vmem:[%s4245 + $0x10] sm:$0xf]
      %v4629 = vld [vmem:[%s4245 + $0x14] sm:$0x1]
      %v4630 = vld [vmem:[%s4245 + $0x18] sm:$0xf]
      %v4631 = vld [vmem:[%s4245 + $0x1c] sm:$0xf]
      %v4632 = vld [vmem:[%s4245 + $0x20] sm:$0x1]
      %v4633 = vld [vmem:[%s4245 + $0x24] sm:$0xf]
      %v4634 = vld [vmem:[%s4245 + $0x28] sm:$0xf]
      %v4635 = vld [vmem:[%s4245 + $0x2c] sm:$0x1]
      %v4636 = vld [vmem:[%s4245 + $0x30] sm:$0xf]
      %v4637 = vld [vmem:[%s4245 + $0x34] sm:$0xf]
      %v4638 = vld [vmem:[%s4245 + $0x38] sm:$0x1]
      %v4639 = vld [vmem:[%s4245 + $0x3c] sm:$0xf]
      %v4640 = vld [vmem:[%s4245 + $0x40] sm:$0xf]
      %v4641 = vld [vmem:[%s4245 + $0x44] sm:$0x1]
      %v4642 = vld [vmem:[%s4245 + $0x48] sm:$0xf]
      %v4643 = vld [vmem:[%s4245 + $0x4c] sm:$0xf]
      %v4644 = vld [vmem:[%s4245 + $0x50] sm:$0x1]
      %v4645 = vld [vmem:[%s4245 + $0x54] sm:$0xf]
      %v4646 = vld [vmem:[%s4245 + $0x58] sm:$0xf]
      %v4647 = vld [vmem:[%s4245 + $0x5c] sm:$0x1]
      %v4648 = vld [vmem:[%s4245 + $0x60] sm:$0xf]
      %v4649 = vld [vmem:[%s4245 + $0x64] sm:$0xf]
      %v4650 = vld [vmem:[%s4245 + $0x68] sm:$0x1]
      %v4651 = vld [vmem:[%s4245 + $0x6c] sm:$0xf]
      %v4652 = vld [vmem:[%s4245 + $0x70] sm:$0xf]
      %v4653 = vld [vmem:[%s4245 + $0x74] sm:$0x1]
      %v4654 = vld [vmem:[%s4245 + $0x78] sm:$0xf]
      %v4655 = vld [vmem:[%s4245 + $0x7c] sm:$0xf]
      %v4656 = vld [vmem:[%s4245 + $0x80] sm:$0x1]
      %v4657 = vld [vmem:[%s4245 + $0x84] sm:$0xf]
      %v4658 = vld [vmem:[%s4245 + $0x88] sm:$0xf]
      %v4659 = vld [vmem:[%s4245 + $0x8c] sm:$0x1]
      %v4660 = vld [vmem:[%s4245 + $0x90] sm:$0xf]
      %v4661 = vld [vmem:[%s4245 + $0x94] sm:$0xf]
      %v4662 = vld [vmem:[%s4245 + $0x98] sm:$0x1]
      %v4663 = vld [vmem:[%s4245 + $0x9c] sm:$0xf]
      %v4664 = vld [vmem:[%s4245 + $0xa0] sm:$0xf]
      %v4665 = vld [vmem:[%s4245 + $0xa4] sm:$0x1]
      %v4666 = vld [vmem:[%s4245 + $0xa8] sm:$0xf]
      %v4667 = vld [vmem:[%s4245 + $0xac] sm:$0xf]
      %v4668 = vld [vmem:[%s4245 + $0xb0] sm:$0x1]
      %v4669 = vld [vmem:[%s4245 + $0xb4] sm:$0xf]
      %v4670 = vld [vmem:[%s4245 + $0xb8] sm:$0xf]
      %v4671 = vld [vmem:[%s4245 + $0xbc] sm:$0x1]
      %v4673 = vshrl.u32 %v4624, 16
      %v4675 = vrot.slane %v4673, 4
      %v4676 = vshll.u32 %v4624, 16
      %v4678 = vrot.slane %v4676, 5
      %v4679 = vor.u32 %v4675, %v4678
      %v4680 = vrot.slane %v4679, 4
      %v4682 = vshll.u32 %v4625, 16
      %v4684 = vrot.slane %v4682, 5
      %v4685 = vsel %vm1375, %v4680, %v4684
      %v4686 = vshrl.u32 %v4625, 16
      %v4688 = vrot.slane %v4686, 4
      %v4689 = vor.u32 %v4688, %v4684
      %v4690 = vrot.slane %v4689, 4
      %v4692 = vshll.u32 %v4626, 16
      %v4694 = vrot.slane %v4692, 5
      %v4695 = vsel %vm1375, %v4690, %v4694
      %v4697 = vshrl.u32 %v4627, 16
      %v4699 = vrot.slane %v4697, 4
      %v4700 = vshll.u32 %v4627, 16
      %v4702 = vrot.slane %v4700, 5
      %v4703 = vor.u32 %v4699, %v4702
      %v4704 = vrot.slane %v4703, 4
      %v4706 = vshll.u32 %v4628, 16
      %v4708 = vrot.slane %v4706, 5
      %v4709 = vsel %vm1375, %v4704, %v4708
      %v4710 = vshrl.u32 %v4628, 16
      %v4712 = vrot.slane %v4710, 4
      %v4713 = vor.u32 %v4712, %v4708
      %v4714 = vrot.slane %v4713, 4
      %v4716 = vshll.u32 %v4629, 16
      %v4718 = vrot.slane %v4716, 5
      %v4719 = vsel %vm1375, %v4714, %v4718
      %v4721 = vshrl.u32 %v4630, 16
      %v4723 = vrot.slane %v4721, 4
      %v4724 = vshll.u32 %v4630, 16
      %v4726 = vrot.slane %v4724, 5
      %v4727 = vor.u32 %v4723, %v4726
      %v4728 = vrot.slane %v4727, 4
      %v4730 = vshll.u32 %v4631, 16
      %v4732 = vrot.slane %v4730, 5
      %v4733 = vsel %vm1375, %v4728, %v4732
      %v4734 = vshrl.u32 %v4631, 16
      %v4736 = vrot.slane %v4734, 4
      %v4737 = vor.u32 %v4736, %v4732
      %v4738 = vrot.slane %v4737, 4
      %v4740 = vshll.u32 %v4632, 16
      %v4742 = vrot.slane %v4740, 5
      %v4743 = vsel %vm1375, %v4738, %v4742
      %v4745 = vshrl.u32 %v4633, 16
      %v4747 = vrot.slane %v4745, 4
      %v4748 = vshll.u32 %v4633, 16
      %v4750 = vrot.slane %v4748, 5
      %v4751 = vor.u32 %v4747, %v4750
      %v4752 = vrot.slane %v4751, 4
      %v4754 = vshll.u32 %v4634, 16
      %v4756 = vrot.slane %v4754, 5
      %v4757 = vsel %vm1375, %v4752, %v4756
      %v4758 = vshrl.u32 %v4634, 16
      %v4760 = vrot.slane %v4758, 4
      %v4761 = vor.u32 %v4760, %v4756
      %v4762 = vrot.slane %v4761, 4
      %v4764 = vshll.u32 %v4635, 16
      %v4766 = vrot.slane %v4764, 5
      %v4767 = vsel %vm1375, %v4762, %v4766
      %v4769 = vshrl.u32 %v4636, 16
      %v4771 = vrot.slane %v4769, 4
      %v4772 = vshll.u32 %v4636, 16
      %v4774 = vrot.slane %v4772, 5
      %v4775 = vor.u32 %v4771, %v4774
      %v4776 = vrot.slane %v4775, 4
      %v4778 = vshll.u32 %v4637, 16
      %v4780 = vrot.slane %v4778, 5
      %v4781 = vsel %vm1375, %v4776, %v4780
      %v4782 = vshrl.u32 %v4637, 16
      %v4784 = vrot.slane %v4782, 4
      %v4785 = vor.u32 %v4784, %v4780
      %v4786 = vrot.slane %v4785, 4
      %v4788 = vshll.u32 %v4638, 16
      %v4790 = vrot.slane %v4788, 5
      %v4791 = vsel %vm1375, %v4786, %v4790
      %v4793 = vshrl.u32 %v4639, 16
      %v4795 = vrot.slane %v4793, 4
      %v4796 = vshll.u32 %v4639, 16
      %v4798 = vrot.slane %v4796, 5
      %v4799 = vor.u32 %v4795, %v4798
      %v4800 = vrot.slane %v4799, 4
      %v4802 = vshll.u32 %v4640, 16
      %v4804 = vrot.slane %v4802, 5
      %v4805 = vsel %vm1375, %v4800, %v4804
      %v4806 = vshrl.u32 %v4640, 16
      %v4808 = vrot.slane %v4806, 4
      %v4809 = vor.u32 %v4808, %v4804
      %v4810 = vrot.slane %v4809, 4
      %v4812 = vshll.u32 %v4641, 16
      %v4814 = vrot.slane %v4812, 5
      %v4815 = vsel %vm1375, %v4810, %v4814
      %v4817 = vshrl.u32 %v4642, 16
      %v4819 = vrot.slane %v4817, 4
      %v4820 = vshll.u32 %v4642, 16
      %v4822 = vrot.slane %v4820, 5
      %v4823 = vor.u32 %v4819, %v4822
      %v4824 = vrot.slane %v4823, 4
      %v4826 = vshll.u32 %v4643, 16
      %v4828 = vrot.slane %v4826, 5
      %v4829 = vsel %vm1375, %v4824, %v4828
      %v4830 = vshrl.u32 %v4643, 16
      %v4832 = vrot.slane %v4830, 4
      %v4833 = vor.u32 %v4832, %v4828
      %v4834 = vrot.slane %v4833, 4
      %v4836 = vshll.u32 %v4644, 16
      %v4838 = vrot.slane %v4836, 5
      %v4839 = vsel %vm1375, %v4834, %v4838
      %v4841 = vshrl.u32 %v4645, 16
      %v4843 = vrot.slane %v4841, 4
      %v4844 = vshll.u32 %v4645, 16
      %v4846 = vrot.slane %v4844, 5
      %v4847 = vor.u32 %v4843, %v4846
      %v4848 = vrot.slane %v4847, 4
      %v4850 = vshll.u32 %v4646, 16
      %v4852 = vrot.slane %v4850, 5
      %v4853 = vsel %vm1375, %v4848, %v4852
      %v4854 = vshrl.u32 %v4646, 16
      %v4856 = vrot.slane %v4854, 4
      %v4857 = vor.u32 %v4856, %v4852
      %v4858 = vrot.slane %v4857, 4
      %v4860 = vshll.u32 %v4647, 16
      %v4862 = vrot.slane %v4860, 5
      %v4863 = vsel %vm1375, %v4858, %v4862
      %v4865 = vshrl.u32 %v4648, 16
      %v4867 = vrot.slane %v4865, 4
      %v4868 = vshll.u32 %v4648, 16
      %v4870 = vrot.slane %v4868, 5
      %v4871 = vor.u32 %v4867, %v4870
      %v4872 = vrot.slane %v4871, 4
      %v4874 = vshll.u32 %v4649, 16
      %v4876 = vrot.slane %v4874, 5
      %v4877 = vsel %vm1375, %v4872, %v4876
      %v4878 = vshrl.u32 %v4649, 16
      %v4880 = vrot.slane %v4878, 4
      %v4881 = vor.u32 %v4880, %v4876
      %v4882 = vrot.slane %v4881, 4
      %v4884 = vshll.u32 %v4650, 16
      %v4886 = vrot.slane %v4884, 5
      %v4887 = vsel %vm1375, %v4882, %v4886
      %v4889 = vshrl.u32 %v4651, 16
      %v4891 = vrot.slane %v4889, 4
      %v4892 = vshll.u32 %v4651, 16
      %v4894 = vrot.slane %v4892, 5
      %v4895 = vor.u32 %v4891, %v4894
      %v4896 = vrot.slane %v4895, 4
      %v4898 = vshll.u32 %v4652, 16
      %v4900 = vrot.slane %v4898, 5
      %v4901 = vsel %vm1375, %v4896, %v4900
      %v4902 = vshrl.u32 %v4652, 16
      %v4904 = vrot.slane %v4902, 4
      %v4905 = vor.u32 %v4904, %v4900
      %v4906 = vrot.slane %v4905, 4
      %v4908 = vshll.u32 %v4653, 16
      %v4910 = vrot.slane %v4908, 5
      %v4911 = vsel %vm1375, %v4906, %v4910
      %v4913 = vshrl.u32 %v4654, 16
      %v4915 = vrot.slane %v4913, 4
      %v4916 = vshll.u32 %v4654, 16
      %v4918 = vrot.slane %v4916, 5
      %v4919 = vor.u32 %v4915, %v4918
      %v4920 = vrot.slane %v4919, 4
      %v4922 = vshll.u32 %v4655, 16
      %v4924 = vrot.slane %v4922, 5
      %v4925 = vsel %vm1375, %v4920, %v4924
      %v4926 = vshrl.u32 %v4655, 16
      %v4928 = vrot.slane %v4926, 4
      %v4929 = vor.u32 %v4928, %v4924
      %v4930 = vrot.slane %v4929, 4
      %v4932 = vshll.u32 %v4656, 16
      %v4934 = vrot.slane %v4932, 5
      %v4935 = vsel %vm1375, %v4930, %v4934
      %v4937 = vshrl.u32 %v4657, 16
      %v4939 = vrot.slane %v4937, 4
      %v4940 = vshll.u32 %v4657, 16
      %v4942 = vrot.slane %v4940, 5
      %v4943 = vor.u32 %v4939, %v4942
      %v4944 = vrot.slane %v4943, 4
      %v4946 = vshll.u32 %v4658, 16
      %v4948 = vrot.slane %v4946, 5
      %v4949 = vsel %vm1375, %v4944, %v4948
      %v4950 = vshrl.u32 %v4658, 16
      %v4952 = vrot.slane %v4950, 4
      %v4953 = vor.u32 %v4952, %v4948
      %v4954 = vrot.slane %v4953, 4
      %v4956 = vshll.u32 %v4659, 16
      %v4958 = vrot.slane %v4956, 5
      %v4959 = vsel %vm1375, %v4954, %v4958
      %v4961 = vshrl.u32 %v4660, 16
      %v4963 = vrot.slane %v4961, 4
      %v4964 = vshll.u32 %v4660, 16
      %v4966 = vrot.slane %v4964, 5
      %v4967 = vor.u32 %v4963, %v4966
      %v4968 = vrot.slane %v4967, 4
      %v4970 = vshll.u32 %v4661, 16
      %v4972 = vrot.slane %v4970, 5
      %v4973 = vsel %vm1375, %v4968, %v4972
      %v4974 = vshrl.u32 %v4661, 16
      %v4976 = vrot.slane %v4974, 4
      %v4977 = vor.u32 %v4976, %v4972
      %v4978 = vrot.slane %v4977, 4
      %v4980 = vshll.u32 %v4662, 16
      %v4982 = vrot.slane %v4980, 5
      %v4983 = vsel %vm1375, %v4978, %v4982
      %v4985 = vshrl.u32 %v4663, 16
      %v4987 = vrot.slane %v4985, 4
      %v4988 = vshll.u32 %v4663, 16
      %v4990 = vrot.slane %v4988, 5
      %v4991 = vor.u32 %v4987, %v4990
      %v4992 = vrot.slane %v4991, 4
      %v4994 = vshll.u32 %v4664, 16
      %v4996 = vrot.slane %v4994, 5
      %v4997 = vsel %vm1375, %v4992, %v4996
      %v4998 = vshrl.u32 %v4664, 16
      %v5000 = vrot.slane %v4998, 4
      %v5001 = vor.u32 %v5000, %v4996
      %v5002 = vrot.slane %v5001, 4
      %v5004 = vshll.u32 %v4665, 16
      %v5006 = vrot.slane %v5004, 5
      %v5007 = vsel %vm1375, %v5002, %v5006
      %v5009 = vshrl.u32 %v4666, 16
      %v5011 = vrot.slane %v5009, 4
      %v5012 = vshll.u32 %v4666, 16
      %v5014 = vrot.slane %v5012, 5
      %v5015 = vor.u32 %v5011, %v5014
      %v5016 = vrot.slane %v5015, 4
      %v5018 = vshll.u32 %v4667, 16
      %v5020 = vrot.slane %v5018, 5
      %v5021 = vsel %vm1375, %v5016, %v5020
      %v5022 = vshrl.u32 %v4667, 16
      %v5024 = vrot.slane %v5022, 4
      %v5025 = vor.u32 %v5024, %v5020
      %v5026 = vrot.slane %v5025, 4
      %v5028 = vshll.u32 %v4668, 16
      %v5030 = vrot.slane %v5028, 5
      %v5031 = vsel %vm1375, %v5026, %v5030
      %v5033 = vshrl.u32 %v4669, 16
      %v5035 = vrot.slane %v5033, 4
      %v5036 = vshll.u32 %v4669, 16
      %v5038 = vrot.slane %v5036, 5
      %v5039 = vor.u32 %v5035, %v5038
      %v5040 = vrot.slane %v5039, 4
      %v5042 = vshll.u32 %v4670, 16
      %v5044 = vrot.slane %v5042, 5
      %v5045 = vsel %vm1375, %v5040, %v5044
      %v5046 = vshrl.u32 %v4670, 16
      %v5048 = vrot.slane %v5046, 4
      %v5049 = vor.u32 %v5048, %v5044
      %v5050 = vrot.slane %v5049, 4
      %v5052 = vshll.u32 %v4671, 16
      %v5054 = vrot.slane %v5052, 5
      %v5055 = vsel %vm1375, %v5050, %v5054
      %s5056 = scalar_lea.vmem %s1, 448
      %v5057 = vld [vmem:[%s5056] sm:$0xf]
      %v5058 = vld [vmem:[%s5056 + $0x4] sm:$0xf]
      %v5059 = vld [vmem:[%s5056 + $0x8] sm:$0xf]
      %v5060 = vld [vmem:[%s5056 + $0xc] sm:$0xf]
      %v5061 = vld [vmem:[%s5056 + $0x10] sm:$0xf]
      %v5062 = vld [vmem:[%s5056 + $0x14] sm:$0xf]
      %v5063 = vld [vmem:[%s5056 + $0x18] sm:$0xf]
      %v5064 = vld [vmem:[%s5056 + $0x1c] sm:$0xf]
      %v5065 = vld [vmem:[%s5056 + $0x20] sm:$0xf]
      %v5066 = vld [vmem:[%s5056 + $0x24] sm:$0xf]
      %v5067 = vld [vmem:[%s5056 + $0x28] sm:$0xf]
      %v5068 = vld [vmem:[%s5056 + $0x2c] sm:$0xf]
      %v5069 = vld [vmem:[%s5056 + $0x30] sm:$0xf]
      %v5070 = vld [vmem:[%s5056 + $0x34] sm:$0xf]
      %v5071 = vld [vmem:[%s5056 + $0x38] sm:$0xf]
      %v5072 = vld [vmem:[%s5056 + $0x3c] sm:$0xf]
      %v5073 = vunpack.c.l.b16 %v4685
      %v5074 = vunpack.c.l.b16 %v4695
      %v5075 = vunpack.c.l.b16 %v4709
      %v5076 = vunpack.c.l.b16 %v4719
      %v5077 = vunpack.c.l.b16 %v4733
      %v5078 = vunpack.c.l.b16 %v4743
      %v5079 = vunpack.c.l.b16 %v4757
      %v5080 = vunpack.c.l.b16 %v4767
      %v5081 = vunpack.c.l.b16 %v4781
      %v5082 = vunpack.c.l.b16 %v4791
      %v5083 = vunpack.c.l.b16 %v4805
      %v5084 = vunpack.c.l.b16 %v4815
      %v5085 = vunpack.c.l.b16 %v4829
      %v5086 = vunpack.c.l.b16 %v4839
      %v5087 = vunpack.c.l.b16 %v4853
      %v5088 = vunpack.c.l.b16 %v4863
      %v5089 = vunpack.c.l.b16 %v4877
      %v5090 = vunpack.c.l.b16 %v4887
      %v5091 = vunpack.c.l.b16 %v4901
      %v5092 = vunpack.c.l.b16 %v4911
      %v5093 = vunpack.c.l.b16 %v4925
      %v5094 = vunpack.c.l.b16 %v4935
      %v5095 = vunpack.c.l.b16 %v4949
      %v5096 = vunpack.c.l.b16 %v4959
      %v5097 = vunpack.c.l.b16 %v4973
      %v5098 = vunpack.c.l.b16 %v4983
      %v5099 = vunpack.c.l.b16 %v4997
      %v5100 = vunpack.c.l.b16 %v5007
      %v5101 = vunpack.c.l.b16 %v5021
      %v5102 = vunpack.c.l.b16 %v5031
      %v5103 = vunpack.c.l.b16 %v5045
      %v5104 = vunpack.c.l.b16 %v5055
      %v5105 = vpack.c.b16 %v5074, %v5073
      %v5106 = vpack.c.b16 %v5076, %v5075
      %v5107 = vpack.c.b16 %v5078, %v5077
      %v5108 = vpack.c.b16 %v5080, %v5079
      %v5109 = vpack.c.b16 %v5082, %v5081
      %v5110 = vpack.c.b16 %v5084, %v5083
      %v5111 = vpack.c.b16 %v5086, %v5085
      %v5112 = vpack.c.b16 %v5088, %v5087
      %v5113 = vpack.c.b16 %v5090, %v5089
      %v5114 = vpack.c.b16 %v5092, %v5091
      %v5115 = vpack.c.b16 %v5094, %v5093
      %v5116 = vpack.c.b16 %v5096, %v5095
      %v5117 = vpack.c.b16 %v5098, %v5097
      %v5118 = vpack.c.b16 %v5100, %v5099
      %v5119 = vpack.c.b16 %v5102, %v5101
      %v5120 = vpack.c.b16 %v5104, %v5103
      %v5153 = vunpack.c.l.b16 %v5057
      %v5154 = vunpack.c.l.b16 %v5058
      %v5155 = vunpack.c.l.b16 %v5059
      %v5156 = vunpack.c.l.b16 %v5060
      %v5157 = vunpack.c.l.b16 %v5061
      %v5158 = vunpack.c.l.b16 %v5062
      %v5159 = vunpack.c.l.b16 %v5063
      %v5160 = vunpack.c.l.b16 %v5064
      %v5161 = vunpack.c.l.b16 %v5065
      %v5162 = vunpack.c.l.b16 %v5066
      %v5163 = vunpack.c.l.b16 %v5067
      %v5164 = vunpack.c.l.b16 %v5068
      %v5165 = vunpack.c.l.b16 %v5069
      %v5166 = vunpack.c.l.b16 %v5070
      %v5167 = vunpack.c.l.b16 %v5071
      %v5168 = vunpack.c.l.b16 %v5072
      %v5169 = vpack.c.b16 %v5154, %v5153
      %v5170 = vpack.c.b16 %v5156, %v5155
      %v5171 = vpack.c.b16 %v5158, %v5157
      %v5172 = vpack.c.b16 %v5160, %v5159
      %v5173 = vpack.c.b16 %v5162, %v5161
      %v5174 = vpack.c.b16 %v5164, %v5163
      %v5175 = vpack.c.b16 %v5166, %v5165
      %v5176 = vpack.c.b16 %v5168, %v5167
      %5185 = vmatpush.bf16.msra.mxu0 %v5176
      %5186 = vmatpush.bf16.msra.mxu0 %v5175
      %5187 = vmatpush.bf16.msra.mxu0 %v5174
      %5188 = vmatpush.bf16.msra.mxu0 %v5173
      %5189 = vmatpush.bf16.msra.mxu0 %v5172
      %5190 = vmatpush.bf16.msra.mxu0 %v5171
      %5191 = vmatpush.bf16.msra.mxu0 %v5170
      %5192 = vmatpush.bf16.msra.mxu0 %v5169
      %5193 = vmatmul.bf16.gmra.mxu0 %v5105
      %v5194 = vpop.f32.mrf.mxu0
      %v5195 = vadd.f32 0.0, %v5194
      %v5196 = vpop.f32.mrf.mxu0
      %v5197 = vadd.f32 0.0, %v5196
      %5198 = vmatmul.bf16.gmra.mxu0 %v5106
      %v5199 = vpop.f32.mrf.mxu0
      %v5200 = vadd.f32 0.0, %v5199
      %v5201 = vpop.f32.mrf.mxu0
      %v5202 = vadd.f32 0.0, %v5201
      %5203 = vmatmul.bf16.gmra.mxu0 %v5107
      %v5204 = vpop.f32.mrf.mxu0
      %v5205 = vadd.f32 0.0, %v5204
      %v5206 = vpop.f32.mrf.mxu0
      %v5207 = vadd.f32 0.0, %v5206
      %5208 = vmatmul.bf16.gmra.mxu0 %v5108
      %v5209 = vpop.f32.mrf.mxu0
      %v5210 = vadd.f32 0.0, %v5209
      %v5211 = vpop.f32.mrf.mxu0
      %v5212 = vadd.f32 0.0, %v5211
      %5213 = vmatmul.bf16.gmra.mxu0 %v5109
      %v5214 = vpop.f32.mrf.mxu0
      %v5215 = vadd.f32 0.0, %v5214
      %v5216 = vpop.f32.mrf.mxu0
      %v5217 = vadd.f32 0.0, %v5216
      %5218 = vmatmul.bf16.gmra.mxu0 %v5110
      %v5219 = vpop.f32.mrf.mxu0
      %v5220 = vadd.f32 0.0, %v5219
      %v5221 = vpop.f32.mrf.mxu0
      %v5222 = vadd.f32 0.0, %v5221
      %5223 = vmatmul.bf16.gmra.mxu0 %v5111
      %v5224 = vpop.f32.mrf.mxu0
      %v5225 = vadd.f32 0.0, %v5224
      %v5226 = vpop.f32.mrf.mxu0
      %v5227 = vadd.f32 0.0, %v5226
      %5228 = vmatmul.bf16.gmra.mxu0 %v5112
      %v5229 = vpop.f32.mrf.mxu0
      %v5230 = vadd.f32 0.0, %v5229
      %v5231 = vpop.f32.mrf.mxu0
      %v5232 = vadd.f32 0.0, %v5231
      %5233 = vmatmul.bf16.gmra.mxu0 %v5113
      %v5234 = vpop.f32.mrf.mxu0
      %v5235 = vadd.f32 0.0, %v5234
      %v5236 = vpop.f32.mrf.mxu0
      %v5237 = vadd.f32 0.0, %v5236
      %5238 = vmatmul.bf16.gmra.mxu0 %v5114
      %v5239 = vpop.f32.mrf.mxu0
      %v5240 = vadd.f32 0.0, %v5239
      %v5241 = vpop.f32.mrf.mxu0
      %v5242 = vadd.f32 0.0, %v5241
      %5243 = vmatmul.bf16.gmra.mxu0 %v5115
      %v5244 = vpop.f32.mrf.mxu0
      %v5245 = vadd.f32 0.0, %v5244
      %v5246 = vpop.f32.mrf.mxu0
      %v5247 = vadd.f32 0.0, %v5246
      %5248 = vmatmul.bf16.gmra.mxu0 %v5116
      %v5249 = vpop.f32.mrf.mxu0
      %v5250 = vadd.f32 0.0, %v5249
      %v5251 = vpop.f32.mrf.mxu0
      %v5252 = vadd.f32 0.0, %v5251
      %5253 = vmatmul.bf16.gmra.mxu0 %v5117
      %v5254 = vpop.f32.mrf.mxu0
      %v5255 = vadd.f32 0.0, %v5254
      %v5256 = vpop.f32.mrf.mxu0
      %v5257 = vadd.f32 0.0, %v5256
      %5258 = vmatmul.bf16.gmra.mxu0 %v5118
      %v5259 = vpop.f32.mrf.mxu0
      %v5260 = vadd.f32 0.0, %v5259
      %v5261 = vpop.f32.mrf.mxu0
      %v5262 = vadd.f32 0.0, %v5261
      %5263 = vmatmul.bf16.gmra.mxu0 %v5119
      %v5264 = vpop.f32.mrf.mxu0
      %v5265 = vadd.f32 0.0, %v5264
      %v5266 = vpop.f32.mrf.mxu0
      %v5267 = vadd.f32 0.0, %v5266
      %5268 = vmatmul.bf16.gmra.mxu0 %v5120
      %v5269 = vpop.f32.mrf.mxu0
      %v5270 = vadd.f32 0.0, %v5269
      %v5271 = vpop.f32.mrf.mxu0
      %v5272 = vadd.f32 0.0, %v5271
      %5273 = vdwg.mxu0
      %v5274 = vld [vmem:[#allocation3] sm:$0xff]
      %v5275 = vld [vmem:[#allocation3 + $0x8] sm:$0xff]
      %v5276 = vld [vmem:[#allocation3 + $0x10] sm:$0xff]
      %v5277 = vld [vmem:[#allocation3 + $0x18] sm:$0xff]
      %v5278 = vld [vmem:[#allocation3 + $0x20] sm:$0xff]
      %v5279 = vld [vmem:[#allocation3 + $0x28] sm:$0xff]
      %v5280 = vld [vmem:[#allocation3 + $0x30] sm:$0xff]
      %v5281 = vld [vmem:[#allocation3 + $0x38] sm:$0xff]
      %v5282 = vld [vmem:[#allocation3 + $0x40] sm:$0xff]
      %v5283 = vld [vmem:[#allocation3 + $0x48] sm:$0xff]
      %v5284 = vld [vmem:[#allocation3 + $0x50] sm:$0xff]
      %v5285 = vld [vmem:[#allocation3 + $0x58] sm:$0xff]
      %v5286 = vld [vmem:[#allocation3 + $0x60] sm:$0xff]
      %v5287 = vld [vmem:[#allocation3 + $0x68] sm:$0xff]
      %v5288 = vld [vmem:[#allocation3 + $0x70] sm:$0xff]
      %v5289 = vld [vmem:[#allocation3 + $0x78] sm:$0xff]
      %v5290 = vld [vmem:[#allocation3 + $0x80] sm:$0xff]
      %v5291 = vld [vmem:[#allocation3 + $0x88] sm:$0xff]
      %v5292 = vld [vmem:[#allocation3 + $0x90] sm:$0xff]
      %v5293 = vld [vmem:[#allocation3 + $0x98] sm:$0xff]
      %v5294 = vld [vmem:[#allocation3 + $0xa0] sm:$0xff]
      %v5295 = vld [vmem:[#allocation3 + $0xa8] sm:$0xff]
      %v5296 = vld [vmem:[#allocation3 + $0xb0] sm:$0xff]
      %v5297 = vld [vmem:[#allocation3 + $0xb8] sm:$0xff]
      %v5298 = vld [vmem:[#allocation3 + $0xc0] sm:$0xff]
      %v5299 = vld [vmem:[#allocation3 + $0xc8] sm:$0xff]
      %v5300 = vld [vmem:[#allocation3 + $0xd0] sm:$0xff]
      %v5301 = vld [vmem:[#allocation3 + $0xd8] sm:$0xff]
      %v5302 = vld [vmem:[#allocation3 + $0xe0] sm:$0xff]
      %v5303 = vld [vmem:[#allocation3 + $0xe8] sm:$0xff]
      %v5304 = vld [vmem:[#allocation3 + $0xf0] sm:$0xff]
      %v5305 = vld [vmem:[#allocation3 + $0xf8] sm:$0xff]
      %v5306 = vadd.f32 %v5274, %v5195
      %v5307 = vadd.f32 %v5275, %v5197
      %v5308 = vadd.f32 %v5276, %v5200
      %v5309 = vadd.f32 %v5277, %v5202
      %v5310 = vadd.f32 %v5278, %v5205
      %v5311 = vadd.f32 %v5279, %v5207
      %v5312 = vadd.f32 %v5280, %v5210
      %v5313 = vadd.f32 %v5281, %v5212
      %v5314 = vadd.f32 %v5282, %v5215
      %v5315 = vadd.f32 %v5283, %v5217
      %v5316 = vadd.f32 %v5284, %v5220
      %v5317 = vadd.f32 %v5285, %v5222
      %v5318 = vadd.f32 %v5286, %v5225
      %v5319 = vadd.f32 %v5287, %v5227
      %v5320 = vadd.f32 %v5288, %v5230
      %v5321 = vadd.f32 %v5289, %v5232
      %v5322 = vadd.f32 %v5290, %v5235
      %v5323 = vadd.f32 %v5291, %v5237
      %v5324 = vadd.f32 %v5292, %v5240
      %v5325 = vadd.f32 %v5293, %v5242
      %v5326 = vadd.f32 %v5294, %v5245
      %v5327 = vadd.f32 %v5295, %v5247
      %v5328 = vadd.f32 %v5296, %v5250
      %v5329 = vadd.f32 %v5297, %v5252
      %v5330 = vadd.f32 %v5298, %v5255
      %v5331 = vadd.f32 %v5299, %v5257
      %v5332 = vadd.f32 %v5300, %v5260
      %v5333 = vadd.f32 %v5301, %v5262
      %v5334 = vadd.f32 %v5302, %v5265
      %v5335 = vadd.f32 %v5303, %v5267
      %v5336 = vadd.f32 %v5304, %v5270
      %v5337 = vadd.f32 %v5305, %v5272
      %5338 = vst [vmem:[#allocation3] sm:$0xff] %v5306
      %5339 = vst [vmem:[#allocation3 + $0x8] sm:$0xff] %v5307
      %5340 = vst [vmem:[#allocation3 + $0x10] sm:$0xff] %v5308
      %5341 = vst [vmem:[#allocation3 + $0x18] sm:$0xff] %v5309
      %5342 = vst [vmem:[#allocation3 + $0x20] sm:$0xff] %v5310
      %5343 = vst [vmem:[#allocation3 + $0x28] sm:$0xff] %v5311
      %5344 = vst [vmem:[#allocation3 + $0x30] sm:$0xff] %v5312
      %5345 = vst [vmem:[#allocation3 + $0x38] sm:$0xff] %v5313
      %5346 = vst [vmem:[#allocation3 + $0x40] sm:$0xff] %v5314
      %5347 = vst [vmem:[#allocation3 + $0x48] sm:$0xff] %v5315
      %5348 = vst [vmem:[#allocation3 + $0x50] sm:$0xff] %v5316
      %5349 = vst [vmem:[#allocation3 + $0x58] sm:$0xff] %v5317
      %5350 = vst [vmem:[#allocation3 + $0x60] sm:$0xff] %v5318
      %5351 = vst [vmem:[#allocation3 + $0x68] sm:$0xff] %v5319
      %5352 = vst [vmem:[#allocation3 + $0x70] sm:$0xff] %v5320
      %5353 = vst [vmem:[#allocation3 + $0x78] sm:$0xff] %v5321
      %5354 = vst [vmem:[#allocation3 + $0x80] sm:$0xff] %v5322
      %5355 = vst [vmem:[#allocation3 + $0x88] sm:$0xff] %v5323
      %5356 = vst [vmem:[#allocation3 + $0x90] sm:$0xff] %v5324
      %5357 = vst [vmem:[#allocation3 + $0x98] sm:$0xff] %v5325
      %5358 = vst [vmem:[#allocation3 + $0xa0] sm:$0xff] %v5326
      %5359 = vst [vmem:[#allocation3 + $0xa8] sm:$0xff] %v5327
      %5360 = vst [vmem:[#allocation3 + $0xb0] sm:$0xff] %v5328
      %5361 = vst [vmem:[#allocation3 + $0xb8] sm:$0xff] %v5329
      %5362 = vst [vmem:[#allocation3 + $0xc0] sm:$0xff] %v5330
      %5363 = vst [vmem:[#allocation3 + $0xc8] sm:$0xff] %v5331
      %5364 = vst [vmem:[#allocation3 + $0xd0] sm:$0xff] %v5332
      %5365 = vst [vmem:[#allocation3 + $0xd8] sm:$0xff] %v5333
      %5366 = vst [vmem:[#allocation3 + $0xe0] sm:$0xff] %v5334
      %5367 = vst [vmem:[#allocation3 + $0xe8] sm:$0xff] %v5335
      %5368 = vst [vmem:[#allocation3 + $0xf0] sm:$0xff] %v5336
      %5369 = vst [vmem:[#allocation3 + $0xf8] sm:$0xff] %v5337
      %v5370 = vld [vmem:[%s4245] sm:$0xe]
      %v5371 = vld [vmem:[%s4245 + $0x4] sm:$0xf]
      %v5372 = vld [vmem:[%s4245 + $0x8] sm:$0x1]
      %v5373 = vld [vmem:[%s4245 + $0xc] sm:$0xe]
      %v5374 = vld [vmem:[%s4245 + $0x10] sm:$0xf]
      %v5375 = vld [vmem:[%s4245 + $0x14] sm:$0x1]
      %v5376 = vld [vmem:[%s4245 + $0x18] sm:$0xe]
      %v5377 = vld [vmem:[%s4245 + $0x1c] sm:$0xf]
      %v5378 = vld [vmem:[%s4245 + $0x20] sm:$0x1]
      %v5379 = vld [vmem:[%s4245 + $0x24] sm:$0xe]
      %v5380 = vld [vmem:[%s4245 + $0x28] sm:$0xf]
      %v5381 = vld [vmem:[%s4245 + $0x2c] sm:$0x1]
      %v5382 = vld [vmem:[%s4245 + $0x30] sm:$0xe]
      %v5383 = vld [vmem:[%s4245 + $0x34] sm:$0xf]
      %v5384 = vld [vmem:[%s4245 + $0x38] sm:$0x1]
      %v5385 = vld [vmem:[%s4245 + $0x3c] sm:$0xe]
      %v5386 = vld [vmem:[%s4245 + $0x40] sm:$0xf]
      %v5387 = vld [vmem:[%s4245 + $0x44] sm:$0x1]
      %v5388 = vld [vmem:[%s4245 + $0x48] sm:$0xe]
      %v5389 = vld [vmem:[%s4245 + $0x4c] sm:$0xf]
      %v5390 = vld [vmem:[%s4245 + $0x50] sm:$0x1]
      %v5391 = vld [vmem:[%s4245 + $0x54] sm:$0xe]
      %v5392 = vld [vmem:[%s4245 + $0x58] sm:$0xf]
      %v5393 = vld [vmem:[%s4245 + $0x5c] sm:$0x1]
      %v5394 = vld [vmem:[%s4245 + $0x60] sm:$0xe]
      %v5395 = vld [vmem:[%s4245 + $0x64] sm:$0xf]
      %v5396 = vld [vmem:[%s4245 + $0x68] sm:$0x1]
      %v5397 = vld [vmem:[%s4245 + $0x6c] sm:$0xe]
      %v5398 = vld [vmem:[%s4245 + $0x70] sm:$0xf]
      %v5399 = vld [vmem:[%s4245 + $0x74] sm:$0x1]
      %v5400 = vld [vmem:[%s4245 + $0x78] sm:$0xe]
      %v5401 = vld [vmem:[%s4245 + $0x7c] sm:$0xf]
      %v5402 = vld [vmem:[%s4245 + $0x80] sm:$0x1]
      %v5403 = vld [vmem:[%s4245 + $0x84] sm:$0xe]
      %v5404 = vld [vmem:[%s4245 + $0x88] sm:$0xf]
      %v5405 = vld [vmem:[%s4245 + $0x8c] sm:$0x1]
      %v5406 = vld [vmem:[%s4245 + $0x90] sm:$0xe]
      %v5407 = vld [vmem:[%s4245 + $0x94] sm:$0xf]
      %v5408 = vld [vmem:[%s4245 + $0x98] sm:$0x1]
      %v5409 = vld [vmem:[%s4245 + $0x9c] sm:$0xe]
      %v5410 = vld [vmem:[%s4245 + $0xa0] sm:$0xf]
      %v5411 = vld [vmem:[%s4245 + $0xa4] sm:$0x1]
      %v5412 = vld [vmem:[%s4245 + $0xa8] sm:$0xe]
      %v5413 = vld [vmem:[%s4245 + $0xac] sm:$0xf]
      %v5414 = vld [vmem:[%s4245 + $0xb0] sm:$0x1]
      %v5415 = vld [vmem:[%s4245 + $0xb4] sm:$0xe]
      %v5416 = vld [vmem:[%s4245 + $0xb8] sm:$0xf]
      %v5417 = vld [vmem:[%s4245 + $0xbc] sm:$0x1]
      %v5466 = vrot.slane %v5370, 5
      %v5467 = vrot.slane %v5466, 4
      %v5468 = vrot.slane %v5371, 5
      %v5469 = vsel %vm2172, %v5467, %v5468
      %v5470 = vrot.slane %v5468, 4
      %v5471 = vrot.slane %v5372, 5
      %v5472 = vsel %vm2172, %v5470, %v5471
      %v5473 = vrot.slane %v5373, 5
      %v5474 = vrot.slane %v5473, 4
      %v5475 = vrot.slane %v5374, 5
      %v5476 = vsel %vm2172, %v5474, %v5475
      %v5477 = vrot.slane %v5475, 4
      %v5478 = vrot.slane %v5375, 5
      %v5479 = vsel %vm2172, %v5477, %v5478
      %v5480 = vrot.slane %v5376, 5
      %v5481 = vrot.slane %v5480, 4
      %v5482 = vrot.slane %v5377, 5
      %v5483 = vsel %vm2172, %v5481, %v5482
      %v5484 = vrot.slane %v5482, 4
      %v5485 = vrot.slane %v5378, 5
      %v5486 = vsel %vm2172, %v5484, %v5485
      %v5487 = vrot.slane %v5379, 5
      %v5488 = vrot.slane %v5487, 4
      %v5489 = vrot.slane %v5380, 5
      %v5490 = vsel %vm2172, %v5488, %v5489
      %v5491 = vrot.slane %v5489, 4
      %v5492 = vrot.slane %v5381, 5
      %v5493 = vsel %vm2172, %v5491, %v5492
      %v5494 = vrot.slane %v5382, 5
      %v5495 = vrot.slane %v5494, 4
      %v5496 = vrot.slane %v5383, 5
      %v5497 = vsel %vm2172, %v5495, %v5496
      %v5498 = vrot.slane %v5496, 4
      %v5499 = vrot.slane %v5384, 5
      %v5500 = vsel %vm2172, %v5498, %v5499
      %v5501 = vrot.slane %v5385, 5
      %v5502 = vrot.slane %v5501, 4
      %v5503 = vrot.slane %v5386, 5
      %v5504 = vsel %vm2172, %v5502, %v5503
      %v5505 = vrot.slane %v5503, 4
      %v5506 = vrot.slane %v5387, 5
      %v5507 = vsel %vm2172, %v5505, %v5506
      %v5508 = vrot.slane %v5388, 5
      %v5509 = vrot.slane %v5508, 4
      %v5510 = vrot.slane %v5389, 5
      %v5511 = vsel %vm2172, %v5509, %v5510
      %v5512 = vrot.slane %v5510, 4
      %v5513 = vrot.slane %v5390, 5
      %v5514 = vsel %vm2172, %v5512, %v5513
      %v5515 = vrot.slane %v5391, 5
      %v5516 = vrot.slane %v5515, 4
      %v5517 = vrot.slane %v5392, 5
      %v5518 = vsel %vm2172, %v5516, %v5517
      %v5519 = vrot.slane %v5517, 4
      %v5520 = vrot.slane %v5393, 5
      %v5521 = vsel %vm2172, %v5519, %v5520
      %v5522 = vrot.slane %v5394, 5
      %v5523 = vrot.slane %v5522, 4
      %v5524 = vrot.slane %v5395, 5
      %v5525 = vsel %vm2172, %v5523, %v5524
      %v5526 = vrot.slane %v5524, 4
      %v5527 = vrot.slane %v5396, 5
      %v5528 = vsel %vm2172, %v5526, %v5527
      %v5529 = vrot.slane %v5397, 5
      %v5530 = vrot.slane %v5529, 4
      %v5531 = vrot.slane %v5398, 5
      %v5532 = vsel %vm2172, %v5530, %v5531
      %v5533 = vrot.slane %v5531, 4
      %v5534 = vrot.slane %v5399, 5
      %v5535 = vsel %vm2172, %v5533, %v5534
      %v5536 = vrot.slane %v5400, 5
      %v5537 = vrot.slane %v5536, 4
      %v5538 = vrot.slane %v5401, 5
      %v5539 = vsel %vm2172, %v5537, %v5538
      %v5540 = vrot.slane %v5538, 4
      %v5541 = vrot.slane %v5402, 5
      %v5542 = vsel %vm2172, %v5540, %v5541
      %v5543 = vrot.slane %v5403, 5
      %v5544 = vrot.slane %v5543, 4
      %v5545 = vrot.slane %v5404, 5
      %v5546 = vsel %vm2172, %v5544, %v5545
      %v5547 = vrot.slane %v5545, 4
      %v5548 = vrot.slane %v5405, 5
      %v5549 = vsel %vm2172, %v5547, %v5548
      %v5550 = vrot.slane %v5406, 5
      %v5551 = vrot.slane %v5550, 4
      %v5552 = vrot.slane %v5407, 5
      %v5553 = vsel %vm2172, %v5551, %v5552
      %v5554 = vrot.slane %v5552, 4
      %v5555 = vrot.slane %v5408, 5
      %v5556 = vsel %vm2172, %v5554, %v5555
      %v5557 = vrot.slane %v5409, 5
      %v5558 = vrot.slane %v5557, 4
      %v5559 = vrot.slane %v5410, 5
      %v5560 = vsel %vm2172, %v5558, %v5559
      %v5561 = vrot.slane %v5559, 4
      %v5562 = vrot.slane %v5411, 5
      %v5563 = vsel %vm2172, %v5561, %v5562
      %v5564 = vrot.slane %v5412, 5
      %v5565 = vrot.slane %v5564, 4
      %v5566 = vrot.slane %v5413, 5
      %v5567 = vsel %vm2172, %v5565, %v5566
      %v5568 = vrot.slane %v5566, 4
      %v5569 = vrot.slane %v5414, 5
      %v5570 = vsel %vm2172, %v5568, %v5569
      %v5571 = vrot.slane %v5415, 5
      %v5572 = vrot.slane %v5571, 4
      %v5573 = vrot.slane %v5416, 5
      %v5574 = vsel %vm2172, %v5572, %v5573
      %v5575 = vrot.slane %v5573, 4
      %v5576 = vrot.slane %v5417, 5
      %v5577 = vsel %vm2172, %v5575, %v5576
      %s5578 = scalar_lea.vmem %s1, 512
      %v5579 = vld [vmem:[%s5578] sm:$0xf]
      %v5580 = vld [vmem:[%s5578 + $0x4] sm:$0xf]
      %v5581 = vld [vmem:[%s5578 + $0x8] sm:$0xf]
      %v5582 = vld [vmem:[%s5578 + $0xc] sm:$0xf]
      %v5583 = vld [vmem:[%s5578 + $0x10] sm:$0xf]
      %v5584 = vld [vmem:[%s5578 + $0x14] sm:$0xf]
      %v5585 = vld [vmem:[%s5578 + $0x18] sm:$0xf]
      %v5586 = vld [vmem:[%s5578 + $0x1c] sm:$0xf]
      %v5587 = vld [vmem:[%s5578 + $0x20] sm:$0xf]
      %v5588 = vld [vmem:[%s5578 + $0x24] sm:$0xf]
      %v5589 = vld [vmem:[%s5578 + $0x28] sm:$0xf]
      %v5590 = vld [vmem:[%s5578 + $0x2c] sm:$0xf]
      %v5591 = vld [vmem:[%s5578 + $0x30] sm:$0xf]
      %v5592 = vld [vmem:[%s5578 + $0x34] sm:$0xf]
      %v5593 = vld [vmem:[%s5578 + $0x38] sm:$0xf]
      %v5594 = vld [vmem:[%s5578 + $0x3c] sm:$0xf]
      %v5595 = vunpack.c.l.b16 %v5469
      %v5596 = vunpack.c.l.b16 %v5472
      %v5597 = vunpack.c.l.b16 %v5476
      %v5598 = vunpack.c.l.b16 %v5479
      %v5599 = vunpack.c.l.b16 %v5483
      %v5600 = vunpack.c.l.b16 %v5486
      %v5601 = vunpack.c.l.b16 %v5490
      %v5602 = vunpack.c.l.b16 %v5493
      %v5603 = vunpack.c.l.b16 %v5497
      %v5604 = vunpack.c.l.b16 %v5500
      %v5605 = vunpack.c.l.b16 %v5504
      %v5606 = vunpack.c.l.b16 %v5507
      %v5607 = vunpack.c.l.b16 %v5511
      %v5608 = vunpack.c.l.b16 %v5514
      %v5609 = vunpack.c.l.b16 %v5518
      %v5610 = vunpack.c.l.b16 %v5521
      %v5611 = vunpack.c.l.b16 %v5525
      %v5612 = vunpack.c.l.b16 %v5528
      %v5613 = vunpack.c.l.b16 %v5532
      %v5614 = vunpack.c.l.b16 %v5535
      %v5615 = vunpack.c.l.b16 %v5539
      %v5616 = vunpack.c.l.b16 %v5542
      %v5617 = vunpack.c.l.b16 %v5546
      %v5618 = vunpack.c.l.b16 %v5549
      %v5619 = vunpack.c.l.b16 %v5553
      %v5620 = vunpack.c.l.b16 %v5556
      %v5621 = vunpack.c.l.b16 %v5560
      %v5622 = vunpack.c.l.b16 %v5563
      %v5623 = vunpack.c.l.b16 %v5567
      %v5624 = vunpack.c.l.b16 %v5570
      %v5625 = vunpack.c.l.b16 %v5574
      %v5626 = vunpack.c.l.b16 %v5577
      %v5627 = vpack.c.b16 %v5596, %v5595
      %v5628 = vpack.c.b16 %v5598, %v5597
      %v5629 = vpack.c.b16 %v5600, %v5599
      %v5630 = vpack.c.b16 %v5602, %v5601
      %v5631 = vpack.c.b16 %v5604, %v5603
      %v5632 = vpack.c.b16 %v5606, %v5605
      %v5633 = vpack.c.b16 %v5608, %v5607
      %v5634 = vpack.c.b16 %v5610, %v5609
      %v5635 = vpack.c.b16 %v5612, %v5611
      %v5636 = vpack.c.b16 %v5614, %v5613
      %v5637 = vpack.c.b16 %v5616, %v5615
      %v5638 = vpack.c.b16 %v5618, %v5617
      %v5639 = vpack.c.b16 %v5620, %v5619
      %v5640 = vpack.c.b16 %v5622, %v5621
      %v5641 = vpack.c.b16 %v5624, %v5623
      %v5642 = vpack.c.b16 %v5626, %v5625
      %v5675 = vunpack.c.l.b16 %v5579
      %v5676 = vunpack.c.l.b16 %v5580
      %v5677 = vunpack.c.l.b16 %v5581
      %v5678 = vunpack.c.l.b16 %v5582
      %v5679 = vunpack.c.l.b16 %v5583
      %v5680 = vunpack.c.l.b16 %v5584
      %v5681 = vunpack.c.l.b16 %v5585
      %v5682 = vunpack.c.l.b16 %v5586
      %v5683 = vunpack.c.l.b16 %v5587
      %v5684 = vunpack.c.l.b16 %v5588
      %v5685 = vunpack.c.l.b16 %v5589
      %v5686 = vunpack.c.l.b16 %v5590
      %v5687 = vunpack.c.l.b16 %v5591
      %v5688 = vunpack.c.l.b16 %v5592
      %v5689 = vunpack.c.l.b16 %v5593
      %v5690 = vunpack.c.l.b16 %v5594
      %v5691 = vpack.c.b16 %v5676, %v5675
      %v5692 = vpack.c.b16 %v5678, %v5677
      %v5693 = vpack.c.b16 %v5680, %v5679
      %v5694 = vpack.c.b16 %v5682, %v5681
      %v5695 = vpack.c.b16 %v5684, %v5683
      %v5696 = vpack.c.b16 %v5686, %v5685
      %v5697 = vpack.c.b16 %v5688, %v5687
      %v5698 = vpack.c.b16 %v5690, %v5689
      %5707 = vmatpush.bf16.msra.mxu0 %v5698
      %5708 = vmatpush.bf16.msra.mxu0 %v5697
      %5709 = vmatpush.bf16.msra.mxu0 %v5696
      %5710 = vmatpush.bf16.msra.mxu0 %v5695
      %5711 = vmatpush.bf16.msra.mxu0 %v5694
      %5712 = vmatpush.bf16.msra.mxu0 %v5693
      %5713 = vmatpush.bf16.msra.mxu0 %v5692
      %5714 = vmatpush.bf16.msra.mxu0 %v5691
      %5715 = vmatmul.bf16.gmra.mxu0 %v5627
      %v5716 = vpop.f32.mrf.mxu0
      %v5717 = vadd.f32 0.0, %v5716
      %v5718 = vpop.f32.mrf.mxu0
      %v5719 = vadd.f32 0.0, %v5718
      %5720 = vmatmul.bf16.gmra.mxu0 %v5628
      %v5721 = vpop.f32.mrf.mxu0
      %v5722 = vadd.f32 0.0, %v5721
      %v5723 = vpop.f32.mrf.mxu0
      %v5724 = vadd.f32 0.0, %v5723
      %5725 = vmatmul.bf16.gmra.mxu0 %v5629
      %v5726 = vpop.f32.mrf.mxu0
      %v5727 = vadd.f32 0.0, %v5726
      %v5728 = vpop.f32.mrf.mxu0
      %v5729 = vadd.f32 0.0, %v5728
      %5730 = vmatmul.bf16.gmra.mxu0 %v5630
      %v5731 = vpop.f32.mrf.mxu0
      %v5732 = vadd.f32 0.0, %v5731
      %v5733 = vpop.f32.mrf.mxu0
      %v5734 = vadd.f32 0.0, %v5733
      %5735 = vmatmul.bf16.gmra.mxu0 %v5631
      %v5736 = vpop.f32.mrf.mxu0
      %v5737 = vadd.f32 0.0, %v5736
      %v5738 = vpop.f32.mrf.mxu0
      %v5739 = vadd.f32 0.0, %v5738
      %5740 = vmatmul.bf16.gmra.mxu0 %v5632
      %v5741 = vpop.f32.mrf.mxu0
      %v5742 = vadd.f32 0.0, %v5741
      %v5743 = vpop.f32.mrf.mxu0
      %v5744 = vadd.f32 0.0, %v5743
      %5745 = vmatmul.bf16.gmra.mxu0 %v5633
      %v5746 = vpop.f32.mrf.mxu0
      %v5747 = vadd.f32 0.0, %v5746
      %v5748 = vpop.f32.mrf.mxu0
      %v5749 = vadd.f32 0.0, %v5748
      %5750 = vmatmul.bf16.gmra.mxu0 %v5634
      %v5751 = vpop.f32.mrf.mxu0
      %v5752 = vadd.f32 0.0, %v5751
      %v5753 = vpop.f32.mrf.mxu0
      %v5754 = vadd.f32 0.0, %v5753
      %5755 = vmatmul.bf16.gmra.mxu0 %v5635
      %v5756 = vpop.f32.mrf.mxu0
      %v5757 = vadd.f32 0.0, %v5756
      %v5758 = vpop.f32.mrf.mxu0
      %v5759 = vadd.f32 0.0, %v5758
      %5760 = vmatmul.bf16.gmra.mxu0 %v5636
      %v5761 = vpop.f32.mrf.mxu0
      %v5762 = vadd.f32 0.0, %v5761
      %v5763 = vpop.f32.mrf.mxu0
      %v5764 = vadd.f32 0.0, %v5763
      %5765 = vmatmul.bf16.gmra.mxu0 %v5637
      %v5766 = vpop.f32.mrf.mxu0
      %v5767 = vadd.f32 0.0, %v5766
      %v5768 = vpop.f32.mrf.mxu0
      %v5769 = vadd.f32 0.0, %v5768
      %5770 = vmatmul.bf16.gmra.mxu0 %v5638
      %v5771 = vpop.f32.mrf.mxu0
      %v5772 = vadd.f32 0.0, %v5771
      %v5773 = vpop.f32.mrf.mxu0
      %v5774 = vadd.f32 0.0, %v5773
      %5775 = vmatmul.bf16.gmra.mxu0 %v5639
      %v5776 = vpop.f32.mrf.mxu0
      %v5777 = vadd.f32 0.0, %v5776
      %v5778 = vpop.f32.mrf.mxu0
      %v5779 = vadd.f32 0.0, %v5778
      %5780 = vmatmul.bf16.gmra.mxu0 %v5640
      %v5781 = vpop.f32.mrf.mxu0
      %v5782 = vadd.f32 0.0, %v5781
      %v5783 = vpop.f32.mrf.mxu0
      %v5784 = vadd.f32 0.0, %v5783
      %5785 = vmatmul.bf16.gmra.mxu0 %v5641
      %v5786 = vpop.f32.mrf.mxu0
      %v5787 = vadd.f32 0.0, %v5786
      %v5788 = vpop.f32.mrf.mxu0
      %v5789 = vadd.f32 0.0, %v5788
      %5790 = vmatmul.bf16.gmra.mxu0 %v5642
      %v5791 = vpop.f32.mrf.mxu0
      %v5792 = vadd.f32 0.0, %v5791
      %v5793 = vpop.f32.mrf.mxu0
      %v5794 = vadd.f32 0.0, %v5793
      %5795 = vdwg.mxu0
      %v5796 = vld [vmem:[#allocation3] sm:$0xff]
      %v5797 = vld [vmem:[#allocation3 + $0x8] sm:$0xff]
      %v5798 = vld [vmem:[#allocation3 + $0x10] sm:$0xff]
      %v5799 = vld [vmem:[#allocation3 + $0x18] sm:$0xff]
      %v5800 = vld [vmem:[#allocation3 + $0x20] sm:$0xff]
      %v5801 = vld [vmem:[#allocation3 + $0x28] sm:$0xff]
      %v5802 = vld [vmem:[#allocation3 + $0x30] sm:$0xff]
      %v5803 = vld [vmem:[#allocation3 + $0x38] sm:$0xff]
      %v5804 = vld [vmem:[#allocation3 + $0x40] sm:$0xff]
      %v5805 = vld [vmem:[#allocation3 + $0x48] sm:$0xff]
      %v5806 = vld [vmem:[#allocation3 + $0x50] sm:$0xff]
      %v5807 = vld [vmem:[#allocation3 + $0x58] sm:$0xff]
      %v5808 = vld [vmem:[#allocation3 + $0x60] sm:$0xff]
      %v5809 = vld [vmem:[#allocation3 + $0x68] sm:$0xff]
      %v5810 = vld [vmem:[#allocation3 + $0x70] sm:$0xff]
      %v5811 = vld [vmem:[#allocation3 + $0x78] sm:$0xff]
      %v5812 = vld [vmem:[#allocation3 + $0x80] sm:$0xff]
      %v5813 = vld [vmem:[#allocation3 + $0x88] sm:$0xff]
      %v5814 = vld [vmem:[#allocation3 + $0x90] sm:$0xff]
      %v5815 = vld [vmem:[#allocation3 + $0x98] sm:$0xff]
      %v5816 = vld [vmem:[#allocation3 + $0xa0] sm:$0xff]
      %v5817 = vld [vmem:[#allocation3 + $0xa8] sm:$0xff]
      %v5818 = vld [vmem:[#allocation3 + $0xb0] sm:$0xff]
      %v5819 = vld [vmem:[#allocation3 + $0xb8] sm:$0xff]
      %v5820 = vld [vmem:[#allocation3 + $0xc0] sm:$0xff]
      %v5821 = vld [vmem:[#allocation3 + $0xc8] sm:$0xff]
      %v5822 = vld [vmem:[#allocation3 + $0xd0] sm:$0xff]
      %v5823 = vld [vmem:[#allocation3 + $0xd8] sm:$0xff]
      %v5824 = vld [vmem:[#allocation3 + $0xe0] sm:$0xff]
      %v5825 = vld [vmem:[#allocation3 + $0xe8] sm:$0xff]
      %v5826 = vld [vmem:[#allocation3 + $0xf0] sm:$0xff]
      %v5827 = vld [vmem:[#allocation3 + $0xf8] sm:$0xff]
      %v5828 = vadd.f32 %v5796, %v5717
      %v5829 = vadd.f32 %v5797, %v5719
      %v5830 = vadd.f32 %v5798, %v5722
      %v5831 = vadd.f32 %v5799, %v5724
      %v5832 = vadd.f32 %v5800, %v5727
      %v5833 = vadd.f32 %v5801, %v5729
      %v5834 = vadd.f32 %v5802, %v5732
      %v5835 = vadd.f32 %v5803, %v5734
      %v5836 = vadd.f32 %v5804, %v5737
      %v5837 = vadd.f32 %v5805, %v5739
      %v5838 = vadd.f32 %v5806, %v5742
      %v5839 = vadd.f32 %v5807, %v5744
      %v5840 = vadd.f32 %v5808, %v5747
      %v5841 = vadd.f32 %v5809, %v5749
      %v5842 = vadd.f32 %v5810, %v5752
      %v5843 = vadd.f32 %v5811, %v5754
      %v5844 = vadd.f32 %v5812, %v5757
      %v5845 = vadd.f32 %v5813, %v5759
      %v5846 = vadd.f32 %v5814, %v5762
      %v5847 = vadd.f32 %v5815, %v5764
      %v5848 = vadd.f32 %v5816, %v5767
      %v5849 = vadd.f32 %v5817, %v5769
      %v5850 = vadd.f32 %v5818, %v5772
      %v5851 = vadd.f32 %v5819, %v5774
      %v5852 = vadd.f32 %v5820, %v5777
      %v5853 = vadd.f32 %v5821, %v5779
      %v5854 = vadd.f32 %v5822, %v5782
      %v5855 = vadd.f32 %v5823, %v5784
      %v5856 = vadd.f32 %v5824, %v5787
      %v5857 = vadd.f32 %v5825, %v5789
      %v5858 = vadd.f32 %v5826, %v5792
      %v5859 = vadd.f32 %v5827, %v5794
      %5860 = vst [vmem:[#allocation3] sm:$0xff] %v5828
      %5861 = vst [vmem:[#allocation3 + $0x8] sm:$0xff] %v5829
      %5862 = vst [vmem:[#allocation3 + $0x10] sm:$0xff] %v5830
      %5863 = vst [vmem:[#allocation3 + $0x18] sm:$0xff] %v5831
      %5864 = vst [vmem:[#allocation3 + $0x20] sm:$0xff] %v5832
      %5865 = vst [vmem:[#allocation3 + $0x28] sm:$0xff] %v5833
      %5866 = vst [vmem:[#allocation3 + $0x30] sm:$0xff] %v5834
      %5867 = vst [vmem:[#allocation3 + $0x38] sm:$0xff] %v5835
      %5868 = vst [vmem:[#allocation3 + $0x40] sm:$0xff] %v5836
      %5869 = vst [vmem:[#allocation3 + $0x48] sm:$0xff] %v5837
      %5870 = vst [vmem:[#allocation3 + $0x50] sm:$0xff] %v5838
      %5871 = vst [vmem:[#allocation3 + $0x58] sm:$0xff] %v5839
      %5872 = vst [vmem:[#allocation3 + $0x60] sm:$0xff] %v5840
      %5873 = vst [vmem:[#allocation3 + $0x68] sm:$0xff] %v5841
      %5874 = vst [vmem:[#allocation3 + $0x70] sm:$0xff] %v5842
      %5875 = vst [vmem:[#allocation3 + $0x78] sm:$0xff] %v5843
      %5876 = vst [vmem:[#allocation3 + $0x80] sm:$0xff] %v5844
      %5877 = vst [vmem:[#allocation3 + $0x88] sm:$0xff] %v5845
      %5878 = vst [vmem:[#allocation3 + $0x90] sm:$0xff] %v5846
      %5879 = vst [vmem:[#allocation3 + $0x98] sm:$0xff] %v5847
      %5880 = vst [vmem:[#allocation3 + $0xa0] sm:$0xff] %v5848
      %5881 = vst [vmem:[#allocation3 + $0xa8] sm:$0xff] %v5849
      %5882 = vst [vmem:[#allocation3 + $0xb0] sm:$0xff] %v5850
      %5883 = vst [vmem:[#allocation3 + $0xb8] sm:$0xff] %v5851
      %5884 = vst [vmem:[#allocation3 + $0xc0] sm:$0xff] %v5852
      %5885 = vst [vmem:[#allocation3 + $0xc8] sm:$0xff] %v5853
      %5886 = vst [vmem:[#allocation3 + $0xd0] sm:$0xff] %v5854
      %5887 = vst [vmem:[#allocation3 + $0xd8] sm:$0xff] %v5855
      %5888 = vst [vmem:[#allocation3 + $0xe0] sm:$0xff] %v5856
      %5889 = vst [vmem:[#allocation3 + $0xe8] sm:$0xff] %v5857
      %5890 = vst [vmem:[#allocation3 + $0xf0] sm:$0xff] %v5858
      %5891 = vst [vmem:[#allocation3 + $0xf8] sm:$0xff] %v5859
      %v5892 = vld [vmem:[#allocation3] sm:$0xff]
      %v5893 = vld [vmem:[#allocation3 + $0x8] sm:$0xff]
      %v5894 = vld [vmem:[#allocation3 + $0x10] sm:$0xff]
      %v5895 = vld [vmem:[#allocation3 + $0x18] sm:$0xff]
      %v5896 = vld [vmem:[#allocation3 + $0x20] sm:$0xff]
      %v5897 = vld [vmem:[#allocation3 + $0x28] sm:$0xff]
      %v5898 = vld [vmem:[#allocation3 + $0x30] sm:$0xff]
      %v5899 = vld [vmem:[#allocation3 + $0x38] sm:$0xff]
      %v5900 = vld [vmem:[#allocation3 + $0x40] sm:$0xff]
      %v5901 = vld [vmem:[#allocation3 + $0x48] sm:$0xff]
      %v5902 = vld [vmem:[#allocation3 + $0x50] sm:$0xff]
      %v5903 = vld [vmem:[#allocation3 + $0x58] sm:$0xff]
      %v5904 = vld [vmem:[#allocation3 + $0x60] sm:$0xff]
      %v5905 = vld [vmem:[#allocation3 + $0x68] sm:$0xff]
      %v5906 = vld [vmem:[#allocation3 + $0x70] sm:$0xff]
      %v5907 = vld [vmem:[#allocation3 + $0x78] sm:$0xff]
      %v5908 = vld [vmem:[#allocation3 + $0x80] sm:$0xff]
      %v5909 = vld [vmem:[#allocation3 + $0x88] sm:$0xff]
      %v5910 = vld [vmem:[#allocation3 + $0x90] sm:$0xff]
      %v5911 = vld [vmem:[#allocation3 + $0x98] sm:$0xff]
      %v5912 = vld [vmem:[#allocation3 + $0xa0] sm:$0xff]
      %v5913 = vld [vmem:[#allocation3 + $0xa8] sm:$0xff]
      %v5914 = vld [vmem:[#allocation3 + $0xb0] sm:$0xff]
      %v5915 = vld [vmem:[#allocation3 + $0xb8] sm:$0xff]
      %v5916 = vld [vmem:[#allocation3 + $0xc0] sm:$0xff]
      %v5917 = vld [vmem:[#allocation3 + $0xc8] sm:$0xff]
      %v5918 = vld [vmem:[#allocation3 + $0xd0] sm:$0xff]
      %v5919 = vld [vmem:[#allocation3 + $0xd8] sm:$0xff]
      %v5920 = vld [vmem:[#allocation3 + $0xe0] sm:$0xff]
      %v5921 = vld [vmem:[#allocation3 + $0xe8] sm:$0xff]
      %v5922 = vld [vmem:[#allocation3 + $0xf0] sm:$0xff]
      %v5923 = vld [vmem:[#allocation3 + $0xf8] sm:$0xff]
      %v5924 = vld [vmem:[%s2] sm:$0x1]
      %v5926 = vperm.slane %v5924, 0
      %v5928 = vadd.f32 %v5892, %v5926
      %v5929 = vadd.f32 %v5893, %v5926
      %v5930 = vadd.f32 %v5894, %v5926
      %v5931 = vadd.f32 %v5895, %v5926
      %v5932 = vadd.f32 %v5896, %v5926
      %v5933 = vadd.f32 %v5897, %v5926
      %v5934 = vadd.f32 %v5898, %v5926
      %v5935 = vadd.f32 %v5899, %v5926
      %v5936 = vadd.f32 %v5900, %v5926
      %v5937 = vadd.f32 %v5901, %v5926
      %v5938 = vadd.f32 %v5902, %v5926
      %v5939 = vadd.f32 %v5903, %v5926
      %v5940 = vadd.f32 %v5904, %v5926
      %v5941 = vadd.f32 %v5905, %v5926
      %v5942 = vadd.f32 %v5906, %v5926
      %v5943 = vadd.f32 %v5907, %v5926
      %v5944 = vadd.f32 %v5908, %v5926
      %v5945 = vadd.f32 %v5909, %v5926
      %v5946 = vadd.f32 %v5910, %v5926
      %v5947 = vadd.f32 %v5911, %v5926
      %v5948 = vadd.f32 %v5912, %v5926
      %v5949 = vadd.f32 %v5913, %v5926
      %v5950 = vadd.f32 %v5914, %v5926
      %v5951 = vadd.f32 %v5915, %v5926
      %v5952 = vadd.f32 %v5916, %v5926
      %v5953 = vadd.f32 %v5917, %v5926
      %v5954 = vadd.f32 %v5918, %v5926
      %v5955 = vadd.f32 %v5919, %v5926
      %v5956 = vadd.f32 %v5920, %v5926
      %v5957 = vadd.f32 %v5921, %v5926
      %v5958 = vadd.f32 %v5922, %v5926
      %v5959 = vadd.f32 %v5923, %v5926
      %v5960 = vadd.f32 %v5928, %v5929
      %v5961 = vadd.f32 %v5960, %v5930
      %v5962 = vadd.f32 %v5961, %v5931
      %v5963 = vadd.f32 %v5962, %v5932
      %v5964 = vadd.f32 %v5963, %v5933
      %v5965 = vadd.f32 %v5964, %v5934
      %v5966 = vadd.f32 %v5965, %v5935
      %v5967 = vadd.f32 %v5966, %v5936
      %v5968 = vadd.f32 %v5967, %v5937
      %v5969 = vadd.f32 %v5968, %v5938
      %v5970 = vadd.f32 %v5969, %v5939
      %v5971 = vadd.f32 %v5970, %v5940
      %v5972 = vadd.f32 %v5971, %v5941
      %v5973 = vadd.f32 %v5972, %v5942
      %v5974 = vadd.f32 %v5973, %v5943
      %v5975 = vadd.f32 %v5974, %v5944
      %v5976 = vadd.f32 %v5975, %v5945
      %v5977 = vadd.f32 %v5976, %v5946
      %v5978 = vadd.f32 %v5977, %v5947
      %v5979 = vadd.f32 %v5978, %v5948
      %v5980 = vadd.f32 %v5979, %v5949
      %v5981 = vadd.f32 %v5980, %v5950
      %v5982 = vadd.f32 %v5981, %v5951
      %v5983 = vadd.f32 %v5982, %v5952
      %v5984 = vadd.f32 %v5983, %v5953
      %v5985 = vadd.f32 %v5984, %v5954
      %v5986 = vadd.f32 %v5985, %v5955
      %v5987 = vadd.f32 %v5986, %v5956
      %v5988 = vadd.f32 %v5987, %v5957
      %v5989 = vadd.f32 %v5988, %v5958
      %v5990 = vadd.f32 %v5989, %v5959
      %v5991 = vrot.slane %v5990, 4
      %v5992 = vadd.f32 %v5990, %v5991
      %v5993 = vrot.slane %v5992, 2
      %v5994 = vadd.f32 %v5992, %v5993
      %v5995 = vrot.slane %v5994, 1
      %v5996 = vadd.f32 %v5994, %v5995
      %v5997 = vrcp.pop 256.0
      %v5998 = vmul.f32 256.0, %v5997
      %v5999 = vsub.f32 1.0, %v5998
      %v6000 = vmul.f32 %v5997, %v5999
      %v6001 = vadd.f32 %v5997, %v6000
      %vm6002 = vweird.f32 %v5997
      %v6003 = vsel %vm6002, %v5997, %v6001
      %v6004 = vmul.f32 %v5996, %v6003
      %v6005 = vmul.f32 %v5928, %v5928
      %v6006 = vmul.f32 %v5929, %v5929
      %v6007 = vmul.f32 %v5930, %v5930
      %v6008 = vmul.f32 %v5931, %v5931
      %v6009 = vmul.f32 %v5932, %v5932
      %v6010 = vmul.f32 %v5933, %v5933
      %v6011 = vmul.f32 %v5934, %v5934
      %v6012 = vmul.f32 %v5935, %v5935
      %v6013 = vmul.f32 %v5936, %v5936
      %v6014 = vmul.f32 %v5937, %v5937
      %v6015 = vmul.f32 %v5938, %v5938
      %v6016 = vmul.f32 %v5939, %v5939
      %v6017 = vmul.f32 %v5940, %v5940
      %v6018 = vmul.f32 %v5941, %v5941
      %v6019 = vmul.f32 %v5942, %v5942
      %v6020 = vmul.f32 %v5943, %v5943
      %v6021 = vmul.f32 %v5944, %v5944
      %v6022 = vmul.f32 %v5945, %v5945
      %v6023 = vmul.f32 %v5946, %v5946
      %v6024 = vmul.f32 %v5947, %v5947
      %v6025 = vmul.f32 %v5948, %v5948
      %v6026 = vmul.f32 %v5949, %v5949
      %v6027 = vmul.f32 %v5950, %v5950
      %v6028 = vmul.f32 %v5951, %v5951
      %v6029 = vmul.f32 %v5952, %v5952
      %v6030 = vmul.f32 %v5953, %v5953
      %v6031 = vmul.f32 %v5954, %v5954
      %v6032 = vmul.f32 %v5955, %v5955
      %v6033 = vmul.f32 %v5956, %v5956
      %v6034 = vmul.f32 %v5957, %v5957
      %v6035 = vmul.f32 %v5958, %v5958
      %v6036 = vmul.f32 %v5959, %v5959
      %v6037 = vadd.f32 %v6005, %v6006
      %v6038 = vadd.f32 %v6037, %v6007
      %v6039 = vadd.f32 %v6038, %v6008
      %v6040 = vadd.f32 %v6039, %v6009
      %v6041 = vadd.f32 %v6040, %v6010
      %v6042 = vadd.f32 %v6041, %v6011
      %v6043 = vadd.f32 %v6042, %v6012
      %v6044 = vadd.f32 %v6043, %v6013
      %v6045 = vadd.f32 %v6044, %v6014
      %v6046 = vadd.f32 %v6045, %v6015
      %v6047 = vadd.f32 %v6046, %v6016
      %v6048 = vadd.f32 %v6047, %v6017
      %v6049 = vadd.f32 %v6048, %v6018
      %v6050 = vadd.f32 %v6049, %v6019
      %v6051 = vadd.f32 %v6050, %v6020
      %v6052 = vadd.f32 %v6051, %v6021
      %v6053 = vadd.f32 %v6052, %v6022
      %v6054 = vadd.f32 %v6053, %v6023
      %v6055 = vadd.f32 %v6054, %v6024
      %v6056 = vadd.f32 %v6055, %v6025
      %v6057 = vadd.f32 %v6056, %v6026
      %v6058 = vadd.f32 %v6057, %v6027
      %v6059 = vadd.f32 %v6058, %v6028
      %v6060 = vadd.f32 %v6059, %v6029
      %v6061 = vadd.f32 %v6060, %v6030
      %v6062 = vadd.f32 %v6061, %v6031
      %v6063 = vadd.f32 %v6062, %v6032
      %v6064 = vadd.f32 %v6063, %v6033
      %v6065 = vadd.f32 %v6064, %v6034
      %v6066 = vadd.f32 %v6065, %v6035
      %v6067 = vadd.f32 %v6066, %v6036
      %v6068 = vrot.slane %v6067, 4
      %v6069 = vadd.f32 %v6067, %v6068
      %v6070 = vrot.slane %v6069, 2
      %v6071 = vadd.f32 %v6069, %v6070
      %v6072 = vrot.slane %v6071, 1
      %v6073 = vadd.f32 %v6071, %v6072
      %v6074 = vmul.f32 %v6073, %v6003
      %v6075 = vmul.f32 %v6004, %v6004
      %v6076 = vsub.f32 %v6074, %v6075
      %v6077 = vmax.f32 %v6076, 0.0
      %v6078 = vsub.f32 %v5928, %v6004
      %v6079 = vsub.f32 %v5929, %v6004
      %v6080 = vsub.f32 %v5930, %v6004
      %v6081 = vsub.f32 %v5931, %v6004
      %v6082 = vsub.f32 %v5932, %v6004
      %v6083 = vsub.f32 %v5933, %v6004
      %v6084 = vsub.f32 %v5934, %v6004
      %v6085 = vsub.f32 %v5935, %v6004
      %v6086 = vsub.f32 %v5936, %v6004
      %v6087 = vsub.f32 %v5937, %v6004
      %v6088 = vsub.f32 %v5938, %v6004
      %v6089 = vsub.f32 %v5939, %v6004
      %v6090 = vsub.f32 %v5940, %v6004
      %v6091 = vsub.f32 %v5941, %v6004
      %v6092 = vsub.f32 %v5942, %v6004
      %v6093 = vsub.f32 %v5943, %v6004
      %v6094 = vsub.f32 %v5944, %v6004
      %v6095 = vsub.f32 %v5945, %v6004
      %v6096 = vsub.f32 %v5946, %v6004
      %v6097 = vsub.f32 %v5947, %v6004
      %v6098 = vsub.f32 %v5948, %v6004
      %v6099 = vsub.f32 %v5949, %v6004
      %v6100 = vsub.f32 %v5950, %v6004
      %v6101 = vsub.f32 %v5951, %v6004
      %v6102 = vsub.f32 %v5952, %v6004
      %v6103 = vsub.f32 %v5953, %v6004
      %v6104 = vsub.f32 %v5954, %v6004
      %v6105 = vsub.f32 %v5955, %v6004
      %v6106 = vsub.f32 %v5956, %v6004
      %v6107 = vsub.f32 %v5957, %v6004
      %v6108 = vsub.f32 %v5958, %v6004
      %v6109 = vsub.f32 %v5959, %v6004
      %v6110 = vadd.f32 %v6077, 1e-05
      %v6111 = vrsqrt.pop %v6110
      %v6112 = vmul.f32 %v6111, %v6110
      %v6113 = vmul.f32 %v6112, %v6111
      %v6114 = vmul.f32 0.5, %v6113
      %v6115 = vsub.f32 1.5, %v6114
      %v6116 = vmul.f32 %v6111, %v6115
      %vm6117 = vweird.f32 %v6110
      %vm6118 = vweird.f32 %v6111
      %vm6119 = vmor %vm6117, %vm6118
      %v6120 = vsel %vm6119, %v6111, %v6116
      %v6121 = vmul.f32 %v6078, %v6120
      %v6122 = vmul.f32 %v6079, %v6120
      %v6123 = vmul.f32 %v6080, %v6120
      %v6124 = vmul.f32 %v6081, %v6120
      %v6125 = vmul.f32 %v6082, %v6120
      %v6126 = vmul.f32 %v6083, %v6120
      %v6127 = vmul.f32 %v6084, %v6120
      %v6128 = vmul.f32 %v6085, %v6120
      %v6129 = vmul.f32 %v6086, %v6120
      %v6130 = vmul.f32 %v6087, %v6120
      %v6131 = vmul.f32 %v6088, %v6120
      %v6132 = vmul.f32 %v6089, %v6120
      %v6133 = vmul.f32 %v6090, %v6120
      %v6134 = vmul.f32 %v6091, %v6120
      %v6135 = vmul.f32 %v6092, %v6120
      %v6136 = vmul.f32 %v6093, %v6120
      %v6137 = vmul.f32 %v6094, %v6120
      %v6138 = vmul.f32 %v6095, %v6120
      %v6139 = vmul.f32 %v6096, %v6120
      %v6140 = vmul.f32 %v6097, %v6120
      %v6141 = vmul.f32 %v6098, %v6120
      %v6142 = vmul.f32 %v6099, %v6120
      %v6143 = vmul.f32 %v6100, %v6120
      %v6144 = vmul.f32 %v6101, %v6120
      %v6145 = vmul.f32 %v6102, %v6120
      %v6146 = vmul.f32 %v6103, %v6120
      %v6147 = vmul.f32 %v6104, %v6120
      %v6148 = vmul.f32 %v6105, %v6120
      %v6149 = vmul.f32 %v6106, %v6120
      %v6150 = vmul.f32 %v6107, %v6120
      %v6151 = vmul.f32 %v6108, %v6120
      %v6152 = vmul.f32 %v6109, %v6120
      %v6153 = vmax.f32 %v6121, 0.0
      %v6154 = vmax.f32 %v6122, 0.0
      %v6155 = vmax.f32 %v6123, 0.0
      %v6156 = vmax.f32 %v6124, 0.0
      %v6157 = vmax.f32 %v6125, 0.0
      %v6158 = vmax.f32 %v6126, 0.0
      %v6159 = vmax.f32 %v6127, 0.0
      %v6160 = vmax.f32 %v6128, 0.0
      %v6161 = vmax.f32 %v6129, 0.0
      %v6162 = vmax.f32 %v6130, 0.0
      %v6163 = vmax.f32 %v6131, 0.0
      %v6164 = vmax.f32 %v6132, 0.0
      %v6165 = vmax.f32 %v6133, 0.0
      %v6166 = vmax.f32 %v6134, 0.0
      %v6167 = vmax.f32 %v6135, 0.0
      %v6168 = vmax.f32 %v6136, 0.0
      %v6169 = vmax.f32 %v6137, 0.0
      %v6170 = vmax.f32 %v6138, 0.0
      %v6171 = vmax.f32 %v6139, 0.0
      %v6172 = vmax.f32 %v6140, 0.0
      %v6173 = vmax.f32 %v6141, 0.0
      %v6174 = vmax.f32 %v6142, 0.0
      %v6175 = vmax.f32 %v6143, 0.0
      %v6176 = vmax.f32 %v6144, 0.0
      %v6177 = vmax.f32 %v6145, 0.0
      %v6178 = vmax.f32 %v6146, 0.0
      %v6179 = vmax.f32 %v6147, 0.0
      %v6180 = vmax.f32 %v6148, 0.0
      %v6181 = vmax.f32 %v6149, 0.0
      %v6182 = vmax.f32 %v6150, 0.0
      %v6183 = vmax.f32 %v6151, 0.0
      %v6184 = vmax.f32 %v6152, 0.0
      %v6185 = vpack.c.bf16 %v6153, %v6153
      %v6186 = vpack.c.bf16 %v6154, %v6154
      %v6187 = vpack.c.bf16 %v6155, %v6155
      %v6188 = vpack.c.bf16 %v6156, %v6156
      %v6189 = vpack.c.bf16 %v6157, %v6157
      %v6190 = vpack.c.bf16 %v6158, %v6158
      %v6191 = vpack.c.bf16 %v6159, %v6159
      %v6192 = vpack.c.bf16 %v6160, %v6160
      %v6193 = vpack.c.bf16 %v6161, %v6161
      %v6194 = vpack.c.bf16 %v6162, %v6162
      %v6195 = vpack.c.bf16 %v6163, %v6163
      %v6196 = vpack.c.bf16 %v6164, %v6164
      %v6197 = vpack.c.bf16 %v6165, %v6165
      %v6198 = vpack.c.bf16 %v6166, %v6166
      %v6199 = vpack.c.bf16 %v6167, %v6167
      %v6200 = vpack.c.bf16 %v6168, %v6168
      %v6201 = vpack.c.bf16 %v6169, %v6169
      %v6202 = vpack.c.bf16 %v6170, %v6170
      %v6203 = vpack.c.bf16 %v6171, %v6171
      %v6204 = vpack.c.bf16 %v6172, %v6172
      %v6205 = vpack.c.bf16 %v6173, %v6173
      %v6206 = vpack.c.bf16 %v6174, %v6174
      %v6207 = vpack.c.bf16 %v6175, %v6175
      %v6208 = vpack.c.bf16 %v6176, %v6176
      %v6209 = vpack.c.bf16 %v6177, %v6177
      %v6210 = vpack.c.bf16 %v6178, %v6178
      %v6211 = vpack.c.bf16 %v6179, %v6179
      %v6212 = vpack.c.bf16 %v6180, %v6180
      %v6213 = vpack.c.bf16 %v6181, %v6181
      %v6214 = vpack.c.bf16 %v6182, %v6182
      %v6215 = vpack.c.bf16 %v6183, %v6183
      %v6216 = vpack.c.bf16 %v6184, %v6184
      %v6218 = vshrl.u32 %v6185, 16
      %v6220 = vrot.slane %v6218, 7
      %v6221 = vshll.u32 %v6185, 16
      %v6223 = vor.u32 %v6220, %v6221
      %v6224 = vrot.slane %v6220, 4
      %v6226 = vshrl.u32 %v6186, 16
      %v6228 = vrot.slane %v6226, 7
      %v6229 = vshll.u32 %v6186, 16
      %v6231 = vor.u32 %v6228, %v6229
      %v6232 = vsel %vm291, %v6224, %v6231
      %v6233 = vrot.slane %v6228, 4
      %v6235 = vshrl.u32 %v6187, 16
      %v6237 = vrot.slane %v6235, 7
      %v6238 = vshll.u32 %v6187, 16
      %v6240 = vor.u32 %v6237, %v6238
      %v6241 = vrot.slane %v6237, 4
      %v6243 = vshrl.u32 %v6188, 16
      %v6245 = vrot.slane %v6243, 7
      %v6246 = vshll.u32 %v6188, 16
      %v6248 = vor.u32 %v6245, %v6246
      %v6249 = vsel %vm291, %v6241, %v6248
      %v6250 = vrot.slane %v6245, 4
      %v6252 = vshrl.u32 %v6189, 16
      %v6254 = vrot.slane %v6252, 7
      %v6255 = vshll.u32 %v6189, 16
      %v6257 = vor.u32 %v6254, %v6255
      %v6258 = vrot.slane %v6254, 4
      %v6260 = vshrl.u32 %v6190, 16
      %v6262 = vrot.slane %v6260, 7
      %v6263 = vshll.u32 %v6190, 16
      %v6265 = vor.u32 %v6262, %v6263
      %v6266 = vsel %vm291, %v6258, %v6265
      %v6267 = vrot.slane %v6262, 4
      %v6269 = vshrl.u32 %v6191, 16
      %v6271 = vrot.slane %v6269, 7
      %v6272 = vshll.u32 %v6191, 16
      %v6274 = vor.u32 %v6271, %v6272
      %v6275 = vrot.slane %v6271, 4
      %v6277 = vshrl.u32 %v6192, 16
      %v6279 = vrot.slane %v6277, 7
      %v6280 = vshll.u32 %v6192, 16
      %v6282 = vor.u32 %v6279, %v6280
      %v6283 = vsel %vm291, %v6275, %v6282
      %v6284 = vrot.slane %v6279, 4
      %v6286 = vshrl.u32 %v6193, 16
      %v6288 = vrot.slane %v6286, 7
      %v6289 = vshll.u32 %v6193, 16
      %v6291 = vor.u32 %v6288, %v6289
      %v6292 = vrot.slane %v6288, 4
      %v6294 = vshrl.u32 %v6194, 16
      %v6296 = vrot.slane %v6294, 7
      %v6297 = vshll.u32 %v6194, 16
      %v6299 = vor.u32 %v6296, %v6297
      %v6300 = vsel %vm291, %v6292, %v6299
      %v6301 = vrot.slane %v6296, 4
      %v6303 = vshrl.u32 %v6195, 16
      %v6305 = vrot.slane %v6303, 7
      %v6306 = vshll.u32 %v6195, 16
      %v6308 = vor.u32 %v6305, %v6306
      %v6309 = vrot.slane %v6305, 4
      %v6311 = vshrl.u32 %v6196, 16
      %v6313 = vrot.slane %v6311, 7
      %v6314 = vshll.u32 %v6196, 16
      %v6316 = vor.u32 %v6313, %v6314
      %v6317 = vsel %vm291, %v6309, %v6316
      %v6318 = vrot.slane %v6313, 4
      %v6320 = vshrl.u32 %v6197, 16
      %v6322 = vrot.slane %v6320, 7
      %v6323 = vshll.u32 %v6197, 16
      %v6325 = vor.u32 %v6322, %v6323
      %v6326 = vrot.slane %v6322, 4
      %v6328 = vshrl.u32 %v6198, 16
      %v6330 = vrot.slane %v6328, 7
      %v6331 = vshll.u32 %v6198, 16
      %v6333 = vor.u32 %v6330, %v6331
      %v6334 = vsel %vm291, %v6326, %v6333
      %v6335 = vrot.slane %v6330, 4
      %v6337 = vshrl.u32 %v6199, 16
      %v6339 = vrot.slane %v6337, 7
      %v6340 = vshll.u32 %v6199, 16
      %v6342 = vor.u32 %v6339, %v6340
      %v6343 = vrot.slane %v6339, 4
      %v6345 = vshrl.u32 %v6200, 16
      %v6347 = vrot.slane %v6345, 7
      %v6348 = vshll.u32 %v6200, 16
      %v6350 = vor.u32 %v6347, %v6348
      %v6351 = vsel %vm291, %v6343, %v6350
      %v6352 = vrot.slane %v6347, 4
      %v6354 = vshrl.u32 %v6201, 16
      %v6356 = vrot.slane %v6354, 7
      %v6357 = vshll.u32 %v6201, 16
      %v6359 = vor.u32 %v6356, %v6357
      %v6360 = vrot.slane %v6356, 4
      %v6362 = vshrl.u32 %v6202, 16
      %v6364 = vrot.slane %v6362, 7
      %v6365 = vshll.u32 %v6202, 16
      %v6367 = vor.u32 %v6364, %v6365
      %v6368 = vsel %vm291, %v6360, %v6367
      %v6369 = vrot.slane %v6364, 4
      %v6371 = vshrl.u32 %v6203, 16
      %v6373 = vrot.slane %v6371, 7
      %v6374 = vshll.u32 %v6203, 16
      %v6376 = vor.u32 %v6373, %v6374
      %v6377 = vrot.slane %v6373, 4
      %v6379 = vshrl.u32 %v6204, 16
      %v6381 = vrot.slane %v6379, 7
      %v6382 = vshll.u32 %v6204, 16
      %v6384 = vor.u32 %v6381, %v6382
      %v6385 = vsel %vm291, %v6377, %v6384
      %v6386 = vrot.slane %v6381, 4
      %v6388 = vshrl.u32 %v6205, 16
      %v6390 = vrot.slane %v6388, 7
      %v6391 = vshll.u32 %v6205, 16
      %v6393 = vor.u32 %v6390, %v6391
      %v6394 = vrot.slane %v6390, 4
      %v6396 = vshrl.u32 %v6206, 16
      %v6398 = vrot.slane %v6396, 7
      %v6399 = vshll.u32 %v6206, 16
      %v6401 = vor.u32 %v6398, %v6399
      %v6402 = vsel %vm291, %v6394, %v6401
      %v6403 = vrot.slane %v6398, 4
      %v6405 = vshrl.u32 %v6207, 16
      %v6407 = vrot.slane %v6405, 7
      %v6408 = vshll.u32 %v6207, 16
      %v6410 = vor.u32 %v6407, %v6408
      %v6411 = vrot.slane %v6407, 4
      %v6413 = vshrl.u32 %v6208, 16
      %v6415 = vrot.slane %v6413, 7
      %v6416 = vshll.u32 %v6208, 16
      %v6418 = vor.u32 %v6415, %v6416
      %v6419 = vsel %vm291, %v6411, %v6418
      %v6420 = vrot.slane %v6415, 4
      %v6422 = vshrl.u32 %v6209, 16
      %v6424 = vrot.slane %v6422, 7
      %v6425 = vshll.u32 %v6209, 16
      %v6427 = vor.u32 %v6424, %v6425
      %v6428 = vrot.slane %v6424, 4
      %v6430 = vshrl.u32 %v6210, 16
      %v6432 = vrot.slane %v6430, 7
      %v6433 = vshll.u32 %v6210, 16
      %v6435 = vor.u32 %v6432, %v6433
      %v6436 = vsel %vm291, %v6428, %v6435
      %v6437 = vrot.slane %v6432, 4
      %v6439 = vshrl.u32 %v6211, 16
      %v6441 = vrot.slane %v6439, 7
      %v6442 = vshll.u32 %v6211, 16
      %v6444 = vor.u32 %v6441, %v6442
      %v6445 = vrot.slane %v6441, 4
      %v6447 = vshrl.u32 %v6212, 16
      %v6449 = vrot.slane %v6447, 7
      %v6450 = vshll.u32 %v6212, 16
      %v6452 = vor.u32 %v6449, %v6450
      %v6453 = vsel %vm291, %v6445, %v6452
      %v6454 = vrot.slane %v6449, 4
      %v6456 = vshrl.u32 %v6213, 16
      %v6458 = vrot.slane %v6456, 7
      %v6459 = vshll.u32 %v6213, 16
      %v6461 = vor.u32 %v6458, %v6459
      %v6462 = vrot.slane %v6458, 4
      %v6464 = vshrl.u32 %v6214, 16
      %v6466 = vrot.slane %v6464, 7
      %v6467 = vshll.u32 %v6214, 16
      %v6469 = vor.u32 %v6466, %v6467
      %v6470 = vsel %vm291, %v6462, %v6469
      %v6471 = vrot.slane %v6466, 4
      %v6473 = vshrl.u32 %v6215, 16
      %v6475 = vrot.slane %v6473, 7
      %v6476 = vshll.u32 %v6215, 16
      %v6478 = vor.u32 %v6475, %v6476
      %v6479 = vrot.slane %v6475, 4
      %v6481 = vshrl.u32 %v6216, 16
      %v6483 = vrot.slane %v6481, 7
      %v6484 = vshll.u32 %v6216, 16
      %v6486 = vor.u32 %v6483, %v6484
      %v6487 = vsel %vm291, %v6479, %v6486
      %v6488 = vrot.slane %v6483, 4
      %v6537 = vld [vmem:[%s612] sm:$0xf]
      %v6538 = vsel %vm615, %v6223, %v6537
      %6539 = vst [vmem:[%s612] sm:$0xf] %v6538
      %6540 = vst [vmem:[%s612 + $0x4] sm:$0xf] %v6232
      %v6541 = vld [vmem:[%s612 + $0x8] sm:$0x1]
      %v6542 = vsel %vm621, %v6233, %v6541
      %6543 = vst [vmem:[%s612 + $0x8] sm:$0x1] %v6542
      %v6544 = vld [vmem:[%s612 + $0xc] sm:$0xf]
      %v6545 = vsel %vm615, %v6240, %v6544
      %6546 = vst [vmem:[%s612 + $0xc] sm:$0xf] %v6545
      %6547 = vst [vmem:[%s612 + $0x10] sm:$0xf] %v6249
      %v6548 = vld [vmem:[%s612 + $0x14] sm:$0x1]
      %v6549 = vsel %vm621, %v6250, %v6548
      %6550 = vst [vmem:[%s612 + $0x14] sm:$0x1] %v6549
      %v6551 = vld [vmem:[%s612 + $0x18] sm:$0xf]
      %v6552 = vsel %vm615, %v6257, %v6551
      %6553 = vst [vmem:[%s612 + $0x18] sm:$0xf] %v6552
      %6554 = vst [vmem:[%s612 + $0x1c] sm:$0xf] %v6266
      %v6555 = vld [vmem:[%s612 + $0x20] sm:$0x1]
      %v6556 = vsel %vm621, %v6267, %v6555
      %6557 = vst [vmem:[%s612 + $0x20] sm:$0x1] %v6556
      %v6558 = vld [vmem:[%s612 + $0x24] sm:$0xf]
      %v6559 = vsel %vm615, %v6274, %v6558
      %6560 = vst [vmem:[%s612 + $0x24] sm:$0xf] %v6559
      %6561 = vst [vmem:[%s612 + $0x28] sm:$0xf] %v6283
      %v6562 = vld [vmem:[%s612 + $0x2c] sm:$0x1]
      %v6563 = vsel %vm621, %v6284, %v6562
      %6564 = vst [vmem:[%s612 + $0x2c] sm:$0x1] %v6563
      %v6565 = vld [vmem:[%s612 + $0x30] sm:$0xf]
      %v6566 = vsel %vm615, %v6291, %v6565
      %6567 = vst [vmem:[%s612 + $0x30] sm:$0xf] %v6566
      %6568 = vst [vmem:[%s612 + $0x34] sm:$0xf] %v6300
      %v6569 = vld [vmem:[%s612 + $0x38] sm:$0x1]
      %v6570 = vsel %vm621, %v6301, %v6569
      %6571 = vst [vmem:[%s612 + $0x38] sm:$0x1] %v6570
      %v6572 = vld [vmem:[%s612 + $0x3c] sm:$0xf]
      %v6573 = vsel %vm615, %v6308, %v6572
      %6574 = vst [vmem:[%s612 + $0x3c] sm:$0xf] %v6573
      %6575 = vst [vmem:[%s612 + $0x40] sm:$0xf] %v6317
      %v6576 = vld [vmem:[%s612 + $0x44] sm:$0x1]
      %v6577 = vsel %vm621, %v6318, %v6576
      %6578 = vst [vmem:[%s612 + $0x44] sm:$0x1] %v6577
      %v6579 = vld [vmem:[%s612 + $0x48] sm:$0xf]
      %v6580 = vsel %vm615, %v6325, %v6579
      %6581 = vst [vmem:[%s612 + $0x48] sm:$0xf] %v6580
      %6582 = vst [vmem:[%s612 + $0x4c] sm:$0xf] %v6334
      %v6583 = vld [vmem:[%s612 + $0x50] sm:$0x1]
      %v6584 = vsel %vm621, %v6335, %v6583
      %6585 = vst [vmem:[%s612 + $0x50] sm:$0x1] %v6584
      %v6586 = vld [vmem:[%s612 + $0x54] sm:$0xf]
      %v6587 = vsel %vm615, %v6342, %v6586
      %6588 = vst [vmem:[%s612 + $0x54] sm:$0xf] %v6587
      %6589 = vst [vmem:[%s612 + $0x58] sm:$0xf] %v6351
      %v6590 = vld [vmem:[%s612 + $0x5c] sm:$0x1]
      %v6591 = vsel %vm621, %v6352, %v6590
      %6592 = vst [vmem:[%s612 + $0x5c] sm:$0x1] %v6591
      %v6593 = vld [vmem:[%s612 + $0x60] sm:$0xf]
      %v6594 = vsel %vm615, %v6359, %v6593
      %6595 = vst [vmem:[%s612 + $0x60] sm:$0xf] %v6594
      %6596 = vst [vmem:[%s612 + $0x64] sm:$0xf] %v6368
      %v6597 = vld [vmem:[%s612 + $0x68] sm:$0x1]
      %v6598 = vsel %vm621, %v6369, %v6597
      %6599 = vst [vmem:[%s612 + $0x68] sm:$0x1] %v6598
      %v6600 = vld [vmem:[%s612 + $0x6c] sm:$0xf]
      %v6601 = vsel %vm615, %v6376, %v6600
      %6602 = vst [vmem:[%s612 + $0x6c] sm:$0xf] %v6601
      %6603 = vst [vmem:[%s612 + $0x70] sm:$0xf] %v6385
      %v6604 = vld [vmem:[%s612 + $0x74] sm:$0x1]
      %v6605 = vsel %vm621, %v6386, %v6604
      %6606 = vst [vmem:[%s612 + $0x74] sm:$0x1] %v6605
      %v6607 = vld [vmem:[%s612 + $0x78] sm:$0xf]
      %v6608 = vsel %vm615, %v6393, %v6607
      %6609 = vst [vmem:[%s612 + $0x78] sm:$0xf] %v6608
      %6610 = vst [vmem:[%s612 + $0x7c] sm:$0xf] %v6402
      %v6611 = vld [vmem:[%s612 + $0x80] sm:$0x1]
      %v6612 = vsel %vm621, %v6403, %v6611
      %6613 = vst [vmem:[%s612 + $0x80] sm:$0x1] %v6612
      %v6614 = vld [vmem:[%s612 + $0x84] sm:$0xf]
      %v6615 = vsel %vm615, %v6410, %v6614
      %6616 = vst [vmem:[%s612 + $0x84] sm:$0xf] %v6615
      %6617 = vst [vmem:[%s612 + $0x88] sm:$0xf] %v6419
      %v6618 = vld [vmem:[%s612 + $0x8c] sm:$0x1]
      %v6619 = vsel %vm621, %v6420, %v6618
      %6620 = vst [vmem:[%s612 + $0x8c] sm:$0x1] %v6619
      %v6621 = vld [vmem:[%s612 + $0x90] sm:$0xf]
      %v6622 = vsel %vm615, %v6427, %v6621
      %6623 = vst [vmem:[%s612 + $0x90] sm:$0xf] %v6622
      %6624 = vst [vmem:[%s612 + $0x94] sm:$0xf] %v6436
      %v6625 = vld [vmem:[%s612 + $0x98] sm:$0x1]
      %v6626 = vsel %vm621, %v6437, %v6625
      %6627 = vst [vmem:[%s612 + $0x98] sm:$0x1] %v6626
      %v6628 = vld [vmem:[%s612 + $0x9c] sm:$0xf]
      %v6629 = vsel %vm615, %v6444, %v6628
      %6630 = vst [vmem:[%s612 + $0x9c] sm:$0xf] %v6629
      %6631 = vst [vmem:[%s612 + $0xa0] sm:$0xf] %v6453
      %v6632 = vld [vmem:[%s612 + $0xa4] sm:$0x1]
      %v6633 = vsel %vm621, %v6454, %v6632
      %6634 = vst [vmem:[%s612 + $0xa4] sm:$0x1] %v6633
      %v6635 = vld [vmem:[%s612 + $0xa8] sm:$0xf]
      %v6636 = vsel %vm615, %v6461, %v6635
      %6637 = vst [vmem:[%s612 + $0xa8] sm:$0xf] %v6636
      %6638 = vst [vmem:[%s612 + $0xac] sm:$0xf] %v6470
      %v6639 = vld [vmem:[%s612 + $0xb0] sm:$0x1]
      %v6640 = vsel %vm621, %v6471, %v6639
      %6641 = vst [vmem:[%s612 + $0xb0] sm:$0x1] %v6640
      %v6642 = vld [vmem:[%s612 + $0xb4] sm:$0xf]
      %v6643 = vsel %vm615, %v6478, %v6642
      %6644 = vst [vmem:[%s612 + $0xb4] sm:$0xf] %v6643
      %6645 = vst [vmem:[%s612 + $0xb8] sm:$0xf] %v6487
      %v6646 = vld [vmem:[%s612 + $0xbc] sm:$0x1]
      %v6647 = vsel %vm621, %v6488, %v6646
      %6648 = vst [vmem:[%s612 + $0xbc] sm:$0x1] %v6647
      %v6649 = vrot.slane %v6218, 4
      %v6650 = vrot.slane %v6649, 4
      %v6651 = vrot.slane %v6235, 4
      %v6652 = vrot.slane %v6651, 4
      %v6653 = vrot.slane %v6252, 4
      %v6654 = vrot.slane %v6653, 4
      %v6655 = vrot.slane %v6269, 4
      %v6656 = vrot.slane %v6655, 4
      %v6657 = vrot.slane %v6286, 4
      %v6658 = vrot.slane %v6657, 4
      %v6659 = vrot.slane %v6303, 4
      %v6660 = vrot.slane %v6659, 4
      %v6661 = vrot.slane %v6320, 4
      %v6662 = vrot.slane %v6661, 4
      %v6663 = vrot.slane %v6337, 4
      %v6664 = vrot.slane %v6663, 4
      %v6665 = vrot.slane %v6354, 4
      %v6666 = vrot.slane %v6665, 4
      %v6667 = vrot.slane %v6371, 4
      %v6668 = vrot.slane %v6667, 4
      %v6669 = vrot.slane %v6388, 4
      %v6670 = vrot.slane %v6669, 4
      %v6671 = vrot.slane %v6405, 4
      %v6672 = vrot.slane %v6671, 4
      %v6673 = vrot.slane %v6422, 4
      %v6674 = vrot.slane %v6673, 4
      %v6675 = vrot.slane %v6439, 4
      %v6676 = vrot.slane %v6675, 4
      %v6677 = vrot.slane %v6456, 4
      %v6678 = vrot.slane %v6677, 4
      %v6679 = vrot.slane %v6473, 4
      %v6680 = vrot.slane %v6679, 4
      %v6697 = vld [vmem:[%s612] sm:$0x1]
      %v6698 = vsel %vm621, %v6650, %v6697
      %6699 = vst [vmem:[%s612] sm:$0x1] %v6698
      %v6700 = vld [vmem:[%s612 + $0xc] sm:$0x1]
      %v6701 = vsel %vm621, %v6652, %v6700
      %6702 = vst [vmem:[%s612 + $0xc] sm:$0x1] %v6701
      %v6703 = vld [vmem:[%s612 + $0x18] sm:$0x1]
      %v6704 = vsel %vm621, %v6654, %v6703
      %6705 = vst [vmem:[%s612 + $0x18] sm:$0x1] %v6704
      %v6706 = vld [vmem:[%s612 + $0x24] sm:$0x1]
      %v6707 = vsel %vm621, %v6656, %v6706
      %6708 = vst [vmem:[%s612 + $0x24] sm:$0x1] %v6707
      %v6709 = vld [vmem:[%s612 + $0x30] sm:$0x1]
      %v6710 = vsel %vm621, %v6658, %v6709
      %6711 = vst [vmem:[%s612 + $0x30] sm:$0x1] %v6710
      %v6712 = vld [vmem:[%s612 + $0x3c] sm:$0x1]
      %v6713 = vsel %vm621, %v6660, %v6712
      %6714 = vst [vmem:[%s612 + $0x3c] sm:$0x1] %v6713
      %v6715 = vld [vmem:[%s612 + $0x48] sm:$0x1]
      %v6716 = vsel %vm621, %v6662, %v6715
      %6717 = vst [vmem:[%s612 + $0x48] sm:$0x1] %v6716
      %v6718 = vld [vmem:[%s612 + $0x54] sm:$0x1]
      %v6719 = vsel %vm621, %v6664, %v6718
      %6720 = vst [vmem:[%s612 + $0x54] sm:$0x1] %v6719
      %v6721 = vld [vmem:[%s612 + $0x60] sm:$0x1]
      %v6722 = vsel %vm621, %v6666, %v6721
      %6723 = vst [vmem:[%s612 + $0x60] sm:$0x1] %v6722
      %v6724 = vld [vmem:[%s612 + $0x6c] sm:$0x1]
      %v6725 = vsel %vm621, %v6668, %v6724
      %6726 = vst [vmem:[%s612 + $0x6c] sm:$0x1] %v6725
      %v6727 = vld [vmem:[%s612 + $0x78] sm:$0x1]
      %v6728 = vsel %vm621, %v6670, %v6727
      %6729 = vst [vmem:[%s612 + $0x78] sm:$0x1] %v6728
      %v6730 = vld [vmem:[%s612 + $0x84] sm:$0x1]
      %v6731 = vsel %vm621, %v6672, %v6730
      %6732 = vst [vmem:[%s612 + $0x84] sm:$0x1] %v6731
      %v6733 = vld [vmem:[%s612 + $0x90] sm:$0x1]
      %v6734 = vsel %vm621, %v6674, %v6733
      %6735 = vst [vmem:[%s612 + $0x90] sm:$0x1] %v6734
      %v6736 = vld [vmem:[%s612 + $0x9c] sm:$0x1]
      %v6737 = vsel %vm621, %v6676, %v6736
      %6738 = vst [vmem:[%s612 + $0x9c] sm:$0x1] %v6737
      %v6739 = vld [vmem:[%s612 + $0xa8] sm:$0x1]
      %v6740 = vsel %vm621, %v6678, %v6739
      %6741 = vst [vmem:[%s612 + $0xa8] sm:$0x1] %v6740
      %v6742 = vld [vmem:[%s612 + $0xb4] sm:$0x1]
      %v6743 = vsel %vm621, %v6680, %v6742
      %6744 = vst [vmem:[%s612 + $0xb4] sm:$0x1] %v6743
      %v6745 = vrot.slane %v6229, 7
      %v6746 = vrot.slane %v6745, 4
      %v6747 = vrot.slane %v6246, 7
      %v6748 = vrot.slane %v6747, 4
      %v6749 = vrot.slane %v6263, 7
      %v6750 = vrot.slane %v6749, 4
      %v6751 = vrot.slane %v6280, 7
      %v6752 = vrot.slane %v6751, 4
      %v6753 = vrot.slane %v6297, 7
      %v6754 = vrot.slane %v6753, 4
      %v6755 = vrot.slane %v6314, 7
      %v6756 = vrot.slane %v6755, 4
      %v6757 = vrot.slane %v6331, 7
      %v6758 = vrot.slane %v6757, 4
      %v6759 = vrot.slane %v6348, 7
      %v6760 = vrot.slane %v6759, 4
      %v6761 = vrot.slane %v6365, 7
      %v6762 = vrot.slane %v6761, 4
      %v6763 = vrot.slane %v6382, 7
      %v6764 = vrot.slane %v6763, 4
      %v6765 = vrot.slane %v6399, 7
      %v6766 = vrot.slane %v6765, 4
      %v6767 = vrot.slane %v6416, 7
      %v6768 = vrot.slane %v6767, 4
      %v6769 = vrot.slane %v6433, 7
      %v6770 = vrot.slane %v6769, 4
      %v6771 = vrot.slane %v6450, 7
      %v6772 = vrot.slane %v6771, 4
      %v6773 = vrot.slane %v6467, 7
      %v6774 = vrot.slane %v6773, 4
      %v6775 = vrot.slane %v6484, 7
      %v6776 = vrot.slane %v6775, 4
      %v6793 = vld [vmem:[%s612 + $0x8] sm:$0x1]
      %v6794 = vsel %vm874, %v6746, %v6793
      %6795 = vst [vmem:[%s612 + $0x8] sm:$0x1] %v6794
      %v6796 = vld [vmem:[%s612 + $0x14] sm:$0x1]
      %v6797 = vsel %vm874, %v6748, %v6796
      %6798 = vst [vmem:[%s612 + $0x14] sm:$0x1] %v6797
      %v6799 = vld [vmem:[%s612 + $0x20] sm:$0x1]
      %v6800 = vsel %vm874, %v6750, %v6799
      %6801 = vst [vmem:[%s612 + $0x20] sm:$0x1] %v6800
      %v6802 = vld [vmem:[%s612 + $0x2c] sm:$0x1]
      %v6803 = vsel %vm874, %v6752, %v6802
      %6804 = vst [vmem:[%s612 + $0x2c] sm:$0x1] %v6803
      %v6805 = vld [vmem:[%s612 + $0x38] sm:$0x1]
      %v6806 = vsel %vm874, %v6754, %v6805
      %6807 = vst [vmem:[%s612 + $0x38] sm:$0x1] %v6806
      %v6808 = vld [vmem:[%s612 + $0x44] sm:$0x1]
      %v6809 = vsel %vm874, %v6756, %v6808
      %6810 = vst [vmem:[%s612 + $0x44] sm:$0x1] %v6809
      %v6811 = vld [vmem:[%s612 + $0x50] sm:$0x1]
      %v6812 = vsel %vm874, %v6758, %v6811
      %6813 = vst [vmem:[%s612 + $0x50] sm:$0x1] %v6812
      %v6814 = vld [vmem:[%s612 + $0x5c] sm:$0x1]
      %v6815 = vsel %vm874, %v6760, %v6814
      %6816 = vst [vmem:[%s612 + $0x5c] sm:$0x1] %v6815
      %v6817 = vld [vmem:[%s612 + $0x68] sm:$0x1]
      %v6818 = vsel %vm874, %v6762, %v6817
      %6819 = vst [vmem:[%s612 + $0x68] sm:$0x1] %v6818
      %v6820 = vld [vmem:[%s612 + $0x74] sm:$0x1]
      %v6821 = vsel %vm874, %v6764, %v6820
      %6822 = vst [vmem:[%s612 + $0x74] sm:$0x1] %v6821
      %v6823 = vld [vmem:[%s612 + $0x80] sm:$0x1]
      %v6824 = vsel %vm874, %v6766, %v6823
      %6825 = vst [vmem:[%s612 + $0x80] sm:$0x1] %v6824
      %v6826 = vld [vmem:[%s612 + $0x8c] sm:$0x1]
      %v6827 = vsel %vm874, %v6768, %v6826
      %6828 = vst [vmem:[%s612 + $0x8c] sm:$0x1] %v6827
      %v6829 = vld [vmem:[%s612 + $0x98] sm:$0x1]
      %v6830 = vsel %vm874, %v6770, %v6829
      %6831 = vst [vmem:[%s612 + $0x98] sm:$0x1] %v6830
      %v6832 = vld [vmem:[%s612 + $0xa4] sm:$0x1]
      %v6833 = vsel %vm874, %v6772, %v6832
      %6834 = vst [vmem:[%s612 + $0xa4] sm:$0x1] %v6833
      %v6835 = vld [vmem:[%s612 + $0xb0] sm:$0x1]
      %v6836 = vsel %vm874, %v6774, %v6835
      %6837 = vst [vmem:[%s612 + $0xb0] sm:$0x1] %v6836
      %v6838 = vld [vmem:[%s612 + $0xbc] sm:$0x1]
      %v6839 = vsel %vm874, %v6776, %v6838
      %6840 = vst [vmem:[%s612 + $0xbc] sm:$0x1] %v6839
      %v6841 = vld [vmem:[#allocation2] sm:$0xf]
      %v6842 = vsel %vm615, %v6240, %v6841
      %6843 = vst [vmem:[#allocation2] sm:$0xf] %v6842
      %6844 = vst [vmem:[#allocation2 + $0x4] sm:$0xf] %v6249
      %v6845 = vld [vmem:[#allocation2 + $0x8] sm:$0x1]
      %v6846 = vsel %vm621, %v6250, %v6845
      %6847 = vst [vmem:[#allocation2 + $0x8] sm:$0x1] %v6846
      %v6848 = vld [vmem:[#allocation2] sm:$0x1]
      %v6849 = vsel %vm621, %v6652, %v6848
      %6850 = vst [vmem:[#allocation2] sm:$0x1] %v6849
      %v6851 = vld [vmem:[#allocation2 + $0x8] sm:$0x1]
      %v6852 = vsel %vm874, %v6748, %v6851
      %6853 = vst [vmem:[#allocation2 + $0x8] sm:$0x1] %v6852
      %v6854 = vld [vmem:[%s992] sm:$0xf]
      %v6855 = vsel %vm615, %v6461, %v6854
      %6856 = vst [vmem:[%s992] sm:$0xf] %v6855
      %6857 = vst [vmem:[%s992 + $0x4] sm:$0xf] %v6470
      %v6858 = vld [vmem:[%s992 + $0x8] sm:$0x1]
      %v6859 = vsel %vm621, %v6471, %v6858
      %6860 = vst [vmem:[%s992 + $0x8] sm:$0x1] %v6859
      %v6861 = vld [vmem:[%s992] sm:$0x1]
      %v6862 = vsel %vm621, %v6678, %v6861
      %6863 = vst [vmem:[%s992] sm:$0x1] %v6862
      %v6864 = vld [vmem:[%s992 + $0x8] sm:$0x1]
      %v6865 = vsel %vm874, %v6774, %v6864
      %6866 = vst [vmem:[%s992 + $0x8] sm:$0x1] %v6865
      %v6867 = vld [vmem:[#allocation2] sm:$0xf]
      %v6868 = vld [vmem:[#allocation2 + $0x4] sm:$0xf]
      %v6869 = vld [vmem:[#allocation2 + $0xc] sm:$0xf]
      %v6870 = vld [vmem:[#allocation2 + $0x10] sm:$0xf]
      %v6871 = vld [vmem:[#allocation2 + $0x18] sm:$0xf]
      %v6872 = vld [vmem:[#allocation2 + $0x1c] sm:$0xf]
      %v6873 = vld [vmem:[#allocation2 + $0x24] sm:$0xf]
      %v6874 = vld [vmem:[#allocation2 + $0x28] sm:$0xf]
      %v6875 = vld [vmem:[#allocation2 + $0x30] sm:$0xf]
      %v6876 = vld [vmem:[#allocation2 + $0x34] sm:$0xf]
      %v6877 = vld [vmem:[#allocation2 + $0x3c] sm:$0xf]
      %v6878 = vld [vmem:[#allocation2 + $0x40] sm:$0xf]
      %v6879 = vld [vmem:[#allocation2 + $0x48] sm:$0xf]
      %v6880 = vld [vmem:[#allocation2 + $0x4c] sm:$0xf]
      %v6881 = vld [vmem:[#allocation2 + $0x54] sm:$0xf]
      %v6882 = vld [vmem:[#allocation2 + $0x58] sm:$0xf]
      %v6883 = vld [vmem:[#allocation2 + $0x60] sm:$0xf]
      %v6884 = vld [vmem:[#allocation2 + $0x64] sm:$0xf]
      %v6885 = vld [vmem:[#allocation2 + $0x6c] sm:$0xf]
      %v6886 = vld [vmem:[#allocation2 + $0x70] sm:$0xf]
      %v6887 = vld [vmem:[#allocation2 + $0x78] sm:$0xf]
      %v6888 = vld [vmem:[#allocation2 + $0x7c] sm:$0xf]
      %v6889 = vld [vmem:[#allocation2 + $0x84] sm:$0xf]
      %v6890 = vld [vmem:[#allocation2 + $0x88] sm:$0xf]
      %v6891 = vld [vmem:[#allocation2 + $0x90] sm:$0xf]
      %v6892 = vld [vmem:[#allocation2 + $0x94] sm:$0xf]
      %v6893 = vld [vmem:[#allocation2 + $0x9c] sm:$0xf]
      %v6894 = vld [vmem:[#allocation2 + $0xa0] sm:$0xf]
      %v6895 = vld [vmem:[#allocation2 + $0xa8] sm:$0xf]
      %v6896 = vld [vmem:[#allocation2 + $0xac] sm:$0xf]
      %v6897 = vld [vmem:[#allocation2 + $0xb4] sm:$0xf]
      %v6898 = vld [vmem:[#allocation2 + $0xb8] sm:$0xf]
      %v6899 = vld [vmem:[%s3] sm:$0xf]
      %v6900 = vld [vmem:[%s3 + $0x4] sm:$0xf]
      %v6901 = vld [vmem:[%s3 + $0x8] sm:$0xf]
      %v6902 = vld [vmem:[%s3 + $0xc] sm:$0xf]
      %v6903 = vld [vmem:[%s3 + $0x10] sm:$0xf]
      %v6904 = vld [vmem:[%s3 + $0x14] sm:$0xf]
      %v6905 = vld [vmem:[%s3 + $0x18] sm:$0xf]
      %v6906 = vld [vmem:[%s3 + $0x1c] sm:$0xf]
      %v6907 = vld [vmem:[%s3 + $0x20] sm:$0xf]
      %v6908 = vld [vmem:[%s3 + $0x24] sm:$0xf]
      %v6909 = vld [vmem:[%s3 + $0x28] sm:$0xf]
      %v6910 = vld [vmem:[%s3 + $0x2c] sm:$0xf]
      %v6911 = vld [vmem:[%s3 + $0x30] sm:$0xf]
      %v6912 = vld [vmem:[%s3 + $0x34] sm:$0xf]
      %v6913 = vld [vmem:[%s3 + $0x38] sm:$0xf]
      %v6914 = vld [vmem:[%s3 + $0x3c] sm:$0xf]
      %v6947 = vunpack.c.l.b16 %v6867
      %v6948 = vunpack.c.l.b16 %v6868
      %v6949 = vunpack.c.l.b16 %v6869
      %v6950 = vunpack.c.l.b16 %v6870
      %v6951 = vunpack.c.l.b16 %v6871
      %v6952 = vunpack.c.l.b16 %v6872
      %v6953 = vunpack.c.l.b16 %v6873
      %v6954 = vunpack.c.l.b16 %v6874
      %v6955 = vunpack.c.l.b16 %v6875
      %v6956 = vunpack.c.l.b16 %v6876
      %v6957 = vunpack.c.l.b16 %v6877
      %v6958 = vunpack.c.l.b16 %v6878
      %v6959 = vunpack.c.l.b16 %v6879
      %v6960 = vunpack.c.l.b16 %v6880
      %v6961 = vunpack.c.l.b16 %v6881
      %v6962 = vunpack.c.l.b16 %v6882
      %v6963 = vunpack.c.l.b16 %v6883
      %v6964 = vunpack.c.l.b16 %v6884
      %v6965 = vunpack.c.l.b16 %v6885
      %v6966 = vunpack.c.l.b16 %v6886
      %v6967 = vunpack.c.l.b16 %v6887
      %v6968 = vunpack.c.l.b16 %v6888
      %v6969 = vunpack.c.l.b16 %v6889
      %v6970 = vunpack.c.l.b16 %v6890
      %v6971 = vunpack.c.l.b16 %v6891
      %v6972 = vunpack.c.l.b16 %v6892
      %v6973 = vunpack.c.l.b16 %v6893
      %v6974 = vunpack.c.l.b16 %v6894
      %v6975 = vunpack.c.l.b16 %v6895
      %v6976 = vunpack.c.l.b16 %v6896
      %v6977 = vunpack.c.l.b16 %v6897
      %v6978 = vunpack.c.l.b16 %v6898
      %v6979 = vpack.c.b16 %v6948, %v6947
      %v6980 = vpack.c.b16 %v6950, %v6949
      %v6981 = vpack.c.b16 %v6952, %v6951
      %v6982 = vpack.c.b16 %v6954, %v6953
      %v6983 = vpack.c.b16 %v6956, %v6955
      %v6984 = vpack.c.b16 %v6958, %v6957
      %v6985 = vpack.c.b16 %v6960, %v6959
      %v6986 = vpack.c.b16 %v6962, %v6961
      %v6987 = vpack.c.b16 %v6964, %v6963
      %v6988 = vpack.c.b16 %v6966, %v6965
      %v6989 = vpack.c.b16 %v6968, %v6967
      %v6990 = vpack.c.b16 %v6970, %v6969
      %v6991 = vpack.c.b16 %v6972, %v6971
      %v6992 = vpack.c.b16 %v6974, %v6973
      %v6993 = vpack.c.b16 %v6976, %v6975
      %v6994 = vpack.c.b16 %v6978, %v6977
      %v7027 = vunpack.c.l.b16 %v6899
      %v7028 = vunpack.c.l.b16 %v6900
      %v7029 = vunpack.c.l.b16 %v6901
      %v7030 = vunpack.c.l.b16 %v6902
      %v7031 = vunpack.c.l.b16 %v6903
      %v7032 = vunpack.c.l.b16 %v6904
      %v7033 = vunpack.c.l.b16 %v6905
      %v7034 = vunpack.c.l.b16 %v6906
      %v7035 = vunpack.c.l.b16 %v6907
      %v7036 = vunpack.c.l.b16 %v6908
      %v7037 = vunpack.c.l.b16 %v6909
      %v7038 = vunpack.c.l.b16 %v6910
      %v7039 = vunpack.c.l.b16 %v6911
      %v7040 = vunpack.c.l.b16 %v6912
      %v7041 = vunpack.c.l.b16 %v6913
      %v7042 = vunpack.c.l.b16 %v6914
      %v7043 = vpack.c.b16 %v7028, %v7027
      %v7044 = vpack.c.b16 %v7030, %v7029
      %v7045 = vpack.c.b16 %v7032, %v7031
      %v7046 = vpack.c.b16 %v7034, %v7033
      %v7047 = vpack.c.b16 %v7036, %v7035
      %v7048 = vpack.c.b16 %v7038, %v7037
      %v7049 = vpack.c.b16 %v7040, %v7039
      %v7050 = vpack.c.b16 %v7042, %v7041
      %7059 = vmatpush.bf16.msra.mxu0 %v7050
      %7060 = vmatpush.bf16.msra.mxu0 %v7049
      %7061 = vmatpush.bf16.msra.mxu0 %v7048
      %7062 = vmatpush.bf16.msra.mxu0 %v7047
      %7063 = vmatpush.bf16.msra.mxu0 %v7046
      %7064 = vmatpush.bf16.msra.mxu0 %v7045
      %7065 = vmatpush.bf16.msra.mxu0 %v7044
      %7066 = vmatpush.bf16.msra.mxu0 %v7043
      %7067 = vmatmul.bf16.gmra.mxu0 %v6979
      %v7068 = vpop.f32.mrf.mxu0
      %v7069 = vadd.f32 0.0, %v7068
      %v7070 = vpop.f32.mrf.mxu0
      %v7071 = vadd.f32 0.0, %v7070
      %7072 = vmatmul.bf16.gmra.mxu0 %v6980
      %v7073 = vpop.f32.mrf.mxu0
      %v7074 = vadd.f32 0.0, %v7073
      %v7075 = vpop.f32.mrf.mxu0
      %v7076 = vadd.f32 0.0, %v7075
      %7077 = vmatmul.bf16.gmra.mxu0 %v6981
      %v7078 = vpop.f32.mrf.mxu0
      %v7079 = vadd.f32 0.0, %v7078
      %v7080 = vpop.f32.mrf.mxu0
      %v7081 = vadd.f32 0.0, %v7080
      %7082 = vmatmul.bf16.gmra.mxu0 %v6982
      %v7083 = vpop.f32.mrf.mxu0
      %v7084 = vadd.f32 0.0, %v7083
      %v7085 = vpop.f32.mrf.mxu0
      %v7086 = vadd.f32 0.0, %v7085
      %7087 = vmatmul.bf16.gmra.mxu0 %v6983
      %v7088 = vpop.f32.mrf.mxu0
      %v7089 = vadd.f32 0.0, %v7088
      %v7090 = vpop.f32.mrf.mxu0
      %v7091 = vadd.f32 0.0, %v7090
      %7092 = vmatmul.bf16.gmra.mxu0 %v6984
      %v7093 = vpop.f32.mrf.mxu0
      %v7094 = vadd.f32 0.0, %v7093
      %v7095 = vpop.f32.mrf.mxu0
      %v7096 = vadd.f32 0.0, %v7095
      %7097 = vmatmul.bf16.gmra.mxu0 %v6985
      %v7098 = vpop.f32.mrf.mxu0
      %v7099 = vadd.f32 0.0, %v7098
      %v7100 = vpop.f32.mrf.mxu0
      %v7101 = vadd.f32 0.0, %v7100
      %7102 = vmatmul.bf16.gmra.mxu0 %v6986
      %v7103 = vpop.f32.mrf.mxu0
      %v7104 = vadd.f32 0.0, %v7103
      %v7105 = vpop.f32.mrf.mxu0
      %v7106 = vadd.f32 0.0, %v7105
      %7107 = vmatmul.bf16.gmra.mxu0 %v6987
      %v7108 = vpop.f32.mrf.mxu0
      %v7109 = vadd.f32 0.0, %v7108
      %v7110 = vpop.f32.mrf.mxu0
      %v7111 = vadd.f32 0.0, %v7110
      %7112 = vmatmul.bf16.gmra.mxu0 %v6988
      %v7113 = vpop.f32.mrf.mxu0
      %v7114 = vadd.f32 0.0, %v7113
      %v7115 = vpop.f32.mrf.mxu0
      %v7116 = vadd.f32 0.0, %v7115
      %7117 = vmatmul.bf16.gmra.mxu0 %v6989
      %v7118 = vpop.f32.mrf.mxu0
      %v7119 = vadd.f32 0.0, %v7118
      %v7120 = vpop.f32.mrf.mxu0
      %v7121 = vadd.f32 0.0, %v7120
      %7122 = vmatmul.bf16.gmra.mxu0 %v6990
      %v7123 = vpop.f32.mrf.mxu0
      %v7124 = vadd.f32 0.0, %v7123
      %v7125 = vpop.f32.mrf.mxu0
      %v7126 = vadd.f32 0.0, %v7125
      %7127 = vmatmul.bf16.gmra.mxu0 %v6991
      %v7128 = vpop.f32.mrf.mxu0
      %v7129 = vadd.f32 0.0, %v7128
      %v7130 = vpop.f32.mrf.mxu0
      %v7131 = vadd.f32 0.0, %v7130
      %7132 = vmatmul.bf16.gmra.mxu0 %v6992
      %v7133 = vpop.f32.mrf.mxu0
      %v7134 = vadd.f32 0.0, %v7133
      %v7135 = vpop.f32.mrf.mxu0
      %v7136 = vadd.f32 0.0, %v7135
      %7137 = vmatmul.bf16.gmra.mxu0 %v6993
      %v7138 = vpop.f32.mrf.mxu0
      %v7139 = vadd.f32 0.0, %v7138
      %v7140 = vpop.f32.mrf.mxu0
      %v7141 = vadd.f32 0.0, %v7140
      %7142 = vmatmul.bf16.gmra.mxu0 %v6994
      %v7143 = vpop.f32.mrf.mxu0
      %v7144 = vadd.f32 0.0, %v7143
      %v7145 = vpop.f32.mrf.mxu0
      %v7146 = vadd.f32 0.0, %v7145
      %7147 = vdwg.mxu0
      %7148 = vst [vmem:[#allocation3] sm:$0xff] %v7069
      %7149 = vst [vmem:[#allocation3 + $0x8] sm:$0xff] %v7071
      %7150 = vst [vmem:[#allocation3 + $0x10] sm:$0xff] %v7074
      %7151 = vst [vmem:[#allocation3 + $0x18] sm:$0xff] %v7076
      %7152 = vst [vmem:[#allocation3 + $0x20] sm:$0xff] %v7079
      %7153 = vst [vmem:[#allocation3 + $0x28] sm:$0xff] %v7081
      %7154 = vst [vmem:[#allocation3 + $0x30] sm:$0xff] %v7084
      %7155 = vst [vmem:[#allocation3 + $0x38] sm:$0xff] %v7086
      %7156 = vst [vmem:[#allocation3 + $0x40] sm:$0xff] %v7089
      %7157 = vst [vmem:[#allocation3 + $0x48] sm:$0xff] %v7091
      %7158 = vst [vmem:[#allocation3 + $0x50] sm:$0xff] %v7094
      %7159 = vst [vmem:[#allocation3 + $0x58] sm:$0xff] %v7096
      %7160 = vst [vmem:[#allocation3 + $0x60] sm:$0xff] %v7099
      %7161 = vst [vmem:[#allocation3 + $0x68] sm:$0xff] %v7101
      %7162 = vst [vmem:[#allocation3 + $0x70] sm:$0xff] %v7104
      %7163 = vst [vmem:[#allocation3 + $0x78] sm:$0xff] %v7106
      %7164 = vst [vmem:[#allocation3 + $0x80] sm:$0xff] %v7109
      %7165 = vst [vmem:[#allocation3 + $0x88] sm:$0xff] %v7111
      %7166 = vst [vmem:[#allocation3 + $0x90] sm:$0xff] %v7114
      %7167 = vst [vmem:[#allocation3 + $0x98] sm:$0xff] %v7116
      %7168 = vst [vmem:[#allocation3 + $0xa0] sm:$0xff] %v7119
      %7169 = vst [vmem:[#allocation3 + $0xa8] sm:$0xff] %v7121
      %7170 = vst [vmem:[#allocation3 + $0xb0] sm:$0xff] %v7124
      %7171 = vst [vmem:[#allocation3 + $0xb8] sm:$0xff] %v7126
      %7172 = vst [vmem:[#allocation3 + $0xc0] sm:$0xff] %v7129
      %7173 = vst [vmem:[#allocation3 + $0xc8] sm:$0xff] %v7131
      %7174 = vst [vmem:[#allocation3 + $0xd0] sm:$0xff] %v7134
      %7175 = vst [vmem:[#allocation3 + $0xd8] sm:$0xff] %v7136
      %7176 = vst [vmem:[#allocation3 + $0xe0] sm:$0xff] %v7139
      %7177 = vst [vmem:[#allocation3 + $0xe8] sm:$0xff] %v7141
      %7178 = vst [vmem:[#allocation3 + $0xf0] sm:$0xff] %v7144
      %7179 = vst [vmem:[#allocation3 + $0xf8] sm:$0xff] %v7146
      %v7180 = vld [vmem:[#allocation2] sm:$0xf]
      %v7181 = vld [vmem:[#allocation2 + $0x4] sm:$0xf]
      %v7182 = vld [vmem:[#allocation2 + $0x8] sm:$0x1]
      %v7183 = vld [vmem:[#allocation2 + $0xc] sm:$0xf]
      %v7184 = vld [vmem:[#allocation2 + $0x10] sm:$0xf]
      %v7185 = vld [vmem:[#allocation2 + $0x14] sm:$0x1]
      %v7186 = vld [vmem:[#allocation2 + $0x18] sm:$0xf]
      %v7187 = vld [vmem:[#allocation2 + $0x1c] sm:$0xf]
      %v7188 = vld [vmem:[#allocation2 + $0x20] sm:$0x1]
      %v7189 = vld [vmem:[#allocation2 + $0x24] sm:$0xf]
      %v7190 = vld [vmem:[#allocation2 + $0x28] sm:$0xf]
      %v7191 = vld [vmem:[#allocation2 + $0x2c] sm:$0x1]
      %v7192 = vld [vmem:[#allocation2 + $0x30] sm:$0xf]
      %v7193 = vld [vmem:[#allocation2 + $0x34] sm:$0xf]
      %v7194 = vld [vmem:[#allocation2 + $0x38] sm:$0x1]
      %v7195 = vld [vmem:[#allocation2 + $0x3c] sm:$0xf]
      %v7196 = vld [vmem:[#allocation2 + $0x40] sm:$0xf]
      %v7197 = vld [vmem:[#allocation2 + $0x44] sm:$0x1]
      %v7198 = vld [vmem:[#allocation2 + $0x48] sm:$0xf]
      %v7199 = vld [vmem:[#allocation2 + $0x4c] sm:$0xf]
      %v7200 = vld [vmem:[#allocation2 + $0x50] sm:$0x1]
      %v7201 = vld [vmem:[#allocation2 + $0x54] sm:$0xf]
      %v7202 = vld [vmem:[#allocation2 + $0x58] sm:$0xf]
      %v7203 = vld [vmem:[#allocation2 + $0x5c] sm:$0x1]
      %v7204 = vld [vmem:[#allocation2 + $0x60] sm:$0xf]
      %v7205 = vld [vmem:[#allocation2 + $0x64] sm:$0xf]
      %v7206 = vld [vmem:[#allocation2 + $0x68] sm:$0x1]
      %v7207 = vld [vmem:[#allocation2 + $0x6c] sm:$0xf]
      %v7208 = vld [vmem:[#allocation2 + $0x70] sm:$0xf]
      %v7209 = vld [vmem:[#allocation2 + $0x74] sm:$0x1]
      %v7210 = vld [vmem:[#allocation2 + $0x78] sm:$0xf]
      %v7211 = vld [vmem:[#allocation2 + $0x7c] sm:$0xf]
      %v7212 = vld [vmem:[#allocation2 + $0x80] sm:$0x1]
      %v7213 = vld [vmem:[#allocation2 + $0x84] sm:$0xf]
      %v7214 = vld [vmem:[#allocation2 + $0x88] sm:$0xf]
      %v7215 = vld [vmem:[#allocation2 + $0x8c] sm:$0x1]
      %v7216 = vld [vmem:[#allocation2 + $0x90] sm:$0xf]
      %v7217 = vld [vmem:[#allocation2 + $0x94] sm:$0xf]
      %v7218 = vld [vmem:[#allocation2 + $0x98] sm:$0x1]
      %v7219 = vld [vmem:[#allocation2 + $0x9c] sm:$0xf]
      %v7220 = vld [vmem:[#allocation2 + $0xa0] sm:$0xf]
      %v7221 = vld [vmem:[#allocation2 + $0xa4] sm:$0x1]
      %v7222 = vld [vmem:[#allocation2 + $0xa8] sm:$0xf]
      %v7223 = vld [vmem:[#allocation2 + $0xac] sm:$0xf]
      %v7224 = vld [vmem:[#allocation2 + $0xb0] sm:$0x1]
      %v7225 = vld [vmem:[#allocation2 + $0xb4] sm:$0xf]
      %v7226 = vld [vmem:[#allocation2 + $0xb8] sm:$0xf]
      %v7227 = vld [vmem:[#allocation2 + $0xbc] sm:$0x1]
      %v7229 = vshrl.u32 %v7180, 16
      %v7231 = vrot.slane %v7229, 4
      %v7232 = vshll.u32 %v7180, 16
      %v7234 = vrot.slane %v7232, 5
      %v7235 = vor.u32 %v7231, %v7234
      %v7236 = vrot.slane %v7235, 4
      %v7238 = vshll.u32 %v7181, 16
      %v7240 = vrot.slane %v7238, 5
      %v7241 = vsel %vm1375, %v7236, %v7240
      %v7242 = vshrl.u32 %v7181, 16
      %v7244 = vrot.slane %v7242, 4
      %v7245 = vor.u32 %v7244, %v7240
      %v7246 = vrot.slane %v7245, 4
      %v7248 = vshll.u32 %v7182, 16
      %v7250 = vrot.slane %v7248, 5
      %v7251 = vsel %vm1375, %v7246, %v7250
      %v7253 = vshrl.u32 %v7183, 16
      %v7255 = vrot.slane %v7253, 4
      %v7256 = vshll.u32 %v7183, 16
      %v7258 = vrot.slane %v7256, 5
      %v7259 = vor.u32 %v7255, %v7258
      %v7260 = vrot.slane %v7259, 4
      %v7262 = vshll.u32 %v7184, 16
      %v7264 = vrot.slane %v7262, 5
      %v7265 = vsel %vm1375, %v7260, %v7264
      %v7266 = vshrl.u32 %v7184, 16
      %v7268 = vrot.slane %v7266, 4
      %v7269 = vor.u32 %v7268, %v7264
      %v7270 = vrot.slane %v7269, 4
      %v7272 = vshll.u32 %v7185, 16
      %v7274 = vrot.slane %v7272, 5
      %v7275 = vsel %vm1375, %v7270, %v7274
      %v7277 = vshrl.u32 %v7186, 16
      %v7279 = vrot.slane %v7277, 4
      %v7280 = vshll.u32 %v7186, 16
      %v7282 = vrot.slane %v7280, 5
      %v7283 = vor.u32 %v7279, %v7282
      %v7284 = vrot.slane %v7283, 4
      %v7286 = vshll.u32 %v7187, 16
      %v7288 = vrot.slane %v7286, 5
      %v7289 = vsel %vm1375, %v7284, %v7288
      %v7290 = vshrl.u32 %v7187, 16
      %v7292 = vrot.slane %v7290, 4
      %v7293 = vor.u32 %v7292, %v7288
      %v7294 = vrot.slane %v7293, 4
      %v7296 = vshll.u32 %v7188, 16
      %v7298 = vrot.slane %v7296, 5
      %v7299 = vsel %vm1375, %v7294, %v7298
      %v7301 = vshrl.u32 %v7189, 16
      %v7303 = vrot.slane %v7301, 4
      %v7304 = vshll.u32 %v7189, 16
      %v7306 = vrot.slane %v7304, 5
      %v7307 = vor.u32 %v7303, %v7306
      %v7308 = vrot.slane %v7307, 4
      %v7310 = vshll.u32 %v7190, 16
      %v7312 = vrot.slane %v7310, 5
      %v7313 = vsel %vm1375, %v7308, %v7312
      %v7314 = vshrl.u32 %v7190, 16
      %v7316 = vrot.slane %v7314, 4
      %v7317 = vor.u32 %v7316, %v7312
      %v7318 = vrot.slane %v7317, 4
      %v7320 = vshll.u32 %v7191, 16
      %v7322 = vrot.slane %v7320, 5
      %v7323 = vsel %vm1375, %v7318, %v7322
      %v7325 = vshrl.u32 %v7192, 16
      %v7327 = vrot.slane %v7325, 4
      %v7328 = vshll.u32 %v7192, 16
      %v7330 = vrot.slane %v7328, 5
      %v7331 = vor.u32 %v7327, %v7330
      %v7332 = vrot.slane %v7331, 4
      %v7334 = vshll.u32 %v7193, 16
      %v7336 = vrot.slane %v7334, 5
      %v7337 = vsel %vm1375, %v7332, %v7336
      %v7338 = vshrl.u32 %v7193, 16
      %v7340 = vrot.slane %v7338, 4
      %v7341 = vor.u32 %v7340, %v7336
      %v7342 = vrot.slane %v7341, 4
      %v7344 = vshll.u32 %v7194, 16
      %v7346 = vrot.slane %v7344, 5
      %v7347 = vsel %vm1375, %v7342, %v7346
      %v7349 = vshrl.u32 %v7195, 16
      %v7351 = vrot.slane %v7349, 4
      %v7352 = vshll.u32 %v7195, 16
      %v7354 = vrot.slane %v7352, 5
      %v7355 = vor.u32 %v7351, %v7354
      %v7356 = vrot.slane %v7355, 4
      %v7358 = vshll.u32 %v7196, 16
      %v7360 = vrot.slane %v7358, 5
      %v7361 = vsel %vm1375, %v7356, %v7360
      %v7362 = vshrl.u32 %v7196, 16
      %v7364 = vrot.slane %v7362, 4
      %v7365 = vor.u32 %v7364, %v7360
      %v7366 = vrot.slane %v7365, 4
      %v7368 = vshll.u32 %v7197, 16
      %v7370 = vrot.slane %v7368, 5
      %v7371 = vsel %vm1375, %v7366, %v7370
      %v7373 = vshrl.u32 %v7198, 16
      %v7375 = vrot.slane %v7373, 4
      %v7376 = vshll.u32 %v7198, 16
      %v7378 = vrot.slane %v7376, 5
      %v7379 = vor.u32 %v7375, %v7378
      %v7380 = vrot.slane %v7379, 4
      %v7382 = vshll.u32 %v7199, 16
      %v7384 = vrot.slane %v7382, 5
      %v7385 = vsel %vm1375, %v7380, %v7384
      %v7386 = vshrl.u32 %v7199, 16
      %v7388 = vrot.slane %v7386, 4
      %v7389 = vor.u32 %v7388, %v7384
      %v7390 = vrot.slane %v7389, 4
      %v7392 = vshll.u32 %v7200, 16
      %v7394 = vrot.slane %v7392, 5
      %v7395 = vsel %vm1375, %v7390, %v7394
      %v7397 = vshrl.u32 %v7201, 16
      %v7399 = vrot.slane %v7397, 4
      %v7400 = vshll.u32 %v7201, 16
      %v7402 = vrot.slane %v7400, 5
      %v7403 = vor.u32 %v7399, %v7402
      %v7404 = vrot.slane %v7403, 4
      %v7406 = vshll.u32 %v7202, 16
      %v7408 = vrot.slane %v7406, 5
      %v7409 = vsel %vm1375, %v7404, %v7408
      %v7410 = vshrl.u32 %v7202, 16
      %v7412 = vrot.slane %v7410, 4
      %v7413 = vor.u32 %v7412, %v7408
      %v7414 = vrot.slane %v7413, 4
      %v7416 = vshll.u32 %v7203, 16
      %v7418 = vrot.slane %v7416, 5
      %v7419 = vsel %vm1375, %v7414, %v7418
      %v7421 = vshrl.u32 %v7204, 16
      %v7423 = vrot.slane %v7421, 4
      %v7424 = vshll.u32 %v7204, 16
      %v7426 = vrot.slane %v7424, 5
      %v7427 = vor.u32 %v7423, %v7426
      %v7428 = vrot.slane %v7427, 4
      %v7430 = vshll.u32 %v7205, 16
      %v7432 = vrot.slane %v7430, 5
      %v7433 = vsel %vm1375, %v7428, %v7432
      %v7434 = vshrl.u32 %v7205, 16
      %v7436 = vrot.slane %v7434, 4
      %v7437 = vor.u32 %v7436, %v7432
      %v7438 = vrot.slane %v7437, 4
      %v7440 = vshll.u32 %v7206, 16
      %v7442 = vrot.slane %v7440, 5
      %v7443 = vsel %vm1375, %v7438, %v7442
      %v7445 = vshrl.u32 %v7207, 16
      %v7447 = vrot.slane %v7445, 4
      %v7448 = vshll.u32 %v7207, 16
      %v7450 = vrot.slane %v7448, 5
      %v7451 = vor.u32 %v7447, %v7450
      %v7452 = vrot.slane %v7451, 4
      %v7454 = vshll.u32 %v7208, 16
      %v7456 = vrot.slane %v7454, 5
      %v7457 = vsel %vm1375, %v7452, %v7456
      %v7458 = vshrl.u32 %v7208, 16
      %v7460 = vrot.slane %v7458, 4
      %v7461 = vor.u32 %v7460, %v7456
      %v7462 = vrot.slane %v7461, 4
      %v7464 = vshll.u32 %v7209, 16
      %v7466 = vrot.slane %v7464, 5
      %v7467 = vsel %vm1375, %v7462, %v7466
      %v7469 = vshrl.u32 %v7210, 16
      %v7471 = vrot.slane %v7469, 4
      %v7472 = vshll.u32 %v7210, 16
      %v7474 = vrot.slane %v7472, 5
      %v7475 = vor.u32 %v7471, %v7474
      %v7476 = vrot.slane %v7475, 4
      %v7478 = vshll.u32 %v7211, 16
      %v7480 = vrot.slane %v7478, 5
      %v7481 = vsel %vm1375, %v7476, %v7480
      %v7482 = vshrl.u32 %v7211, 16
      %v7484 = vrot.slane %v7482, 4
      %v7485 = vor.u32 %v7484, %v7480
      %v7486 = vrot.slane %v7485, 4
      %v7488 = vshll.u32 %v7212, 16
      %v7490 = vrot.slane %v7488, 5
      %v7491 = vsel %vm1375, %v7486, %v7490
      %v7493 = vshrl.u32 %v7213, 16
      %v7495 = vrot.slane %v7493, 4
      %v7496 = vshll.u32 %v7213, 16
      %v7498 = vrot.slane %v7496, 5
      %v7499 = vor.u32 %v7495, %v7498
      %v7500 = vrot.slane %v7499, 4
      %v7502 = vshll.u32 %v7214, 16
      %v7504 = vrot.slane %v7502, 5
      %v7505 = vsel %vm1375, %v7500, %v7504
      %v7506 = vshrl.u32 %v7214, 16
      %v7508 = vrot.slane %v7506, 4
      %v7509 = vor.u32 %v7508, %v7504
      %v7510 = vrot.slane %v7509, 4
      %v7512 = vshll.u32 %v7215, 16
      %v7514 = vrot.slane %v7512, 5
      %v7515 = vsel %vm1375, %v7510, %v7514
      %v7517 = vshrl.u32 %v7216, 16
      %v7519 = vrot.slane %v7517, 4
      %v7520 = vshll.u32 %v7216, 16
      %v7522 = vrot.slane %v7520, 5
      %v7523 = vor.u32 %v7519, %v7522
      %v7524 = vrot.slane %v7523, 4
      %v7526 = vshll.u32 %v7217, 16
      %v7528 = vrot.slane %v7526, 5
      %v7529 = vsel %vm1375, %v7524, %v7528
      %v7530 = vshrl.u32 %v7217, 16
      %v7532 = vrot.slane %v7530, 4
      %v7533 = vor.u32 %v7532, %v7528
      %v7534 = vrot.slane %v7533, 4
      %v7536 = vshll.u32 %v7218, 16
      %v7538 = vrot.slane %v7536, 5
      %v7539 = vsel %vm1375, %v7534, %v7538
      %v7541 = vshrl.u32 %v7219, 16
      %v7543 = vrot.slane %v7541, 4
      %v7544 = vshll.u32 %v7219, 16
      %v7546 = vrot.slane %v7544, 5
      %v7547 = vor.u32 %v7543, %v7546
      %v7548 = vrot.slane %v7547, 4
      %v7550 = vshll.u32 %v7220, 16
      %v7552 = vrot.slane %v7550, 5
      %v7553 = vsel %vm1375, %v7548, %v7552
      %v7554 = vshrl.u32 %v7220, 16
      %v7556 = vrot.slane %v7554, 4
      %v7557 = vor.u32 %v7556, %v7552
      %v7558 = vrot.slane %v7557, 4
      %v7560 = vshll.u32 %v7221, 16
      %v7562 = vrot.slane %v7560, 5
      %v7563 = vsel %vm1375, %v7558, %v7562
      %v7565 = vshrl.u32 %v7222, 16
      %v7567 = vrot.slane %v7565, 4
      %v7568 = vshll.u32 %v7222, 16
      %v7570 = vrot.slane %v7568, 5
      %v7571 = vor.u32 %v7567, %v7570
      %v7572 = vrot.slane %v7571, 4
      %v7574 = vshll.u32 %v7223, 16
      %v7576 = vrot.slane %v7574, 5
      %v7577 = vsel %vm1375, %v7572, %v7576
      %v7578 = vshrl.u32 %v7223, 16
      %v7580 = vrot.slane %v7578, 4
      %v7581 = vor.u32 %v7580, %v7576
      %v7582 = vrot.slane %v7581, 4
      %v7584 = vshll.u32 %v7224, 16
      %v7586 = vrot.slane %v7584, 5
      %v7587 = vsel %vm1375, %v7582, %v7586
      %v7589 = vshrl.u32 %v7225, 16
      %v7591 = vrot.slane %v7589, 4
      %v7592 = vshll.u32 %v7225, 16
      %v7594 = vrot.slane %v7592, 5
      %v7595 = vor.u32 %v7591, %v7594
      %v7596 = vrot.slane %v7595, 4
      %v7598 = vshll.u32 %v7226, 16
      %v7600 = vrot.slane %v7598, 5
      %v7601 = vsel %vm1375, %v7596, %v7600
      %v7602 = vshrl.u32 %v7226, 16
      %v7604 = vrot.slane %v7602, 4
      %v7605 = vor.u32 %v7604, %v7600
      %v7606 = vrot.slane %v7605, 4
      %v7608 = vshll.u32 %v7227, 16
      %v7610 = vrot.slane %v7608, 5
      %v7611 = vsel %vm1375, %v7606, %v7610
      %s7612 = scalar_lea.vmem %s3, 64
      %v7613 = vld [vmem:[%s7612] sm:$0xf]
      %v7614 = vld [vmem:[%s7612 + $0x4] sm:$0xf]
      %v7615 = vld [vmem:[%s7612 + $0x8] sm:$0xf]
      %v7616 = vld [vmem:[%s7612 + $0xc] sm:$0xf]
      %v7617 = vld [vmem:[%s7612 + $0x10] sm:$0xf]
      %v7618 = vld [vmem:[%s7612 + $0x14] sm:$0xf]
      %v7619 = vld [vmem:[%s7612 + $0x18] sm:$0xf]
      %v7620 = vld [vmem:[%s7612 + $0x1c] sm:$0xf]
      %v7621 = vld [vmem:[%s7612 + $0x20] sm:$0xf]
      %v7622 = vld [vmem:[%s7612 + $0x24] sm:$0xf]
      %v7623 = vld [vmem:[%s7612 + $0x28] sm:$0xf]
      %v7624 = vld [vmem:[%s7612 + $0x2c] sm:$0xf]
      %v7625 = vld [vmem:[%s7612 + $0x30] sm:$0xf]
      %v7626 = vld [vmem:[%s7612 + $0x34] sm:$0xf]
      %v7627 = vld [vmem:[%s7612 + $0x38] sm:$0xf]
      %v7628 = vld [vmem:[%s7612 + $0x3c] sm:$0xf]
      %v7629 = vunpack.c.l.b16 %v7241
      %v7630 = vunpack.c.l.b16 %v7251
      %v7631 = vunpack.c.l.b16 %v7265
      %v7632 = vunpack.c.l.b16 %v7275
      %v7633 = vunpack.c.l.b16 %v7289
      %v7634 = vunpack.c.l.b16 %v7299
      %v7635 = vunpack.c.l.b16 %v7313
      %v7636 = vunpack.c.l.b16 %v7323
      %v7637 = vunpack.c.l.b16 %v7337
      %v7638 = vunpack.c.l.b16 %v7347
      %v7639 = vunpack.c.l.b16 %v7361
      %v7640 = vunpack.c.l.b16 %v7371
      %v7641 = vunpack.c.l.b16 %v7385
      %v7642 = vunpack.c.l.b16 %v7395
      %v7643 = vunpack.c.l.b16 %v7409
      %v7644 = vunpack.c.l.b16 %v7419
      %v7645 = vunpack.c.l.b16 %v7433
      %v7646 = vunpack.c.l.b16 %v7443
      %v7647 = vunpack.c.l.b16 %v7457
      %v7648 = vunpack.c.l.b16 %v7467
      %v7649 = vunpack.c.l.b16 %v7481
      %v7650 = vunpack.c.l.b16 %v7491
      %v7651 = vunpack.c.l.b16 %v7505
      %v7652 = vunpack.c.l.b16 %v7515
      %v7653 = vunpack.c.l.b16 %v7529
      %v7654 = vunpack.c.l.b16 %v7539
      %v7655 = vunpack.c.l.b16 %v7553
      %v7656 = vunpack.c.l.b16 %v7563
      %v7657 = vunpack.c.l.b16 %v7577
      %v7658 = vunpack.c.l.b16 %v7587
      %v7659 = vunpack.c.l.b16 %v7601
      %v7660 = vunpack.c.l.b16 %v7611
      %v7661 = vpack.c.b16 %v7630, %v7629
      %v7662 = vpack.c.b16 %v7632, %v7631
      %v7663 = vpack.c.b16 %v7634, %v7633
      %v7664 = vpack.c.b16 %v7636, %v7635
      %v7665 = vpack.c.b16 %v7638, %v7637
      %v7666 = vpack.c.b16 %v7640, %v7639
      %v7667 = vpack.c.b16 %v7642, %v7641
      %v7668 = vpack.c.b16 %v7644, %v7643
      %v7669 = vpack.c.b16 %v7646, %v7645
      %v7670 = vpack.c.b16 %v7648, %v7647
      %v7671 = vpack.c.b16 %v7650, %v7649
      %v7672 = vpack.c.b16 %v7652, %v7651
      %v7673 = vpack.c.b16 %v7654, %v7653
      %v7674 = vpack.c.b16 %v7656, %v7655
      %v7675 = vpack.c.b16 %v7658, %v7657
      %v7676 = vpack.c.b16 %v7660, %v7659
      %v7709 = vunpack.c.l.b16 %v7613
      %v7710 = vunpack.c.l.b16 %v7614
      %v7711 = vunpack.c.l.b16 %v7615
      %v7712 = vunpack.c.l.b16 %v7616
      %v7713 = vunpack.c.l.b16 %v7617
      %v7714 = vunpack.c.l.b16 %v7618
      %v7715 = vunpack.c.l.b16 %v7619
      %v7716 = vunpack.c.l.b16 %v7620
      %v7717 = vunpack.c.l.b16 %v7621
      %v7718 = vunpack.c.l.b16 %v7622
      %v7719 = vunpack.c.l.b16 %v7623
      %v7720 = vunpack.c.l.b16 %v7624
      %v7721 = vunpack.c.l.b16 %v7625
      %v7722 = vunpack.c.l.b16 %v7626
      %v7723 = vunpack.c.l.b16 %v7627
      %v7724 = vunpack.c.l.b16 %v7628
      %v7725 = vpack.c.b16 %v7710, %v7709
      %v7726 = vpack.c.b16 %v7712, %v7711
      %v7727 = vpack.c.b16 %v7714, %v7713
      %v7728 = vpack.c.b16 %v7716, %v7715
      %v7729 = vpack.c.b16 %v7718, %v7717
      %v7730 = vpack.c.b16 %v7720, %v7719
      %v7731 = vpack.c.b16 %v7722, %v7721
      %v7732 = vpack.c.b16 %v7724, %v7723
      %7741 = vmatpush.bf16.msra.mxu0 %v7732
      %7742 = vmatpush.bf16.msra.mxu0 %v7731
      %7743 = vmatpush.bf16.msra.mxu0 %v7730
      %7744 = vmatpush.bf16.msra.mxu0 %v7729
      %7745 = vmatpush.bf16.msra.mxu0 %v7728
      %7746 = vmatpush.bf16.msra.mxu0 %v7727
      %7747 = vmatpush.bf16.msra.mxu0 %v7726
      %7748 = vmatpush.bf16.msra.mxu0 %v7725
      %7749 = vmatmul.bf16.gmra.mxu0 %v7661
      %v7750 = vpop.f32.mrf.mxu0
      %v7751 = vadd.f32 0.0, %v7750
      %v7752 = vpop.f32.mrf.mxu0
      %v7753 = vadd.f32 0.0, %v7752
      %7754 = vmatmul.bf16.gmra.mxu0 %v7662
      %v7755 = vpop.f32.mrf.mxu0
      %v7756 = vadd.f32 0.0, %v7755
      %v7757 = vpop.f32.mrf.mxu0
      %v7758 = vadd.f32 0.0, %v7757
      %7759 = vmatmul.bf16.gmra.mxu0 %v7663
      %v7760 = vpop.f32.mrf.mxu0
      %v7761 = vadd.f32 0.0, %v7760
      %v7762 = vpop.f32.mrf.mxu0
      %v7763 = vadd.f32 0.0, %v7762
      %7764 = vmatmul.bf16.gmra.mxu0 %v7664
      %v7765 = vpop.f32.mrf.mxu0
      %v7766 = vadd.f32 0.0, %v7765
      %v7767 = vpop.f32.mrf.mxu0
      %v7768 = vadd.f32 0.0, %v7767
      %7769 = vmatmul.bf16.gmra.mxu0 %v7665
      %v7770 = vpop.f32.mrf.mxu0
      %v7771 = vadd.f32 0.0, %v7770
      %v7772 = vpop.f32.mrf.mxu0
      %v7773 = vadd.f32 0.0, %v7772
      %7774 = vmatmul.bf16.gmra.mxu0 %v7666
      %v7775 = vpop.f32.mrf.mxu0
      %v7776 = vadd.f32 0.0, %v7775
      %v7777 = vpop.f32.mrf.mxu0
      %v7778 = vadd.f32 0.0, %v7777
      %7779 = vmatmul.bf16.gmra.mxu0 %v7667
      %v7780 = vpop.f32.mrf.mxu0
      %v7781 = vadd.f32 0.0, %v7780
      %v7782 = vpop.f32.mrf.mxu0
      %v7783 = vadd.f32 0.0, %v7782
      %7784 = vmatmul.bf16.gmra.mxu0 %v7668
      %v7785 = vpop.f32.mrf.mxu0
      %v7786 = vadd.f32 0.0, %v7785
      %v7787 = vpop.f32.mrf.mxu0
      %v7788 = vadd.f32 0.0, %v7787
      %7789 = vmatmul.bf16.gmra.mxu0 %v7669
      %v7790 = vpop.f32.mrf.mxu0
      %v7791 = vadd.f32 0.0, %v7790
      %v7792 = vpop.f32.mrf.mxu0
      %v7793 = vadd.f32 0.0, %v7792
      %7794 = vmatmul.bf16.gmra.mxu0 %v7670
      %v7795 = vpop.f32.mrf.mxu0
      %v7796 = vadd.f32 0.0, %v7795
      %v7797 = vpop.f32.mrf.mxu0
      %v7798 = vadd.f32 0.0, %v7797
      %7799 = vmatmul.bf16.gmra.mxu0 %v7671
      %v7800 = vpop.f32.mrf.mxu0
      %v7801 = vadd.f32 0.0, %v7800
      %v7802 = vpop.f32.mrf.mxu0
      %v7803 = vadd.f32 0.0, %v7802
      %7804 = vmatmul.bf16.gmra.mxu0 %v7672
      %v7805 = vpop.f32.mrf.mxu0
      %v7806 = vadd.f32 0.0, %v7805
      %v7807 = vpop.f32.mrf.mxu0
      %v7808 = vadd.f32 0.0, %v7807
      %7809 = vmatmul.bf16.gmra.mxu0 %v7673
      %v7810 = vpop.f32.mrf.mxu0
      %v7811 = vadd.f32 0.0, %v7810
      %v7812 = vpop.f32.mrf.mxu0
      %v7813 = vadd.f32 0.0, %v7812
      %7814 = vmatmul.bf16.gmra.mxu0 %v7674
      %v7815 = vpop.f32.mrf.mxu0
      %v7816 = vadd.f32 0.0, %v7815
      %v7817 = vpop.f32.mrf.mxu0
      %v7818 = vadd.f32 0.0, %v7817
      %7819 = vmatmul.bf16.gmra.mxu0 %v7675
      %v7820 = vpop.f32.mrf.mxu0
      %v7821 = vadd.f32 0.0, %v7820
      %v7822 = vpop.f32.mrf.mxu0
      %v7823 = vadd.f32 0.0, %v7822
      %7824 = vmatmul.bf16.gmra.mxu0 %v7676
      %v7825 = vpop.f32.mrf.mxu0
      %v7826 = vadd.f32 0.0, %v7825
      %v7827 = vpop.f32.mrf.mxu0
      %v7828 = vadd.f32 0.0, %v7827
      %7829 = vdwg.mxu0
      %v7830 = vld [vmem:[#allocation3] sm:$0xff]
      %v7831 = vld [vmem:[#allocation3 + $0x8] sm:$0xff]
      %v7832 = vld [vmem:[#allocation3 + $0x10] sm:$0xff]
      %v7833 = vld [vmem:[#allocation3 + $0x18] sm:$0xff]
      %v7834 = vld [vmem:[#allocation3 + $0x20] sm:$0xff]
      %v7835 = vld [vmem:[#allocation3 + $0x28] sm:$0xff]
      %v7836 = vld [vmem:[#allocation3 + $0x30] sm:$0xff]
      %v7837 = vld [vmem:[#allocation3 + $0x38] sm:$0xff]
      %v7838 = vld [vmem:[#allocation3 + $0x40] sm:$0xff]
      %v7839 = vld [vmem:[#allocation3 + $0x48] sm:$0xff]
      %v7840 = vld [vmem:[#allocation3 + $0x50] sm:$0xff]
      %v7841 = vld [vmem:[#allocation3 + $0x58] sm:$0xff]
      %v7842 = vld [vmem:[#allocation3 + $0x60] sm:$0xff]
      %v7843 = vld [vmem:[#allocation3 + $0x68] sm:$0xff]
      %v7844 = vld [vmem:[#allocation3 + $0x70] sm:$0xff]
      %v7845 = vld [vmem:[#allocation3 + $0x78] sm:$0xff]
      %v7846 = vld [vmem:[#allocation3 + $0x80] sm:$0xff]
      %v7847 = vld [vmem:[#allocation3 + $0x88] sm:$0xff]
      %v7848 = vld [vmem:[#allocation3 + $0x90] sm:$0xff]
      %v7849 = vld [vmem:[#allocation3 + $0x98] sm:$0xff]
      %v7850 = vld [vmem:[#allocation3 + $0xa0] sm:$0xff]
      %v7851 = vld [vmem:[#allocation3 + $0xa8] sm:$0xff]
      %v7852 = vld [vmem:[#allocation3 + $0xb0] sm:$0xff]
      %v7853 = vld [vmem:[#allocation3 + $0xb8] sm:$0xff]
      %v7854 = vld [vmem:[#allocation3 + $0xc0] sm:$0xff]
      %v7855 = vld [vmem:[#allocation3 + $0xc8] sm:$0xff]
      %v7856 = vld [vmem:[#allocation3 + $0xd0] sm:$0xff]
      %v7857 = vld [vmem:[#allocation3 + $0xd8] sm:$0xff]
      %v7858 = vld [vmem:[#allocation3 + $0xe0] sm:$0xff]
      %v7859 = vld [vmem:[#allocation3 + $0xe8] sm:$0xff]
      %v7860 = vld [vmem:[#allocation3 + $0xf0] sm:$0xff]
      %v7861 = vld [vmem:[#allocation3 + $0xf8] sm:$0xff]
      %v7862 = vadd.f32 %v7830, %v7751
      %v7863 = vadd.f32 %v7831, %v7753
      %v7864 = vadd.f32 %v7832, %v7756
      %v7865 = vadd.f32 %v7833, %v7758
      %v7866 = vadd.f32 %v7834, %v7761
      %v7867 = vadd.f32 %v7835, %v7763
      %v7868 = vadd.f32 %v7836, %v7766
      %v7869 = vadd.f32 %v7837, %v7768
      %v7870 = vadd.f32 %v7838, %v7771
      %v7871 = vadd.f32 %v7839, %v7773
      %v7872 = vadd.f32 %v7840, %v7776
      %v7873 = vadd.f32 %v7841, %v7778
      %v7874 = vadd.f32 %v7842, %v7781
      %v7875 = vadd.f32 %v7843, %v7783
      %v7876 = vadd.f32 %v7844, %v7786
      %v7877 = vadd.f32 %v7845, %v7788
      %v7878 = vadd.f32 %v7846, %v7791
      %v7879 = vadd.f32 %v7847, %v7793
      %v7880 = vadd.f32 %v7848, %v7796
      %v7881 = vadd.f32 %v7849, %v7798
      %v7882 = vadd.f32 %v7850, %v7801
      %v7883 = vadd.f32 %v7851, %v7803
      %v7884 = vadd.f32 %v7852, %v7806
      %v7885 = vadd.f32 %v7853, %v7808
      %v7886 = vadd.f32 %v7854, %v7811
      %v7887 = vadd.f32 %v7855, %v7813
      %v7888 = vadd.f32 %v7856, %v7816
      %v7889 = vadd.f32 %v7857, %v7818
      %v7890 = vadd.f32 %v7858, %v7821
      %v7891 = vadd.f32 %v7859, %v7823
      %v7892 = vadd.f32 %v7860, %v7826
      %v7893 = vadd.f32 %v7861, %v7828
      %7894 = vst [vmem:[#allocation3] sm:$0xff] %v7862
      %7895 = vst [vmem:[#allocation3 + $0x8] sm:$0xff] %v7863
      %7896 = vst [vmem:[#allocation3 + $0x10] sm:$0xff] %v7864
      %7897 = vst [vmem:[#allocation3 + $0x18] sm:$0xff] %v7865
      %7898 = vst [vmem:[#allocation3 + $0x20] sm:$0xff] %v7866
      %7899 = vst [vmem:[#allocation3 + $0x28] sm:$0xff] %v7867
      %7900 = vst [vmem:[#allocation3 + $0x30] sm:$0xff] %v7868
      %7901 = vst [vmem:[#allocation3 + $0x38] sm:$0xff] %v7869
      %7902 = vst [vmem:[#allocation3 + $0x40] sm:$0xff] %v7870
      %7903 = vst [vmem:[#allocation3 + $0x48] sm:$0xff] %v7871
      %7904 = vst [vmem:[#allocation3 + $0x50] sm:$0xff] %v7872
      %7905 = vst [vmem:[#allocation3 + $0x58] sm:$0xff] %v7873
      %7906 = vst [vmem:[#allocation3 + $0x60] sm:$0xff] %v7874
      %7907 = vst [vmem:[#allocation3 + $0x68] sm:$0xff] %v7875
      %7908 = vst [vmem:[#allocation3 + $0x70] sm:$0xff] %v7876
      %7909 = vst [vmem:[#allocation3 + $0x78] sm:$0xff] %v7877
      %7910 = vst [vmem:[#allocation3 + $0x80] sm:$0xff] %v7878
      %7911 = vst [vmem:[#allocation3 + $0x88] sm:$0xff] %v7879
      %7912 = vst [vmem:[#allocation3 + $0x90] sm:$0xff] %v7880
      %7913 = vst [vmem:[#allocation3 + $0x98] sm:$0xff] %v7881
      %7914 = vst [vmem:[#allocation3 + $0xa0] sm:$0xff] %v7882
      %7915 = vst [vmem:[#allocation3 + $0xa8] sm:$0xff] %v7883
      %7916 = vst [vmem:[#allocation3 + $0xb0] sm:$0xff] %v7884
      %7917 = vst [vmem:[#allocation3 + $0xb8] sm:$0xff] %v7885
      %7918 = vst [vmem:[#allocation3 + $0xc0] sm:$0xff] %v7886
      %7919 = vst [vmem:[#allocation3 + $0xc8] sm:$0xff] %v7887
      %7920 = vst [vmem:[#allocation3 + $0xd0] sm:$0xff] %v7888
      %7921 = vst [vmem:[#allocation3 + $0xd8] sm:$0xff] %v7889
      %7922 = vst [vmem:[#allocation3 + $0xe0] sm:$0xff] %v7890
      %7923 = vst [vmem:[#allocation3 + $0xe8] sm:$0xff] %v7891
      %7924 = vst [vmem:[#allocation3 + $0xf0] sm:$0xff] %v7892
      %7925 = vst [vmem:[#allocation3 + $0xf8] sm:$0xff] %v7893
      %v7926 = vld [vmem:[#allocation2] sm:$0xe]
      %v7927 = vld [vmem:[#allocation2 + $0x4] sm:$0xf]
      %v7928 = vld [vmem:[#allocation2 + $0x8] sm:$0x1]
      %v7929 = vld [vmem:[#allocation2 + $0xc] sm:$0xe]
      %v7930 = vld [vmem:[#allocation2 + $0x10] sm:$0xf]
      %v7931 = vld [vmem:[#allocation2 + $0x14] sm:$0x1]
      %v7932 = vld [vmem:[#allocation2 + $0x18] sm:$0xe]
      %v7933 = vld [vmem:[#allocation2 + $0x1c] sm:$0xf]
      %v7934 = vld [vmem:[#allocation2 + $0x20] sm:$0x1]
      %v7935 = vld [vmem:[#allocation2 + $0x24] sm:$0xe]
      %v7936 = vld [vmem:[#allocation2 + $0x28] sm:$0xf]
      %v7937 = vld [vmem:[#allocation2 + $0x2c] sm:$0x1]
      %v7938 = vld [vmem:[#allocation2 + $0x30] sm:$0xe]
      %v7939 = vld [vmem:[#allocation2 + $0x34] sm:$0xf]
      %v7940 = vld [vmem:[#allocation2 + $0x38] sm:$0x1]
      %v7941 = vld [vmem:[#allocation2 + $0x3c] sm:$0xe]
      %v7942 = vld [vmem:[#allocation2 + $0x40] sm:$0xf]
      %v7943 = vld [vmem:[#allocation2 + $0x44] sm:$0x1]
      %v7944 = vld [vmem:[#allocation2 + $0x48] sm:$0xe]
      %v7945 = vld [vmem:[#allocation2 + $0x4c] sm:$0xf]
      %v7946 = vld [vmem:[#allocation2 + $0x50] sm:$0x1]
      %v7947 = vld [vmem:[#allocation2 + $0x54] sm:$0xe]
      %v7948 = vld [vmem:[#allocation2 + $0x58] sm:$0xf]
      %v7949 = vld [vmem:[#allocation2 + $0x5c] sm:$0x1]
      %v7950 = vld [vmem:[#allocation2 + $0x60] sm:$0xe]
      %v7951 = vld [vmem:[#allocation2 + $0x64] sm:$0xf]
      %v7952 = vld [vmem:[#allocation2 + $0x68] sm:$0x1]
      %v7953 = vld [vmem:[#allocation2 + $0x6c] sm:$0xe]
      %v7954 = vld [vmem:[#allocation2 + $0x70] sm:$0xf]
      %v7955 = vld [vmem:[#allocation2 + $0x74] sm:$0x1]
      %v7956 = vld [vmem:[#allocation2 + $0x78] sm:$0xe]
      %v7957 = vld [vmem:[#allocation2 + $0x7c] sm:$0xf]
      %v7958 = vld [vmem:[#allocation2 + $0x80] sm:$0x1]
      %v7959 = vld [vmem:[#allocation2 + $0x84] sm:$0xe]
      %v7960 = vld [vmem:[#allocation2 + $0x88] sm:$0xf]
      %v7961 = vld [vmem:[#allocation2 + $0x8c] sm:$0x1]
      %v7962 = vld [vmem:[#allocation2 + $0x90] sm:$0xe]
      %v7963 = vld [vmem:[#allocation2 + $0x94] sm:$0xf]
      %v7964 = vld [vmem:[#allocation2 + $0x98] sm:$0x1]
      %v7965 = vld [vmem:[#allocation2 + $0x9c] sm:$0xe]
      %v7966 = vld [vmem:[#allocation2 + $0xa0] sm:$0xf]
      %v7967 = vld [vmem:[#allocation2 + $0xa4] sm:$0x1]
      %v7968 = vld [vmem:[#allocation2 + $0xa8] sm:$0xe]
      %v7969 = vld [vmem:[#allocation2 + $0xac] sm:$0xf]
      %v7970 = vld [vmem:[#allocation2 + $0xb0] sm:$0x1]
      %v7971 = vld [vmem:[#allocation2 + $0xb4] sm:$0xe]
      %v7972 = vld [vmem:[#allocation2 + $0xb8] sm:$0xf]
      %v7973 = vld [vmem:[#allocation2 + $0xbc] sm:$0x1]
      %v8022 = vrot.slane %v7926, 5
      %v8023 = vrot.slane %v8022, 4
      %v8024 = vrot.slane %v7927, 5
      %v8025 = vsel %vm2172, %v8023, %v8024
      %v8026 = vrot.slane %v8024, 4
      %v8027 = vrot.slane %v7928, 5
      %v8028 = vsel %vm2172, %v8026, %v8027
      %v8029 = vrot.slane %v7929, 5
      %v8030 = vrot.slane %v8029, 4
      %v8031 = vrot.slane %v7930, 5
      %v8032 = vsel %vm2172, %v8030, %v8031
      %v8033 = vrot.slane %v8031, 4
      %v8034 = vrot.slane %v7931, 5
      %v8035 = vsel %vm2172, %v8033, %v8034
      %v8036 = vrot.slane %v7932, 5
      %v8037 = vrot.slane %v8036, 4
      %v8038 = vrot.slane %v7933, 5
      %v8039 = vsel %vm2172, %v8037, %v8038
      %v8040 = vrot.slane %v8038, 4
      %v8041 = vrot.slane %v7934, 5
      %v8042 = vsel %vm2172, %v8040, %v8041
      %v8043 = vrot.slane %v7935, 5
      %v8044 = vrot.slane %v8043, 4
      %v8045 = vrot.slane %v7936, 5
      %v8046 = vsel %vm2172, %v8044, %v8045
      %v8047 = vrot.slane %v8045, 4
      %v8048 = vrot.slane %v7937, 5
      %v8049 = vsel %vm2172, %v8047, %v8048
      %v8050 = vrot.slane %v7938, 5
      %v8051 = vrot.slane %v8050, 4
      %v8052 = vrot.slane %v7939, 5
      %v8053 = vsel %vm2172, %v8051, %v8052
      %v8054 = vrot.slane %v8052, 4
      %v8055 = vrot.slane %v7940, 5
      %v8056 = vsel %vm2172, %v8054, %v8055
      %v8057 = vrot.slane %v7941, 5
      %v8058 = vrot.slane %v8057, 4
      %v8059 = vrot.slane %v7942, 5
      %v8060 = vsel %vm2172, %v8058, %v8059
      %v8061 = vrot.slane %v8059, 4
      %v8062 = vrot.slane %v7943, 5
      %v8063 = vsel %vm2172, %v8061, %v8062
      %v8064 = vrot.slane %v7944, 5
      %v8065 = vrot.slane %v8064, 4
      %v8066 = vrot.slane %v7945, 5
      %v8067 = vsel %vm2172, %v8065, %v8066
      %v8068 = vrot.slane %v8066, 4
      %v8069 = vrot.slane %v7946, 5
      %v8070 = vsel %vm2172, %v8068, %v8069
      %v8071 = vrot.slane %v7947, 5
      %v8072 = vrot.slane %v8071, 4
      %v8073 = vrot.slane %v7948, 5
      %v8074 = vsel %vm2172, %v8072, %v8073
      %v8075 = vrot.slane %v8073, 4
      %v8076 = vrot.slane %v7949, 5
      %v8077 = vsel %vm2172, %v8075, %v8076
      %v8078 = vrot.slane %v7950, 5
      %v8079 = vrot.slane %v8078, 4
      %v8080 = vrot.slane %v7951, 5
      %v8081 = vsel %vm2172, %v8079, %v8080
      %v8082 = vrot.slane %v8080, 4
      %v8083 = vrot.slane %v7952, 5
      %v8084 = vsel %vm2172, %v8082, %v8083
      %v8085 = vrot.slane %v7953, 5
      %v8086 = vrot.slane %v8085, 4
      %v8087 = vrot.slane %v7954, 5
      %v8088 = vsel %vm2172, %v8086, %v8087
      %v8089 = vrot.slane %v8087, 4
      %v8090 = vrot.slane %v7955, 5
      %v8091 = vsel %vm2172, %v8089, %v8090
      %v8092 = vrot.slane %v7956, 5
      %v8093 = vrot.slane %v8092, 4
      %v8094 = vrot.slane %v7957, 5
      %v8095 = vsel %vm2172, %v8093, %v8094
      %v8096 = vrot.slane %v8094, 4
      %v8097 = vrot.slane %v7958, 5
      %v8098 = vsel %vm2172, %v8096, %v8097
      %v8099 = vrot.slane %v7959, 5
      %v8100 = vrot.slane %v8099, 4
      %v8101 = vrot.slane %v7960, 5
      %v8102 = vsel %vm2172, %v8100, %v8101
      %v8103 = vrot.slane %v8101, 4
      %v8104 = vrot.slane %v7961, 5
      %v8105 = vsel %vm2172, %v8103, %v8104
      %v8106 = vrot.slane %v7962, 5
      %v8107 = vrot.slane %v8106, 4
      %v8108 = vrot.slane %v7963, 5
      %v8109 = vsel %vm2172, %v8107, %v8108
      %v8110 = vrot.slane %v8108, 4
      %v8111 = vrot.slane %v7964, 5
      %v8112 = vsel %vm2172, %v8110, %v8111
      %v8113 = vrot.slane %v7965, 5
      %v8114 = vrot.slane %v8113, 4
      %v8115 = vrot.slane %v7966, 5
      %v8116 = vsel %vm2172, %v8114, %v8115
      %v8117 = vrot.slane %v8115, 4
      %v8118 = vrot.slane %v7967, 5
      %v8119 = vsel %vm2172, %v8117, %v8118
      %v8120 = vrot.slane %v7968, 5
      %v8121 = vrot.slane %v8120, 4
      %v8122 = vrot.slane %v7969, 5
      %v8123 = vsel %vm2172, %v8121, %v8122
      %v8124 = vrot.slane %v8122, 4
      %v8125 = vrot.slane %v7970, 5
      %v8126 = vsel %vm2172, %v8124, %v8125
      %v8127 = vrot.slane %v7971, 5
      %v8128 = vrot.slane %v8127, 4
      %v8129 = vrot.slane %v7972, 5
      %v8130 = vsel %vm2172, %v8128, %v8129
      %v8131 = vrot.slane %v8129, 4
      %v8132 = vrot.slane %v7973, 5
      %v8133 = vsel %vm2172, %v8131, %v8132
      %s8134 = scalar_lea.vmem %s3, 128
      %v8135 = vld [vmem:[%s8134] sm:$0xf]
      %v8136 = vld [vmem:[%s8134 + $0x4] sm:$0xf]
      %v8137 = vld [vmem:[%s8134 + $0x8] sm:$0xf]
      %v8138 = vld [vmem:[%s8134 + $0xc] sm:$0xf]
      %v8139 = vld [vmem:[%s8134 + $0x10] sm:$0xf]
      %v8140 = vld [vmem:[%s8134 + $0x14] sm:$0xf]
      %v8141 = vld [vmem:[%s8134 + $0x18] sm:$0xf]
      %v8142 = vld [vmem:[%s8134 + $0x1c] sm:$0xf]
      %v8143 = vld [vmem:[%s8134 + $0x20] sm:$0xf]
      %v8144 = vld [vmem:[%s8134 + $0x24] sm:$0xf]
      %v8145 = vld [vmem:[%s8134 + $0x28] sm:$0xf]
      %v8146 = vld [vmem:[%s8134 + $0x2c] sm:$0xf]
      %v8147 = vld [vmem:[%s8134 + $0x30] sm:$0xf]
      %v8148 = vld [vmem:[%s8134 + $0x34] sm:$0xf]
      %v8149 = vld [vmem:[%s8134 + $0x38] sm:$0xf]
      %v8150 = vld [vmem:[%s8134 + $0x3c] sm:$0xf]
      %v8151 = vunpack.c.l.b16 %v8025
      %v8152 = vunpack.c.l.b16 %v8028
      %v8153 = vunpack.c.l.b16 %v8032
      %v8154 = vunpack.c.l.b16 %v8035
      %v8155 = vunpack.c.l.b16 %v8039
      %v8156 = vunpack.c.l.b16 %v8042
      %v8157 = vunpack.c.l.b16 %v8046
      %v8158 = vunpack.c.l.b16 %v8049
      %v8159 = vunpack.c.l.b16 %v8053
      %v8160 = vunpack.c.l.b16 %v8056
      %v8161 = vunpack.c.l.b16 %v8060
      %v8162 = vunpack.c.l.b16 %v8063
      %v8163 = vunpack.c.l.b16 %v8067
      %v8164 = vunpack.c.l.b16 %v8070
      %v8165 = vunpack.c.l.b16 %v8074
      %v8166 = vunpack.c.l.b16 %v8077
      %v8167 = vunpack.c.l.b16 %v8081
      %v8168 = vunpack.c.l.b16 %v8084
      %v8169 = vunpack.c.l.b16 %v8088
      %v8170 = vunpack.c.l.b16 %v8091
      %v8171 = vunpack.c.l.b16 %v8095
      %v8172 = vunpack.c.l.b16 %v8098
      %v8173 = vunpack.c.l.b16 %v8102
      %v8174 = vunpack.c.l.b16 %v8105
      %v8175 = vunpack.c.l.b16 %v8109
      %v8176 = vunpack.c.l.b16 %v8112
      %v8177 = vunpack.c.l.b16 %v8116
      %v8178 = vunpack.c.l.b16 %v8119
      %v8179 = vunpack.c.l.b16 %v8123
      %v8180 = vunpack.c.l.b16 %v8126
      %v8181 = vunpack.c.l.b16 %v8130
      %v8182 = vunpack.c.l.b16 %v8133
      %v8183 = vpack.c.b16 %v8152, %v8151
      %v8184 = vpack.c.b16 %v8154, %v8153
      %v8185 = vpack.c.b16 %v8156, %v8155
      %v8186 = vpack.c.b16 %v8158, %v8157
      %v8187 = vpack.c.b16 %v8160, %v8159
      %v8188 = vpack.c.b16 %v8162, %v8161
      %v8189 = vpack.c.b16 %v8164, %v8163
      %v8190 = vpack.c.b16 %v8166, %v8165
      %v8191 = vpack.c.b16 %v8168, %v8167
      %v8192 = vpack.c.b16 %v8170, %v8169
      %v8193 = vpack.c.b16 %v8172, %v8171
      %v8194 = vpack.c.b16 %v8174, %v8173
      %v8195 = vpack.c.b16 %v8176, %v8175
      %v8196 = vpack.c.b16 %v8178, %v8177
      %v8197 = vpack.c.b16 %v8180, %v8179
      %v8198 = vpack.c.b16 %v8182, %v8181
      %v8231 = vunpack.c.l.b16 %v8135
      %v8232 = vunpack.c.l.b16 %v8136
      %v8233 = vunpack.c.l.b16 %v8137
      %v8234 = vunpack.c.l.b16 %v8138
      %v8235 = vunpack.c.l.b16 %v8139
      %v8236 = vunpack.c.l.b16 %v8140
      %v8237 = vunpack.c.l.b16 %v8141
      %v8238 = vunpack.c.l.b16 %v8142
      %v8239 = vunpack.c.l.b16 %v8143
      %v8240 = vunpack.c.l.b16 %v8144
      %v8241 = vunpack.c.l.b16 %v8145
      %v8242 = vunpack.c.l.b16 %v8146
      %v8243 = vunpack.c.l.b16 %v8147
      %v8244 = vunpack.c.l.b16 %v8148
      %v8245 = vunpack.c.l.b16 %v8149
      %v8246 = vunpack.c.l.b16 %v8150
      %v8247 = vpack.c.b16 %v8232, %v8231
      %v8248 = vpack.c.b16 %v8234, %v8233
      %v8249 = vpack.c.b16 %v8236, %v8235
      %v8250 = vpack.c.b16 %v8238, %v8237
      %v8251 = vpack.c.b16 %v8240, %v8239
      %v8252 = vpack.c.b16 %v8242, %v8241
      %v8253 = vpack.c.b16 %v8244, %v8243
      %v8254 = vpack.c.b16 %v8246, %v8245
      %8263 = vmatpush.bf16.msra.mxu0 %v8254
      %8264 = vmatpush.bf16.msra.mxu0 %v8253
      %8265 = vmatpush.bf16.msra.mxu0 %v8252
      %8266 = vmatpush.bf16.msra.mxu0 %v8251
      %8267 = vmatpush.bf16.msra.mxu0 %v8250
      %8268 = vmatpush.bf16.msra.mxu0 %v8249
      %8269 = vmatpush.bf16.msra.mxu0 %v8248
      %8270 = vmatpush.bf16.msra.mxu0 %v8247
      %8271 = vmatmul.bf16.gmra.mxu0 %v8183
      %v8272 = vpop.f32.mrf.mxu0
      %v8273 = vadd.f32 0.0, %v8272
      %v8274 = vpop.f32.mrf.mxu0
      %v8275 = vadd.f32 0.0, %v8274
      %8276 = vmatmul.bf16.gmra.mxu0 %v8184
      %v8277 = vpop.f32.mrf.mxu0
      %v8278 = vadd.f32 0.0, %v8277
      %v8279 = vpop.f32.mrf.mxu0
      %v8280 = vadd.f32 0.0, %v8279
      %8281 = vmatmul.bf16.gmra.mxu0 %v8185
      %v8282 = vpop.f32.mrf.mxu0
      %v8283 = vadd.f32 0.0, %v8282
      %v8284 = vpop.f32.mrf.mxu0
      %v8285 = vadd.f32 0.0, %v8284
      %8286 = vmatmul.bf16.gmra.mxu0 %v8186
      %v8287 = vpop.f32.mrf.mxu0
      %v8288 = vadd.f32 0.0, %v8287
      %v8289 = vpop.f32.mrf.mxu0
      %v8290 = vadd.f32 0.0, %v8289
      %8291 = vmatmul.bf16.gmra.mxu0 %v8187
      %v8292 = vpop.f32.mrf.mxu0
      %v8293 = vadd.f32 0.0, %v8292
      %v8294 = vpop.f32.mrf.mxu0
      %v8295 = vadd.f32 0.0, %v8294
      %8296 = vmatmul.bf16.gmra.mxu0 %v8188
      %v8297 = vpop.f32.mrf.mxu0
      %v8298 = vadd.f32 0.0, %v8297
      %v8299 = vpop.f32.mrf.mxu0
      %v8300 = vadd.f32 0.0, %v8299
      %8301 = vmatmul.bf16.gmra.mxu0 %v8189
      %v8302 = vpop.f32.mrf.mxu0
      %v8303 = vadd.f32 0.0, %v8302
      %v8304 = vpop.f32.mrf.mxu0
      %v8305 = vadd.f32 0.0, %v8304
      %8306 = vmatmul.bf16.gmra.mxu0 %v8190
      %v8307 = vpop.f32.mrf.mxu0
      %v8308 = vadd.f32 0.0, %v8307
      %v8309 = vpop.f32.mrf.mxu0
      %v8310 = vadd.f32 0.0, %v8309
      %8311 = vmatmul.bf16.gmra.mxu0 %v8191
      %v8312 = vpop.f32.mrf.mxu0
      %v8313 = vadd.f32 0.0, %v8312
      %v8314 = vpop.f32.mrf.mxu0
      %v8315 = vadd.f32 0.0, %v8314
      %8316 = vmatmul.bf16.gmra.mxu0 %v8192
      %v8317 = vpop.f32.mrf.mxu0
      %v8318 = vadd.f32 0.0, %v8317
      %v8319 = vpop.f32.mrf.mxu0
      %v8320 = vadd.f32 0.0, %v8319
      %8321 = vmatmul.bf16.gmra.mxu0 %v8193
      %v8322 = vpop.f32.mrf.mxu0
      %v8323 = vadd.f32 0.0, %v8322
      %v8324 = vpop.f32.mrf.mxu0
      %v8325 = vadd.f32 0.0, %v8324
      %8326 = vmatmul.bf16.gmra.mxu0 %v8194
      %v8327 = vpop.f32.mrf.mxu0
      %v8328 = vadd.f32 0.0, %v8327
      %v8329 = vpop.f32.mrf.mxu0
      %v8330 = vadd.f32 0.0, %v8329
      %8331 = vmatmul.bf16.gmra.mxu0 %v8195
      %v8332 = vpop.f32.mrf.mxu0
      %v8333 = vadd.f32 0.0, %v8332
      %v8334 = vpop.f32.mrf.mxu0
      %v8335 = vadd.f32 0.0, %v8334
      %8336 = vmatmul.bf16.gmra.mxu0 %v8196
      %v8337 = vpop.f32.mrf.mxu0
      %v8338 = vadd.f32 0.0, %v8337
      %v8339 = vpop.f32.mrf.mxu0
      %v8340 = vadd.f32 0.0, %v8339
      %8341 = vmatmul.bf16.gmra.mxu0 %v8197
      %v8342 = vpop.f32.mrf.mxu0
      %v8343 = vadd.f32 0.0, %v8342
      %v8344 = vpop.f32.mrf.mxu0
      %v8345 = vadd.f32 0.0, %v8344
      %8346 = vmatmul.bf16.gmra.mxu0 %v8198
      %v8347 = vpop.f32.mrf.mxu0
      %v8348 = vadd.f32 0.0, %v8347
      %v8349 = vpop.f32.mrf.mxu0
      %v8350 = vadd.f32 0.0, %v8349
      %8351 = vdwg.mxu0
      %v8352 = vld [vmem:[#allocation3] sm:$0xff]
      %v8353 = vld [vmem:[#allocation3 + $0x8] sm:$0xff]
      %v8354 = vld [vmem:[#allocation3 + $0x10] sm:$0xff]
      %v8355 = vld [vmem:[#allocation3 + $0x18] sm:$0xff]
      %v8356 = vld [vmem:[#allocation3 + $0x20] sm:$0xff]
      %v8357 = vld [vmem:[#allocation3 + $0x28] sm:$0xff]
      %v8358 = vld [vmem:[#allocation3 + $0x30] sm:$0xff]
      %v8359 = vld [vmem:[#allocation3 + $0x38] sm:$0xff]
      %v8360 = vld [vmem:[#allocation3 + $0x40] sm:$0xff]
      %v8361 = vld [vmem:[#allocation3 + $0x48] sm:$0xff]
      %v8362 = vld [vmem:[#allocation3 + $0x50] sm:$0xff]
      %v8363 = vld [vmem:[#allocation3 + $0x58] sm:$0xff]
      %v8364 = vld [vmem:[#allocation3 + $0x60] sm:$0xff]
      %v8365 = vld [vmem:[#allocation3 + $0x68] sm:$0xff]
      %v8366 = vld [vmem:[#allocation3 + $0x70] sm:$0xff]
      %v8367 = vld [vmem:[#allocation3 + $0x78] sm:$0xff]
      %v8368 = vld [vmem:[#allocation3 + $0x80] sm:$0xff]
      %v8369 = vld [vmem:[#allocation3 + $0x88] sm:$0xff]
      %v8370 = vld [vmem:[#allocation3 + $0x90] sm:$0xff]
      %v8371 = vld [vmem:[#allocation3 + $0x98] sm:$0xff]
      %v8372 = vld [vmem:[#allocation3 + $0xa0] sm:$0xff]
      %v8373 = vld [vmem:[#allocation3 + $0xa8] sm:$0xff]
      %v8374 = vld [vmem:[#allocation3 + $0xb0] sm:$0xff]
      %v8375 = vld [vmem:[#allocation3 + $0xb8] sm:$0xff]
      %v8376 = vld [vmem:[#allocation3 + $0xc0] sm:$0xff]
      %v8377 = vld [vmem:[#allocation3 + $0xc8] sm:$0xff]
      %v8378 = vld [vmem:[#allocation3 + $0xd0] sm:$0xff]
      %v8379 = vld [vmem:[#allocation3 + $0xd8] sm:$0xff]
      %v8380 = vld [vmem:[#allocation3 + $0xe0] sm:$0xff]
      %v8381 = vld [vmem:[#allocation3 + $0xe8] sm:$0xff]
      %v8382 = vld [vmem:[#allocation3 + $0xf0] sm:$0xff]
      %v8383 = vld [vmem:[#allocation3 + $0xf8] sm:$0xff]
      %v8384 = vadd.f32 %v8352, %v8273
      %v8385 = vadd.f32 %v8353, %v8275
      %v8386 = vadd.f32 %v8354, %v8278
      %v8387 = vadd.f32 %v8355, %v8280
      %v8388 = vadd.f32 %v8356, %v8283
      %v8389 = vadd.f32 %v8357, %v8285
      %v8390 = vadd.f32 %v8358, %v8288
      %v8391 = vadd.f32 %v8359, %v8290
      %v8392 = vadd.f32 %v8360, %v8293
      %v8393 = vadd.f32 %v8361, %v8295
      %v8394 = vadd.f32 %v8362, %v8298
      %v8395 = vadd.f32 %v8363, %v8300
      %v8396 = vadd.f32 %v8364, %v8303
      %v8397 = vadd.f32 %v8365, %v8305
      %v8398 = vadd.f32 %v8366, %v8308
      %v8399 = vadd.f32 %v8367, %v8310
      %v8400 = vadd.f32 %v8368, %v8313
      %v8401 = vadd.f32 %v8369, %v8315
      %v8402 = vadd.f32 %v8370, %v8318
      %v8403 = vadd.f32 %v8371, %v8320
      %v8404 = vadd.f32 %v8372, %v8323
      %v8405 = vadd.f32 %v8373, %v8325
      %v8406 = vadd.f32 %v8374, %v8328
      %v8407 = vadd.f32 %v8375, %v8330
      %v8408 = vadd.f32 %v8376, %v8333
      %v8409 = vadd.f32 %v8377, %v8335
      %v8410 = vadd.f32 %v8378, %v8338
      %v8411 = vadd.f32 %v8379, %v8340
      %v8412 = vadd.f32 %v8380, %v8343
      %v8413 = vadd.f32 %v8381, %v8345
      %v8414 = vadd.f32 %v8382, %v8348
      %v8415 = vadd.f32 %v8383, %v8350
      %8416 = vst [vmem:[#allocation3] sm:$0xff] %v8384
      %8417 = vst [vmem:[#allocation3 + $0x8] sm:$0xff] %v8385
      %8418 = vst [vmem:[#allocation3 + $0x10] sm:$0xff] %v8386
      %8419 = vst [vmem:[#allocation3 + $0x18] sm:$0xff] %v8387
      %8420 = vst [vmem:[#allocation3 + $0x20] sm:$0xff] %v8388
      %8421 = vst [vmem:[#allocation3 + $0x28] sm:$0xff] %v8389
      %8422 = vst [vmem:[#allocation3 + $0x30] sm:$0xff] %v8390
      %8423 = vst [vmem:[#allocation3 + $0x38] sm:$0xff] %v8391
      %8424 = vst [vmem:[#allocation3 + $0x40] sm:$0xff] %v8392
      %8425 = vst [vmem:[#allocation3 + $0x48] sm:$0xff] %v8393
      %8426 = vst [vmem:[#allocation3 + $0x50] sm:$0xff] %v8394
      %8427 = vst [vmem:[#allocation3 + $0x58] sm:$0xff] %v8395
      %8428 = vst [vmem:[#allocation3 + $0x60] sm:$0xff] %v8396
      %8429 = vst [vmem:[#allocation3 + $0x68] sm:$0xff] %v8397
      %8430 = vst [vmem:[#allocation3 + $0x70] sm:$0xff] %v8398
      %8431 = vst [vmem:[#allocation3 + $0x78] sm:$0xff] %v8399
      %8432 = vst [vmem:[#allocation3 + $0x80] sm:$0xff] %v8400
      %8433 = vst [vmem:[#allocation3 + $0x88] sm:$0xff] %v8401
      %8434 = vst [vmem:[#allocation3 + $0x90] sm:$0xff] %v8402
      %8435 = vst [vmem:[#allocation3 + $0x98] sm:$0xff] %v8403
      %8436 = vst [vmem:[#allocation3 + $0xa0] sm:$0xff] %v8404
      %8437 = vst [vmem:[#allocation3 + $0xa8] sm:$0xff] %v8405
      %8438 = vst [vmem:[#allocation3 + $0xb0] sm:$0xff] %v8406
      %8439 = vst [vmem:[#allocation3 + $0xb8] sm:$0xff] %v8407
      %8440 = vst [vmem:[#allocation3 + $0xc0] sm:$0xff] %v8408
      %8441 = vst [vmem:[#allocation3 + $0xc8] sm:$0xff] %v8409
      %8442 = vst [vmem:[#allocation3 + $0xd0] sm:$0xff] %v8410
      %8443 = vst [vmem:[#allocation3 + $0xd8] sm:$0xff] %v8411
      %8444 = vst [vmem:[#allocation3 + $0xe0] sm:$0xff] %v8412
      %8445 = vst [vmem:[#allocation3 + $0xe8] sm:$0xff] %v8413
      %8446 = vst [vmem:[#allocation3 + $0xf0] sm:$0xff] %v8414
      %8447 = vst [vmem:[#allocation3 + $0xf8] sm:$0xff] %v8415
      %v8448 = vld [vmem:[%s612] sm:$0xf]
      %v8449 = vld [vmem:[%s612 + $0x4] sm:$0xf]
      %v8450 = vld [vmem:[%s612 + $0xc] sm:$0xf]
      %v8451 = vld [vmem:[%s612 + $0x10] sm:$0xf]
      %v8452 = vld [vmem:[%s612 + $0x18] sm:$0xf]
      %v8453 = vld [vmem:[%s612 + $0x1c] sm:$0xf]
      %v8454 = vld [vmem:[%s612 + $0x24] sm:$0xf]
      %v8455 = vld [vmem:[%s612 + $0x28] sm:$0xf]
      %v8456 = vld [vmem:[%s612 + $0x30] sm:$0xf]
      %v8457 = vld [vmem:[%s612 + $0x34] sm:$0xf]
      %v8458 = vld [vmem:[%s612 + $0x3c] sm:$0xf]
      %v8459 = vld [vmem:[%s612 + $0x40] sm:$0xf]
      %v8460 = vld [vmem:[%s612 + $0x48] sm:$0xf]
      %v8461 = vld [vmem:[%s612 + $0x4c] sm:$0xf]
      %v8462 = vld [vmem:[%s612 + $0x54] sm:$0xf]
      %v8463 = vld [vmem:[%s612 + $0x58] sm:$0xf]
      %v8464 = vld [vmem:[%s612 + $0x60] sm:$0xf]
      %v8465 = vld [vmem:[%s612 + $0x64] sm:$0xf]
      %v8466 = vld [vmem:[%s612 + $0x6c] sm:$0xf]
      %v8467 = vld [vmem:[%s612 + $0x70] sm:$0xf]
      %v8468 = vld [vmem:[%s612 + $0x78] sm:$0xf]
      %v8469 = vld [vmem:[%s612 + $0x7c] sm:$0xf]
      %v8470 = vld [vmem:[%s612 + $0x84] sm:$0xf]
      %v8471 = vld [vmem:[%s612 + $0x88] sm:$0xf]
      %v8472 = vld [vmem:[%s612 + $0x90] sm:$0xf]
      %v8473 = vld [vmem:[%s612 + $0x94] sm:$0xf]
      %v8474 = vld [vmem:[%s612 + $0x9c] sm:$0xf]
      %v8475 = vld [vmem:[%s612 + $0xa0] sm:$0xf]
      %v8476 = vld [vmem:[%s612 + $0xa8] sm:$0xf]
      %v8477 = vld [vmem:[%s612 + $0xac] sm:$0xf]
      %v8478 = vld [vmem:[%s612 + $0xb4] sm:$0xf]
      %v8479 = vld [vmem:[%s612 + $0xb8] sm:$0xf]
      %s8480 = scalar_lea.vmem %s3, 192
      %v8481 = vld [vmem:[%s8480] sm:$0xf]
      %v8482 = vld [vmem:[%s8480 + $0x4] sm:$0xf]
      %v8483 = vld [vmem:[%s8480 + $0x8] sm:$0xf]
      %v8484 = vld [vmem:[%s8480 + $0xc] sm:$0xf]
      %v8485 = vld [vmem:[%s8480 + $0x10] sm:$0xf]
      %v8486 = vld [vmem:[%s8480 + $0x14] sm:$0xf]
      %v8487 = vld [vmem:[%s8480 + $0x18] sm:$0xf]
      %v8488 = vld [vmem:[%s8480 + $0x1c] sm:$0xf]
      %v8489 = vld [vmem:[%s8480 + $0x20] sm:$0xf]
      %v8490 = vld [vmem:[%s8480 + $0x24] sm:$0xf]
      %v8491 = vld [vmem:[%s8480 + $0x28] sm:$0xf]
      %v8492 = vld [vmem:[%s8480 + $0x2c] sm:$0xf]
      %v8493 = vld [vmem:[%s8480 + $0x30] sm:$0xf]
      %v8494 = vld [vmem:[%s8480 + $0x34] sm:$0xf]
      %v8495 = vld [vmem:[%s8480 + $0x38] sm:$0xf]
      %v8496 = vld [vmem:[%s8480 + $0x3c] sm:$0xf]
      %v8529 = vunpack.c.l.b16 %v8448
      %v8530 = vunpack.c.l.b16 %v8449
      %v8531 = vunpack.c.l.b16 %v8450
      %v8532 = vunpack.c.l.b16 %v8451
      %v8533 = vunpack.c.l.b16 %v8452
      %v8534 = vunpack.c.l.b16 %v8453
      %v8535 = vunpack.c.l.b16 %v8454
      %v8536 = vunpack.c.l.b16 %v8455
      %v8537 = vunpack.c.l.b16 %v8456
      %v8538 = vunpack.c.l.b16 %v8457
      %v8539 = vunpack.c.l.b16 %v8458
      %v8540 = vunpack.c.l.b16 %v8459
      %v8541 = vunpack.c.l.b16 %v8460
      %v8542 = vunpack.c.l.b16 %v8461
      %v8543 = vunpack.c.l.b16 %v8462
      %v8544 = vunpack.c.l.b16 %v8463
      %v8545 = vunpack.c.l.b16 %v8464
      %v8546 = vunpack.c.l.b16 %v8465
      %v8547 = vunpack.c.l.b16 %v8466
      %v8548 = vunpack.c.l.b16 %v8467
      %v8549 = vunpack.c.l.b16 %v8468
      %v8550 = vunpack.c.l.b16 %v8469
      %v8551 = vunpack.c.l.b16 %v8470
      %v8552 = vunpack.c.l.b16 %v8471
      %v8553 = vunpack.c.l.b16 %v8472
      %v8554 = vunpack.c.l.b16 %v8473
      %v8555 = vunpack.c.l.b16 %v8474
      %v8556 = vunpack.c.l.b16 %v8475
      %v8557 = vunpack.c.l.b16 %v8476
      %v8558 = vunpack.c.l.b16 %v8477
      %v8559 = vunpack.c.l.b16 %v8478
      %v8560 = vunpack.c.l.b16 %v8479
      %v8561 = vpack.c.b16 %v8530, %v8529
      %v8562 = vpack.c.b16 %v8532, %v8531
      %v8563 = vpack.c.b16 %v8534, %v8533
      %v8564 = vpack.c.b16 %v8536, %v8535
      %v8565 = vpack.c.b16 %v8538, %v8537
      %v8566 = vpack.c.b16 %v8540, %v8539
      %v8567 = vpack.c.b16 %v8542, %v8541
      %v8568 = vpack.c.b16 %v8544, %v8543
      %v8569 = vpack.c.b16 %v8546, %v8545
      %v8570 = vpack.c.b16 %v8548, %v8547
      %v8571 = vpack.c.b16 %v8550, %v8549
      %v8572 = vpack.c.b16 %v8552, %v8551
      %v8573 = vpack.c.b16 %v8554, %v8553
      %v8574 = vpack.c.b16 %v8556, %v8555
      %v8575 = vpack.c.b16 %v8558, %v8557
      %v8576 = vpack.c.b16 %v8560, %v8559
      %v8609 = vunpack.c.l.b16 %v8481
      %v8610 = vunpack.c.l.b16 %v8482
      %v8611 = vunpack.c.l.b16 %v8483
      %v8612 = vunpack.c.l.b16 %v8484
      %v8613 = vunpack.c.l.b16 %v8485
      %v8614 = vunpack.c.l.b16 %v8486
      %v8615 = vunpack.c.l.b16 %v8487
      %v8616 = vunpack.c.l.b16 %v8488
      %v8617 = vunpack.c.l.b16 %v8489
      %v8618 = vunpack.c.l.b16 %v8490
      %v8619 = vunpack.c.l.b16 %v8491
      %v8620 = vunpack.c.l.b16 %v8492
      %v8621 = vunpack.c.l.b16 %v8493
      %v8622 = vunpack.c.l.b16 %v8494
      %v8623 = vunpack.c.l.b16 %v8495
      %v8624 = vunpack.c.l.b16 %v8496
      %v8625 = vpack.c.b16 %v8610, %v8609
      %v8626 = vpack.c.b16 %v8612, %v8611
      %v8627 = vpack.c.b16 %v8614, %v8613
      %v8628 = vpack.c.b16 %v8616, %v8615
      %v8629 = vpack.c.b16 %v8618, %v8617
      %v8630 = vpack.c.b16 %v8620, %v8619
      %v8631 = vpack.c.b16 %v8622, %v8621
      %v8632 = vpack.c.b16 %v8624, %v8623
      %8641 = vmatpush.bf16.msra.mxu0 %v8632
      %8642 = vmatpush.bf16.msra.mxu0 %v8631
      %8643 = vmatpush.bf16.msra.mxu0 %v8630
      %8644 = vmatpush.bf16.msra.mxu0 %v8629
      %8645 = vmatpush.bf16.msra.mxu0 %v8628
      %8646 = vmatpush.bf16.msra.mxu0 %v8627
      %8647 = vmatpush.bf16.msra.mxu0 %v8626
      %8648 = vmatpush.bf16.msra.mxu0 %v8625
      %8649 = vmatmul.bf16.gmra.mxu0 %v8561
      %v8650 = vpop.f32.mrf.mxu0
      %v8651 = vadd.f32 0.0, %v8650
      %v8652 = vpop.f32.mrf.mxu0
      %v8653 = vadd.f32 0.0, %v8652
      %8654 = vmatmul.bf16.gmra.mxu0 %v8562
      %v8655 = vpop.f32.mrf.mxu0
      %v8656 = vadd.f32 0.0, %v8655
      %v8657 = vpop.f32.mrf.mxu0
      %v8658 = vadd.f32 0.0, %v8657
      %8659 = vmatmul.bf16.gmra.mxu0 %v8563
      %v8660 = vpop.f32.mrf.mxu0
      %v8661 = vadd.f32 0.0, %v8660
      %v8662 = vpop.f32.mrf.mxu0
      %v8663 = vadd.f32 0.0, %v8662
      %8664 = vmatmul.bf16.gmra.mxu0 %v8564
      %v8665 = vpop.f32.mrf.mxu0
      %v8666 = vadd.f32 0.0, %v8665
      %v8667 = vpop.f32.mrf.mxu0
      %v8668 = vadd.f32 0.0, %v8667
      %8669 = vmatmul.bf16.gmra.mxu0 %v8565
      %v8670 = vpop.f32.mrf.mxu0
      %v8671 = vadd.f32 0.0, %v8670
      %v8672 = vpop.f32.mrf.mxu0
      %v8673 = vadd.f32 0.0, %v8672
      %8674 = vmatmul.bf16.gmra.mxu0 %v8566
      %v8675 = vpop.f32.mrf.mxu0
      %v8676 = vadd.f32 0.0, %v8675
      %v8677 = vpop.f32.mrf.mxu0
      %v8678 = vadd.f32 0.0, %v8677
      %8679 = vmatmul.bf16.gmra.mxu0 %v8567
      %v8680 = vpop.f32.mrf.mxu0
      %v8681 = vadd.f32 0.0, %v8680
      %v8682 = vpop.f32.mrf.mxu0
      %v8683 = vadd.f32 0.0, %v8682
      %8684 = vmatmul.bf16.gmra.mxu0 %v8568
      %v8685 = vpop.f32.mrf.mxu0
      %v8686 = vadd.f32 0.0, %v8685
      %v8687 = vpop.f32.mrf.mxu0
      %v8688 = vadd.f32 0.0, %v8687
      %8689 = vmatmul.bf16.gmra.mxu0 %v8569
      %v8690 = vpop.f32.mrf.mxu0
      %v8691 = vadd.f32 0.0, %v8690
      %v8692 = vpop.f32.mrf.mxu0
      %v8693 = vadd.f32 0.0, %v8692
      %8694 = vmatmul.bf16.gmra.mxu0 %v8570
      %v8695 = vpop.f32.mrf.mxu0
      %v8696 = vadd.f32 0.0, %v8695
      %v8697 = vpop.f32.mrf.mxu0
      %v8698 = vadd.f32 0.0, %v8697
      %8699 = vmatmul.bf16.gmra.mxu0 %v8571
      %v8700 = vpop.f32.mrf.mxu0
      %v8701 = vadd.f32 0.0, %v8700
      %v8702 = vpop.f32.mrf.mxu0
      %v8703 = vadd.f32 0.0, %v8702
      %8704 = vmatmul.bf16.gmra.mxu0 %v8572
      %v8705 = vpop.f32.mrf.mxu0
      %v8706 = vadd.f32 0.0, %v8705
      %v8707 = vpop.f32.mrf.mxu0
      %v8708 = vadd.f32 0.0, %v8707
      %8709 = vmatmul.bf16.gmra.mxu0 %v8573
      %v8710 = vpop.f32.mrf.mxu0
      %v8711 = vadd.f32 0.0, %v8710
      %v8712 = vpop.f32.mrf.mxu0
      %v8713 = vadd.f32 0.0, %v8712
      %8714 = vmatmul.bf16.gmra.mxu0 %v8574
      %v8715 = vpop.f32.mrf.mxu0
      %v8716 = vadd.f32 0.0, %v8715
      %v8717 = vpop.f32.mrf.mxu0
      %v8718 = vadd.f32 0.0, %v8717
      %8719 = vmatmul.bf16.gmra.mxu0 %v8575
      %v8720 = vpop.f32.mrf.mxu0
      %v8721 = vadd.f32 0.0, %v8720
      %v8722 = vpop.f32.mrf.mxu0
      %v8723 = vadd.f32 0.0, %v8722
      %8724 = vmatmul.bf16.gmra.mxu0 %v8576
      %v8725 = vpop.f32.mrf.mxu0
      %v8726 = vadd.f32 0.0, %v8725
      %v8727 = vpop.f32.mrf.mxu0
      %v8728 = vadd.f32 0.0, %v8727
      %8729 = vdwg.mxu0
      %v8730 = vld [vmem:[#allocation3] sm:$0xff]
      %v8731 = vld [vmem:[#allocation3 + $0x8] sm:$0xff]
      %v8732 = vld [vmem:[#allocation3 + $0x10] sm:$0xff]
      %v8733 = vld [vmem:[#allocation3 + $0x18] sm:$0xff]
      %v8734 = vld [vmem:[#allocation3 + $0x20] sm:$0xff]
      %v8735 = vld [vmem:[#allocation3 + $0x28] sm:$0xff]
      %v8736 = vld [vmem:[#allocation3 + $0x30] sm:$0xff]
      %v8737 = vld [vmem:[#allocation3 + $0x38] sm:$0xff]
      %v8738 = vld [vmem:[#allocation3 + $0x40] sm:$0xff]
      %v8739 = vld [vmem:[#allocation3 + $0x48] sm:$0xff]
      %v8740 = vld [vmem:[#allocation3 + $0x50] sm:$0xff]
      %v8741 = vld [vmem:[#allocation3 + $0x58] sm:$0xff]
      %v8742 = vld [vmem:[#allocation3 + $0x60] sm:$0xff]
      %v8743 = vld [vmem:[#allocation3 + $0x68] sm:$0xff]
      %v8744 = vld [vmem:[#allocation3 + $0x70] sm:$0xff]
      %v8745 = vld [vmem:[#allocation3 + $0x78] sm:$0xff]
      %v8746 = vld [vmem:[#allocation3 + $0x80] sm:$0xff]
      %v8747 = vld [vmem:[#allocation3 + $0x88] sm:$0xff]
      %v8748 = vld [vmem:[#allocation3 + $0x90] sm:$0xff]
      %v8749 = vld [vmem:[#allocation3 + $0x98] sm:$0xff]
      %v8750 = vld [vmem:[#allocation3 + $0xa0] sm:$0xff]
      %v8751 = vld [vmem:[#allocation3 + $0xa8] sm:$0xff]
      %v8752 = vld [vmem:[#allocation3 + $0xb0] sm:$0xff]
      %v8753 = vld [vmem:[#allocation3 + $0xb8] sm:$0xff]
      %v8754 = vld [vmem:[#allocation3 + $0xc0] sm:$0xff]
      %v8755 = vld [vmem:[#allocation3 + $0xc8] sm:$0xff]
      %v8756 = vld [vmem:[#allocation3 + $0xd0] sm:$0xff]
      %v8757 = vld [vmem:[#allocation3 + $0xd8] sm:$0xff]
      %v8758 = vld [vmem:[#allocation3 + $0xe0] sm:$0xff]
      %v8759 = vld [vmem:[#allocation3 + $0xe8] sm:$0xff]
      %v8760 = vld [vmem:[#allocation3 + $0xf0] sm:$0xff]
      %v8761 = vld [vmem:[#allocation3 + $0xf8] sm:$0xff]
      %v8762 = vadd.f32 %v8730, %v8651
      %v8763 = vadd.f32 %v8731, %v8653
      %v8764 = vadd.f32 %v8732, %v8656
      %v8765 = vadd.f32 %v8733, %v8658
      %v8766 = vadd.f32 %v8734, %v8661
      %v8767 = vadd.f32 %v8735, %v8663
      %v8768 = vadd.f32 %v8736, %v8666
      %v8769 = vadd.f32 %v8737, %v8668
      %v8770 = vadd.f32 %v8738, %v8671
      %v8771 = vadd.f32 %v8739, %v8673
      %v8772 = vadd.f32 %v8740, %v8676
      %v8773 = vadd.f32 %v8741, %v8678
      %v8774 = vadd.f32 %v8742, %v8681
      %v8775 = vadd.f32 %v8743, %v8683
      %v8776 = vadd.f32 %v8744, %v8686
      %v8777 = vadd.f32 %v8745, %v8688
      %v8778 = vadd.f32 %v8746, %v8691
      %v8779 = vadd.f32 %v8747, %v8693
      %v8780 = vadd.f32 %v8748, %v8696
      %v8781 = vadd.f32 %v8749, %v8698
      %v8782 = vadd.f32 %v8750, %v8701
      %v8783 = vadd.f32 %v8751, %v8703
      %v8784 = vadd.f32 %v8752, %v8706
      %v8785 = vadd.f32 %v8753, %v8708
      %v8786 = vadd.f32 %v8754, %v8711
      %v8787 = vadd.f32 %v8755, %v8713
      %v8788 = vadd.f32 %v8756, %v8716
      %v8789 = vadd.f32 %v8757, %v8718
      %v8790 = vadd.f32 %v8758, %v8721
      %v8791 = vadd.f32 %v8759, %v8723
      %v8792 = vadd.f32 %v8760, %v8726
      %v8793 = vadd.f32 %v8761, %v8728
      %8794 = vst [vmem:[#allocation3] sm:$0xff] %v8762
      %8795 = vst [vmem:[#allocation3 + $0x8] sm:$0xff] %v8763
      %8796 = vst [vmem:[#allocation3 + $0x10] sm:$0xff] %v8764
      %8797 = vst [vmem:[#allocation3 + $0x18] sm:$0xff] %v8765
      %8798 = vst [vmem:[#allocation3 + $0x20] sm:$0xff] %v8766
      %8799 = vst [vmem:[#allocation3 + $0x28] sm:$0xff] %v8767
      %8800 = vst [vmem:[#allocation3 + $0x30] sm:$0xff] %v8768
      %8801 = vst [vmem:[#allocation3 + $0x38] sm:$0xff] %v8769
      %8802 = vst [vmem:[#allocation3 + $0x40] sm:$0xff] %v8770
      %8803 = vst [vmem:[#allocation3 + $0x48] sm:$0xff] %v8771
      %8804 = vst [vmem:[#allocation3 + $0x50] sm:$0xff] %v8772
      %8805 = vst [vmem:[#allocation3 + $0x58] sm:$0xff] %v8773
      %8806 = vst [vmem:[#allocation3 + $0x60] sm:$0xff] %v8774
      %8807 = vst [vmem:[#allocation3 + $0x68] sm:$0xff] %v8775
      %8808 = vst [vmem:[#allocation3 + $0x70] sm:$0xff] %v8776
      %8809 = vst [vmem:[#allocation3 + $0x78] sm:$0xff] %v8777
      %8810 = vst [vmem:[#allocation3 + $0x80] sm:$0xff] %v8778
      %8811 = vst [vmem:[#allocation3 + $0x88] sm:$0xff] %v8779
      %8812 = vst [vmem:[#allocation3 + $0x90] sm:$0xff] %v8780
      %8813 = vst [vmem:[#allocation3 + $0x98] sm:$0xff] %v8781
      %8814 = vst [vmem:[#allocation3 + $0xa0] sm:$0xff] %v8782
      %8815 = vst [vmem:[#allocation3 + $0xa8] sm:$0xff] %v8783
      %8816 = vst [vmem:[#allocation3 + $0xb0] sm:$0xff] %v8784
      %8817 = vst [vmem:[#allocation3 + $0xb8] sm:$0xff] %v8785
      %8818 = vst [vmem:[#allocation3 + $0xc0] sm:$0xff] %v8786
      %8819 = vst [vmem:[#allocation3 + $0xc8] sm:$0xff] %v8787
      %8820 = vst [vmem:[#allocation3 + $0xd0] sm:$0xff] %v8788
      %8821 = vst [vmem:[#allocation3 + $0xd8] sm:$0xff] %v8789
      %8822 = vst [vmem:[#allocation3 + $0xe0] sm:$0xff] %v8790
      %8823 = vst [vmem:[#allocation3 + $0xe8] sm:$0xff] %v8791
      %8824 = vst [vmem:[#allocation3 + $0xf0] sm:$0xff] %v8792
      %8825 = vst [vmem:[#allocation3 + $0xf8] sm:$0xff] %v8793
      %v8826 = vld [vmem:[%s612] sm:$0xf]
      %v8827 = vld [vmem:[%s612 + $0x4] sm:$0xf]
      %v8828 = vld [vmem:[%s612 + $0x8] sm:$0x1]
      %v8829 = vld [vmem:[%s612 + $0xc] sm:$0xf]
      %v8830 = vld [vmem:[%s612 + $0x10] sm:$0xf]
      %v8831 = vld [vmem:[%s612 + $0x14] sm:$0x1]
      %v8832 = vld [vmem:[%s612 + $0x18] sm:$0xf]
      %v8833 = vld [vmem:[%s612 + $0x1c] sm:$0xf]
      %v8834 = vld [vmem:[%s612 + $0x20] sm:$0x1]
      %v8835 = vld [vmem:[%s612 + $0x24] sm:$0xf]
      %v8836 = vld [vmem:[%s612 + $0x28] sm:$0xf]
      %v8837 = vld [vmem:[%s612 + $0x2c] sm:$0x1]
      %v8838 = vld [vmem:[%s612 + $0x30] sm:$0xf]
      %v8839 = vld [vmem:[%s612 + $0x34] sm:$0xf]
      %v8840 = vld [vmem:[%s612 + $0x38] sm:$0x1]
      %v8841 = vld [vmem:[%s612 + $0x3c] sm:$0xf]
      %v8842 = vld [vmem:[%s612 + $0x40] sm:$0xf]
      %v8843 = vld [vmem:[%s612 + $0x44] sm:$0x1]
      %v8844 = vld [vmem:[%s612 + $0x48] sm:$0xf]
      %v8845 = vld [vmem:[%s612 + $0x4c] sm:$0xf]
      %v8846 = vld [vmem:[%s612 + $0x50] sm:$0x1]
      %v8847 = vld [vmem:[%s612 + $0x54] sm:$0xf]
      %v8848 = vld [vmem:[%s612 + $0x58] sm:$0xf]
      %v8849 = vld [vmem:[%s612 + $0x5c] sm:$0x1]
      %v8850 = vld [vmem:[%s612 + $0x60] sm:$0xf]
      %v8851 = vld [vmem:[%s612 + $0x64] sm:$0xf]
      %v8852 = vld [vmem:[%s612 + $0x68] sm:$0x1]
      %v8853 = vld [vmem:[%s612 + $0x6c] sm:$0xf]
      %v8854 = vld [vmem:[%s612 + $0x70] sm:$0xf]
      %v8855 = vld [vmem:[%s612 + $0x74] sm:$0x1]
      %v8856 = vld [vmem:[%s612 + $0x78] sm:$0xf]
      %v8857 = vld [vmem:[%s612 + $0x7c] sm:$0xf]
      %v8858 = vld [vmem:[%s612 + $0x80] sm:$0x1]
      %v8859 = vld [vmem:[%s612 + $0x84] sm:$0xf]
      %v8860 = vld [vmem:[%s612 + $0x88] sm:$0xf]
      %v8861 = vld [vmem:[%s612 + $0x8c] sm:$0x1]
      %v8862 = vld [vmem:[%s612 + $0x90] sm:$0xf]
      %v8863 = vld [vmem:[%s612 + $0x94] sm:$0xf]
      %v8864 = vld [vmem:[%s612 + $0x98] sm:$0x1]
      %v8865 = vld [vmem:[%s612 + $0x9c] sm:$0xf]
      %v8866 = vld [vmem:[%s612 + $0xa0] sm:$0xf]
      %v8867 = vld [vmem:[%s612 + $0xa4] sm:$0x1]
      %v8868 = vld [vmem:[%s612 + $0xa8] sm:$0xf]
      %v8869 = vld [vmem:[%s612 + $0xac] sm:$0xf]
      %v8870 = vld [vmem:[%s612 + $0xb0] sm:$0x1]
      %v8871 = vld [vmem:[%s612 + $0xb4] sm:$0xf]
      %v8872 = vld [vmem:[%s612 + $0xb8] sm:$0xf]
      %v8873 = vld [vmem:[%s612 + $0xbc] sm:$0x1]
      %v8875 = vshrl.u32 %v8826, 16
      %v8877 = vrot.slane %v8875, 4
      %v8878 = vshll.u32 %v8826, 16
      %v8880 = vrot.slane %v8878, 5
      %v8881 = vor.u32 %v8877, %v8880
      %v8882 = vrot.slane %v8881, 4
      %v8884 = vshll.u32 %v8827, 16
      %v8886 = vrot.slane %v8884, 5
      %v8887 = vsel %vm1375, %v8882, %v8886
      %v8888 = vshrl.u32 %v8827, 16
      %v8890 = vrot.slane %v8888, 4
      %v8891 = vor.u32 %v8890, %v8886
      %v8892 = vrot.slane %v8891, 4
      %v8894 = vshll.u32 %v8828, 16
      %v8896 = vrot.slane %v8894, 5
      %v8897 = vsel %vm1375, %v8892, %v8896
      %v8899 = vshrl.u32 %v8829, 16
      %v8901 = vrot.slane %v8899, 4
      %v8902 = vshll.u32 %v8829, 16
      %v8904 = vrot.slane %v8902, 5
      %v8905 = vor.u32 %v8901, %v8904
      %v8906 = vrot.slane %v8905, 4
      %v8908 = vshll.u32 %v8830, 16
      %v8910 = vrot.slane %v8908, 5
      %v8911 = vsel %vm1375, %v8906, %v8910
      %v8912 = vshrl.u32 %v8830, 16
      %v8914 = vrot.slane %v8912, 4
      %v8915 = vor.u32 %v8914, %v8910
      %v8916 = vrot.slane %v8915, 4
      %v8918 = vshll.u32 %v8831, 16
      %v8920 = vrot.slane %v8918, 5
      %v8921 = vsel %vm1375, %v8916, %v8920
      %v8923 = vshrl.u32 %v8832, 16
      %v8925 = vrot.slane %v8923, 4
      %v8926 = vshll.u32 %v8832, 16
      %v8928 = vrot.slane %v8926, 5
      %v8929 = vor.u32 %v8925, %v8928
      %v8930 = vrot.slane %v8929, 4
      %v8932 = vshll.u32 %v8833, 16
      %v8934 = vrot.slane %v8932, 5
      %v8935 = vsel %vm1375, %v8930, %v8934
      %v8936 = vshrl.u32 %v8833, 16
      %v8938 = vrot.slane %v8936, 4
      %v8939 = vor.u32 %v8938, %v8934
      %v8940 = vrot.slane %v8939, 4
      %v8942 = vshll.u32 %v8834, 16
      %v8944 = vrot.slane %v8942, 5
      %v8945 = vsel %vm1375, %v8940, %v8944
      %v8947 = vshrl.u32 %v8835, 16
      %v8949 = vrot.slane %v8947, 4
      %v8950 = vshll.u32 %v8835, 16
      %v8952 = vrot.slane %v8950, 5
      %v8953 = vor.u32 %v8949, %v8952
      %v8954 = vrot.slane %v8953, 4
      %v8956 = vshll.u32 %v8836, 16
      %v8958 = vrot.slane %v8956, 5
      %v8959 = vsel %vm1375, %v8954, %v8958
      %v8960 = vshrl.u32 %v8836, 16
      %v8962 = vrot.slane %v8960, 4
      %v8963 = vor.u32 %v8962, %v8958
      %v8964 = vrot.slane %v8963, 4
      %v8966 = vshll.u32 %v8837, 16
      %v8968 = vrot.slane %v8966, 5
      %v8969 = vsel %vm1375, %v8964, %v8968
      %v8971 = vshrl.u32 %v8838, 16
      %v8973 = vrot.slane %v8971, 4
      %v8974 = vshll.u32 %v8838, 16
      %v8976 = vrot.slane %v8974, 5
      %v8977 = vor.u32 %v8973, %v8976
      %v8978 = vrot.slane %v8977, 4
      %v8980 = vshll.u32 %v8839, 16
      %v8982 = vrot.slane %v8980, 5
      %v8983 = vsel %vm1375, %v8978, %v8982
      %v8984 = vshrl.u32 %v8839, 16
      %v8986 = vrot.slane %v8984, 4
      %v8987 = vor.u32 %v8986, %v8982
      %v8988 = vrot.slane %v8987, 4
      %v8990 = vshll.u32 %v8840, 16
      %v8992 = vrot.slane %v8990, 5
      %v8993 = vsel %vm1375, %v8988, %v8992
      %v8995 = vshrl.u32 %v8841, 16
      %v8997 = vrot.slane %v8995, 4
      %v8998 = vshll.u32 %v8841, 16
      %v9000 = vrot.slane %v8998, 5
      %v9001 = vor.u32 %v8997, %v9000
      %v9002 = vrot.slane %v9001, 4
      %v9004 = vshll.u32 %v8842, 16
      %v9006 = vrot.slane %v9004, 5
      %v9007 = vsel %vm1375, %v9002, %v9006
      %v9008 = vshrl.u32 %v8842, 16
      %v9010 = vrot.slane %v9008, 4
      %v9011 = vor.u32 %v9010, %v9006
      %v9012 = vrot.slane %v9011, 4
      %v9014 = vshll.u32 %v8843, 16
      %v9016 = vrot.slane %v9014, 5
      %v9017 = vsel %vm1375, %v9012, %v9016
      %v9019 = vshrl.u32 %v8844, 16
      %v9021 = vrot.slane %v9019, 4
      %v9022 = vshll.u32 %v8844, 16
      %v9024 = vrot.slane %v9022, 5
      %v9025 = vor.u32 %v9021, %v9024
      %v9026 = vrot.slane %v9025, 4
      %v9028 = vshll.u32 %v8845, 16
      %v9030 = vrot.slane %v9028, 5
      %v9031 = vsel %vm1375, %v9026, %v9030
      %v9032 = vshrl.u32 %v8845, 16
      %v9034 = vrot.slane %v9032, 4
      %v9035 = vor.u32 %v9034, %v9030
      %v9036 = vrot.slane %v9035, 4
      %v9038 = vshll.u32 %v8846, 16
      %v9040 = vrot.slane %v9038, 5
      %v9041 = vsel %vm1375, %v9036, %v9040
      %v9043 = vshrl.u32 %v8847, 16
      %v9045 = vrot.slane %v9043, 4
      %v9046 = vshll.u32 %v8847, 16
      %v9048 = vrot.slane %v9046, 5
      %v9049 = vor.u32 %v9045, %v9048
      %v9050 = vrot.slane %v9049, 4
      %v9052 = vshll.u32 %v8848, 16
      %v9054 = vrot.slane %v9052, 5
      %v9055 = vsel %vm1375, %v9050, %v9054
      %v9056 = vshrl.u32 %v8848, 16
      %v9058 = vrot.slane %v9056, 4
      %v9059 = vor.u32 %v9058, %v9054
      %v9060 = vrot.slane %v9059, 4
      %v9062 = vshll.u32 %v8849, 16
      %v9064 = vrot.slane %v9062, 5
      %v9065 = vsel %vm1375, %v9060, %v9064
      %v9067 = vshrl.u32 %v8850, 16
      %v9069 = vrot.slane %v9067, 4
      %v9070 = vshll.u32 %v8850, 16
      %v9072 = vrot.slane %v9070, 5
      %v9073 = vor.u32 %v9069, %v9072
      %v9074 = vrot.slane %v9073, 4
      %v9076 = vshll.u32 %v8851, 16
      %v9078 = vrot.slane %v9076, 5
      %v9079 = vsel %vm1375, %v9074, %v9078
      %v9080 = vshrl.u32 %v8851, 16
      %v9082 = vrot.slane %v9080, 4
      %v9083 = vor.u32 %v9082, %v9078
      %v9084 = vrot.slane %v9083, 4
      %v9086 = vshll.u32 %v8852, 16
      %v9088 = vrot.slane %v9086, 5
      %v9089 = vsel %vm1375, %v9084, %v9088
      %v9091 = vshrl.u32 %v8853, 16
      %v9093 = vrot.slane %v9091, 4
      %v9094 = vshll.u32 %v8853, 16
      %v9096 = vrot.slane %v9094, 5
      %v9097 = vor.u32 %v9093, %v9096
      %v9098 = vrot.slane %v9097, 4
      %v9100 = vshll.u32 %v8854, 16
      %v9102 = vrot.slane %v9100, 5
      %v9103 = vsel %vm1375, %v9098, %v9102
      %v9104 = vshrl.u32 %v8854, 16
      %v9106 = vrot.slane %v9104, 4
      %v9107 = vor.u32 %v9106, %v9102
      %v9108 = vrot.slane %v9107, 4
      %v9110 = vshll.u32 %v8855, 16
      %v9112 = vrot.slane %v9110, 5
      %v9113 = vsel %vm1375, %v9108, %v9112
      %v9115 = vshrl.u32 %v8856, 16
      %v9117 = vrot.slane %v9115, 4
      %v9118 = vshll.u32 %v8856, 16
      %v9120 = vrot.slane %v9118, 5
      %v9121 = vor.u32 %v9117, %v9120
      %v9122 = vrot.slane %v9121, 4
      %v9124 = vshll.u32 %v8857, 16
      %v9126 = vrot.slane %v9124, 5
      %v9127 = vsel %vm1375, %v9122, %v9126
      %v9128 = vshrl.u32 %v8857, 16
      %v9130 = vrot.slane %v9128, 4
      %v9131 = vor.u32 %v9130, %v9126
      %v9132 = vrot.slane %v9131, 4
      %v9134 = vshll.u32 %v8858, 16
      %v9136 = vrot.slane %v9134, 5
      %v9137 = vsel %vm1375, %v9132, %v9136
      %v9139 = vshrl.u32 %v8859, 16
      %v9141 = vrot.slane %v9139, 4
      %v9142 = vshll.u32 %v8859, 16
      %v9144 = vrot.slane %v9142, 5
      %v9145 = vor.u32 %v9141, %v9144
      %v9146 = vrot.slane %v9145, 4
      %v9148 = vshll.u32 %v8860, 16
      %v9150 = vrot.slane %v9148, 5
      %v9151 = vsel %vm1375, %v9146, %v9150
      %v9152 = vshrl.u32 %v8860, 16
      %v9154 = vrot.slane %v9152, 4
      %v9155 = vor.u32 %v9154, %v9150
      %v9156 = vrot.slane %v9155, 4
      %v9158 = vshll.u32 %v8861, 16
      %v9160 = vrot.slane %v9158, 5
      %v9161 = vsel %vm1375, %v9156, %v9160
      %v9163 = vshrl.u32 %v8862, 16
      %v9165 = vrot.slane %v9163, 4
      %v9166 = vshll.u32 %v8862, 16
      %v9168 = vrot.slane %v9166, 5
      %v9169 = vor.u32 %v9165, %v9168
      %v9170 = vrot.slane %v9169, 4
      %v9172 = vshll.u32 %v8863, 16
      %v9174 = vrot.slane %v9172, 5
      %v9175 = vsel %vm1375, %v9170, %v9174
      %v9176 = vshrl.u32 %v8863, 16
      %v9178 = vrot.slane %v9176, 4
      %v9179 = vor.u32 %v9178, %v9174
      %v9180 = vrot.slane %v9179, 4
      %v9182 = vshll.u32 %v8864, 16
      %v9184 = vrot.slane %v9182, 5
      %v9185 = vsel %vm1375, %v9180, %v9184
      %v9187 = vshrl.u32 %v8865, 16
      %v9189 = vrot.slane %v9187, 4
      %v9190 = vshll.u32 %v8865, 16
      %v9192 = vrot.slane %v9190, 5
      %v9193 = vor.u32 %v9189, %v9192
      %v9194 = vrot.slane %v9193, 4
      %v9196 = vshll.u32 %v8866, 16
      %v9198 = vrot.slane %v9196, 5
      %v9199 = vsel %vm1375, %v9194, %v9198
      %v9200 = vshrl.u32 %v8866, 16
      %v9202 = vrot.slane %v9200, 4
      %v9203 = vor.u32 %v9202, %v9198
      %v9204 = vrot.slane %v9203, 4
      %v9206 = vshll.u32 %v8867, 16
      %v9208 = vrot.slane %v9206, 5
      %v9209 = vsel %vm1375, %v9204, %v9208
      %v9211 = vshrl.u32 %v8868, 16
      %v9213 = vrot.slane %v9211, 4
      %v9214 = vshll.u32 %v8868, 16
      %v9216 = vrot.slane %v9214, 5
      %v9217 = vor.u32 %v9213, %v9216
      %v9218 = vrot.slane %v9217, 4
      %v9220 = vshll.u32 %v8869, 16
      %v9222 = vrot.slane %v9220, 5
      %v9223 = vsel %vm1375, %v9218, %v9222
      %v9224 = vshrl.u32 %v8869, 16
      %v9226 = vrot.slane %v9224, 4
      %v9227 = vor.u32 %v9226, %v9222
      %v9228 = vrot.slane %v9227, 4
      %v9230 = vshll.u32 %v8870, 16
      %v9232 = vrot.slane %v9230, 5
      %v9233 = vsel %vm1375, %v9228, %v9232
      %v9235 = vshrl.u32 %v8871, 16
      %v9237 = vrot.slane %v9235, 4
      %v9238 = vshll.u32 %v8871, 16
      %v9240 = vrot.slane %v9238, 5
      %v9241 = vor.u32 %v9237, %v9240
      %v9242 = vrot.slane %v9241, 4
      %v9244 = vshll.u32 %v8872, 16
      %v9246 = vrot.slane %v9244, 5
      %v9247 = vsel %vm1375, %v9242, %v9246
      %v9248 = vshrl.u32 %v8872, 16
      %v9250 = vrot.slane %v9248, 4
      %v9251 = vor.u32 %v9250, %v9246
      %v9252 = vrot.slane %v9251, 4
      %v9254 = vshll.u32 %v8873, 16
      %v9256 = vrot.slane %v9254, 5
      %v9257 = vsel %vm1375, %v9252, %v9256
      %s9258 = scalar_lea.vmem %s3, 256
      %v9259 = vld [vmem:[%s9258] sm:$0xf]
      %v9260 = vld [vmem:[%s9258 + $0x4] sm:$0xf]
      %v9261 = vld [vmem:[%s9258 + $0x8] sm:$0xf]
      %v9262 = vld [vmem:[%s9258 + $0xc] sm:$0xf]
      %v9263 = vld [vmem:[%s9258 + $0x10] sm:$0xf]
      %v9264 = vld [vmem:[%s9258 + $0x14] sm:$0xf]
      %v9265 = vld [vmem:[%s9258 + $0x18] sm:$0xf]
      %v9266 = vld [vmem:[%s9258 + $0x1c] sm:$0xf]
      %v9267 = vld [vmem:[%s9258 + $0x20] sm:$0xf]
      %v9268 = vld [vmem:[%s9258 + $0x24] sm:$0xf]
      %v9269 = vld [vmem:[%s9258 + $0x28] sm:$0xf]
      %v9270 = vld [vmem:[%s9258 + $0x2c] sm:$0xf]
      %v9271 = vld [vmem:[%s9258 + $0x30] sm:$0xf]
      %v9272 = vld [vmem:[%s9258 + $0x34] sm:$0xf]
      %v9273 = vld [vmem:[%s9258 + $0x38] sm:$0xf]
      %v9274 = vld [vmem:[%s9258 + $0x3c] sm:$0xf]
      %v9275 = vunpack.c.l.b16 %v8887
      %v9276 = vunpack.c.l.b16 %v8897
      %v9277 = vunpack.c.l.b16 %v8911
      %v9278 = vunpack.c.l.b16 %v8921
      %v9279 = vunpack.c.l.b16 %v8935
      %v9280 = vunpack.c.l.b16 %v8945
      %v9281 = vunpack.c.l.b16 %v8959
      %v9282 = vunpack.c.l.b16 %v8969
      %v9283 = vunpack.c.l.b16 %v8983
      %v9284 = vunpack.c.l.b16 %v8993
      %v9285 = vunpack.c.l.b16 %v9007
      %v9286 = vunpack.c.l.b16 %v9017
      %v9287 = vunpack.c.l.b16 %v9031
      %v9288 = vunpack.c.l.b16 %v9041
      %v9289 = vunpack.c.l.b16 %v9055
      %v9290 = vunpack.c.l.b16 %v9065
      %v9291 = vunpack.c.l.b16 %v9079
      %v9292 = vunpack.c.l.b16 %v9089
      %v9293 = vunpack.c.l.b16 %v9103
      %v9294 = vunpack.c.l.b16 %v9113
      %v9295 = vunpack.c.l.b16 %v9127
      %v9296 = vunpack.c.l.b16 %v9137
      %v9297 = vunpack.c.l.b16 %v9151
      %v9298 = vunpack.c.l.b16 %v9161
      %v9299 = vunpack.c.l.b16 %v9175
      %v9300 = vunpack.c.l.b16 %v9185
      %v9301 = vunpack.c.l.b16 %v9199
      %v9302 = vunpack.c.l.b16 %v9209
      %v9303 = vunpack.c.l.b16 %v9223
      %v9304 = vunpack.c.l.b16 %v9233
      %v9305 = vunpack.c.l.b16 %v9247
      %v9306 = vunpack.c.l.b16 %v9257
      %v9307 = vpack.c.b16 %v9276, %v9275
      %v9308 = vpack.c.b16 %v9278, %v9277
      %v9309 = vpack.c.b16 %v9280, %v9279
      %v9310 = vpack.c.b16 %v9282, %v9281
      %v9311 = vpack.c.b16 %v9284, %v9283
      %v9312 = vpack.c.b16 %v9286, %v9285
      %v9313 = vpack.c.b16 %v9288, %v9287
      %v9314 = vpack.c.b16 %v9290, %v9289
      %v9315 = vpack.c.b16 %v9292, %v9291
      %v9316 = vpack.c.b16 %v9294, %v9293
      %v9317 = vpack.c.b16 %v9296, %v9295
      %v9318 = vpack.c.b16 %v9298, %v9297
      %v9319 = vpack.c.b16 %v9300, %v9299
      %v9320 = vpack.c.b16 %v9302, %v9301
      %v9321 = vpack.c.b16 %v9304, %v9303
      %v9322 = vpack.c.b16 %v9306, %v9305
      %v9355 = vunpack.c.l.b16 %v9259
      %v9356 = vunpack.c.l.b16 %v9260
      %v9357 = vunpack.c.l.b16 %v9261
      %v9358 = vunpack.c.l.b16 %v9262
      %v9359 = vunpack.c.l.b16 %v9263
      %v9360 = vunpack.c.l.b16 %v9264
      %v9361 = vunpack.c.l.b16 %v9265
      %v9362 = vunpack.c.l.b16 %v9266
      %v9363 = vunpack.c.l.b16 %v9267
      %v9364 = vunpack.c.l.b16 %v9268
      %v9365 = vunpack.c.l.b16 %v9269
      %v9366 = vunpack.c.l.b16 %v9270
      %v9367 = vunpack.c.l.b16 %v9271
      %v9368 = vunpack.c.l.b16 %v9272
      %v9369 = vunpack.c.l.b16 %v9273
      %v9370 = vunpack.c.l.b16 %v9274
      %v9371 = vpack.c.b16 %v9356, %v9355
      %v9372 = vpack.c.b16 %v9358, %v9357
      %v9373 = vpack.c.b16 %v9360, %v9359
      %v9374 = vpack.c.b16 %v9362, %v9361
      %v9375 = vpack.c.b16 %v9364, %v9363
      %v9376 = vpack.c.b16 %v9366, %v9365
      %v9377 = vpack.c.b16 %v9368, %v9367
      %v9378 = vpack.c.b16 %v9370, %v9369
      %9387 = vmatpush.bf16.msra.mxu0 %v9378
      %9388 = vmatpush.bf16.msra.mxu0 %v9377
      %9389 = vmatpush.bf16.msra.mxu0 %v9376
      %9390 = vmatpush.bf16.msra.mxu0 %v9375
      %9391 = vmatpush.bf16.msra.mxu0 %v9374
      %9392 = vmatpush.bf16.msra.mxu0 %v9373
      %9393 = vmatpush.bf16.msra.mxu0 %v9372
      %9394 = vmatpush.bf16.msra.mxu0 %v9371
      %9395 = vmatmul.bf16.gmra.mxu0 %v9307
      %v9396 = vpop.f32.mrf.mxu0
      %v9397 = vadd.f32 0.0, %v9396
      %v9398 = vpop.f32.mrf.mxu0
      %v9399 = vadd.f32 0.0, %v9398
      %9400 = vmatmul.bf16.gmra.mxu0 %v9308
      %v9401 = vpop.f32.mrf.mxu0
      %v9402 = vadd.f32 0.0, %v9401
      %v9403 = vpop.f32.mrf.mxu0
      %v9404 = vadd.f32 0.0, %v9403
      %9405 = vmatmul.bf16.gmra.mxu0 %v9309
      %v9406 = vpop.f32.mrf.mxu0
      %v9407 = vadd.f32 0.0, %v9406
      %v9408 = vpop.f32.mrf.mxu0
      %v9409 = vadd.f32 0.0, %v9408
      %9410 = vmatmul.bf16.gmra.mxu0 %v9310
      %v9411 = vpop.f32.mrf.mxu0
      %v9412 = vadd.f32 0.0, %v9411
      %v9413 = vpop.f32.mrf.mxu0
      %v9414 = vadd.f32 0.0, %v9413
      %9415 = vmatmul.bf16.gmra.mxu0 %v9311
      %v9416 = vpop.f32.mrf.mxu0
      %v9417 = vadd.f32 0.0, %v9416
      %v9418 = vpop.f32.mrf.mxu0
      %v9419 = vadd.f32 0.0, %v9418
      %9420 = vmatmul.bf16.gmra.mxu0 %v9312
      %v9421 = vpop.f32.mrf.mxu0
      %v9422 = vadd.f32 0.0, %v9421
      %v9423 = vpop.f32.mrf.mxu0
      %v9424 = vadd.f32 0.0, %v9423
      %9425 = vmatmul.bf16.gmra.mxu0 %v9313
      %v9426 = vpop.f32.mrf.mxu0
      %v9427 = vadd.f32 0.0, %v9426
      %v9428 = vpop.f32.mrf.mxu0
      %v9429 = vadd.f32 0.0, %v9428
      %9430 = vmatmul.bf16.gmra.mxu0 %v9314
      %v9431 = vpop.f32.mrf.mxu0
      %v9432 = vadd.f32 0.0, %v9431
      %v9433 = vpop.f32.mrf.mxu0
      %v9434 = vadd.f32 0.0, %v9433
      %9435 = vmatmul.bf16.gmra.mxu0 %v9315
      %v9436 = vpop.f32.mrf.mxu0
      %v9437 = vadd.f32 0.0, %v9436
      %v9438 = vpop.f32.mrf.mxu0
      %v9439 = vadd.f32 0.0, %v9438
      %9440 = vmatmul.bf16.gmra.mxu0 %v9316
      %v9441 = vpop.f32.mrf.mxu0
      %v9442 = vadd.f32 0.0, %v9441
      %v9443 = vpop.f32.mrf.mxu0
      %v9444 = vadd.f32 0.0, %v9443
      %9445 = vmatmul.bf16.gmra.mxu0 %v9317
      %v9446 = vpop.f32.mrf.mxu0
      %v9447 = vadd.f32 0.0, %v9446
      %v9448 = vpop.f32.mrf.mxu0
      %v9449 = vadd.f32 0.0, %v9448
      %9450 = vmatmul.bf16.gmra.mxu0 %v9318
      %v9451 = vpop.f32.mrf.mxu0
      %v9452 = vadd.f32 0.0, %v9451
      %v9453 = vpop.f32.mrf.mxu0
      %v9454 = vadd.f32 0.0, %v9453
      %9455 = vmatmul.bf16.gmra.mxu0 %v9319
      %v9456 = vpop.f32.mrf.mxu0
      %v9457 = vadd.f32 0.0, %v9456
      %v9458 = vpop.f32.mrf.mxu0
      %v9459 = vadd.f32 0.0, %v9458
      %9460 = vmatmul.bf16.gmra.mxu0 %v9320
      %v9461 = vpop.f32.mrf.mxu0
      %v9462 = vadd.f32 0.0, %v9461
      %v9463 = vpop.f32.mrf.mxu0
      %v9464 = vadd.f32 0.0, %v9463
      %9465 = vmatmul.bf16.gmra.mxu0 %v9321
      %v9466 = vpop.f32.mrf.mxu0
      %v9467 = vadd.f32 0.0, %v9466
      %v9468 = vpop.f32.mrf.mxu0
      %v9469 = vadd.f32 0.0, %v9468
      %9470 = vmatmul.bf16.gmra.mxu0 %v9322
      %v9471 = vpop.f32.mrf.mxu0
      %v9472 = vadd.f32 0.0, %v9471
      %v9473 = vpop.f32.mrf.mxu0
      %v9474 = vadd.f32 0.0, %v9473
      %9475 = vdwg.mxu0
      %v9476 = vld [vmem:[#allocation3] sm:$0xff]
      %v9477 = vld [vmem:[#allocation3 + $0x8] sm:$0xff]
      %v9478 = vld [vmem:[#allocation3 + $0x10] sm:$0xff]
      %v9479 = vld [vmem:[#allocation3 + $0x18] sm:$0xff]
      %v9480 = vld [vmem:[#allocation3 + $0x20] sm:$0xff]
      %v9481 = vld [vmem:[#allocation3 + $0x28] sm:$0xff]
      %v9482 = vld [vmem:[#allocation3 + $0x30] sm:$0xff]
      %v9483 = vld [vmem:[#allocation3 + $0x38] sm:$0xff]
      %v9484 = vld [vmem:[#allocation3 + $0x40] sm:$0xff]
      %v9485 = vld [vmem:[#allocation3 + $0x48] sm:$0xff]
      %v9486 = vld [vmem:[#allocation3 + $0x50] sm:$0xff]
      %v9487 = vld [vmem:[#allocation3 + $0x58] sm:$0xff]
      %v9488 = vld [vmem:[#allocation3 + $0x60] sm:$0xff]
      %v9489 = vld [vmem:[#allocation3 + $0x68] sm:$0xff]
      %v9490 = vld [vmem:[#allocation3 + $0x70] sm:$0xff]
      %v9491 = vld [vmem:[#allocation3 + $0x78] sm:$0xff]
      %v9492 = vld [vmem:[#allocation3 + $0x80] sm:$0xff]
      %v9493 = vld [vmem:[#allocation3 + $0x88] sm:$0xff]
      %v9494 = vld [vmem:[#allocation3 + $0x90] sm:$0xff]
      %v9495 = vld [vmem:[#allocation3 + $0x98] sm:$0xff]
      %v9496 = vld [vmem:[#allocation3 + $0xa0] sm:$0xff]
      %v9497 = vld [vmem:[#allocation3 + $0xa8] sm:$0xff]
      %v9498 = vld [vmem:[#allocation3 + $0xb0] sm:$0xff]
      %v9499 = vld [vmem:[#allocation3 + $0xb8] sm:$0xff]
      %v9500 = vld [vmem:[#allocation3 + $0xc0] sm:$0xff]
      %v9501 = vld [vmem:[#allocation3 + $0xc8] sm:$0xff]
      %v9502 = vld [vmem:[#allocation3 + $0xd0] sm:$0xff]
      %v9503 = vld [vmem:[#allocation3 + $0xd8] sm:$0xff]
      %v9504 = vld [vmem:[#allocation3 + $0xe0] sm:$0xff]
      %v9505 = vld [vmem:[#allocation3 + $0xe8] sm:$0xff]
      %v9506 = vld [vmem:[#allocation3 + $0xf0] sm:$0xff]
      %v9507 = vld [vmem:[#allocation3 + $0xf8] sm:$0xff]
      %v9508 = vadd.f32 %v9476, %v9397
      %v9509 = vadd.f32 %v9477, %v9399
      %v9510 = vadd.f32 %v9478, %v9402
      %v9511 = vadd.f32 %v9479, %v9404
      %v9512 = vadd.f32 %v9480, %v9407
      %v9513 = vadd.f32 %v9481, %v9409
      %v9514 = vadd.f32 %v9482, %v9412
      %v9515 = vadd.f32 %v9483, %v9414
      %v9516 = vadd.f32 %v9484, %v9417
      %v9517 = vadd.f32 %v9485, %v9419
      %v9518 = vadd.f32 %v9486, %v9422
      %v9519 = vadd.f32 %v9487, %v9424
      %v9520 = vadd.f32 %v9488, %v9427
      %v9521 = vadd.f32 %v9489, %v9429
      %v9522 = vadd.f32 %v9490, %v9432
      %v9523 = vadd.f32 %v9491, %v9434
      %v9524 = vadd.f32 %v9492, %v9437
      %v9525 = vadd.f32 %v9493, %v9439
      %v9526 = vadd.f32 %v9494, %v9442
      %v9527 = vadd.f32 %v9495, %v9444
      %v9528 = vadd.f32 %v9496, %v9447
      %v9529 = vadd.f32 %v9497, %v9449
      %v9530 = vadd.f32 %v9498, %v9452
      %v9531 = vadd.f32 %v9499, %v9454
      %v9532 = vadd.f32 %v9500, %v9457
      %v9533 = vadd.f32 %v9501, %v9459
      %v9534 = vadd.f32 %v9502, %v9462
      %v9535 = vadd.f32 %v9503, %v9464
      %v9536 = vadd.f32 %v9504, %v9467
      %v9537 = vadd.f32 %v9505, %v9469
      %v9538 = vadd.f32 %v9506, %v9472
      %v9539 = vadd.f32 %v9507, %v9474
      %9540 = vst [vmem:[#allocation3] sm:$0xff] %v9508
      %9541 = vst [vmem:[#allocation3 + $0x8] sm:$0xff] %v9509
      %9542 = vst [vmem:[#allocation3 + $0x10] sm:$0xff] %v9510
      %9543 = vst [vmem:[#allocation3 + $0x18] sm:$0xff] %v9511
      %9544 = vst [vmem:[#allocation3 + $0x20] sm:$0xff] %v9512
      %9545 = vst [vmem:[#allocation3 + $0x28] sm:$0xff] %v9513
      %9546 = vst [vmem:[#allocation3 + $0x30] sm:$0xff] %v9514
      %9547 = vst [vmem:[#allocation3 + $0x38] sm:$0xff] %v9515
      %9548 = vst [vmem:[#allocation3 + $0x40] sm:$0xff] %v9516
      %9549 = vst [vmem:[#allocation3 + $0x48] sm:$0xff] %v9517
      %9550 = vst [vmem:[#allocation3 + $0x50] sm:$0xff] %v9518
      %9551 = vst [vmem:[#allocation3 + $0x58] sm:$0xff] %v9519
      %9552 = vst [vmem:[#allocation3 + $0x60] sm:$0xff] %v9520
      %9553 = vst [vmem:[#allocation3 + $0x68] sm:$0xff] %v9521
      %9554 = vst [vmem:[#allocation3 + $0x70] sm:$0xff] %v9522
      %9555 = vst [vmem:[#allocation3 + $0x78] sm:$0xff] %v9523
      %9556 = vst [vmem:[#allocation3 + $0x80] sm:$0xff] %v9524
      %9557 = vst [vmem:[#allocation3 + $0x88] sm:$0xff] %v9525
      %9558 = vst [vmem:[#allocation3 + $0x90] sm:$0xff] %v9526
      %9559 = vst [vmem:[#allocation3 + $0x98] sm:$0xff] %v9527
      %9560 = vst [vmem:[#allocation3 + $0xa0] sm:$0xff] %v9528
      %9561 = vst [vmem:[#allocation3 + $0xa8] sm:$0xff] %v9529
      %9562 = vst [vmem:[#allocation3 + $0xb0] sm:$0xff] %v9530
      %9563 = vst [vmem:[#allocation3 + $0xb8] sm:$0xff] %v9531
      %9564 = vst [vmem:[#allocation3 + $0xc0] sm:$0xff] %v9532
      %9565 = vst [vmem:[#allocation3 + $0xc8] sm:$0xff] %v9533
      %9566 = vst [vmem:[#allocation3 + $0xd0] sm:$0xff] %v9534
      %9567 = vst [vmem:[#allocation3 + $0xd8] sm:$0xff] %v9535
      %9568 = vst [vmem:[#allocation3 + $0xe0] sm:$0xff] %v9536
      %9569 = vst [vmem:[#allocation3 + $0xe8] sm:$0xff] %v9537
      %9570 = vst [vmem:[#allocation3 + $0xf0] sm:$0xff] %v9538
      %9571 = vst [vmem:[#allocation3 + $0xf8] sm:$0xff] %v9539
      %v9572 = vld [vmem:[%s612] sm:$0xe]
      %v9573 = vld [vmem:[%s612 + $0x4] sm:$0xf]
      %v9574 = vld [vmem:[%s612 + $0x8] sm:$0x1]
      %v9575 = vld [vmem:[%s612 + $0xc] sm:$0xe]
      %v9576 = vld [vmem:[%s612 + $0x10] sm:$0xf]
      %v9577 = vld [vmem:[%s612 + $0x14] sm:$0x1]
      %v9578 = vld [vmem:[%s612 + $0x18] sm:$0xe]
      %v9579 = vld [vmem:[%s612 + $0x1c] sm:$0xf]
      %v9580 = vld [vmem:[%s612 + $0x20] sm:$0x1]
      %v9581 = vld [vmem:[%s612 + $0x24] sm:$0xe]
      %v9582 = vld [vmem:[%s612 + $0x28] sm:$0xf]
      %v9583 = vld [vmem:[%s612 + $0x2c] sm:$0x1]
      %v9584 = vld [vmem:[%s612 + $0x30] sm:$0xe]
      %v9585 = vld [vmem:[%s612 + $0x34] sm:$0xf]
      %v9586 = vld [vmem:[%s612 + $0x38] sm:$0x1]
      %v9587 = vld [vmem:[%s612 + $0x3c] sm:$0xe]
      %v9588 = vld [vmem:[%s612 + $0x40] sm:$0xf]
      %v9589 = vld [vmem:[%s612 + $0x44] sm:$0x1]
      %v9590 = vld [vmem:[%s612 + $0x48] sm:$0xe]
      %v9591 = vld [vmem:[%s612 + $0x4c] sm:$0xf]
      %v9592 = vld [vmem:[%s612 + $0x50] sm:$0x1]
      %v9593 = vld [vmem:[%s612 + $0x54] sm:$0xe]
      %v9594 = vld [vmem:[%s612 + $0x58] sm:$0xf]
      %v9595 = vld [vmem:[%s612 + $0x5c] sm:$0x1]
      %v9596 = vld [vmem:[%s612 + $0x60] sm:$0xe]
      %v9597 = vld [vmem:[%s612 + $0x64] sm:$0xf]
      %v9598 = vld [vmem:[%s612 + $0x68] sm:$0x1]
      %v9599 = vld [vmem:[%s612 + $0x6c] sm:$0xe]
      %v9600 = vld [vmem:[%s612 + $0x70] sm:$0xf]
      %v9601 = vld [vmem:[%s612 + $0x74] sm:$0x1]
      %v9602 = vld [vmem:[%s612 + $0x78] sm:$0xe]
      %v9603 = vld [vmem:[%s612 + $0x7c] sm:$0xf]
      %v9604 = vld [vmem:[%s612 + $0x80] sm:$0x1]
      %v9605 = vld [vmem:[%s612 + $0x84] sm:$0xe]
      %v9606 = vld [vmem:[%s612 + $0x88] sm:$0xf]
      %v9607 = vld [vmem:[%s612 + $0x8c] sm:$0x1]
      %v9608 = vld [vmem:[%s612 + $0x90] sm:$0xe]
      %v9609 = vld [vmem:[%s612 + $0x94] sm:$0xf]
      %v9610 = vld [vmem:[%s612 + $0x98] sm:$0x1]
      %v9611 = vld [vmem:[%s612 + $0x9c] sm:$0xe]
      %v9612 = vld [vmem:[%s612 + $0xa0] sm:$0xf]
      %v9613 = vld [vmem:[%s612 + $0xa4] sm:$0x1]
      %v9614 = vld [vmem:[%s612 + $0xa8] sm:$0xe]
      %v9615 = vld [vmem:[%s612 + $0xac] sm:$0xf]
      %v9616 = vld [vmem:[%s612 + $0xb0] sm:$0x1]
      %v9617 = vld [vmem:[%s612 + $0xb4] sm:$0xe]
      %v9618 = vld [vmem:[%s612 + $0xb8] sm:$0xf]
      %v9619 = vld [vmem:[%s612 + $0xbc] sm:$0x1]
      %v9668 = vrot.slane %v9572, 5
      %v9669 = vrot.slane %v9668, 4
      %v9670 = vrot.slane %v9573, 5
      %v9671 = vsel %vm2172, %v9669, %v9670
      %v9672 = vrot.slane %v9670, 4
      %v9673 = vrot.slane %v9574, 5
      %v9674 = vsel %vm2172, %v9672, %v9673
      %v9675 = vrot.slane %v9575, 5
      %v9676 = vrot.slane %v9675, 4
      %v9677 = vrot.slane %v9576, 5
      %v9678 = vsel %vm2172, %v9676, %v9677
      %v9679 = vrot.slane %v9677, 4
      %v9680 = vrot.slane %v9577, 5
      %v9681 = vsel %vm2172, %v9679, %v9680
      %v9682 = vrot.slane %v9578, 5
      %v9683 = vrot.slane %v9682, 4
      %v9684 = vrot.slane %v9579, 5
      %v9685 = vsel %vm2172, %v9683, %v9684
      %v9686 = vrot.slane %v9684, 4
      %v9687 = vrot.slane %v9580, 5
      %v9688 = vsel %vm2172, %v9686, %v9687
      %v9689 = vrot.slane %v9581, 5
      %v9690 = vrot.slane %v9689, 4
      %v9691 = vrot.slane %v9582, 5
      %v9692 = vsel %vm2172, %v9690, %v9691
      %v9693 = vrot.slane %v9691, 4
      %v9694 = vrot.slane %v9583, 5
      %v9695 = vsel %vm2172, %v9693, %v9694
      %v9696 = vrot.slane %v9584, 5
      %v9697 = vrot.slane %v9696, 4
      %v9698 = vrot.slane %v9585, 5
      %v9699 = vsel %vm2172, %v9697, %v9698
      %v9700 = vrot.slane %v9698, 4
      %v9701 = vrot.slane %v9586, 5
      %v9702 = vsel %vm2172, %v9700, %v9701
      %v9703 = vrot.slane %v9587, 5
      %v9704 = vrot.slane %v9703, 4
      %v9705 = vrot.slane %v9588, 5
      %v9706 = vsel %vm2172, %v9704, %v9705
      %v9707 = vrot.slane %v9705, 4
      %v9708 = vrot.slane %v9589, 5
      %v9709 = vsel %vm2172, %v9707, %v9708
      %v9710 = vrot.slane %v9590, 5
      %v9711 = vrot.slane %v9710, 4
      %v9712 = vrot.slane %v9591, 5
      %v9713 = vsel %vm2172, %v9711, %v9712
      %v9714 = vrot.slane %v9712, 4
      %v9715 = vrot.slane %v9592, 5
      %v9716 = vsel %vm2172, %v9714, %v9715
      %v9717 = vrot.slane %v9593, 5
      %v9718 = vrot.slane %v9717, 4
      %v9719 = vrot.slane %v9594, 5
      %v9720 = vsel %vm2172, %v9718, %v9719
      %v9721 = vrot.slane %v9719, 4
      %v9722 = vrot.slane %v9595, 5
      %v9723 = vsel %vm2172, %v9721, %v9722
      %v9724 = vrot.slane %v9596, 5
      %v9725 = vrot.slane %v9724, 4
      %v9726 = vrot.slane %v9597, 5
      %v9727 = vsel %vm2172, %v9725, %v9726
      %v9728 = vrot.slane %v9726, 4
      %v9729 = vrot.slane %v9598, 5
      %v9730 = vsel %vm2172, %v9728, %v9729
      %v9731 = vrot.slane %v9599, 5
      %v9732 = vrot.slane %v9731, 4
      %v9733 = vrot.slane %v9600, 5
      %v9734 = vsel %vm2172, %v9732, %v9733
      %v9735 = vrot.slane %v9733, 4
      %v9736 = vrot.slane %v9601, 5
      %v9737 = vsel %vm2172, %v9735, %v9736
      %v9738 = vrot.slane %v9602, 5
      %v9739 = vrot.slane %v9738, 4
      %v9740 = vrot.slane %v9603, 5
      %v9741 = vsel %vm2172, %v9739, %v9740
      %v9742 = vrot.slane %v9740, 4
      %v9743 = vrot.slane %v9604, 5
      %v9744 = vsel %vm2172, %v9742, %v9743
      %v9745 = vrot.slane %v9605, 5
      %v9746 = vrot.slane %v9745, 4
      %v9747 = vrot.slane %v9606, 5
      %v9748 = vsel %vm2172, %v9746, %v9747
      %v9749 = vrot.slane %v9747, 4
      %v9750 = vrot.slane %v9607, 5
      %v9751 = vsel %vm2172, %v9749, %v9750
      %v9752 = vrot.slane %v9608, 5
      %v9753 = vrot.slane %v9752, 4
      %v9754 = vrot.slane %v9609, 5
      %v9755 = vsel %vm2172, %v9753, %v9754
      %v9756 = vrot.slane %v9754, 4
      %v9757 = vrot.slane %v9610, 5
      %v9758 = vsel %vm2172, %v9756, %v9757
      %v9759 = vrot.slane %v9611, 5
      %v9760 = vrot.slane %v9759, 4
      %v9761 = vrot.slane %v9612, 5
      %v9762 = vsel %vm2172, %v9760, %v9761
      %v9763 = vrot.slane %v9761, 4
      %v9764 = vrot.slane %v9613, 5
      %v9765 = vsel %vm2172, %v9763, %v9764
      %v9766 = vrot.slane %v9614, 5
      %v9767 = vrot.slane %v9766, 4
      %v9768 = vrot.slane %v9615, 5
      %v9769 = vsel %vm2172, %v9767, %v9768
      %v9770 = vrot.slane %v9768, 4
      %v9771 = vrot.slane %v9616, 5
      %v9772 = vsel %vm2172, %v9770, %v9771
      %v9773 = vrot.slane %v9617, 5
      %v9774 = vrot.slane %v9773, 4
      %v9775 = vrot.slane %v9618, 5
      %v9776 = vsel %vm2172, %v9774, %v9775
      %v9777 = vrot.slane %v9775, 4
      %v9778 = vrot.slane %v9619, 5
      %v9779 = vsel %vm2172, %v9777, %v9778
      %s9780 = scalar_lea.vmem %s3, 320
      %v9781 = vld [vmem:[%s9780] sm:$0xf]
      %v9782 = vld [vmem:[%s9780 + $0x4] sm:$0xf]
      %v9783 = vld [vmem:[%s9780 + $0x8] sm:$0xf]
      %v9784 = vld [vmem:[%s9780 + $0xc] sm:$0xf]
      %v9785 = vld [vmem:[%s9780 + $0x10] sm:$0xf]
      %v9786 = vld [vmem:[%s9780 + $0x14] sm:$0xf]
      %v9787 = vld [vmem:[%s9780 + $0x18] sm:$0xf]
      %v9788 = vld [vmem:[%s9780 + $0x1c] sm:$0xf]
      %v9789 = vld [vmem:[%s9780 + $0x20] sm:$0xf]
      %v9790 = vld [vmem:[%s9780 + $0x24] sm:$0xf]
      %v9791 = vld [vmem:[%s9780 + $0x28] sm:$0xf]
      %v9792 = vld [vmem:[%s9780 + $0x2c] sm:$0xf]
      %v9793 = vld [vmem:[%s9780 + $0x30] sm:$0xf]
      %v9794 = vld [vmem:[%s9780 + $0x34] sm:$0xf]
      %v9795 = vld [vmem:[%s9780 + $0x38] sm:$0xf]
      %v9796 = vld [vmem:[%s9780 + $0x3c] sm:$0xf]
      %v9797 = vunpack.c.l.b16 %v9671
      %v9798 = vunpack.c.l.b16 %v9674
      %v9799 = vunpack.c.l.b16 %v9678
      %v9800 = vunpack.c.l.b16 %v9681
      %v9801 = vunpack.c.l.b16 %v9685
      %v9802 = vunpack.c.l.b16 %v9688
      %v9803 = vunpack.c.l.b16 %v9692
      %v9804 = vunpack.c.l.b16 %v9695
      %v9805 = vunpack.c.l.b16 %v9699
      %v9806 = vunpack.c.l.b16 %v9702
      %v9807 = vunpack.c.l.b16 %v9706
      %v9808 = vunpack.c.l.b16 %v9709
      %v9809 = vunpack.c.l.b16 %v9713
      %v9810 = vunpack.c.l.b16 %v9716
      %v9811 = vunpack.c.l.b16 %v9720
      %v9812 = vunpack.c.l.b16 %v9723
      %v9813 = vunpack.c.l.b16 %v9727
      %v9814 = vunpack.c.l.b16 %v9730
      %v9815 = vunpack.c.l.b16 %v9734
      %v9816 = vunpack.c.l.b16 %v9737
      %v9817 = vunpack.c.l.b16 %v9741
      %v9818 = vunpack.c.l.b16 %v9744
      %v9819 = vunpack.c.l.b16 %v9748
      %v9820 = vunpack.c.l.b16 %v9751
      %v9821 = vunpack.c.l.b16 %v9755
      %v9822 = vunpack.c.l.b16 %v9758
      %v9823 = vunpack.c.l.b16 %v9762
      %v9824 = vunpack.c.l.b16 %v9765
      %v9825 = vunpack.c.l.b16 %v9769
      %v9826 = vunpack.c.l.b16 %v9772
      %v9827 = vunpack.c.l.b16 %v9776
      %v9828 = vunpack.c.l.b16 %v9779
      %v9829 = vpack.c.b16 %v9798, %v9797
      %v9830 = vpack.c.b16 %v9800, %v9799
      %v9831 = vpack.c.b16 %v9802, %v9801
      %v9832 = vpack.c.b16 %v9804, %v9803
      %v9833 = vpack.c.b16 %v9806, %v9805
      %v9834 = vpack.c.b16 %v9808, %v9807
      %v9835 = vpack.c.b16 %v9810, %v9809
      %v9836 = vpack.c.b16 %v9812, %v9811
      %v9837 = vpack.c.b16 %v9814, %v9813
      %v9838 = vpack.c.b16 %v9816, %v9815
      %v9839 = vpack.c.b16 %v9818, %v9817
      %v9840 = vpack.c.b16 %v9820, %v9819
      %v9841 = vpack.c.b16 %v9822, %v9821
      %v9842 = vpack.c.b16 %v9824, %v9823
      %v9843 = vpack.c.b16 %v9826, %v9825
      %v9844 = vpack.c.b16 %v9828, %v9827
      %v9877 = vunpack.c.l.b16 %v9781
      %v9878 = vunpack.c.l.b16 %v9782
      %v9879 = vunpack.c.l.b16 %v9783
      %v9880 = vunpack.c.l.b16 %v9784
      %v9881 = vunpack.c.l.b16 %v9785
      %v9882 = vunpack.c.l.b16 %v9786
      %v9883 = vunpack.c.l.b16 %v9787
      %v9884 = vunpack.c.l.b16 %v9788
      %v9885 = vunpack.c.l.b16 %v9789
      %v9886 = vunpack.c.l.b16 %v9790
      %v9887 = vunpack.c.l.b16 %v9791
      %v9888 = vunpack.c.l.b16 %v9792
      %v9889 = vunpack.c.l.b16 %v9793
      %v9890 = vunpack.c.l.b16 %v9794
      %v9891 = vunpack.c.l.b16 %v9795
      %v9892 = vunpack.c.l.b16 %v9796
      %v9893 = vpack.c.b16 %v9878, %v9877
      %v9894 = vpack.c.b16 %v9880, %v9879
      %v9895 = vpack.c.b16 %v9882, %v9881
      %v9896 = vpack.c.b16 %v9884, %v9883
      %v9897 = vpack.c.b16 %v9886, %v9885
      %v9898 = vpack.c.b16 %v9888, %v9887
      %v9899 = vpack.c.b16 %v9890, %v9889
      %v9900 = vpack.c.b16 %v9892, %v9891
      %9909 = vmatpush.bf16.msra.mxu0 %v9900
      %9910 = vmatpush.bf16.msra.mxu0 %v9899
      %9911 = vmatpush.bf16.msra.mxu0 %v9898
      %9912 = vmatpush.bf16.msra.mxu0 %v9897
      %9913 = vmatpush.bf16.msra.mxu0 %v9896
      %9914 = vmatpush.bf16.msra.mxu0 %v9895
      %9915 = vmatpush.bf16.msra.mxu0 %v9894
      %9916 = vmatpush.bf16.msra.mxu0 %v9893
      %9917 = vmatmul.bf16.gmra.mxu0 %v9829
      %v9918 = vpop.f32.mrf.mxu0
      %v9919 = vadd.f32 0.0, %v9918
      %v9920 = vpop.f32.mrf.mxu0
      %v9921 = vadd.f32 0.0, %v9920
      %9922 = vmatmul.bf16.gmra.mxu0 %v9830
      %v9923 = vpop.f32.mrf.mxu0
      %v9924 = vadd.f32 0.0, %v9923
      %v9925 = vpop.f32.mrf.mxu0
      %v9926 = vadd.f32 0.0, %v9925
      %9927 = vmatmul.bf16.gmra.mxu0 %v9831
      %v9928 = vpop.f32.mrf.mxu0
      %v9929 = vadd.f32 0.0, %v9928
      %v9930 = vpop.f32.mrf.mxu0
      %v9931 = vadd.f32 0.0, %v9930
      %9932 = vmatmul.bf16.gmra.mxu0 %v9832
      %v9933 = vpop.f32.mrf.mxu0
      %v9934 = vadd.f32 0.0, %v9933
      %v9935 = vpop.f32.mrf.mxu0
      %v9936 = vadd.f32 0.0, %v9935
      %9937 = vmatmul.bf16.gmra.mxu0 %v9833
      %v9938 = vpop.f32.mrf.mxu0
      %v9939 = vadd.f32 0.0, %v9938
      %v9940 = vpop.f32.mrf.mxu0
      %v9941 = vadd.f32 0.0, %v9940
      %9942 = vmatmul.bf16.gmra.mxu0 %v9834
      %v9943 = vpop.f32.mrf.mxu0
      %v9944 = vadd.f32 0.0, %v9943
      %v9945 = vpop.f32.mrf.mxu0
      %v9946 = vadd.f32 0.0, %v9945
      %9947 = vmatmul.bf16.gmra.mxu0 %v9835
      %v9948 = vpop.f32.mrf.mxu0
      %v9949 = vadd.f32 0.0, %v9948
      %v9950 = vpop.f32.mrf.mxu0
      %v9951 = vadd.f32 0.0, %v9950
      %9952 = vmatmul.bf16.gmra.mxu0 %v9836
      %v9953 = vpop.f32.mrf.mxu0
      %v9954 = vadd.f32 0.0, %v9953
      %v9955 = vpop.f32.mrf.mxu0
      %v9956 = vadd.f32 0.0, %v9955
      %9957 = vmatmul.bf16.gmra.mxu0 %v9837
      %v9958 = vpop.f32.mrf.mxu0
      %v9959 = vadd.f32 0.0, %v9958
      %v9960 = vpop.f32.mrf.mxu0
      %v9961 = vadd.f32 0.0, %v9960
      %9962 = vmatmul.bf16.gmra.mxu0 %v9838
      %v9963 = vpop.f32.mrf.mxu0
      %v9964 = vadd.f32 0.0, %v9963
      %v9965 = vpop.f32.mrf.mxu0
      %v9966 = vadd.f32 0.0, %v9965
      %9967 = vmatmul.bf16.gmra.mxu0 %v9839
      %v9968 = vpop.f32.mrf.mxu0
      %v9969 = vadd.f32 0.0, %v9968
      %v9970 = vpop.f32.mrf.mxu0
      %v9971 = vadd.f32 0.0, %v9970
      %9972 = vmatmul.bf16.gmra.mxu0 %v9840
      %v9973 = vpop.f32.mrf.mxu0
      %v9974 = vadd.f32 0.0, %v9973
      %v9975 = vpop.f32.mrf.mxu0
      %v9976 = vadd.f32 0.0, %v9975
      %9977 = vmatmul.bf16.gmra.mxu0 %v9841
      %v9978 = vpop.f32.mrf.mxu0
      %v9979 = vadd.f32 0.0, %v9978
      %v9980 = vpop.f32.mrf.mxu0
      %v9981 = vadd.f32 0.0, %v9980
      %9982 = vmatmul.bf16.gmra.mxu0 %v9842
      %v9983 = vpop.f32.mrf.mxu0
      %v9984 = vadd.f32 0.0, %v9983
      %v9985 = vpop.f32.mrf.mxu0
      %v9986 = vadd.f32 0.0, %v9985
      %9987 = vmatmul.bf16.gmra.mxu0 %v9843
      %v9988 = vpop.f32.mrf.mxu0
      %v9989 = vadd.f32 0.0, %v9988
      %v9990 = vpop.f32.mrf.mxu0
      %v9991 = vadd.f32 0.0, %v9990
      %9992 = vmatmul.bf16.gmra.mxu0 %v9844
      %v9993 = vpop.f32.mrf.mxu0
      %v9994 = vadd.f32 0.0, %v9993
      %v9995 = vpop.f32.mrf.mxu0
      %v9996 = vadd.f32 0.0, %v9995
      %9997 = vdwg.mxu0
      %v9998 = vld [vmem:[#allocation3] sm:$0xff]
      %v9999 = vld [vmem:[#allocation3 + $0x8] sm:$0xff]
      %v10000 = vld [vmem:[#allocation3 + $0x10] sm:$0xff]
      %v10001 = vld [vmem:[#allocation3 + $0x18] sm:$0xff]
      %v10002 = vld [vmem:[#allocation3 + $0x20] sm:$0xff]
      %v10003 = vld [vmem:[#allocation3 + $0x28] sm:$0xff]
      %v10004 = vld [vmem:[#allocation3 + $0x30] sm:$0xff]
      %v10005 = vld [vmem:[#allocation3 + $0x38] sm:$0xff]
      %v10006 = vld [vmem:[#allocation3 + $0x40] sm:$0xff]
      %v10007 = vld [vmem:[#allocation3 + $0x48] sm:$0xff]
      %v10008 = vld [vmem:[#allocation3 + $0x50] sm:$0xff]
      %v10009 = vld [vmem:[#allocation3 + $0x58] sm:$0xff]
      %v10010 = vld [vmem:[#allocation3 + $0x60] sm:$0xff]
      %v10011 = vld [vmem:[#allocation3 + $0x68] sm:$0xff]
      %v10012 = vld [vmem:[#allocation3 + $0x70] sm:$0xff]
      %v10013 = vld [vmem:[#allocation3 + $0x78] sm:$0xff]
      %v10014 = vld [vmem:[#allocation3 + $0x80] sm:$0xff]
      %v10015 = vld [vmem:[#allocation3 + $0x88] sm:$0xff]
      %v10016 = vld [vmem:[#allocation3 + $0x90] sm:$0xff]
      %v10017 = vld [vmem:[#allocation3 + $0x98] sm:$0xff]
      %v10018 = vld [vmem:[#allocation3 + $0xa0] sm:$0xff]
      %v10019 = vld [vmem:[#allocation3 + $0xa8] sm:$0xff]
      %v10020 = vld [vmem:[#allocation3 + $0xb0] sm:$0xff]
      %v10021 = vld [vmem:[#allocation3 + $0xb8] sm:$0xff]
      %v10022 = vld [vmem:[#allocation3 + $0xc0] sm:$0xff]
      %v10023 = vld [vmem:[#allocation3 + $0xc8] sm:$0xff]
      %v10024 = vld [vmem:[#allocation3 + $0xd0] sm:$0xff]
      %v10025 = vld [vmem:[#allocation3 + $0xd8] sm:$0xff]
      %v10026 = vld [vmem:[#allocation3 + $0xe0] sm:$0xff]
      %v10027 = vld [vmem:[#allocation3 + $0xe8] sm:$0xff]
      %v10028 = vld [vmem:[#allocation3 + $0xf0] sm:$0xff]
      %v10029 = vld [vmem:[#allocation3 + $0xf8] sm:$0xff]
      %v10030 = vadd.f32 %v9998, %v9919
      %v10031 = vadd.f32 %v9999, %v9921
      %v10032 = vadd.f32 %v10000, %v9924
      %v10033 = vadd.f32 %v10001, %v9926
      %v10034 = vadd.f32 %v10002, %v9929
      %v10035 = vadd.f32 %v10003, %v9931
      %v10036 = vadd.f32 %v10004, %v9934
      %v10037 = vadd.f32 %v10005, %v9936
      %v10038 = vadd.f32 %v10006, %v9939
      %v10039 = vadd.f32 %v10007, %v9941
      %v10040 = vadd.f32 %v10008, %v9944
      %v10041 = vadd.f32 %v10009, %v9946
      %v10042 = vadd.f32 %v10010, %v9949
      %v10043 = vadd.f32 %v10011, %v9951
      %v10044 = vadd.f32 %v10012, %v9954
      %v10045 = vadd.f32 %v10013, %v9956
      %v10046 = vadd.f32 %v10014, %v9959
      %v10047 = vadd.f32 %v10015, %v9961
      %v10048 = vadd.f32 %v10016, %v9964
      %v10049 = vadd.f32 %v10017, %v9966
      %v10050 = vadd.f32 %v10018, %v9969
      %v10051 = vadd.f32 %v10019, %v9971
      %v10052 = vadd.f32 %v10020, %v9974
      %v10053 = vadd.f32 %v10021, %v9976
      %v10054 = vadd.f32 %v10022, %v9979
      %v10055 = vadd.f32 %v10023, %v9981
      %v10056 = vadd.f32 %v10024, %v9984
      %v10057 = vadd.f32 %v10025, %v9986
      %v10058 = vadd.f32 %v10026, %v9989
      %v10059 = vadd.f32 %v10027, %v9991
      %v10060 = vadd.f32 %v10028, %v9994
      %v10061 = vadd.f32 %v10029, %v9996
      %10062 = vst [vmem:[#allocation3] sm:$0xff] %v10030
      %10063 = vst [vmem:[#allocation3 + $0x8] sm:$0xff] %v10031
      %10064 = vst [vmem:[#allocation3 + $0x10] sm:$0xff] %v10032
      %10065 = vst [vmem:[#allocation3 + $0x18] sm:$0xff] %v10033
      %10066 = vst [vmem:[#allocation3 + $0x20] sm:$0xff] %v10034
      %10067 = vst [vmem:[#allocation3 + $0x28] sm:$0xff] %v10035
      %10068 = vst [vmem:[#allocation3 + $0x30] sm:$0xff] %v10036
      %10069 = vst [vmem:[#allocation3 + $0x38] sm:$0xff] %v10037
      %10070 = vst [vmem:[#allocation3 + $0x40] sm:$0xff] %v10038
      %10071 = vst [vmem:[#allocation3 + $0x48] sm:$0xff] %v10039
      %10072 = vst [vmem:[#allocation3 + $0x50] sm:$0xff] %v10040
      %10073 = vst [vmem:[#allocation3 + $0x58] sm:$0xff] %v10041
      %10074 = vst [vmem:[#allocation3 + $0x60] sm:$0xff] %v10042
      %10075 = vst [vmem:[#allocation3 + $0x68] sm:$0xff] %v10043
      %10076 = vst [vmem:[#allocation3 + $0x70] sm:$0xff] %v10044
      %10077 = vst [vmem:[#allocation3 + $0x78] sm:$0xff] %v10045
      %10078 = vst [vmem:[#allocation3 + $0x80] sm:$0xff] %v10046
      %10079 = vst [vmem:[#allocation3 + $0x88] sm:$0xff] %v10047
      %10080 = vst [vmem:[#allocation3 + $0x90] sm:$0xff] %v10048
      %10081 = vst [vmem:[#allocation3 + $0x98] sm:$0xff] %v10049
      %10082 = vst [vmem:[#allocation3 + $0xa0] sm:$0xff] %v10050
      %10083 = vst [vmem:[#allocation3 + $0xa8] sm:$0xff] %v10051
      %10084 = vst [vmem:[#allocation3 + $0xb0] sm:$0xff] %v10052
      %10085 = vst [vmem:[#allocation3 + $0xb8] sm:$0xff] %v10053
      %10086 = vst [vmem:[#allocation3 + $0xc0] sm:$0xff] %v10054
      %10087 = vst [vmem:[#allocation3 + $0xc8] sm:$0xff] %v10055
      %10088 = vst [vmem:[#allocation3 + $0xd0] sm:$0xff] %v10056
      %10089 = vst [vmem:[#allocation3 + $0xd8] sm:$0xff] %v10057
      %10090 = vst [vmem:[#allocation3 + $0xe0] sm:$0xff] %v10058
      %10091 = vst [vmem:[#allocation3 + $0xe8] sm:$0xff] %v10059
      %10092 = vst [vmem:[#allocation3 + $0xf0] sm:$0xff] %v10060
      %10093 = vst [vmem:[#allocation3 + $0xf8] sm:$0xff] %v10061
      %v10094 = vld [vmem:[%s4245] sm:$0xf]
      %v10095 = vld [vmem:[%s4245 + $0x4] sm:$0xf]
      %v10096 = vld [vmem:[%s4245 + $0xc] sm:$0xf]
      %v10097 = vld [vmem:[%s4245 + $0x10] sm:$0xf]
      %v10098 = vld [vmem:[%s4245 + $0x18] sm:$0xf]
      %v10099 = vld [vmem:[%s4245 + $0x1c] sm:$0xf]
      %v10100 = vld [vmem:[%s4245 + $0x24] sm:$0xf]
      %v10101 = vld [vmem:[%s4245 + $0x28] sm:$0xf]
      %v10102 = vld [vmem:[%s4245 + $0x30] sm:$0xf]
      %v10103 = vld [vmem:[%s4245 + $0x34] sm:$0xf]
      %v10104 = vld [vmem:[%s4245 + $0x3c] sm:$0xf]
      %v10105 = vld [vmem:[%s4245 + $0x40] sm:$0xf]
      %v10106 = vld [vmem:[%s4245 + $0x48] sm:$0xf]
      %v10107 = vld [vmem:[%s4245 + $0x4c] sm:$0xf]
      %v10108 = vld [vmem:[%s4245 + $0x54] sm:$0xf]
      %v10109 = vld [vmem:[%s4245 + $0x58] sm:$0xf]
      %v10110 = vld [vmem:[%s4245 + $0x60] sm:$0xf]
      %v10111 = vld [vmem:[%s4245 + $0x64] sm:$0xf]
      %v10112 = vld [vmem:[%s4245 + $0x6c] sm:$0xf]
      %v10113 = vld [vmem:[%s4245 + $0x70] sm:$0xf]
      %v10114 = vld [vmem:[%s4245 + $0x78] sm:$0xf]
      %v10115 = vld [vmem:[%s4245 + $0x7c] sm:$0xf]
      %v10116 = vld [vmem:[%s4245 + $0x84] sm:$0xf]
      %v10117 = vld [vmem:[%s4245 + $0x88] sm:$0xf]
      %v10118 = vld [vmem:[%s4245 + $0x90] sm:$0xf]
      %v10119 = vld [vmem:[%s4245 + $0x94] sm:$0xf]
      %v10120 = vld [vmem:[%s4245 + $0x9c] sm:$0xf]
      %v10121 = vld [vmem:[%s4245 + $0xa0] sm:$0xf]
      %v10122 = vld [vmem:[%s4245 + $0xa8] sm:$0xf]
      %v10123 = vld [vmem:[%s4245 + $0xac] sm:$0xf]
      %v10124 = vld [vmem:[%s4245 + $0xb4] sm:$0xf]
      %v10125 = vld [vmem:[%s4245 + $0xb8] sm:$0xf]
      %s10126 = scalar_lea.vmem %s3, 384
      %v10127 = vld [vmem:[%s10126] sm:$0xf]
      %v10128 = vld [vmem:[%s10126 + $0x4] sm:$0xf]
      %v10129 = vld [vmem:[%s10126 + $0x8] sm:$0xf]
      %v10130 = vld [vmem:[%s10126 + $0xc] sm:$0xf]
      %v10131 = vld [vmem:[%s10126 + $0x10] sm:$0xf]
      %v10132 = vld [vmem:[%s10126 + $0x14] sm:$0xf]
      %v10133 = vld [vmem:[%s10126 + $0x18] sm:$0xf]
      %v10134 = vld [vmem:[%s10126 + $0x1c] sm:$0xf]
      %v10135 = vld [vmem:[%s10126 + $0x20] sm:$0xf]
      %v10136 = vld [vmem:[%s10126 + $0x24] sm:$0xf]
      %v10137 = vld [vmem:[%s10126 + $0x28] sm:$0xf]
      %v10138 = vld [vmem:[%s10126 + $0x2c] sm:$0xf]
      %v10139 = vld [vmem:[%s10126 + $0x30] sm:$0xf]
      %v10140 = vld [vmem:[%s10126 + $0x34] sm:$0xf]
      %v10141 = vld [vmem:[%s10126 + $0x38] sm:$0xf]
      %v10142 = vld [vmem:[%s10126 + $0x3c] sm:$0xf]
      %v10175 = vunpack.c.l.b16 %v10094
      %v10176 = vunpack.c.l.b16 %v10095
      %v10177 = vunpack.c.l.b16 %v10096
      %v10178 = vunpack.c.l.b16 %v10097
      %v10179 = vunpack.c.l.b16 %v10098
      %v10180 = vunpack.c.l.b16 %v10099
      %v10181 = vunpack.c.l.b16 %v10100
      %v10182 = vunpack.c.l.b16 %v10101
      %v10183 = vunpack.c.l.b16 %v10102
      %v10184 = vunpack.c.l.b16 %v10103
      %v10185 = vunpack.c.l.b16 %v10104
      %v10186 = vunpack.c.l.b16 %v10105
      %v10187 = vunpack.c.l.b16 %v10106
      %v10188 = vunpack.c.l.b16 %v10107
      %v10189 = vunpack.c.l.b16 %v10108
      %v10190 = vunpack.c.l.b16 %v10109
      %v10191 = vunpack.c.l.b16 %v10110
      %v10192 = vunpack.c.l.b16 %v10111
      %v10193 = vunpack.c.l.b16 %v10112
      %v10194 = vunpack.c.l.b16 %v10113
      %v10195 = vunpack.c.l.b16 %v10114
      %v10196 = vunpack.c.l.b16 %v10115
      %v10197 = vunpack.c.l.b16 %v10116
      %v10198 = vunpack.c.l.b16 %v10117
      %v10199 = vunpack.c.l.b16 %v10118
      %v10200 = vunpack.c.l.b16 %v10119
      %v10201 = vunpack.c.l.b16 %v10120
      %v10202 = vunpack.c.l.b16 %v10121
      %v10203 = vunpack.c.l.b16 %v10122
      %v10204 = vunpack.c.l.b16 %v10123
      %v10205 = vunpack.c.l.b16 %v10124
      %v10206 = vunpack.c.l.b16 %v10125
      %v10207 = vpack.c.b16 %v10176, %v10175
      %v10208 = vpack.c.b16 %v10178, %v10177
      %v10209 = vpack.c.b16 %v10180, %v10179
      %v10210 = vpack.c.b16 %v10182, %v10181
      %v10211 = vpack.c.b16 %v10184, %v10183
      %v10212 = vpack.c.b16 %v10186, %v10185
      %v10213 = vpack.c.b16 %v10188, %v10187
      %v10214 = vpack.c.b16 %v10190, %v10189
      %v10215 = vpack.c.b16 %v10192, %v10191
      %v10216 = vpack.c.b16 %v10194, %v10193
      %v10217 = vpack.c.b16 %v10196, %v10195
      %v10218 = vpack.c.b16 %v10198, %v10197
      %v10219 = vpack.c.b16 %v10200, %v10199
      %v10220 = vpack.c.b16 %v10202, %v10201
      %v10221 = vpack.c.b16 %v10204, %v10203
      %v10222 = vpack.c.b16 %v10206, %v10205
      %v10255 = vunpack.c.l.b16 %v10127
      %v10256 = vunpack.c.l.b16 %v10128
      %v10257 = vunpack.c.l.b16 %v10129
      %v10258 = vunpack.c.l.b16 %v10130
      %v10259 = vunpack.c.l.b16 %v10131
      %v10260 = vunpack.c.l.b16 %v10132
      %v10261 = vunpack.c.l.b16 %v10133
      %v10262 = vunpack.c.l.b16 %v10134
      %v10263 = vunpack.c.l.b16 %v10135
      %v10264 = vunpack.c.l.b16 %v10136
      %v10265 = vunpack.c.l.b16 %v10137
      %v10266 = vunpack.c.l.b16 %v10138
      %v10267 = vunpack.c.l.b16 %v10139
      %v10268 = vunpack.c.l.b16 %v10140
      %v10269 = vunpack.c.l.b16 %v10141
      %v10270 = vunpack.c.l.b16 %v10142
      %v10271 = vpack.c.b16 %v10256, %v10255
      %v10272 = vpack.c.b16 %v10258, %v10257
      %v10273 = vpack.c.b16 %v10260, %v10259
      %v10274 = vpack.c.b16 %v10262, %v10261
      %v10275 = vpack.c.b16 %v10264, %v10263
      %v10276 = vpack.c.b16 %v10266, %v10265
      %v10277 = vpack.c.b16 %v10268, %v10267
      %v10278 = vpack.c.b16 %v10270, %v10269
      %10287 = vmatpush.bf16.msra.mxu0 %v10278
      %10288 = vmatpush.bf16.msra.mxu0 %v10277
      %10289 = vmatpush.bf16.msra.mxu0 %v10276
      %10290 = vmatpush.bf16.msra.mxu0 %v10275
      %10291 = vmatpush.bf16.msra.mxu0 %v10274
      %10292 = vmatpush.bf16.msra.mxu0 %v10273
      %10293 = vmatpush.bf16.msra.mxu0 %v10272
      %10294 = vmatpush.bf16.msra.mxu0 %v10271
      %10295 = vmatmul.bf16.gmra.mxu0 %v10207
      %v10296 = vpop.f32.mrf.mxu0
      %v10297 = vadd.f32 0.0, %v10296
      %v10298 = vpop.f32.mrf.mxu0
      %v10299 = vadd.f32 0.0, %v10298
      %10300 = vmatmul.bf16.gmra.mxu0 %v10208
      %v10301 = vpop.f32.mrf.mxu0
      %v10302 = vadd.f32 0.0, %v10301
      %v10303 = vpop.f32.mrf.mxu0
      %v10304 = vadd.f32 0.0, %v10303
      %10305 = vmatmul.bf16.gmra.mxu0 %v10209
      %v10306 = vpop.f32.mrf.mxu0
      %v10307 = vadd.f32 0.0, %v10306
      %v10308 = vpop.f32.mrf.mxu0
      %v10309 = vadd.f32 0.0, %v10308
      %10310 = vmatmul.bf16.gmra.mxu0 %v10210
      %v10311 = vpop.f32.mrf.mxu0
      %v10312 = vadd.f32 0.0, %v10311
      %v10313 = vpop.f32.mrf.mxu0
      %v10314 = vadd.f32 0.0, %v10313
      %10315 = vmatmul.bf16.gmra.mxu0 %v10211
      %v10316 = vpop.f32.mrf.mxu0
      %v10317 = vadd.f32 0.0, %v10316
      %v10318 = vpop.f32.mrf.mxu0
      %v10319 = vadd.f32 0.0, %v10318
      %10320 = vmatmul.bf16.gmra.mxu0 %v10212
      %v10321 = vpop.f32.mrf.mxu0
      %v10322 = vadd.f32 0.0, %v10321
      %v10323 = vpop.f32.mrf.mxu0
      %v10324 = vadd.f32 0.0, %v10323
      %10325 = vmatmul.bf16.gmra.mxu0 %v10213
      %v10326 = vpop.f32.mrf.mxu0
      %v10327 = vadd.f32 0.0, %v10326
      %v10328 = vpop.f32.mrf.mxu0
      %v10329 = vadd.f32 0.0, %v10328
      %10330 = vmatmul.bf16.gmra.mxu0 %v10214
      %v10331 = vpop.f32.mrf.mxu0
      %v10332 = vadd.f32 0.0, %v10331
      %v10333 = vpop.f32.mrf.mxu0
      %v10334 = vadd.f32 0.0, %v10333
      %10335 = vmatmul.bf16.gmra.mxu0 %v10215
      %v10336 = vpop.f32.mrf.mxu0
      %v10337 = vadd.f32 0.0, %v10336
      %v10338 = vpop.f32.mrf.mxu0
      %v10339 = vadd.f32 0.0, %v10338
      %10340 = vmatmul.bf16.gmra.mxu0 %v10216
      %v10341 = vpop.f32.mrf.mxu0
      %v10342 = vadd.f32 0.0, %v10341
      %v10343 = vpop.f32.mrf.mxu0
      %v10344 = vadd.f32 0.0, %v10343
      %10345 = vmatmul.bf16.gmra.mxu0 %v10217
      %v10346 = vpop.f32.mrf.mxu0
      %v10347 = vadd.f32 0.0, %v10346
      %v10348 = vpop.f32.mrf.mxu0
      %v10349 = vadd.f32 0.0, %v10348
      %10350 = vmatmul.bf16.gmra.mxu0 %v10218
      %v10351 = vpop.f32.mrf.mxu0
      %v10352 = vadd.f32 0.0, %v10351
      %v10353 = vpop.f32.mrf.mxu0
      %v10354 = vadd.f32 0.0, %v10353
      %10355 = vmatmul.bf16.gmra.mxu0 %v10219
      %v10356 = vpop.f32.mrf.mxu0
      %v10357 = vadd.f32 0.0, %v10356
      %v10358 = vpop.f32.mrf.mxu0
      %v10359 = vadd.f32 0.0, %v10358
      %10360 = vmatmul.bf16.gmra.mxu0 %v10220
      %v10361 = vpop.f32.mrf.mxu0
      %v10362 = vadd.f32 0.0, %v10361
      %v10363 = vpop.f32.mrf.mxu0
      %v10364 = vadd.f32 0.0, %v10363
      %10365 = vmatmul.bf16.gmra.mxu0 %v10221
      %v10366 = vpop.f32.mrf.mxu0
      %v10367 = vadd.f32 0.0, %v10366
      %v10368 = vpop.f32.mrf.mxu0
      %v10369 = vadd.f32 0.0, %v10368
      %10370 = vmatmul.bf16.gmra.mxu0 %v10222
      %v10371 = vpop.f32.mrf.mxu0
      %v10372 = vadd.f32 0.0, %v10371
      %v10373 = vpop.f32.mrf.mxu0
      %v10374 = vadd.f32 0.0, %v10373
      %10375 = vdwg.mxu0
      %v10376 = vld [vmem:[#allocation3] sm:$0xff]
      %v10377 = vld [vmem:[#allocation3 + $0x8] sm:$0xff]
      %v10378 = vld [vmem:[#allocation3 + $0x10] sm:$0xff]
      %v10379 = vld [vmem:[#allocation3 + $0x18] sm:$0xff]
      %v10380 = vld [vmem:[#allocation3 + $0x20] sm:$0xff]
      %v10381 = vld [vmem:[#allocation3 + $0x28] sm:$0xff]
      %v10382 = vld [vmem:[#allocation3 + $0x30] sm:$0xff]
      %v10383 = vld [vmem:[#allocation3 + $0x38] sm:$0xff]
      %v10384 = vld [vmem:[#allocation3 + $0x40] sm:$0xff]
      %v10385 = vld [vmem:[#allocation3 + $0x48] sm:$0xff]
      %v10386 = vld [vmem:[#allocation3 + $0x50] sm:$0xff]
      %v10387 = vld [vmem:[#allocation3 + $0x58] sm:$0xff]
      %v10388 = vld [vmem:[#allocation3 + $0x60] sm:$0xff]
      %v10389 = vld [vmem:[#allocation3 + $0x68] sm:$0xff]
      %v10390 = vld [vmem:[#allocation3 + $0x70] sm:$0xff]
      %v10391 = vld [vmem:[#allocation3 + $0x78] sm:$0xff]
      %v10392 = vld [vmem:[#allocation3 + $0x80] sm:$0xff]
      %v10393 = vld [vmem:[#allocation3 + $0x88] sm:$0xff]
      %v10394 = vld [vmem:[#allocation3 + $0x90] sm:$0xff]
      %v10395 = vld [vmem:[#allocation3 + $0x98] sm:$0xff]
      %v10396 = vld [vmem:[#allocation3 + $0xa0] sm:$0xff]
      %v10397 = vld [vmem:[#allocation3 + $0xa8] sm:$0xff]
      %v10398 = vld [vmem:[#allocation3 + $0xb0] sm:$0xff]
      %v10399 = vld [vmem:[#allocation3 + $0xb8] sm:$0xff]
      %v10400 = vld [vmem:[#allocation3 + $0xc0] sm:$0xff]
      %v10401 = vld [vmem:[#allocation3 + $0xc8] sm:$0xff]
      %v10402 = vld [vmem:[#allocation3 + $0xd0] sm:$0xff]
      %v10403 = vld [vmem:[#allocation3 + $0xd8] sm:$0xff]
      %v10404 = vld [vmem:[#allocation3 + $0xe0] sm:$0xff]
      %v10405 = vld [vmem:[#allocation3 + $0xe8] sm:$0xff]
      %v10406 = vld [vmem:[#allocation3 + $0xf0] sm:$0xff]
      %v10407 = vld [vmem:[#allocation3 + $0xf8] sm:$0xff]
      %v10408 = vadd.f32 %v10376, %v10297
      %v10409 = vadd.f32 %v10377, %v10299
      %v10410 = vadd.f32 %v10378, %v10302
      %v10411 = vadd.f32 %v10379, %v10304
      %v10412 = vadd.f32 %v10380, %v10307
      %v10413 = vadd.f32 %v10381, %v10309
      %v10414 = vadd.f32 %v10382, %v10312
      %v10415 = vadd.f32 %v10383, %v10314
      %v10416 = vadd.f32 %v10384, %v10317
      %v10417 = vadd.f32 %v10385, %v10319
      %v10418 = vadd.f32 %v10386, %v10322
      %v10419 = vadd.f32 %v10387, %v10324
      %v10420 = vadd.f32 %v10388, %v10327
      %v10421 = vadd.f32 %v10389, %v10329
      %v10422 = vadd.f32 %v10390, %v10332
      %v10423 = vadd.f32 %v10391, %v10334
      %v10424 = vadd.f32 %v10392, %v10337
      %v10425 = vadd.f32 %v10393, %v10339
      %v10426 = vadd.f32 %v10394, %v10342
      %v10427 = vadd.f32 %v10395, %v10344
      %v10428 = vadd.f32 %v10396, %v10347
      %v10429 = vadd.f32 %v10397, %v10349
      %v10430 = vadd.f32 %v10398, %v10352
      %v10431 = vadd.f32 %v10399, %v10354
      %v10432 = vadd.f32 %v10400, %v10357
      %v10433 = vadd.f32 %v10401, %v10359
      %v10434 = vadd.f32 %v10402, %v10362
      %v10435 = vadd.f32 %v10403, %v10364
      %v10436 = vadd.f32 %v10404, %v10367
      %v10437 = vadd.f32 %v10405, %v10369
      %v10438 = vadd.f32 %v10406, %v10372
      %v10439 = vadd.f32 %v10407, %v10374
      %10440 = vst [vmem:[#allocation3] sm:$0xff] %v10408
      %10441 = vst [vmem:[#allocation3 + $0x8] sm:$0xff] %v10409
      %10442 = vst [vmem:[#allocation3 + $0x10] sm:$0xff] %v10410
      %10443 = vst [vmem:[#allocation3 + $0x18] sm:$0xff] %v10411
      %10444 = vst [vmem:[#allocation3 + $0x20] sm:$0xff] %v10412
      %10445 = vst [vmem:[#allocation3 + $0x28] sm:$0xff] %v10413
      %10446 = vst [vmem:[#allocation3 + $0x30] sm:$0xff] %v10414
      %10447 = vst [vmem:[#allocation3 + $0x38] sm:$0xff] %v10415
      %10448 = vst [vmem:[#allocation3 + $0x40] sm:$0xff] %v10416
      %10449 = vst [vmem:[#allocation3 + $0x48] sm:$0xff] %v10417
      %10450 = vst [vmem:[#allocation3 + $0x50] sm:$0xff] %v10418
      %10451 = vst [vmem:[#allocation3 + $0x58] sm:$0xff] %v10419
      %10452 = vst [vmem:[#allocation3 + $0x60] sm:$0xff] %v10420
      %10453 = vst [vmem:[#allocation3 + $0x68] sm:$0xff] %v10421
      %10454 = vst [vmem:[#allocation3 + $0x70] sm:$0xff] %v10422
      %10455 = vst [vmem:[#allocation3 + $0x78] sm:$0xff] %v10423
      %10456 = vst [vmem:[#allocation3 + $0x80] sm:$0xff] %v10424
      %10457 = vst [vmem:[#allocation3 + $0x88] sm:$0xff] %v10425
      %10458 = vst [vmem:[#allocation3 + $0x90] sm:$0xff] %v10426
      %10459 = vst [vmem:[#allocation3 + $0x98] sm:$0xff] %v10427
      %10460 = vst [vmem:[#allocation3 + $0xa0] sm:$0xff] %v10428
      %10461 = vst [vmem:[#allocation3 + $0xa8] sm:$0xff] %v10429
      %10462 = vst [vmem:[#allocation3 + $0xb0] sm:$0xff] %v10430
      %10463 = vst [vmem:[#allocation3 + $0xb8] sm:$0xff] %v10431
      %10464 = vst [vmem:[#allocation3 + $0xc0] sm:$0xff] %v10432
      %10465 = vst [vmem:[#allocation3 + $0xc8] sm:$0xff] %v10433
      %10466 = vst [vmem:[#allocation3 + $0xd0] sm:$0xff] %v10434
      %10467 = vst [vmem:[#allocation3 + $0xd8] sm:$0xff] %v10435
      %10468 = vst [vmem:[#allocation3 + $0xe0] sm:$0xff] %v10436
      %10469 = vst [vmem:[#allocation3 + $0xe8] sm:$0xff] %v10437
      %10470 = vst [vmem:[#allocation3 + $0xf0] sm:$0xff] %v10438
      %10471 = vst [vmem:[#allocation3 + $0xf8] sm:$0xff] %v10439
      %v10472 = vld [vmem:[%s4245] sm:$0xf]
      %v10473 = vld [vmem:[%s4245 + $0x4] sm:$0xf]
      %v10474 = vld [vmem:[%s4245 + $0x8] sm:$0x1]
      %v10475 = vld [vmem:[%s4245 + $0xc] sm:$0xf]
      %v10476 = vld [vmem:[%s4245 + $0x10] sm:$0xf]
      %v10477 = vld [vmem:[%s4245 + $0x14] sm:$0x1]
      %v10478 = vld [vmem:[%s4245 + $0x18] sm:$0xf]
      %v10479 = vld [vmem:[%s4245 + $0x1c] sm:$0xf]
      %v10480 = vld [vmem:[%s4245 + $0x20] sm:$0x1]
      %v10481 = vld [vmem:[%s4245 + $0x24] sm:$0xf]
      %v10482 = vld [vmem:[%s4245 + $0x28] sm:$0xf]
      %v10483 = vld [vmem:[%s4245 + $0x2c] sm:$0x1]
      %v10484 = vld [vmem:[%s4245 + $0x30] sm:$0xf]
      %v10485 = vld [vmem:[%s4245 + $0x34] sm:$0xf]
      %v10486 = vld [vmem:[%s4245 + $0x38] sm:$0x1]
      %v10487 = vld [vmem:[%s4245 + $0x3c] sm:$0xf]
      %v10488 = vld [vmem:[%s4245 + $0x40] sm:$0xf]
      %v10489 = vld [vmem:[%s4245 + $0x44] sm:$0x1]
      %v10490 = vld [vmem:[%s4245 + $0x48] sm:$0xf]
      %v10491 = vld [vmem:[%s4245 + $0x4c] sm:$0xf]
      %v10492 = vld [vmem:[%s4245 + $0x50] sm:$0x1]
      %v10493 = vld [vmem:[%s4245 + $0x54] sm:$0xf]
      %v10494 = vld [vmem:[%s4245 + $0x58] sm:$0xf]
      %v10495 = vld [vmem:[%s4245 + $0x5c] sm:$0x1]
      %v10496 = vld [vmem:[%s4245 + $0x60] sm:$0xf]
      %v10497 = vld [vmem:[%s4245 + $0x64] sm:$0xf]
      %v10498 = vld [vmem:[%s4245 + $0x68] sm:$0x1]
      %v10499 = vld [vmem:[%s4245 + $0x6c] sm:$0xf]
      %v10500 = vld [vmem:[%s4245 + $0x70] sm:$0xf]
      %v10501 = vld [vmem:[%s4245 + $0x74] sm:$0x1]
      %v10502 = vld [vmem:[%s4245 + $0x78] sm:$0xf]
      %v10503 = vld [vmem:[%s4245 + $0x7c] sm:$0xf]
      %v10504 = vld [vmem:[%s4245 + $0x80] sm:$0x1]
      %v10505 = vld [vmem:[%s4245 + $0x84] sm:$0xf]
      %v10506 = vld [vmem:[%s4245 + $0x88] sm:$0xf]
      %v10507 = vld [vmem:[%s4245 + $0x8c] sm:$0x1]
      %v10508 = vld [vmem:[%s4245 + $0x90] sm:$0xf]
      %v10509 = vld [vmem:[%s4245 + $0x94] sm:$0xf]
      %v10510 = vld [vmem:[%s4245 + $0x98] sm:$0x1]
      %v10511 = vld [vmem:[%s4245 + $0x9c] sm:$0xf]
      %v10512 = vld [vmem:[%s4245 + $0xa0] sm:$0xf]
      %v10513 = vld [vmem:[%s4245 + $0xa4] sm:$0x1]
      %v10514 = vld [vmem:[%s4245 + $0xa8] sm:$0xf]
      %v10515 = vld [vmem:[%s4245 + $0xac] sm:$0xf]
      %v10516 = vld [vmem:[%s4245 + $0xb0] sm:$0x1]
      %v10517 = vld [vmem:[%s4245 + $0xb4] sm:$0xf]
      %v10518 = vld [vmem:[%s4245 + $0xb8] sm:$0xf]
      %v10519 = vld [vmem:[%s4245 + $0xbc] sm:$0x1]
      %v10521 = vshrl.u32 %v10472, 16
      %v10523 = vrot.slane %v10521, 4
      %v10524 = vshll.u32 %v10472, 16
      %v10526 = vrot.slane %v10524, 5
      %v10527 = vor.u32 %v10523, %v10526
      %v10528 = vrot.slane %v10527, 4
      %v10530 = vshll.u32 %v10473, 16
      %v10532 = vrot.slane %v10530, 5
      %v10533 = vsel %vm1375, %v10528, %v10532
      %v10534 = vshrl.u32 %v10473, 16
      %v10536 = vrot.slane %v10534, 4
      %v10537 = vor.u32 %v10536, %v10532
      %v10538 = vrot.slane %v10537, 4
      %v10540 = vshll.u32 %v10474, 16
      %v10542 = vrot.slane %v10540, 5
      %v10543 = vsel %vm1375, %v10538, %v10542
      %v10545 = vshrl.u32 %v10475, 16
      %v10547 = vrot.slane %v10545, 4
      %v10548 = vshll.u32 %v10475, 16
      %v10550 = vrot.slane %v10548, 5
      %v10551 = vor.u32 %v10547, %v10550
      %v10552 = vrot.slane %v10551, 4
      %v10554 = vshll.u32 %v10476, 16
      %v10556 = vrot.slane %v10554, 5
      %v10557 = vsel %vm1375, %v10552, %v10556
      %v10558 = vshrl.u32 %v10476, 16
      %v10560 = vrot.slane %v10558, 4
      %v10561 = vor.u32 %v10560, %v10556
      %v10562 = vrot.slane %v10561, 4
      %v10564 = vshll.u32 %v10477, 16
      %v10566 = vrot.slane %v10564, 5
      %v10567 = vsel %vm1375, %v10562, %v10566
      %v10569 = vshrl.u32 %v10478, 16
      %v10571 = vrot.slane %v10569, 4
      %v10572 = vshll.u32 %v10478, 16
      %v10574 = vrot.slane %v10572, 5
      %v10575 = vor.u32 %v10571, %v10574
      %v10576 = vrot.slane %v10575, 4
      %v10578 = vshll.u32 %v10479, 16
      %v10580 = vrot.slane %v10578, 5
      %v10581 = vsel %vm1375, %v10576, %v10580
      %v10582 = vshrl.u32 %v10479, 16
      %v10584 = vrot.slane %v10582, 4
      %v10585 = vor.u32 %v10584, %v10580
      %v10586 = vrot.slane %v10585, 4
      %v10588 = vshll.u32 %v10480, 16
      %v10590 = vrot.slane %v10588, 5
      %v10591 = vsel %vm1375, %v10586, %v10590
      %v10593 = vshrl.u32 %v10481, 16
      %v10595 = vrot.slane %v10593, 4
      %v10596 = vshll.u32 %v10481, 16
      %v10598 = vrot.slane %v10596, 5
      %v10599 = vor.u32 %v10595, %v10598
      %v10600 = vrot.slane %v10599, 4
      %v10602 = vshll.u32 %v10482, 16
      %v10604 = vrot.slane %v10602, 5
      %v10605 = vsel %vm1375, %v10600, %v10604
      %v10606 = vshrl.u32 %v10482, 16
      %v10608 = vrot.slane %v10606, 4
      %v10609 = vor.u32 %v10608, %v10604
      %v10610 = vrot.slane %v10609, 4
      %v10612 = vshll.u32 %v10483, 16
      %v10614 = vrot.slane %v10612, 5
      %v10615 = vsel %vm1375, %v10610, %v10614
      %v10617 = vshrl.u32 %v10484, 16
      %v10619 = vrot.slane %v10617, 4
      %v10620 = vshll.u32 %v10484, 16
      %v10622 = vrot.slane %v10620, 5
      %v10623 = vor.u32 %v10619, %v10622
      %v10624 = vrot.slane %v10623, 4
      %v10626 = vshll.u32 %v10485, 16
      %v10628 = vrot.slane %v10626, 5
      %v10629 = vsel %vm1375, %v10624, %v10628
      %v10630 = vshrl.u32 %v10485, 16
      %v10632 = vrot.slane %v10630, 4
      %v10633 = vor.u32 %v10632, %v10628
      %v10634 = vrot.slane %v10633, 4
      %v10636 = vshll.u32 %v10486, 16
      %v10638 = vrot.slane %v10636, 5
      %v10639 = vsel %vm1375, %v10634, %v10638
      %v10641 = vshrl.u32 %v10487, 16
      %v10643 = vrot.slane %v10641, 4
      %v10644 = vshll.u32 %v10487, 16
      %v10646 = vrot.slane %v10644, 5
      %v10647 = vor.u32 %v10643, %v10646
      %v10648 = vrot.slane %v10647, 4
      %v10650 = vshll.u32 %v10488, 16
      %v10652 = vrot.slane %v10650, 5
      %v10653 = vsel %vm1375, %v10648, %v10652
      %v10654 = vshrl.u32 %v10488, 16
      %v10656 = vrot.slane %v10654, 4
      %v10657 = vor.u32 %v10656, %v10652
      %v10658 = vrot.slane %v10657, 4
      %v10660 = vshll.u32 %v10489, 16
      %v10662 = vrot.slane %v10660, 5
      %v10663 = vsel %vm1375, %v10658, %v10662
      %v10665 = vshrl.u32 %v10490, 16
      %v10667 = vrot.slane %v10665, 4
      %v10668 = vshll.u32 %v10490, 16
      %v10670 = vrot.slane %v10668, 5
      %v10671 = vor.u32 %v10667, %v10670
      %v10672 = vrot.slane %v10671, 4
      %v10674 = vshll.u32 %v10491, 16
      %v10676 = vrot.slane %v10674, 5
      %v10677 = vsel %vm1375, %v10672, %v10676
      %v10678 = vshrl.u32 %v10491, 16
      %v10680 = vrot.slane %v10678, 4
      %v10681 = vor.u32 %v10680, %v10676
      %v10682 = vrot.slane %v10681, 4
      %v10684 = vshll.u32 %v10492, 16
      %v10686 = vrot.slane %v10684, 5
      %v10687 = vsel %vm1375, %v10682, %v10686
      %v10689 = vshrl.u32 %v10493, 16
      %v10691 = vrot.slane %v10689, 4
      %v10692 = vshll.u32 %v10493, 16
      %v10694 = vrot.slane %v10692, 5
      %v10695 = vor.u32 %v10691, %v10694
      %v10696 = vrot.slane %v10695, 4
      %v10698 = vshll.u32 %v10494, 16
      %v10700 = vrot.slane %v10698, 5
      %v10701 = vsel %vm1375, %v10696, %v10700
      %v10702 = vshrl.u32 %v10494, 16
      %v10704 = vrot.slane %v10702, 4
      %v10705 = vor.u32 %v10704, %v10700
      %v10706 = vrot.slane %v10705, 4
      %v10708 = vshll.u32 %v10495, 16
      %v10710 = vrot.slane %v10708, 5
      %v10711 = vsel %vm1375, %v10706, %v10710
      %v10713 = vshrl.u32 %v10496, 16
      %v10715 = vrot.slane %v10713, 4
      %v10716 = vshll.u32 %v10496, 16
      %v10718 = vrot.slane %v10716, 5
      %v10719 = vor.u32 %v10715, %v10718
      %v10720 = vrot.slane %v10719, 4
      %v10722 = vshll.u32 %v10497, 16
      %v10724 = vrot.slane %v10722, 5
      %v10725 = vsel %vm1375, %v10720, %v10724
      %v10726 = vshrl.u32 %v10497, 16
      %v10728 = vrot.slane %v10726, 4
      %v10729 = vor.u32 %v10728, %v10724
      %v10730 = vrot.slane %v10729, 4
      %v10732 = vshll.u32 %v10498, 16
      %v10734 = vrot.slane %v10732, 5
      %v10735 = vsel %vm1375, %v10730, %v10734
      %v10737 = vshrl.u32 %v10499, 16
      %v10739 = vrot.slane %v10737, 4
      %v10740 = vshll.u32 %v10499, 16
      %v10742 = vrot.slane %v10740, 5
      %v10743 = vor.u32 %v10739, %v10742
      %v10744 = vrot.slane %v10743, 4
      %v10746 = vshll.u32 %v10500, 16
      %v10748 = vrot.slane %v10746, 5
      %v10749 = vsel %vm1375, %v10744, %v10748
      %v10750 = vshrl.u32 %v10500, 16
      %v10752 = vrot.slane %v10750, 4
      %v10753 = vor.u32 %v10752, %v10748
      %v10754 = vrot.slane %v10753, 4
      %v10756 = vshll.u32 %v10501, 16
      %v10758 = vrot.slane %v10756, 5
      %v10759 = vsel %vm1375, %v10754, %v10758
      %v10761 = vshrl.u32 %v10502, 16
      %v10763 = vrot.slane %v10761, 4
      %v10764 = vshll.u32 %v10502, 16
      %v10766 = vrot.slane %v10764, 5
      %v10767 = vor.u32 %v10763, %v10766
      %v10768 = vrot.slane %v10767, 4
      %v10770 = vshll.u32 %v10503, 16
      %v10772 = vrot.slane %v10770, 5
      %v10773 = vsel %vm1375, %v10768, %v10772
      %v10774 = vshrl.u32 %v10503, 16
      %v10776 = vrot.slane %v10774, 4
      %v10777 = vor.u32 %v10776, %v10772
      %v10778 = vrot.slane %v10777, 4
      %v10780 = vshll.u32 %v10504, 16
      %v10782 = vrot.slane %v10780, 5
      %v10783 = vsel %vm1375, %v10778, %v10782
      %v10785 = vshrl.u32 %v10505, 16
      %v10787 = vrot.slane %v10785, 4
      %v10788 = vshll.u32 %v10505, 16
      %v10790 = vrot.slane %v10788, 5
      %v10791 = vor.u32 %v10787, %v10790
      %v10792 = vrot.slane %v10791, 4
      %v10794 = vshll.u32 %v10506, 16
      %v10796 = vrot.slane %v10794, 5
      %v10797 = vsel %vm1375, %v10792, %v10796
      %v10798 = vshrl.u32 %v10506, 16
      %v10800 = vrot.slane %v10798, 4
      %v10801 = vor.u32 %v10800, %v10796
      %v10802 = vrot.slane %v10801, 4
      %v10804 = vshll.u32 %v10507, 16
      %v10806 = vrot.slane %v10804, 5
      %v10807 = vsel %vm1375, %v10802, %v10806
      %v10809 = vshrl.u32 %v10508, 16
      %v10811 = vrot.slane %v10809, 4
      %v10812 = vshll.u32 %v10508, 16
      %v10814 = vrot.slane %v10812, 5
      %v10815 = vor.u32 %v10811, %v10814
      %v10816 = vrot.slane %v10815, 4
      %v10818 = vshll.u32 %v10509, 16
      %v10820 = vrot.slane %v10818, 5
      %v10821 = vsel %vm1375, %v10816, %v10820
      %v10822 = vshrl.u32 %v10509, 16
      %v10824 = vrot.slane %v10822, 4
      %v10825 = vor.u32 %v10824, %v10820
      %v10826 = vrot.slane %v10825, 4
      %v10828 = vshll.u32 %v10510, 16
      %v10830 = vrot.slane %v10828, 5
      %v10831 = vsel %vm1375, %v10826, %v10830
      %v10833 = vshrl.u32 %v10511, 16
      %v10835 = vrot.slane %v10833, 4
      %v10836 = vshll.u32 %v10511, 16
      %v10838 = vrot.slane %v10836, 5
      %v10839 = vor.u32 %v10835, %v10838
      %v10840 = vrot.slane %v10839, 4
      %v10842 = vshll.u32 %v10512, 16
      %v10844 = vrot.slane %v10842, 5
      %v10845 = vsel %vm1375, %v10840, %v10844
      %v10846 = vshrl.u32 %v10512, 16
      %v10848 = vrot.slane %v10846, 4
      %v10849 = vor.u32 %v10848, %v10844
      %v10850 = vrot.slane %v10849, 4
      %v10852 = vshll.u32 %v10513, 16
      %v10854 = vrot.slane %v10852, 5
      %v10855 = vsel %vm1375, %v10850, %v10854
      %v10857 = vshrl.u32 %v10514, 16
      %v10859 = vrot.slane %v10857, 4
      %v10860 = vshll.u32 %v10514, 16
      %v10862 = vrot.slane %v10860, 5
      %v10863 = vor.u32 %v10859, %v10862
      %v10864 = vrot.slane %v10863, 4
      %v10866 = vshll.u32 %v10515, 16
      %v10868 = vrot.slane %v10866, 5
      %v10869 = vsel %vm1375, %v10864, %v10868
      %v10870 = vshrl.u32 %v10515, 16
      %v10872 = vrot.slane %v10870, 4
      %v10873 = vor.u32 %v10872, %v10868
      %v10874 = vrot.slane %v10873, 4
      %v10876 = vshll.u32 %v10516, 16
      %v10878 = vrot.slane %v10876, 5
      %v10879 = vsel %vm1375, %v10874, %v10878
      %v10881 = vshrl.u32 %v10517, 16
      %v10883 = vrot.slane %v10881, 4
      %v10884 = vshll.u32 %v10517, 16
      %v10886 = vrot.slane %v10884, 5
      %v10887 = vor.u32 %v10883, %v10886
      %v10888 = vrot.slane %v10887, 4
      %v10890 = vshll.u32 %v10518, 16
      %v10892 = vrot.slane %v10890, 5
      %v10893 = vsel %vm1375, %v10888, %v10892
      %v10894 = vshrl.u32 %v10518, 16
      %v10896 = vrot.slane %v10894, 4
      %v10897 = vor.u32 %v10896, %v10892
      %v10898 = vrot.slane %v10897, 4
      %v10900 = vshll.u32 %v10519, 16
      %v10902 = vrot.slane %v10900, 5
      %v10903 = vsel %vm1375, %v10898, %v10902
      %s10904 = scalar_lea.vmem %s3, 448
      %v10905 = vld [vmem:[%s10904] sm:$0xf]
      %v10906 = vld [vmem:[%s10904 + $0x4] sm:$0xf]
      %v10907 = vld [vmem:[%s10904 + $0x8] sm:$0xf]
      %v10908 = vld [vmem:[%s10904 + $0xc] sm:$0xf]
      %v10909 = vld [vmem:[%s10904 + $0x10] sm:$0xf]
      %v10910 = vld [vmem:[%s10904 + $0x14] sm:$0xf]
      %v10911 = vld [vmem:[%s10904 + $0x18] sm:$0xf]
      %v10912 = vld [vmem:[%s10904 + $0x1c] sm:$0xf]
      %v10913 = vld [vmem:[%s10904 + $0x20] sm:$0xf]
      %v10914 = vld [vmem:[%s10904 + $0x24] sm:$0xf]
      %v10915 = vld [vmem:[%s10904 + $0x28] sm:$0xf]
      %v10916 = vld [vmem:[%s10904 + $0x2c] sm:$0xf]
      %v10917 = vld [vmem:[%s10904 + $0x30] sm:$0xf]
      %v10918 = vld [vmem:[%s10904 + $0x34] sm:$0xf]
      %v10919 = vld [vmem:[%s10904 + $0x38] sm:$0xf]
      %v10920 = vld [vmem:[%s10904 + $0x3c] sm:$0xf]
      %v10921 = vunpack.c.l.b16 %v10533
      %v10922 = vunpack.c.l.b16 %v10543
      %v10923 = vunpack.c.l.b16 %v10557
      %v10924 = vunpack.c.l.b16 %v10567
      %v10925 = vunpack.c.l.b16 %v10581
      %v10926 = vunpack.c.l.b16 %v10591
      %v10927 = vunpack.c.l.b16 %v10605
      %v10928 = vunpack.c.l.b16 %v10615
      %v10929 = vunpack.c.l.b16 %v10629
      %v10930 = vunpack.c.l.b16 %v10639
      %v10931 = vunpack.c.l.b16 %v10653
      %v10932 = vunpack.c.l.b16 %v10663
      %v10933 = vunpack.c.l.b16 %v10677
      %v10934 = vunpack.c.l.b16 %v10687
      %v10935 = vunpack.c.l.b16 %v10701
      %v10936 = vunpack.c.l.b16 %v10711
      %v10937 = vunpack.c.l.b16 %v10725
      %v10938 = vunpack.c.l.b16 %v10735
      %v10939 = vunpack.c.l.b16 %v10749
      %v10940 = vunpack.c.l.b16 %v10759
      %v10941 = vunpack.c.l.b16 %v10773
      %v10942 = vunpack.c.l.b16 %v10783
      %v10943 = vunpack.c.l.b16 %v10797
      %v10944 = vunpack.c.l.b16 %v10807
      %v10945 = vunpack.c.l.b16 %v10821
      %v10946 = vunpack.c.l.b16 %v10831
      %v10947 = vunpack.c.l.b16 %v10845
      %v10948 = vunpack.c.l.b16 %v10855
      %v10949 = vunpack.c.l.b16 %v10869
      %v10950 = vunpack.c.l.b16 %v10879
      %v10951 = vunpack.c.l.b16 %v10893
      %v10952 = vunpack.c.l.b16 %v10903
      %v10953 = vpack.c.b16 %v10922, %v10921
      %v10954 = vpack.c.b16 %v10924, %v10923
      %v10955 = vpack.c.b16 %v10926, %v10925
      %v10956 = vpack.c.b16 %v10928, %v10927
      %v10957 = vpack.c.b16 %v10930, %v10929
      %v10958 = vpack.c.b16 %v10932, %v10931
      %v10959 = vpack.c.b16 %v10934, %v10933
      %v10960 = vpack.c.b16 %v10936, %v10935
      %v10961 = vpack.c.b16 %v10938, %v10937
      %v10962 = vpack.c.b16 %v10940, %v10939
      %v10963 = vpack.c.b16 %v10942, %v10941
      %v10964 = vpack.c.b16 %v10944, %v10943
      %v10965 = vpack.c.b16 %v10946, %v10945
      %v10966 = vpack.c.b16 %v10948, %v10947
      %v10967 = vpack.c.b16 %v10950, %v10949
      %v10968 = vpack.c.b16 %v10952, %v10951
      %v11001 = vunpack.c.l.b16 %v10905
      %v11002 = vunpack.c.l.b16 %v10906
      %v11003 = vunpack.c.l.b16 %v10907
      %v11004 = vunpack.c.l.b16 %v10908
      %v11005 = vunpack.c.l.b16 %v10909
      %v11006 = vunpack.c.l.b16 %v10910
      %v11007 = vunpack.c.l.b16 %v10911
      %v11008 = vunpack.c.l.b16 %v10912
      %v11009 = vunpack.c.l.b16 %v10913
      %v11010 = vunpack.c.l.b16 %v10914
      %v11011 = vunpack.c.l.b16 %v10915
      %v11012 = vunpack.c.l.b16 %v10916
      %v11013 = vunpack.c.l.b16 %v10917
      %v11014 = vunpack.c.l.b16 %v10918
      %v11015 = vunpack.c.l.b16 %v10919
      %v11016 = vunpack.c.l.b16 %v10920
      %v11017 = vpack.c.b16 %v11002, %v11001
      %v11018 = vpack.c.b16 %v11004, %v11003
      %v11019 = vpack.c.b16 %v11006, %v11005
      %v11020 = vpack.c.b16 %v11008, %v11007
      %v11021 = vpack.c.b16 %v11010, %v11009
      %v11022 = vpack.c.b16 %v11012, %v11011
      %v11023 = vpack.c.b16 %v11014, %v11013
      %v11024 = vpack.c.b16 %v11016, %v11015
      %11033 = vmatpush.bf16.msra.mxu0 %v11024
      %11034 = vmatpush.bf16.msra.mxu0 %v11023
      %11035 = vmatpush.bf16.msra.mxu0 %v11022
      %11036 = vmatpush.bf16.msra.mxu0 %v11021
      %11037 = vmatpush.bf16.msra.mxu0 %v11020
      %11038 = vmatpush.bf16.msra.mxu0 %v11019
      %11039 = vmatpush.bf16.msra.mxu0 %v11018
      %11040 = vmatpush.bf16.msra.mxu0 %v11017
      %11041 = vmatmul.bf16.gmra.mxu0 %v10953
      %v11042 = vpop.f32.mrf.mxu0
      %v11043 = vadd.f32 0.0, %v11042
      %v11044 = vpop.f32.mrf.mxu0
      %v11045 = vadd.f32 0.0, %v11044
      %11046 = vmatmul.bf16.gmra.mxu0 %v10954
      %v11047 = vpop.f32.mrf.mxu0
      %v11048 = vadd.f32 0.0, %v11047
      %v11049 = vpop.f32.mrf.mxu0
      %v11050 = vadd.f32 0.0, %v11049
      %11051 = vmatmul.bf16.gmra.mxu0 %v10955
      %v11052 = vpop.f32.mrf.mxu0
      %v11053 = vadd.f32 0.0, %v11052
      %v11054 = vpop.f32.mrf.mxu0
      %v11055 = vadd.f32 0.0, %v11054
      %11056 = vmatmul.bf16.gmra.mxu0 %v10956
      %v11057 = vpop.f32.mrf.mxu0
      %v11058 = vadd.f32 0.0, %v11057
      %v11059 = vpop.f32.mrf.mxu0
      %v11060 = vadd.f32 0.0, %v11059
      %11061 = vmatmul.bf16.gmra.mxu0 %v10957
      %v11062 = vpop.f32.mrf.mxu0
      %v11063 = vadd.f32 0.0, %v11062
      %v11064 = vpop.f32.mrf.mxu0
      %v11065 = vadd.f32 0.0, %v11064
      %11066 = vmatmul.bf16.gmra.mxu0 %v10958
      %v11067 = vpop.f32.mrf.mxu0
      %v11068 = vadd.f32 0.0, %v11067
      %v11069 = vpop.f32.mrf.mxu0
      %v11070 = vadd.f32 0.0, %v11069
      %11071 = vmatmul.bf16.gmra.mxu0 %v10959
      %v11072 = vpop.f32.mrf.mxu0
      %v11073 = vadd.f32 0.0, %v11072
      %v11074 = vpop.f32.mrf.mxu0
      %v11075 = vadd.f32 0.0, %v11074
      %11076 = vmatmul.bf16.gmra.mxu0 %v10960
      %v11077 = vpop.f32.mrf.mxu0
      %v11078 = vadd.f32 0.0, %v11077
      %v11079 = vpop.f32.mrf.mxu0
      %v11080 = vadd.f32 0.0, %v11079
      %11081 = vmatmul.bf16.gmra.mxu0 %v10961
      %v11082 = vpop.f32.mrf.mxu0
      %v11083 = vadd.f32 0.0, %v11082
      %v11084 = vpop.f32.mrf.mxu0
      %v11085 = vadd.f32 0.0, %v11084
      %11086 = vmatmul.bf16.gmra.mxu0 %v10962
      %v11087 = vpop.f32.mrf.mxu0
      %v11088 = vadd.f32 0.0, %v11087
      %v11089 = vpop.f32.mrf.mxu0
      %v11090 = vadd.f32 0.0, %v11089
      %11091 = vmatmul.bf16.gmra.mxu0 %v10963
      %v11092 = vpop.f32.mrf.mxu0
      %v11093 = vadd.f32 0.0, %v11092
      %v11094 = vpop.f32.mrf.mxu0
      %v11095 = vadd.f32 0.0, %v11094
      %11096 = vmatmul.bf16.gmra.mxu0 %v10964
      %v11097 = vpop.f32.mrf.mxu0
      %v11098 = vadd.f32 0.0, %v11097
      %v11099 = vpop.f32.mrf.mxu0
      %v11100 = vadd.f32 0.0, %v11099
      %11101 = vmatmul.bf16.gmra.mxu0 %v10965
      %v11102 = vpop.f32.mrf.mxu0
      %v11103 = vadd.f32 0.0, %v11102
      %v11104 = vpop.f32.mrf.mxu0
      %v11105 = vadd.f32 0.0, %v11104
      %11106 = vmatmul.bf16.gmra.mxu0 %v10966
      %v11107 = vpop.f32.mrf.mxu0
      %v11108 = vadd.f32 0.0, %v11107
      %v11109 = vpop.f32.mrf.mxu0
      %v11110 = vadd.f32 0.0, %v11109
      %11111 = vmatmul.bf16.gmra.mxu0 %v10967
      %v11112 = vpop.f32.mrf.mxu0
      %v11113 = vadd.f32 0.0, %v11112
      %v11114 = vpop.f32.mrf.mxu0
      %v11115 = vadd.f32 0.0, %v11114
      %11116 = vmatmul.bf16.gmra.mxu0 %v10968
      %v11117 = vpop.f32.mrf.mxu0
      %v11118 = vadd.f32 0.0, %v11117
      %v11119 = vpop.f32.mrf.mxu0
      %v11120 = vadd.f32 0.0, %v11119
      %11121 = vdwg.mxu0
      %v11122 = vld [vmem:[#allocation3] sm:$0xff]
      %v11123 = vld [vmem:[#allocation3 + $0x8] sm:$0xff]
      %v11124 = vld [vmem:[#allocation3 + $0x10] sm:$0xff]
      %v11125 = vld [vmem:[#allocation3 + $0x18] sm:$0xff]
      %v11126 = vld [vmem:[#allocation3 + $0x20] sm:$0xff]
      %v11127 = vld [vmem:[#allocation3 + $0x28] sm:$0xff]
      %v11128 = vld [vmem:[#allocation3 + $0x30] sm:$0xff]
      %v11129 = vld [vmem:[#allocation3 + $0x38] sm:$0xff]
      %v11130 = vld [vmem:[#allocation3 + $0x40] sm:$0xff]
      %v11131 = vld [vmem:[#allocation3 + $0x48] sm:$0xff]
      %v11132 = vld [vmem:[#allocation3 + $0x50] sm:$0xff]
      %v11133 = vld [vmem:[#allocation3 + $0x58] sm:$0xff]
      %v11134 = vld [vmem:[#allocation3 + $0x60] sm:$0xff]
      %v11135 = vld [vmem:[#allocation3 + $0x68] sm:$0xff]
      %v11136 = vld [vmem:[#allocation3 + $0x70] sm:$0xff]
      %v11137 = vld [vmem:[#allocation3 + $0x78] sm:$0xff]
      %v11138 = vld [vmem:[#allocation3 + $0x80] sm:$0xff]
      %v11139 = vld [vmem:[#allocation3 + $0x88] sm:$0xff]
      %v11140 = vld [vmem:[#allocation3 + $0x90] sm:$0xff]
      %v11141 = vld [vmem:[#allocation3 + $0x98] sm:$0xff]
      %v11142 = vld [vmem:[#allocation3 + $0xa0] sm:$0xff]
      %v11143 = vld [vmem:[#allocation3 + $0xa8] sm:$0xff]
      %v11144 = vld [vmem:[#allocation3 + $0xb0] sm:$0xff]
      %v11145 = vld [vmem:[#allocation3 + $0xb8] sm:$0xff]
      %v11146 = vld [vmem:[#allocation3 + $0xc0] sm:$0xff]
      %v11147 = vld [vmem:[#allocation3 + $0xc8] sm:$0xff]
      %v11148 = vld [vmem:[#allocation3 + $0xd0] sm:$0xff]
      %v11149 = vld [vmem:[#allocation3 + $0xd8] sm:$0xff]
      %v11150 = vld [vmem:[#allocation3 + $0xe0] sm:$0xff]
      %v11151 = vld [vmem:[#allocation3 + $0xe8] sm:$0xff]
      %v11152 = vld [vmem:[#allocation3 + $0xf0] sm:$0xff]
      %v11153 = vld [vmem:[#allocation3 + $0xf8] sm:$0xff]
      %v11154 = vadd.f32 %v11122, %v11043
      %v11155 = vadd.f32 %v11123, %v11045
      %v11156 = vadd.f32 %v11124, %v11048
      %v11157 = vadd.f32 %v11125, %v11050
      %v11158 = vadd.f32 %v11126, %v11053
      %v11159 = vadd.f32 %v11127, %v11055
      %v11160 = vadd.f32 %v11128, %v11058
      %v11161 = vadd.f32 %v11129, %v11060
      %v11162 = vadd.f32 %v11130, %v11063
      %v11163 = vadd.f32 %v11131, %v11065
      %v11164 = vadd.f32 %v11132, %v11068
      %v11165 = vadd.f32 %v11133, %v11070
      %v11166 = vadd.f32 %v11134, %v11073
      %v11167 = vadd.f32 %v11135, %v11075
      %v11168 = vadd.f32 %v11136, %v11078
      %v11169 = vadd.f32 %v11137, %v11080
      %v11170 = vadd.f32 %v11138, %v11083
      %v11171 = vadd.f32 %v11139, %v11085
      %v11172 = vadd.f32 %v11140, %v11088
      %v11173 = vadd.f32 %v11141, %v11090
      %v11174 = vadd.f32 %v11142, %v11093
      %v11175 = vadd.f32 %v11143, %v11095
      %v11176 = vadd.f32 %v11144, %v11098
      %v11177 = vadd.f32 %v11145, %v11100
      %v11178 = vadd.f32 %v11146, %v11103
      %v11179 = vadd.f32 %v11147, %v11105
      %v11180 = vadd.f32 %v11148, %v11108
      %v11181 = vadd.f32 %v11149, %v11110
      %v11182 = vadd.f32 %v11150, %v11113
      %v11183 = vadd.f32 %v11151, %v11115
      %v11184 = vadd.f32 %v11152, %v11118
      %v11185 = vadd.f32 %v11153, %v11120
      %11186 = vst [vmem:[#allocation3] sm:$0xff] %v11154
      %11187 = vst [vmem:[#allocation3 + $0x8] sm:$0xff] %v11155
      %11188 = vst [vmem:[#allocation3 + $0x10] sm:$0xff] %v11156
      %11189 = vst [vmem:[#allocation3 + $0x18] sm:$0xff] %v11157
      %11190 = vst [vmem:[#allocation3 + $0x20] sm:$0xff] %v11158
      %11191 = vst [vmem:[#allocation3 + $0x28] sm:$0xff] %v11159
      %11192 = vst [vmem:[#allocation3 + $0x30] sm:$0xff] %v11160
      %11193 = vst [vmem:[#allocation3 + $0x38] sm:$0xff] %v11161
      %11194 = vst [vmem:[#allocation3 + $0x40] sm:$0xff] %v11162
      %11195 = vst [vmem:[#allocation3 + $0x48] sm:$0xff] %v11163
      %11196 = vst [vmem:[#allocation3 + $0x50] sm:$0xff] %v11164
      %11197 = vst [vmem:[#allocation3 + $0x58] sm:$0xff] %v11165
      %11198 = vst [vmem:[#allocation3 + $0x60] sm:$0xff] %v11166
      %11199 = vst [vmem:[#allocation3 + $0x68] sm:$0xff] %v11167
      %11200 = vst [vmem:[#allocation3 + $0x70] sm:$0xff] %v11168
      %11201 = vst [vmem:[#allocation3 + $0x78] sm:$0xff] %v11169
      %11202 = vst [vmem:[#allocation3 + $0x80] sm:$0xff] %v11170
      %11203 = vst [vmem:[#allocation3 + $0x88] sm:$0xff] %v11171
      %11204 = vst [vmem:[#allocation3 + $0x90] sm:$0xff] %v11172
      %11205 = vst [vmem:[#allocation3 + $0x98] sm:$0xff] %v11173
      %11206 = vst [vmem:[#allocation3 + $0xa0] sm:$0xff] %v11174
      %11207 = vst [vmem:[#allocation3 + $0xa8] sm:$0xff] %v11175
      %11208 = vst [vmem:[#allocation3 + $0xb0] sm:$0xff] %v11176
      %11209 = vst [vmem:[#allocation3 + $0xb8] sm:$0xff] %v11177
      %11210 = vst [vmem:[#allocation3 + $0xc0] sm:$0xff] %v11178
      %11211 = vst [vmem:[#allocation3 + $0xc8] sm:$0xff] %v11179
      %11212 = vst [vmem:[#allocation3 + $0xd0] sm:$0xff] %v11180
      %11213 = vst [vmem:[#allocation3 + $0xd8] sm:$0xff] %v11181
      %11214 = vst [vmem:[#allocation3 + $0xe0] sm:$0xff] %v11182
      %11215 = vst [vmem:[#allocation3 + $0xe8] sm:$0xff] %v11183
      %11216 = vst [vmem:[#allocation3 + $0xf0] sm:$0xff] %v11184
      %11217 = vst [vmem:[#allocation3 + $0xf8] sm:$0xff] %v11185
      %v11218 = vld [vmem:[%s4245] sm:$0xe]
      %v11219 = vld [vmem:[%s4245 + $0x4] sm:$0xf]
      %v11220 = vld [vmem:[%s4245 + $0x8] sm:$0x1]
      %v11221 = vld [vmem:[%s4245 + $0xc] sm:$0xe]
      %v11222 = vld [vmem:[%s4245 + $0x10] sm:$0xf]
      %v11223 = vld [vmem:[%s4245 + $0x14] sm:$0x1]
      %v11224 = vld [vmem:[%s4245 + $0x18] sm:$0xe]
      %v11225 = vld [vmem:[%s4245 + $0x1c] sm:$0xf]
      %v11226 = vld [vmem:[%s4245 + $0x20] sm:$0x1]
      %v11227 = vld [vmem:[%s4245 + $0x24] sm:$0xe]
      %v11228 = vld [vmem:[%s4245 + $0x28] sm:$0xf]
      %v11229 = vld [vmem:[%s4245 + $0x2c] sm:$0x1]
      %v11230 = vld [vmem:[%s4245 + $0x30] sm:$0xe]
      %v11231 = vld [vmem:[%s4245 + $0x34] sm:$0xf]
      %v11232 = vld [vmem:[%s4245 + $0x38] sm:$0x1]
      %v11233 = vld [vmem:[%s4245 + $0x3c] sm:$0xe]
      %v11234 = vld [vmem:[%s4245 + $0x40] sm:$0xf]
      %v11235 = vld [vmem:[%s4245 + $0x44] sm:$0x1]
      %v11236 = vld [vmem:[%s4245 + $0x48] sm:$0xe]
      %v11237 = vld [vmem:[%s4245 + $0x4c] sm:$0xf]
      %v11238 = vld [vmem:[%s4245 + $0x50] sm:$0x1]
      %v11239 = vld [vmem:[%s4245 + $0x54] sm:$0xe]
      %v11240 = vld [vmem:[%s4245 + $0x58] sm:$0xf]
      %v11241 = vld [vmem:[%s4245 + $0x5c] sm:$0x1]
      %v11242 = vld [vmem:[%s4245 + $0x60] sm:$0xe]
      %v11243 = vld [vmem:[%s4245 + $0x64] sm:$0xf]
      %v11244 = vld [vmem:[%s4245 + $0x68] sm:$0x1]
      %v11245 = vld [vmem:[%s4245 + $0x6c] sm:$0xe]
      %v11246 = vld [vmem:[%s4245 + $0x70] sm:$0xf]
      %v11247 = vld [vmem:[%s4245 + $0x74] sm:$0x1]
      %v11248 = vld [vmem:[%s4245 + $0x78] sm:$0xe]
      %v11249 = vld [vmem:[%s4245 + $0x7c] sm:$0xf]
      %v11250 = vld [vmem:[%s4245 + $0x80] sm:$0x1]
      %v11251 = vld [vmem:[%s4245 + $0x84] sm:$0xe]
      %v11252 = vld [vmem:[%s4245 + $0x88] sm:$0xf]
      %v11253 = vld [vmem:[%s4245 + $0x8c] sm:$0x1]
      %v11254 = vld [vmem:[%s4245 + $0x90] sm:$0xe]
      %v11255 = vld [vmem:[%s4245 + $0x94] sm:$0xf]
      %v11256 = vld [vmem:[%s4245 + $0x98] sm:$0x1]
      %v11257 = vld [vmem:[%s4245 + $0x9c] sm:$0xe]
      %v11258 = vld [vmem:[%s4245 + $0xa0] sm:$0xf]
      %v11259 = vld [vmem:[%s4245 + $0xa4] sm:$0x1]
      %v11260 = vld [vmem:[%s4245 + $0xa8] sm:$0xe]
      %v11261 = vld [vmem:[%s4245 + $0xac] sm:$0xf]
      %v11262 = vld [vmem:[%s4245 + $0xb0] sm:$0x1]
      %v11263 = vld [vmem:[%s4245 + $0xb4] sm:$0xe]
      %v11264 = vld [vmem:[%s4245 + $0xb8] sm:$0xf]
      %v11265 = vld [vmem:[%s4245 + $0xbc] sm:$0x1]
      %v11314 = vrot.slane %v11218, 5
      %v11315 = vrot.slane %v11314, 4
      %v11316 = vrot.slane %v11219, 5
      %v11317 = vsel %vm2172, %v11315, %v11316
      %v11318 = vrot.slane %v11316, 4
      %v11319 = vrot.slane %v11220, 5
      %v11320 = vsel %vm2172, %v11318, %v11319
      %v11321 = vrot.slane %v11221, 5
      %v11322 = vrot.slane %v11321, 4
      %v11323 = vrot.slane %v11222, 5
      %v11324 = vsel %vm2172, %v11322, %v11323
      %v11325 = vrot.slane %v11323, 4
      %v11326 = vrot.slane %v11223, 5
      %v11327 = vsel %vm2172, %v11325, %v11326
      %v11328 = vrot.slane %v11224, 5
      %v11329 = vrot.slane %v11328, 4
      %v11330 = vrot.slane %v11225, 5
      %v11331 = vsel %vm2172, %v11329, %v11330
      %v11332 = vrot.slane %v11330, 4
      %v11333 = vrot.slane %v11226, 5
      %v11334 = vsel %vm2172, %v11332, %v11333
      %v11335 = vrot.slane %v11227, 5
      %v11336 = vrot.slane %v11335, 4
      %v11337 = vrot.slane %v11228, 5
      %v11338 = vsel %vm2172, %v11336, %v11337
      %v11339 = vrot.slane %v11337, 4
      %v11340 = vrot.slane %v11229, 5
      %v11341 = vsel %vm2172, %v11339, %v11340
      %v11342 = vrot.slane %v11230, 5
      %v11343 = vrot.slane %v11342, 4
      %v11344 = vrot.slane %v11231, 5
      %v11345 = vsel %vm2172, %v11343, %v11344
      %v11346 = vrot.slane %v11344, 4
      %v11347 = vrot.slane %v11232, 5
      %v11348 = vsel %vm2172, %v11346, %v11347
      %v11349 = vrot.slane %v11233, 5
      %v11350 = vrot.slane %v11349, 4
      %v11351 = vrot.slane %v11234, 5
      %v11352 = vsel %vm2172, %v11350, %v11351
      %v11353 = vrot.slane %v11351, 4
      %v11354 = vrot.slane %v11235, 5
      %v11355 = vsel %vm2172, %v11353, %v11354
      %v11356 = vrot.slane %v11236, 5
      %v11357 = vrot.slane %v11356, 4
      %v11358 = vrot.slane %v11237, 5
      %v11359 = vsel %vm2172, %v11357, %v11358
      %v11360 = vrot.slane %v11358, 4
      %v11361 = vrot.slane %v11238, 5
      %v11362 = vsel %vm2172, %v11360, %v11361
      %v11363 = vrot.slane %v11239, 5
      %v11364 = vrot.slane %v11363, 4
      %v11365 = vrot.slane %v11240, 5
      %v11366 = vsel %vm2172, %v11364, %v11365
      %v11367 = vrot.slane %v11365, 4
      %v11368 = vrot.slane %v11241, 5
      %v11369 = vsel %vm2172, %v11367, %v11368
      %v11370 = vrot.slane %v11242, 5
      %v11371 = vrot.slane %v11370, 4
      %v11372 = vrot.slane %v11243, 5
      %v11373 = vsel %vm2172, %v11371, %v11372
      %v11374 = vrot.slane %v11372, 4
      %v11375 = vrot.slane %v11244, 5
      %v11376 = vsel %vm2172, %v11374, %v11375
      %v11377 = vrot.slane %v11245, 5
      %v11378 = vrot.slane %v11377, 4
      %v11379 = vrot.slane %v11246, 5
      %v11380 = vsel %vm2172, %v11378, %v11379
      %v11381 = vrot.slane %v11379, 4
      %v11382 = vrot.slane %v11247, 5
      %v11383 = vsel %vm2172, %v11381, %v11382
      %v11384 = vrot.slane %v11248, 5
      %v11385 = vrot.slane %v11384, 4
      %v11386 = vrot.slane %v11249, 5
      %v11387 = vsel %vm2172, %v11385, %v11386
      %v11388 = vrot.slane %v11386, 4
      %v11389 = vrot.slane %v11250, 5
      %v11390 = vsel %vm2172, %v11388, %v11389
      %v11391 = vrot.slane %v11251, 5
      %v11392 = vrot.slane %v11391, 4
      %v11393 = vrot.slane %v11252, 5
      %v11394 = vsel %vm2172, %v11392, %v11393
      %v11395 = vrot.slane %v11393, 4
      %v11396 = vrot.slane %v11253, 5
      %v11397 = vsel %vm2172, %v11395, %v11396
      %v11398 = vrot.slane %v11254, 5
      %v11399 = vrot.slane %v11398, 4
      %v11400 = vrot.slane %v11255, 5
      %v11401 = vsel %vm2172, %v11399, %v11400
      %v11402 = vrot.slane %v11400, 4
      %v11403 = vrot.slane %v11256, 5
      %v11404 = vsel %vm2172, %v11402, %v11403
      %v11405 = vrot.slane %v11257, 5
      %v11406 = vrot.slane %v11405, 4
      %v11407 = vrot.slane %v11258, 5
      %v11408 = vsel %vm2172, %v11406, %v11407
      %v11409 = vrot.slane %v11407, 4
      %v11410 = vrot.slane %v11259, 5
      %v11411 = vsel %vm2172, %v11409, %v11410
      %v11412 = vrot.slane %v11260, 5
      %v11413 = vrot.slane %v11412, 4
      %v11414 = vrot.slane %v11261, 5
      %v11415 = vsel %vm2172, %v11413, %v11414
      %v11416 = vrot.slane %v11414, 4
      %v11417 = vrot.slane %v11262, 5
      %v11418 = vsel %vm2172, %v11416, %v11417
      %v11419 = vrot.slane %v11263, 5
      %v11420 = vrot.slane %v11419, 4
      %v11421 = vrot.slane %v11264, 5
      %v11422 = vsel %vm2172, %v11420, %v11421
      %v11423 = vrot.slane %v11421, 4
      %v11424 = vrot.slane %v11265, 5
      %v11425 = vsel %vm2172, %v11423, %v11424
      %s11426 = scalar_lea.vmem %s3, 512
      %v11427 = vld [vmem:[%s11426] sm:$0xf]
      %v11428 = vld [vmem:[%s11426 + $0x4] sm:$0xf]
      %v11429 = vld [vmem:[%s11426 + $0x8] sm:$0xf]
      %v11430 = vld [vmem:[%s11426 + $0xc] sm:$0xf]
      %v11431 = vld [vmem:[%s11426 + $0x10] sm:$0xf]
      %v11432 = vld [vmem:[%s11426 + $0x14] sm:$0xf]
      %v11433 = vld [vmem:[%s11426 + $0x18] sm:$0xf]
      %v11434 = vld [vmem:[%s11426 + $0x1c] sm:$0xf]
      %v11435 = vld [vmem:[%s11426 + $0x20] sm:$0xf]
      %v11436 = vld [vmem:[%s11426 + $0x24] sm:$0xf]
      %v11437 = vld [vmem:[%s11426 + $0x28] sm:$0xf]
      %v11438 = vld [vmem:[%s11426 + $0x2c] sm:$0xf]
      %v11439 = vld [vmem:[%s11426 + $0x30] sm:$0xf]
      %v11440 = vld [vmem:[%s11426 + $0x34] sm:$0xf]
      %v11441 = vld [vmem:[%s11426 + $0x38] sm:$0xf]
      %v11442 = vld [vmem:[%s11426 + $0x3c] sm:$0xf]
      %v11443 = vunpack.c.l.b16 %v11317
      %v11444 = vunpack.c.l.b16 %v11320
      %v11445 = vunpack.c.l.b16 %v11324
      %v11446 = vunpack.c.l.b16 %v11327
      %v11447 = vunpack.c.l.b16 %v11331
      %v11448 = vunpack.c.l.b16 %v11334
      %v11449 = vunpack.c.l.b16 %v11338
      %v11450 = vunpack.c.l.b16 %v11341
      %v11451 = vunpack.c.l.b16 %v11345
      %v11452 = vunpack.c.l.b16 %v11348
      %v11453 = vunpack.c.l.b16 %v11352
      %v11454 = vunpack.c.l.b16 %v11355
      %v11455 = vunpack.c.l.b16 %v11359
      %v11456 = vunpack.c.l.b16 %v11362
      %v11457 = vunpack.c.l.b16 %v11366
      %v11458 = vunpack.c.l.b16 %v11369
      %v11459 = vunpack.c.l.b16 %v11373
      %v11460 = vunpack.c.l.b16 %v11376
      %v11461 = vunpack.c.l.b16 %v11380
      %v11462 = vunpack.c.l.b16 %v11383
      %v11463 = vunpack.c.l.b16 %v11387
      %v11464 = vunpack.c.l.b16 %v11390
      %v11465 = vunpack.c.l.b16 %v11394
      %v11466 = vunpack.c.l.b16 %v11397
      %v11467 = vunpack.c.l.b16 %v11401
      %v11468 = vunpack.c.l.b16 %v11404
      %v11469 = vunpack.c.l.b16 %v11408
      %v11470 = vunpack.c.l.b16 %v11411
      %v11471 = vunpack.c.l.b16 %v11415
      %v11472 = vunpack.c.l.b16 %v11418
      %v11473 = vunpack.c.l.b16 %v11422
      %v11474 = vunpack.c.l.b16 %v11425
      %v11475 = vpack.c.b16 %v11444, %v11443
      %v11476 = vpack.c.b16 %v11446, %v11445
      %v11477 = vpack.c.b16 %v11448, %v11447
      %v11478 = vpack.c.b16 %v11450, %v11449
      %v11479 = vpack.c.b16 %v11452, %v11451
      %v11480 = vpack.c.b16 %v11454, %v11453
      %v11481 = vpack.c.b16 %v11456, %v11455
      %v11482 = vpack.c.b16 %v11458, %v11457
      %v11483 = vpack.c.b16 %v11460, %v11459
      %v11484 = vpack.c.b16 %v11462, %v11461
      %v11485 = vpack.c.b16 %v11464, %v11463
      %v11486 = vpack.c.b16 %v11466, %v11465
      %v11487 = vpack.c.b16 %v11468, %v11467
      %v11488 = vpack.c.b16 %v11470, %v11469
      %v11489 = vpack.c.b16 %v11472, %v11471
      %v11490 = vpack.c.b16 %v11474, %v11473
      %v11523 = vunpack.c.l.b16 %v11427
      %v11524 = vunpack.c.l.b16 %v11428
      %v11525 = vunpack.c.l.b16 %v11429
      %v11526 = vunpack.c.l.b16 %v11430
      %v11527 = vunpack.c.l.b16 %v11431
      %v11528 = vunpack.c.l.b16 %v11432
      %v11529 = vunpack.c.l.b16 %v11433
      %v11530 = vunpack.c.l.b16 %v11434
      %v11531 = vunpack.c.l.b16 %v11435
      %v11532 = vunpack.c.l.b16 %v11436
      %v11533 = vunpack.c.l.b16 %v11437
      %v11534 = vunpack.c.l.b16 %v11438
      %v11535 = vunpack.c.l.b16 %v11439
      %v11536 = vunpack.c.l.b16 %v11440
      %v11537 = vunpack.c.l.b16 %v11441
      %v11538 = vunpack.c.l.b16 %v11442
      %v11539 = vpack.c.b16 %v11524, %v11523
      %v11540 = vpack.c.b16 %v11526, %v11525
      %v11541 = vpack.c.b16 %v11528, %v11527
      %v11542 = vpack.c.b16 %v11530, %v11529
      %v11543 = vpack.c.b16 %v11532, %v11531
      %v11544 = vpack.c.b16 %v11534, %v11533
      %v11545 = vpack.c.b16 %v11536, %v11535
      %v11546 = vpack.c.b16 %v11538, %v11537
      %11555 = vmatpush.bf16.msra.mxu0 %v11546
      %11556 = vmatpush.bf16.msra.mxu0 %v11545
      %11557 = vmatpush.bf16.msra.mxu0 %v11544
      %11558 = vmatpush.bf16.msra.mxu0 %v11543
      %11559 = vmatpush.bf16.msra.mxu0 %v11542
      %11560 = vmatpush.bf16.msra.mxu0 %v11541
      %11561 = vmatpush.bf16.msra.mxu0 %v11540
      %11562 = vmatpush.bf16.msra.mxu0 %v11539
      %11563 = vmatmul.bf16.gmra.mxu0 %v11475
      %v11564 = vpop.f32.mrf.mxu0
      %v11565 = vadd.f32 0.0, %v11564
      %v11566 = vpop.f32.mrf.mxu0
      %v11567 = vadd.f32 0.0, %v11566
      %11568 = vmatmul.bf16.gmra.mxu0 %v11476
      %v11569 = vpop.f32.mrf.mxu0
      %v11570 = vadd.f32 0.0, %v11569
      %v11571 = vpop.f32.mrf.mxu0
      %v11572 = vadd.f32 0.0, %v11571
      %11573 = vmatmul.bf16.gmra.mxu0 %v11477
      %v11574 = vpop.f32.mrf.mxu0
      %v11575 = vadd.f32 0.0, %v11574
      %v11576 = vpop.f32.mrf.mxu0
      %v11577 = vadd.f32 0.0, %v11576
      %11578 = vmatmul.bf16.gmra.mxu0 %v11478
      %v11579 = vpop.f32.mrf.mxu0
      %v11580 = vadd.f32 0.0, %v11579
      %v11581 = vpop.f32.mrf.mxu0
      %v11582 = vadd.f32 0.0, %v11581
      %11583 = vmatmul.bf16.gmra.mxu0 %v11479
      %v11584 = vpop.f32.mrf.mxu0
      %v11585 = vadd.f32 0.0, %v11584
      %v11586 = vpop.f32.mrf.mxu0
      %v11587 = vadd.f32 0.0, %v11586
      %11588 = vmatmul.bf16.gmra.mxu0 %v11480
      %v11589 = vpop.f32.mrf.mxu0
      %v11590 = vadd.f32 0.0, %v11589
      %v11591 = vpop.f32.mrf.mxu0
      %v11592 = vadd.f32 0.0, %v11591
      %11593 = vmatmul.bf16.gmra.mxu0 %v11481
      %v11594 = vpop.f32.mrf.mxu0
      %v11595 = vadd.f32 0.0, %v11594
      %v11596 = vpop.f32.mrf.mxu0
      %v11597 = vadd.f32 0.0, %v11596
      %11598 = vmatmul.bf16.gmra.mxu0 %v11482
      %v11599 = vpop.f32.mrf.mxu0
      %v11600 = vadd.f32 0.0, %v11599
      %v11601 = vpop.f32.mrf.mxu0
      %v11602 = vadd.f32 0.0, %v11601
      %11603 = vmatmul.bf16.gmra.mxu0 %v11483
      %v11604 = vpop.f32.mrf.mxu0
      %v11605 = vadd.f32 0.0, %v11604
      %v11606 = vpop.f32.mrf.mxu0
      %v11607 = vadd.f32 0.0, %v11606
      %11608 = vmatmul.bf16.gmra.mxu0 %v11484
      %v11609 = vpop.f32.mrf.mxu0
      %v11610 = vadd.f32 0.0, %v11609
      %v11611 = vpop.f32.mrf.mxu0
      %v11612 = vadd.f32 0.0, %v11611
      %11613 = vmatmul.bf16.gmra.mxu0 %v11485
      %v11614 = vpop.f32.mrf.mxu0
      %v11615 = vadd.f32 0.0, %v11614
      %v11616 = vpop.f32.mrf.mxu0
      %v11617 = vadd.f32 0.0, %v11616
      %11618 = vmatmul.bf16.gmra.mxu0 %v11486
      %v11619 = vpop.f32.mrf.mxu0
      %v11620 = vadd.f32 0.0, %v11619
      %v11621 = vpop.f32.mrf.mxu0
      %v11622 = vadd.f32 0.0, %v11621
      %11623 = vmatmul.bf16.gmra.mxu0 %v11487
      %v11624 = vpop.f32.mrf.mxu0
      %v11625 = vadd.f32 0.0, %v11624
      %v11626 = vpop.f32.mrf.mxu0
      %v11627 = vadd.f32 0.0, %v11626
      %11628 = vmatmul.bf16.gmra.mxu0 %v11488
      %v11629 = vpop.f32.mrf.mxu0
      %v11630 = vadd.f32 0.0, %v11629
      %v11631 = vpop.f32.mrf.mxu0
      %v11632 = vadd.f32 0.0, %v11631
      %11633 = vmatmul.bf16.gmra.mxu0 %v11489
      %v11634 = vpop.f32.mrf.mxu0
      %v11635 = vadd.f32 0.0, %v11634
      %v11636 = vpop.f32.mrf.mxu0
      %v11637 = vadd.f32 0.0, %v11636
      %11638 = vmatmul.bf16.gmra.mxu0 %v11490
      %v11639 = vpop.f32.mrf.mxu0
      %v11640 = vadd.f32 0.0, %v11639
      %v11641 = vpop.f32.mrf.mxu0
      %v11642 = vadd.f32 0.0, %v11641
      %11643 = vdwg.mxu0
      %v11644 = vld [vmem:[#allocation3] sm:$0xff]
      %v11645 = vld [vmem:[#allocation3 + $0x8] sm:$0xff]
      %v11646 = vld [vmem:[#allocation3 + $0x10] sm:$0xff]
      %v11647 = vld [vmem:[#allocation3 + $0x18] sm:$0xff]
      %v11648 = vld [vmem:[#allocation3 + $0x20] sm:$0xff]
      %v11649 = vld [vmem:[#allocation3 + $0x28] sm:$0xff]
      %v11650 = vld [vmem:[#allocation3 + $0x30] sm:$0xff]
      %v11651 = vld [vmem:[#allocation3 + $0x38] sm:$0xff]
      %v11652 = vld [vmem:[#allocation3 + $0x40] sm:$0xff]
      %v11653 = vld [vmem:[#allocation3 + $0x48] sm:$0xff]
      %v11654 = vld [vmem:[#allocation3 + $0x50] sm:$0xff]
      %v11655 = vld [vmem:[#allocation3 + $0x58] sm:$0xff]
      %v11656 = vld [vmem:[#allocation3 + $0x60] sm:$0xff]
      %v11657 = vld [vmem:[#allocation3 + $0x68] sm:$0xff]
      %v11658 = vld [vmem:[#allocation3 + $0x70] sm:$0xff]
      %v11659 = vld [vmem:[#allocation3 + $0x78] sm:$0xff]
      %v11660 = vld [vmem:[#allocation3 + $0x80] sm:$0xff]
      %v11661 = vld [vmem:[#allocation3 + $0x88] sm:$0xff]
      %v11662 = vld [vmem:[#allocation3 + $0x90] sm:$0xff]
      %v11663 = vld [vmem:[#allocation3 + $0x98] sm:$0xff]
      %v11664 = vld [vmem:[#allocation3 + $0xa0] sm:$0xff]
      %v11665 = vld [vmem:[#allocation3 + $0xa8] sm:$0xff]
      %v11666 = vld [vmem:[#allocation3 + $0xb0] sm:$0xff]
      %v11667 = vld [vmem:[#allocation3 + $0xb8] sm:$0xff]
      %v11668 = vld [vmem:[#allocation3 + $0xc0] sm:$0xff]
      %v11669 = vld [vmem:[#allocation3 + $0xc8] sm:$0xff]
      %v11670 = vld [vmem:[#allocation3 + $0xd0] sm:$0xff]
      %v11671 = vld [vmem:[#allocation3 + $0xd8] sm:$0xff]
      %v11672 = vld [vmem:[#allocation3 + $0xe0] sm:$0xff]
      %v11673 = vld [vmem:[#allocation3 + $0xe8] sm:$0xff]
      %v11674 = vld [vmem:[#allocation3 + $0xf0] sm:$0xff]
      %v11675 = vld [vmem:[#allocation3 + $0xf8] sm:$0xff]
      %v11676 = vadd.f32 %v11644, %v11565
      %v11677 = vadd.f32 %v11645, %v11567
      %v11678 = vadd.f32 %v11646, %v11570
      %v11679 = vadd.f32 %v11647, %v11572
      %v11680 = vadd.f32 %v11648, %v11575
      %v11681 = vadd.f32 %v11649, %v11577
      %v11682 = vadd.f32 %v11650, %v11580
      %v11683 = vadd.f32 %v11651, %v11582
      %v11684 = vadd.f32 %v11652, %v11585
      %v11685 = vadd.f32 %v11653, %v11587
      %v11686 = vadd.f32 %v11654, %v11590
      %v11687 = vadd.f32 %v11655, %v11592
      %v11688 = vadd.f32 %v11656, %v11595
      %v11689 = vadd.f32 %v11657, %v11597
      %v11690 = vadd.f32 %v11658, %v11600
      %v11691 = vadd.f32 %v11659, %v11602
      %v11692 = vadd.f32 %v11660, %v11605
      %v11693 = vadd.f32 %v11661, %v11607
      %v11694 = vadd.f32 %v11662, %v11610
      %v11695 = vadd.f32 %v11663, %v11612
      %v11696 = vadd.f32 %v11664, %v11615
      %v11697 = vadd.f32 %v11665, %v11617
      %v11698 = vadd.f32 %v11666, %v11620
      %v11699 = vadd.f32 %v11667, %v11622
      %v11700 = vadd.f32 %v11668, %v11625
      %v11701 = vadd.f32 %v11669, %v11627
      %v11702 = vadd.f32 %v11670, %v11630
      %v11703 = vadd.f32 %v11671, %v11632
      %v11704 = vadd.f32 %v11672, %v11635
      %v11705 = vadd.f32 %v11673, %v11637
      %v11706 = vadd.f32 %v11674, %v11640
      %v11707 = vadd.f32 %v11675, %v11642
      %11708 = vst [vmem:[#allocation3] sm:$0xff] %v11676
      %11709 = vst [vmem:[#allocation3 + $0x8] sm:$0xff] %v11677
      %11710 = vst [vmem:[#allocation3 + $0x10] sm:$0xff] %v11678
      %11711 = vst [vmem:[#allocation3 + $0x18] sm:$0xff] %v11679
      %11712 = vst [vmem:[#allocation3 + $0x20] sm:$0xff] %v11680
      %11713 = vst [vmem:[#allocation3 + $0x28] sm:$0xff] %v11681
      %11714 = vst [vmem:[#allocation3 + $0x30] sm:$0xff] %v11682
      %11715 = vst [vmem:[#allocation3 + $0x38] sm:$0xff] %v11683
      %11716 = vst [vmem:[#allocation3 + $0x40] sm:$0xff] %v11684
      %11717 = vst [vmem:[#allocation3 + $0x48] sm:$0xff] %v11685
      %11718 = vst [vmem:[#allocation3 + $0x50] sm:$0xff] %v11686
      %11719 = vst [vmem:[#allocation3 + $0x58] sm:$0xff] %v11687
      %11720 = vst [vmem:[#allocation3 + $0x60] sm:$0xff] %v11688
      %11721 = vst [vmem:[#allocation3 + $0x68] sm:$0xff] %v11689
      %11722 = vst [vmem:[#allocation3 + $0x70] sm:$0xff] %v11690
      %11723 = vst [vmem:[#allocation3 + $0x78] sm:$0xff] %v11691
      %11724 = vst [vmem:[#allocation3 + $0x80] sm:$0xff] %v11692
      %11725 = vst [vmem:[#allocation3 + $0x88] sm:$0xff] %v11693
      %11726 = vst [vmem:[#allocation3 + $0x90] sm:$0xff] %v11694
      %11727 = vst [vmem:[#allocation3 + $0x98] sm:$0xff] %v11695
      %11728 = vst [vmem:[#allocation3 + $0xa0] sm:$0xff] %v11696
      %11729 = vst [vmem:[#allocation3 + $0xa8] sm:$0xff] %v11697
      %11730 = vst [vmem:[#allocation3 + $0xb0] sm:$0xff] %v11698
      %11731 = vst [vmem:[#allocation3 + $0xb8] sm:$0xff] %v11699
      %11732 = vst [vmem:[#allocation3 + $0xc0] sm:$0xff] %v11700
      %11733 = vst [vmem:[#allocation3 + $0xc8] sm:$0xff] %v11701
      %11734 = vst [vmem:[#allocation3 + $0xd0] sm:$0xff] %v11702
      %11735 = vst [vmem:[#allocation3 + $0xd8] sm:$0xff] %v11703
      %11736 = vst [vmem:[#allocation3 + $0xe0] sm:$0xff] %v11704
      %11737 = vst [vmem:[#allocation3 + $0xe8] sm:$0xff] %v11705
      %11738 = vst [vmem:[#allocation3 + $0xf0] sm:$0xff] %v11706
      %11739 = vst [vmem:[#allocation3 + $0xf8] sm:$0xff] %v11707
      %v11740 = vld [vmem:[#allocation3] sm:$0xff]
      %v11741 = vld [vmem:[#allocation3 + $0x8] sm:$0xff]
      %v11742 = vld [vmem:[#allocation3 + $0x10] sm:$0xff]
      %v11743 = vld [vmem:[#allocation3 + $0x18] sm:$0xff]
      %v11744 = vld [vmem:[#allocation3 + $0x20] sm:$0xff]
      %v11745 = vld [vmem:[#allocation3 + $0x28] sm:$0xff]
      %v11746 = vld [vmem:[#allocation3 + $0x30] sm:$0xff]
      %v11747 = vld [vmem:[#allocation3 + $0x38] sm:$0xff]
      %v11748 = vld [vmem:[#allocation3 + $0x40] sm:$0xff]
      %v11749 = vld [vmem:[#allocation3 + $0x48] sm:$0xff]
      %v11750 = vld [vmem:[#allocation3 + $0x50] sm:$0xff]
      %v11751 = vld [vmem:[#allocation3 + $0x58] sm:$0xff]
      %v11752 = vld [vmem:[#allocation3 + $0x60] sm:$0xff]
      %v11753 = vld [vmem:[#allocation3 + $0x68] sm:$0xff]
      %v11754 = vld [vmem:[#allocation3 + $0x70] sm:$0xff]
      %v11755 = vld [vmem:[#allocation3 + $0x78] sm:$0xff]
      %v11756 = vld [vmem:[#allocation3 + $0x80] sm:$0xff]
      %v11757 = vld [vmem:[#allocation3 + $0x88] sm:$0xff]
      %v11758 = vld [vmem:[#allocation3 + $0x90] sm:$0xff]
      %v11759 = vld [vmem:[#allocation3 + $0x98] sm:$0xff]
      %v11760 = vld [vmem:[#allocation3 + $0xa0] sm:$0xff]
      %v11761 = vld [vmem:[#allocation3 + $0xa8] sm:$0xff]
      %v11762 = vld [vmem:[#allocation3 + $0xb0] sm:$0xff]
      %v11763 = vld [vmem:[#allocation3 + $0xb8] sm:$0xff]
      %v11764 = vld [vmem:[#allocation3 + $0xc0] sm:$0xff]
      %v11765 = vld [vmem:[#allocation3 + $0xc8] sm:$0xff]
      %v11766 = vld [vmem:[#allocation3 + $0xd0] sm:$0xff]
      %v11767 = vld [vmem:[#allocation3 + $0xd8] sm:$0xff]
      %v11768 = vld [vmem:[#allocation3 + $0xe0] sm:$0xff]
      %v11769 = vld [vmem:[#allocation3 + $0xe8] sm:$0xff]
      %v11770 = vld [vmem:[#allocation3 + $0xf0] sm:$0xff]
      %v11771 = vld [vmem:[#allocation3 + $0xf8] sm:$0xff]
      %v11772 = vld [vmem:[%s4] sm:$0x1]
      %v11774 = vperm.slane %v11772, 0
      %v11776 = vadd.f32 %v11740, %v11774
      %v11777 = vadd.f32 %v11741, %v11774
      %v11778 = vadd.f32 %v11742, %v11774
      %v11779 = vadd.f32 %v11743, %v11774
      %v11780 = vadd.f32 %v11744, %v11774
      %v11781 = vadd.f32 %v11745, %v11774
      %v11782 = vadd.f32 %v11746, %v11774
      %v11783 = vadd.f32 %v11747, %v11774
      %v11784 = vadd.f32 %v11748, %v11774
      %v11785 = vadd.f32 %v11749, %v11774
      %v11786 = vadd.f32 %v11750, %v11774
      %v11787 = vadd.f32 %v11751, %v11774
      %v11788 = vadd.f32 %v11752, %v11774
      %v11789 = vadd.f32 %v11753, %v11774
      %v11790 = vadd.f32 %v11754, %v11774
      %v11791 = vadd.f32 %v11755, %v11774
      %v11792 = vadd.f32 %v11756, %v11774
      %v11793 = vadd.f32 %v11757, %v11774
      %v11794 = vadd.f32 %v11758, %v11774
      %v11795 = vadd.f32 %v11759, %v11774
      %v11796 = vadd.f32 %v11760, %v11774
      %v11797 = vadd.f32 %v11761, %v11774
      %v11798 = vadd.f32 %v11762, %v11774
      %v11799 = vadd.f32 %v11763, %v11774
      %v11800 = vadd.f32 %v11764, %v11774
      %v11801 = vadd.f32 %v11765, %v11774
      %v11802 = vadd.f32 %v11766, %v11774
      %v11803 = vadd.f32 %v11767, %v11774
      %v11804 = vadd.f32 %v11768, %v11774
      %v11805 = vadd.f32 %v11769, %v11774
      %v11806 = vadd.f32 %v11770, %v11774
      %v11807 = vadd.f32 %v11771, %v11774
      %v11808 = vadd.f32 %v11776, %v11777
      %v11809 = vadd.f32 %v11808, %v11778
      %v11810 = vadd.f32 %v11809, %v11779
      %v11811 = vadd.f32 %v11810, %v11780
      %v11812 = vadd.f32 %v11811, %v11781
      %v11813 = vadd.f32 %v11812, %v11782
      %v11814 = vadd.f32 %v11813, %v11783
      %v11815 = vadd.f32 %v11814, %v11784
      %v11816 = vadd.f32 %v11815, %v11785
      %v11817 = vadd.f32 %v11816, %v11786
      %v11818 = vadd.f32 %v11817, %v11787
      %v11819 = vadd.f32 %v11818, %v11788
      %v11820 = vadd.f32 %v11819, %v11789
      %v11821 = vadd.f32 %v11820, %v11790
      %v11822 = vadd.f32 %v11821, %v11791
      %v11823 = vadd.f32 %v11822, %v11792
      %v11824 = vadd.f32 %v11823, %v11793
      %v11825 = vadd.f32 %v11824, %v11794
      %v11826 = vadd.f32 %v11825, %v11795
      %v11827 = vadd.f32 %v11826, %v11796
      %v11828 = vadd.f32 %v11827, %v11797
      %v11829 = vadd.f32 %v11828, %v11798
      %v11830 = vadd.f32 %v11829, %v11799
      %v11831 = vadd.f32 %v11830, %v11800
      %v11832 = vadd.f32 %v11831, %v11801
      %v11833 = vadd.f32 %v11832, %v11802
      %v11834 = vadd.f32 %v11833, %v11803
      %v11835 = vadd.f32 %v11834, %v11804
      %v11836 = vadd.f32 %v11835, %v11805
      %v11837 = vadd.f32 %v11836, %v11806
      %v11838 = vadd.f32 %v11837, %v11807
      %v11839 = vrot.slane %v11838, 4
      %v11840 = vadd.f32 %v11838, %v11839
      %v11841 = vrot.slane %v11840, 2
      %v11842 = vadd.f32 %v11840, %v11841
      %v11843 = vrot.slane %v11842, 1
      %v11844 = vadd.f32 %v11842, %v11843
      %v11845 = vmul.f32 %v11844, %v6003
      %v11846 = vmul.f32 %v11776, %v11776
      %v11847 = vmul.f32 %v11777, %v11777
      %v11848 = vmul.f32 %v11778, %v11778
      %v11849 = vmul.f32 %v11779, %v11779
      %v11850 = vmul.f32 %v11780, %v11780
      %v11851 = vmul.f32 %v11781, %v11781
      %v11852 = vmul.f32 %v11782, %v11782
      %v11853 = vmul.f32 %v11783, %v11783
      %v11854 = vmul.f32 %v11784, %v11784
      %v11855 = vmul.f32 %v11785, %v11785
      %v11856 = vmul.f32 %v11786, %v11786
      %v11857 = vmul.f32 %v11787, %v11787
      %v11858 = vmul.f32 %v11788, %v11788
      %v11859 = vmul.f32 %v11789, %v11789
      %v11860 = vmul.f32 %v11790, %v11790
      %v11861 = vmul.f32 %v11791, %v11791
      %v11862 = vmul.f32 %v11792, %v11792
      %v11863 = vmul.f32 %v11793, %v11793
      %v11864 = vmul.f32 %v11794, %v11794
      %v11865 = vmul.f32 %v11795, %v11795
      %v11866 = vmul.f32 %v11796, %v11796
      %v11867 = vmul.f32 %v11797, %v11797
      %v11868 = vmul.f32 %v11798, %v11798
      %v11869 = vmul.f32 %v11799, %v11799
      %v11870 = vmul.f32 %v11800, %v11800
      %v11871 = vmul.f32 %v11801, %v11801
      %v11872 = vmul.f32 %v11802, %v11802
      %v11873 = vmul.f32 %v11803, %v11803
      %v11874 = vmul.f32 %v11804, %v11804
      %v11875 = vmul.f32 %v11805, %v11805
      %v11876 = vmul.f32 %v11806, %v11806
      %v11877 = vmul.f32 %v11807, %v11807
      %v11878 = vadd.f32 %v11846, %v11847
      %v11879 = vadd.f32 %v11878, %v11848
      %v11880 = vadd.f32 %v11879, %v11849
      %v11881 = vadd.f32 %v11880, %v11850
      %v11882 = vadd.f32 %v11881, %v11851
      %v11883 = vadd.f32 %v11882, %v11852
      %v11884 = vadd.f32 %v11883, %v11853
      %v11885 = vadd.f32 %v11884, %v11854
      %v11886 = vadd.f32 %v11885, %v11855
      %v11887 = vadd.f32 %v11886, %v11856
      %v11888 = vadd.f32 %v11887, %v11857
      %v11889 = vadd.f32 %v11888, %v11858
      %v11890 = vadd.f32 %v11889, %v11859
      %v11891 = vadd.f32 %v11890, %v11860
      %v11892 = vadd.f32 %v11891, %v11861
      %v11893 = vadd.f32 %v11892, %v11862
      %v11894 = vadd.f32 %v11893, %v11863
      %v11895 = vadd.f32 %v11894, %v11864
      %v11896 = vadd.f32 %v11895, %v11865
      %v11897 = vadd.f32 %v11896, %v11866
      %v11898 = vadd.f32 %v11897, %v11867
      %v11899 = vadd.f32 %v11898, %v11868
      %v11900 = vadd.f32 %v11899, %v11869
      %v11901 = vadd.f32 %v11900, %v11870
      %v11902 = vadd.f32 %v11901, %v11871
      %v11903 = vadd.f32 %v11902, %v11872
      %v11904 = vadd.f32 %v11903, %v11873
      %v11905 = vadd.f32 %v11904, %v11874
      %v11906 = vadd.f32 %v11905, %v11875
      %v11907 = vadd.f32 %v11906, %v11876
      %v11908 = vadd.f32 %v11907, %v11877
      %v11909 = vrot.slane %v11908, 4
      %v11910 = vadd.f32 %v11908, %v11909
      %v11911 = vrot.slane %v11910, 2
      %v11912 = vadd.f32 %v11910, %v11911
      %v11913 = vrot.slane %v11912, 1
      %v11914 = vadd.f32 %v11912, %v11913
      %v11915 = vmul.f32 %v11914, %v6003
      %v11916 = vmul.f32 %v11845, %v11845
      %v11917 = vsub.f32 %v11915, %v11916
      %v11918 = vmax.f32 %v11917, 0.0
      %v11919 = vsub.f32 %v11776, %v11845
      %v11920 = vsub.f32 %v11777, %v11845
      %v11921 = vsub.f32 %v11778, %v11845
      %v11922 = vsub.f32 %v11779, %v11845
      %v11923 = vsub.f32 %v11780, %v11845
      %v11924 = vsub.f32 %v11781, %v11845
      %v11925 = vsub.f32 %v11782, %v11845
      %v11926 = vsub.f32 %v11783, %v11845
      %v11927 = vsub.f32 %v11784, %v11845
      %v11928 = vsub.f32 %v11785, %v11845
      %v11929 = vsub.f32 %v11786, %v11845
      %v11930 = vsub.f32 %v11787, %v11845
      %v11931 = vsub.f32 %v11788, %v11845
      %v11932 = vsub.f32 %v11789, %v11845
      %v11933 = vsub.f32 %v11790, %v11845
      %v11934 = vsub.f32 %v11791, %v11845
      %v11935 = vsub.f32 %v11792, %v11845
      %v11936 = vsub.f32 %v11793, %v11845
      %v11937 = vsub.f32 %v11794, %v11845
      %v11938 = vsub.f32 %v11795, %v11845
      %v11939 = vsub.f32 %v11796, %v11845
      %v11940 = vsub.f32 %v11797, %v11845
      %v11941 = vsub.f32 %v11798, %v11845
      %v11942 = vsub.f32 %v11799, %v11845
      %v11943 = vsub.f32 %v11800, %v11845
      %v11944 = vsub.f32 %v11801, %v11845
      %v11945 = vsub.f32 %v11802, %v11845
      %v11946 = vsub.f32 %v11803, %v11845
      %v11947 = vsub.f32 %v11804, %v11845
      %v11948 = vsub.f32 %v11805, %v11845
      %v11949 = vsub.f32 %v11806, %v11845
      %v11950 = vsub.f32 %v11807, %v11845
      %v11951 = vadd.f32 %v11918, 1e-05
      %v11952 = vrsqrt.pop %v11951
      %v11953 = vmul.f32 %v11952, %v11951
      %v11954 = vmul.f32 %v11953, %v11952
      %v11955 = vmul.f32 0.5, %v11954
      %v11956 = vsub.f32 1.5, %v11955
      %v11957 = vmul.f32 %v11952, %v11956
      %vm11958 = vweird.f32 %v11951
      %vm11959 = vweird.f32 %v11952
      %vm11960 = vmor %vm11958, %vm11959
      %v11961 = vsel %vm11960, %v11952, %v11957
      %v11962 = vmul.f32 %v11919, %v11961
      %v11963 = vmul.f32 %v11920, %v11961
      %v11964 = vmul.f32 %v11921, %v11961
      %v11965 = vmul.f32 %v11922, %v11961
      %v11966 = vmul.f32 %v11923, %v11961
      %v11967 = vmul.f32 %v11924, %v11961
      %v11968 = vmul.f32 %v11925, %v11961
      %v11969 = vmul.f32 %v11926, %v11961
      %v11970 = vmul.f32 %v11927, %v11961
      %v11971 = vmul.f32 %v11928, %v11961
      %v11972 = vmul.f32 %v11929, %v11961
      %v11973 = vmul.f32 %v11930, %v11961
      %v11974 = vmul.f32 %v11931, %v11961
      %v11975 = vmul.f32 %v11932, %v11961
      %v11976 = vmul.f32 %v11933, %v11961
      %v11977 = vmul.f32 %v11934, %v11961
      %v11978 = vmul.f32 %v11935, %v11961
      %v11979 = vmul.f32 %v11936, %v11961
      %v11980 = vmul.f32 %v11937, %v11961
      %v11981 = vmul.f32 %v11938, %v11961
      %v11982 = vmul.f32 %v11939, %v11961
      %v11983 = vmul.f32 %v11940, %v11961
      %v11984 = vmul.f32 %v11941, %v11961
      %v11985 = vmul.f32 %v11942, %v11961
      %v11986 = vmul.f32 %v11943, %v11961
      %v11987 = vmul.f32 %v11944, %v11961
      %v11988 = vmul.f32 %v11945, %v11961
      %v11989 = vmul.f32 %v11946, %v11961
      %v11990 = vmul.f32 %v11947, %v11961
      %v11991 = vmul.f32 %v11948, %v11961
      %v11992 = vmul.f32 %v11949, %v11961
      %v11993 = vmul.f32 %v11950, %v11961
      %v11994 = vld [vmem:[%s219] sm:$0xff]
      %v11995 = vld [vmem:[%s219 + $0x8] sm:$0xff]
      %v11996 = vld [vmem:[%s219 + $0x10] sm:$0xff]
      %v11997 = vld [vmem:[%s219 + $0x18] sm:$0xff]
      %v11998 = vld [vmem:[%s219 + $0x20] sm:$0xff]
      %v11999 = vld [vmem:[%s219 + $0x28] sm:$0xff]
      %v12000 = vld [vmem:[%s219 + $0x30] sm:$0xff]
      %v12001 = vld [vmem:[%s219 + $0x38] sm:$0xff]
      %v12002 = vld [vmem:[%s219 + $0x40] sm:$0xff]
      %v12003 = vld [vmem:[%s219 + $0x48] sm:$0xff]
      %v12004 = vld [vmem:[%s219 + $0x50] sm:$0xff]
      %v12005 = vld [vmem:[%s219 + $0x58] sm:$0xff]
      %v12006 = vld [vmem:[%s219 + $0x60] sm:$0xff]
      %v12007 = vld [vmem:[%s219 + $0x68] sm:$0xff]
      %v12008 = vld [vmem:[%s219 + $0x70] sm:$0xff]
      %v12009 = vld [vmem:[%s219 + $0x78] sm:$0xff]
      %v12010 = vld [vmem:[%s219 + $0x80] sm:$0xff]
      %v12011 = vld [vmem:[%s219 + $0x88] sm:$0xff]
      %v12012 = vld [vmem:[%s219 + $0x90] sm:$0xff]
      %v12013 = vld [vmem:[%s219 + $0x98] sm:$0xff]
      %v12014 = vld [vmem:[%s219 + $0xa0] sm:$0xff]
      %v12015 = vld [vmem:[%s219 + $0xa8] sm:$0xff]
      %v12016 = vld [vmem:[%s219 + $0xb0] sm:$0xff]
      %v12017 = vld [vmem:[%s219 + $0xb8] sm:$0xff]
      %v12018 = vld [vmem:[%s219 + $0xc0] sm:$0xff]
      %v12019 = vld [vmem:[%s219 + $0xc8] sm:$0xff]
      %v12020 = vld [vmem:[%s219 + $0xd0] sm:$0xff]
      %v12021 = vld [vmem:[%s219 + $0xd8] sm:$0xff]
      %v12022 = vld [vmem:[%s219 + $0xe0] sm:$0xff]
      %v12023 = vld [vmem:[%s219 + $0xe8] sm:$0xff]
      %v12024 = vld [vmem:[%s219 + $0xf0] sm:$0xff]
      %v12025 = vld [vmem:[%s219 + $0xf8] sm:$0xff]
      %v12026 = vadd.f32 %v11994, %v11962
      %v12027 = vadd.f32 %v11995, %v11963
      %v12028 = vadd.f32 %v11996, %v11964
      %v12029 = vadd.f32 %v11997, %v11965
      %v12030 = vadd.f32 %v11998, %v11966
      %v12031 = vadd.f32 %v11999, %v11967
      %v12032 = vadd.f32 %v12000, %v11968
      %v12033 = vadd.f32 %v12001, %v11969
      %v12034 = vadd.f32 %v12002, %v11970
      %v12035 = vadd.f32 %v12003, %v11971
      %v12036 = vadd.f32 %v12004, %v11972
      %v12037 = vadd.f32 %v12005, %v11973
      %v12038 = vadd.f32 %v12006, %v11974
      %v12039 = vadd.f32 %v12007, %v11975
      %v12040 = vadd.f32 %v12008, %v11976
      %v12041 = vadd.f32 %v12009, %v11977
      %v12042 = vadd.f32 %v12010, %v11978
      %v12043 = vadd.f32 %v12011, %v11979
      %v12044 = vadd.f32 %v12012, %v11980
      %v12045 = vadd.f32 %v12013, %v11981
      %v12046 = vadd.f32 %v12014, %v11982
      %v12047 = vadd.f32 %v12015, %v11983
      %v12048 = vadd.f32 %v12016, %v11984
      %v12049 = vadd.f32 %v12017, %v11985
      %v12050 = vadd.f32 %v12018, %v11986
      %v12051 = vadd.f32 %v12019, %v11987
      %v12052 = vadd.f32 %v12020, %v11988
      %v12053 = vadd.f32 %v12021, %v11989
      %v12054 = vadd.f32 %v12022, %v11990
      %v12055 = vadd.f32 %v12023, %v11991
      %v12056 = vadd.f32 %v12024, %v11992
      %v12057 = vadd.f32 %v12025, %v11993
      %12058 = vst [vmem:[%s224] sm:$0xff] %v12026
      %12059 = vst [vmem:[%s224 + $0x8] sm:$0xff] %v12027
      %12060 = vst [vmem:[%s224 + $0x10] sm:$0xff] %v12028
      %12061 = vst [vmem:[%s224 + $0x18] sm:$0xff] %v12029
      %12062 = vst [vmem:[%s224 + $0x20] sm:$0xff] %v12030
      %12063 = vst [vmem:[%s224 + $0x28] sm:$0xff] %v12031
      %12064 = vst [vmem:[%s224 + $0x30] sm:$0xff] %v12032
      %12065 = vst [vmem:[%s224 + $0x38] sm:$0xff] %v12033
      %12066 = vst [vmem:[%s224 + $0x40] sm:$0xff] %v12034
      %12067 = vst [vmem:[%s224 + $0x48] sm:$0xff] %v12035
      %12068 = vst [vmem:[%s224 + $0x50] sm:$0xff] %v12036
      %12069 = vst [vmem:[%s224 + $0x58] sm:$0xff] %v12037
      %12070 = vst [vmem:[%s224 + $0x60] sm:$0xff] %v12038
      %12071 = vst [vmem:[%s224 + $0x68] sm:$0xff] %v12039
      %12072 = vst [vmem:[%s224 + $0x70] sm:$0xff] %v12040
      %12073 = vst [vmem:[%s224 + $0x78] sm:$0xff] %v12041
      %12074 = vst [vmem:[%s224 + $0x80] sm:$0xff] %v12042
      %12075 = vst [vmem:[%s224 + $0x88] sm:$0xff] %v12043
      %12076 = vst [vmem:[%s224 + $0x90] sm:$0xff] %v12044
      %12077 = vst [vmem:[%s224 + $0x98] sm:$0xff] %v12045
      %12078 = vst [vmem:[%s224 + $0xa0] sm:$0xff] %v12046
      %12079 = vst [vmem:[%s224 + $0xa8] sm:$0xff] %v12047
      %12080 = vst [vmem:[%s224 + $0xb0] sm:$0xff] %v12048
      %12081 = vst [vmem:[%s224 + $0xb8] sm:$0xff] %v12049
      %12082 = vst [vmem:[%s224 + $0xc0] sm:$0xff] %v12050
      %12083 = vst [vmem:[%s224 + $0xc8] sm:$0xff] %v12051
      %12084 = vst [vmem:[%s224 + $0xd0] sm:$0xff] %v12052
      %12085 = vst [vmem:[%s224 + $0xd8] sm:$0xff] %v12053
      %12086 = vst [vmem:[%s224 + $0xe0] sm:$0xff] %v12054
      %12087 = vst [vmem:[%s224 + $0xe8] sm:$0xff] %v12055
      %12088 = vst [vmem:[%s224 + $0xf0] sm:$0xff] %v12056
      %12089 = vst [vmem:[%s224 + $0xf8] sm:$0xff] %v12057
      %p12090 = scmp.lt.s32.totalorder %s16, 1
      %s12091 = scalar_select %p12090, %s16, 1
      %s12092 = smul.addr %s12091, 32
      %s12093 = smul.addr %s12092, 8
      %s12094 = scalar_lea.vmem %s5, %s12093
      // Predicated region
      $region41: #{residual_block_pallas.1} parent=39 // pred_check
        %p12095 = pneg %p144
      $region42: #{residual_block_pallas.1} parent=39 // pred_check_branch
        %12097 = sbr.rel (%p12095) target = $region44
      $region43: #{residual_block_pallas.1} parent=39 // pred_region
        _
      $region44: #{residual_block_pallas.1} parent=39 // pred_fallthru
        _
    $region40: #{residual_block_pallas.1} parent=5 // pred_fallthru
      _
    %p12098 = scmp.le.s32.totalorder 2, %s11
    // Predicated region
    $region45: #{residual_block_pallas.1} parent=5 // pred_check
      %p12099 = pneg %p12098
    $region46: #{residual_block_pallas.1} parent=5 // pred_check_branch
      %12101 = sbr.rel (%p12099) target = $region48
    $region47: #{residual_block_pallas.1} parent=5 // pred_region
      %s12102 = ssub.s32 %s11, 2
      // Predicated region
      $region49: #{residual_block_pallas.1} parent=47 // pred_check
        %p12103 = pneg %p150
      $region50: #{residual_block_pallas.1} parent=47 // pred_check_branch
        %12105 = sbr.rel (%p12103) target = $region52
      $region51: #{residual_block_pallas.1} parent=47 // pred_region
        %p12106 = scmp.lt.s32.totalorder %s17, 1
        %s12107 = scalar_select %p12106, %s17, 1
        %s12108 = smul.addr %s12107, 32
        %s12109 = smul.addr %s12108, 8
        %s12110 = scalar_lea.vmem %s5, %s12109
      $region52: #{residual_block_pallas.1} parent=47 // pred_fallthru
        _
    $region48: #{residual_block_pallas.1} parent=5 // pred_fallthru
      _
  $region6: #{residual_block_pallas.1} parent=0 // loop_footer
    %s15 = sadd.s32 1, %s11
  $region7: #{residual_block_pallas.1} parent=0 // loop_footer_branch
    %10 = sbr.rel target = $region3
  $region8: #{residual_block_pallas.1} parent=0 // loop_exit
    _

</llo_original>
